<compile_context>
chip_gen: v7x
topology: tpu7x:2x2x1
jax: 0.10.0
libtpu: 0.0.40
codegen_flags: <defaults>
</compile_context>

<pallas_src>
import functools

import jax
import jax.numpy as jnp
from jax.experimental import pallas as pl
from jax.experimental.pallas import tpu as pltpu


# Set True on v7x (64 MiB VMEM/TC) to single-buffer the grid-constant weight blocks.
# TODO(synk): add K-axis reduction-grid tiling of wqkv/w1/w2 for large D / d_ff.
WEIGHT_SINGLE_BUFFER = False


# ----------------------------- kernels ------------------------------------


def _layernorm(x, gamma, beta, eps=1e-5):
    # f32 statistics; rsqrt goes to the EUP slot.
    mean = jnp.mean(x, axis=-1, keepdims=True)
    var = jnp.mean(jnp.square(x - mean), axis=-1, keepdims=True)
    return (x - mean) * jax.lax.rsqrt(var + eps) * gamma + beta


def decoder_layer_kernel(num_heads, compute_dtype,
                         x_ref, wqkv_ref, bqkv_ref, wo_ref, bo_ref,
                         g1_ref, be1_ref, w1_ref, bf1_ref, w2_ref, bf2_ref,
                         g2_ref, be2_ref, o_ref, qkv_scr, ctx_scr):
    b_blk, T, D = x_ref.shape
    N = b_blk * T
    hd = D // num_heads
    scale = 1.0 / (hd ** 0.5)
    exact_softmax = jnp.dtype(compute_dtype) == jnp.dtype(jnp.float32)

    x = x_ref[...]                         # (b_blk, T, D), compute dtype
    xf = x.reshape(N, D)                   # flatten tokens -> M = b_blk*T rows for MXU

    # --- fused QKV projection: one (N, D) @ (D, 3D) matmul, f32 accumulation ---
    # Result is cast once into a compute-dtype VMEM scratch so the f32 (N, 3D) value
    # dies immediately (no spilled f32 copy, no three .astype copies of q/k/v).
    qkv_scr[...] = (jnp.dot(xf, wqkv_ref[...], preferred_element_type=jnp.float32)
                    + bqkv_ref[...]).astype(compute_dtype)

    # additive causal bias built once per block (large finite negative, no -inf footgun)
    row = jax.lax.broadcasted_iota(jnp.int32, (T, T), 0)
    col = jax.lax.broadcasted_iota(jnp.int32, (T, T), 1)
    causal_bias = jnp.where(col <= row, 0.0, -1e30).astype(jnp.float32)[None, :, :]

    # --- masked multi-head attention ---
    # Each head's context vectors are written into their lane slot of ctx_scr; the
    # output projection then runs as ONE (N, D) @ (D, D) matmul (full K=D contraction),
    # replacing the old per-head K=hd fold + per-head f32 accumulator RMW.
    # TODO(synk): for long T, switch to flash-style KV tiling (online softmax) so the
    # (T, T) score block does not have to live in VMEM.
    for h in range(num_heads):             # static Python loop (unrolled)
        lo = h * hd
        qh = qkv_scr[:, 0 * D + lo:0 * D + lo + hd].reshape(b_blk, T, hd)
        kh = qkv_scr[:, 1 * D + lo:1 * D + lo + hd].reshape(b_blk, T, hd)
        vh = qkv_scr[:, 2 * D + lo:2 * D + lo + hd].reshape(b_blk, T, hd)
        # batched over sequences (single leading batch dim)
        s = jnp.einsum('bqd,bkd->bqk', qh, kh,
                       preferred_element_type=jnp.float32) * scale + causal_bias
        m = jnp.max(s, axis=-1, keepdims=True)
        p = jnp.exp(s - m)
        l = jnp.sum(p, axis=-1, keepdims=True)
        inv_l = (1.0 / l) if exact_softmax else pl.reciprocal(l, approx=True)
        ho = jnp.einsum('bqk,bkd->bqd', p.astype(compute_dtype), vh,
                        preferred_element_type=jnp.float32)
        ho = ho * inv_l                     # normalize after PV (fewer elements)
        ctx_scr[:, lo:lo + hd] = ho.reshape(N, hd).astype(compute_dtype)

    # single output projection, full K=D contraction, f32 accumulation
    attn = jnp.dot(ctx_scr[...], wo_ref[...],
                   preferred_element_type=jnp.float32) + bo_ref[...]

    # --- residual + LayerNorm 1 (f32) ---
    h1 = _layernorm(xf.astype(jnp.float32) + attn, g1_ref[...], be1_ref[...])

    # --- feed-forward network on flattened tokens (elementwise stays f32) ---
    ff = jnp.dot(h1.astype(compute_dtype), w1_ref[...],
                 preferred_element_type=jnp.float32) + bf1_ref[...]
    ff = jnp.maximum(ff, 0.0)
    ff = jnp.dot(ff.astype(compute_dtype), w2_ref[...],
                 preferred_element_type=jnp.float32) + bf2_ref[...]

    # --- residual + LayerNorm 2 (f32) ---
    out = _layernorm(h1 + ff, g2_ref[...], be2_ref[...])
    o_ref[...] = out.reshape(b_blk, T, D).astype(o_ref.dtype)


def final_linear_kernel(x_ref, w_ref, b_ref, o_ref):
    o_ref[...] = (jnp.dot(x_ref[...], w_ref[...], preferred_element_type=jnp.float32)
                  + b_ref[...])


# ----------------------------- wrappers ------------------------------------


def _vmem_limit_bytes():
    # ~75% of physical VMEM: 48 MiB on v7x (64 MiB/TC), 96 MiB on v5e/v6e (128 MiB).
    cap = 64 * 1024 * 1024
    try:
        info = pltpu.get_tpu_info()
        cap = getattr(info, "vmem_capacity_bytes", cap) or cap
    except Exception:
        pass
    return int(cap * 3 // 4)


def _const_spec(shape):
    # whole-array block with a constant index_map (weight is resident; DMA'd once).
    idx = lambda *_: (0,) * len(shape)
    if WEIGHT_SINGLE_BUFFER:
        try:
            return pl.BlockSpec(shape, idx, pipeline_mode=pl.Buffered(buffer_count=1))
        except Exception:
            pass
    return pl.BlockSpec(shape, idx)


def _pick_batch_block(B, T, target_tokens=256, min_blocks=2):
    """Largest divisor of B with b_blk*T <= target_tokens, preferring >= min_blocks
    grid steps so BlockSpec double-buffering can overlap the activation DMA.

    Tuning notes: on v6e prefer 256-token blocks (min_blocks=1) to fill the 256-wide
    MXU; on v7x prefer min_blocks=4 (>= 2 steps per TensorCore)."""
    divisors = [d for d in range(1, B + 1) if B % d == 0]
    fits = [d for d in divisors if d * T <= max(target_tokens, T)]
    pipelined = [d for d in fits if B // d >= min_blocks]
    return max(pipelined) if pipelined else max(fits)


def run_decoder_layer(x, p, num_heads, compute_dtype=jnp.float32):
    B, T, D = x.shape
    d_ff = p["w1"].shape[1]
    cd = jnp.dtype(compute_dtype)
    b_blk = _pick_batch_block(B, T)
    n_blocks = B // b_blk
    N = b_blk * T

    def as_cd(w):  # no-op when params were pre-cast via prepare_params()
        return w if w.dtype == cd else w.astype(cd)

    wqkv, wo, w1, w2 = as_cd(p["wqkv"]), as_cd(p["wo"]), as_cd(p["w1"]), as_cd(p["w2"])

    in_specs = [
        pl.BlockSpec((b_blk, T, D), lambda b: (b, 0, 0)),   # activations per batch block
        _const_spec((D, 3 * D)), _const_spec((1, 3 * D)),    # qkv proj
        _const_spec((D, D)), _const_spec((1, D)),            # out proj
        _const_spec((1, D)), _const_spec((1, D)),            # LN1 gamma/beta
        _const_spec((D, d_ff)), _const_spec((1, d_ff)),      # ffn fc1
        _const_spec((d_ff, D)), _const_spec((1, D)),         # ffn fc2
        _const_spec((1, D)), _const_spec((1, D)),            # LN2 gamma/beta
    ]

    wsize = cd.itemsize
    flops = 2 * B * T * D * (4 * D + 2 * d_ff) + 4 * B * T * T * D
    # weights with constant index_maps are resident: counted ONCE, not per block
    bytes_accessed = (2 * B * T * D * wsize
                      + (3 * D * D + D * D + 2 * D * d_ff) * wsize
                      + (3 * D + 5 * D + 2 * d_ff) * 4)
    cost = pl.CostEstimate(flops=int(flops),
                           transcendentals=int(B * num_heads * T * T),
                           bytes_accessed=int(bytes_accessed))

    return pl.pallas_call(
        functools.partial(decoder_layer_kernel, num_heads, cd),
        out_shape=jax.ShapeDtypeStruct((B, T, D), cd),
        grid=(n_blocks,),
        in_specs=in_specs,
        out_specs=pl.BlockSpec((b_blk, T, D), lambda b: (b, 0, 0)),
        scratch_shapes=[pltpu.VMEM((N, 3 * D), cd),   # QKV parked in compute dtype
                        pltpu.VMEM((N, D), cd)],      # per-head context ("concat")
        compiler_params=pltpu.CompilerParams(
            dimension_semantics=("parallel",),
            vmem_limit_bytes=_vmem_limit_bytes()),
        cost_estimate=cost,
    )(x, wqkv, p["bqkv"], wo, p["bo"],
      p["g1"], p["be1"], w1, p["bf1"], w2, p["bf2"],
      p["g2"], p["be2"])


def run_final_linear(x, w, b, compute_dtype=jnp.float32):
    B, T, D = x.shape
    V = w.shape[1]
    cd = jnp.dtype(compute_dtype)
    NT = B * T

    xf = x.reshape(NT, D)                      # flatten tokens (free XLA reshape)
    xf = xf if xf.dtype == cd else xf.astype(cd)
    w = w if w.dtype == cd else w.astype(cd)

    # pad token/vocab axes to multiples of 128 so every block is lane/sublane aligned
    pad_nt = (-NT) % 128
    pad_v = (-V) % 128
    if pad_nt:
        xf = jnp.pad(xf, ((0, pad_nt), (0, 0)))
    if pad_v:
        w = jnp.pad(w, ((0, 0), (0, pad_v)))
        b = jnp.pad(b, ((0, 0), (0, pad_v)))
    NTp, Vp = NT + pad_nt, V + pad_v

    TM = max(t for t in (512, 256, 128) if NTp % t == 0)   # token tile (MXU M dim)
    TV = max(t for t in (512, 256, 128) if Vp % t == 0)    # vocab tile (lane-dense vst)

    wsize = cd.itemsize
    cost = pl.CostEstimate(
        flops=int(2 * NTp * D * Vp), transcendentals=0,
        bytes_accessed=int(NTp * D * wsize * (Vp // TV)    # x re-streamed per vocab tile
                           + D * Vp * wsize                # weight panel streamed ONCE
                           + NTp * Vp * 4))

    # vocab-outer / token-inner grid: the (D, TV) weight tile's block index is constant
    # across the inner token loop, so the full D x V weight is DMA'd exactly once.
    out = pl.pallas_call(
        final_linear_kernel,
        out_shape=jax.ShapeDtypeStruct((NTp, Vp), jnp.float32),
        grid=(Vp // TV, NTp // TM),
        in_specs=[
            pl.BlockSpec((TM, D), lambda j, i: (i, 0)),
            pl.BlockSpec((D, TV), lambda j, i: (0, j)),
            pl.BlockSpec((1, TV), lambda j, i: (0, j)),
        ],
        out_specs=pl.BlockSpec((TM, TV), lambda j, i: (i, j)),
        compiler_params=pltpu.CompilerParams(
            dimension_semantics=("parallel", "parallel"),
            vmem_limit_bytes=_vmem_limit_bytes()),
        cost_estimate=cost,
    )(xf, w, b)
    return out[:NT, :V].reshape(B, T, V)


def prepare_params(params, compute_dtype):
    """Cast the matmul weights to the compute dtype ONCE (outside the per-layer calls)
    so the f32 master weights are not re-read from HBM and re-cast on every forward.
    Biases / LayerNorm params / embeddings stay f32 (they feed f32 accumulators)."""
    cd = jnp.dtype(compute_dtype)
    out = dict(params)
    out["w_final"] = params["w_final"].astype(cd)
    out["layers"] = []
    for lp in params["layers"]:
        lp = dict(lp)
        for k in ("wqkv", "wo", "w1", "w2"):
            lp[k] = lp[k].astype(cd)
        out["layers"].append(lp)
    return out


def transformer_forward(token_ids, params, num_heads, compute_dtype=jnp.float32):
    # Token/positional embedding lookup (data-dependent gather) stays plain-JAX glue.
    B, T = token_ids.shape
    x = params["token_embed"][token_ids] + params["pos_embed"][:T][None, :, :]
    x = x.astype(compute_dtype)            # single activation cast per forward
    for layer_params in params["layers"]:
        x = run_decoder_layer(x, layer_params, num_heads, compute_dtype)
    return run_final_linear(x, params["w_final"], params["b_final"], compute_dtype)


# ----------------------- deterministic parameter init ----------------------


def init_params(key, d_model, d_ff, vocab_size, num_layers, max_seq_len):
    keys = iter(jax.random.split(key, 64))

    def rnd(shape, scale=0.02):
        return jax.random.normal(next(keys), shape, jnp.float32) * scale

    params = {
        "token_embed": rnd((vocab_size, d_model)),
        "pos_embed": rnd((max_seq_len, d_model)),
        "w_final": rnd((d_model, vocab_size)),
        "b_final": rnd((1, vocab_size)),
        "layers": [],
    }
    for _ in range(num_layers):
        params["layers"].append({
            "wqkv": rnd((d_model, 3 * d_model)),
            "bqkv": rnd((1, 3 * d_model)),
            "wo": rnd((d_model, d_model)),
            "bo": rnd((1, d_model)),
            "g1": jnp.ones((1, d_model), jnp.float32),
            "be1": jnp.zeros((1, d_model), jnp.float32),
            "w1": rnd((d_model, d_ff)),
            "bf1": rnd((1, d_ff)),
            "w2": rnd((d_ff, d_model)),
            "bf2": rnd((1, d_model)),
            "g2": jnp.ones((1, d_model), jnp.float32),
            "be2": jnp.zeros((1, d_model), jnp.float32),
        })
    return params


# --------------------------- pure-JAX reference -----------------------------


def reference_forward(token_ids, params, num_heads):
    B, T = token_ids.shape
    x = params["token_embed"][token_ids] + params["pos_embed"][:T][None, :, :]
    D = x.shape[-1]
    hd = D // num_heads

    def ln(v, g, b, eps=1e-5):
        m = jnp.mean(v, axis=-1, keepdims=True)
        var = jnp.mean((v - m) ** 2, axis=-1, keepdims=True)
        return (v - m) / jnp.sqrt(var + eps) * g + b

    for p in params["layers"]:
        qkv = x @ p["wqkv"] + p["bqkv"]
        q, k, v = jnp.split(qkv, 3, axis=-1)
        q = q.reshape(B, T, num_heads, hd).transpose(0, 2, 1, 3)
        k = k.reshape(B, T, num_heads, hd).transpose(0, 2, 1, 3)
        v = v.reshape(B, T, num_heads, hd).transpose(0, 2, 1, 3)
        s = (q @ k.transpose(0, 1, 3, 2)) / (hd ** 0.5)
        mask = jnp.tril(jnp.ones((T, T)))[None, None]
        s = jnp.where(mask == 0, -jnp.inf, s)
        w = jax.nn.softmax(s, axis=-1)
        a = (w @ v).transpose(0, 2, 1, 3).reshape(B, T, D)
        a = a @ p["wo"] + p["bo"]
        h1 = ln(x + a, p["g1"], p["be1"])
        ff = jnp.maximum(h1 @ p["w1"] + p["bf1"], 0.0) @ p["w2"] + p["bf2"]
        x = ln(h1 + ff, p["g2"], p["be2"])
    return x @ params["w_final"] + params["b_final"]


# --------------------------------- main -------------------------------------

if __name__ == "__main__":
    # TPU-friendly small shapes: D=128 lanes, B*T=256 tokens, V=256 (2 lane tiles).
    d_model, d_ff, num_heads = 128, 512, 4
    vocab_size, num_layers, max_seq_len = 256, 2, 64
    B, T = 8, 32

    key = jax.random.PRNGKey(0)
    pkey, dkey = jax.random.split(key)
    params = init_params(pkey, d_model, d_ff, vocab_size, num_layers, max_seq_len)
    token_ids = jax.random.randint(dkey, (B, T), 0, vocab_size, dtype=jnp.int32)

    ref = reference_forward(token_ids, params, num_heads)

    # f32 compute path (matches the PyTorch module's numerics; exact softmax norm).
    params_f32 = prepare_params(params, jnp.float32)
    logits = transformer_forward(token_ids, params_f32, num_heads, jnp.float32)
    logits = jax.block_until_ready(logits)
    assert logits.shape == (B, T, vocab_size)
    assert jnp.allclose(logits, ref, atol=2e-3, rtol=2e-3), "f32 mismatch vs JAX reference"

    # bf16 fast path (halved weight/activation DMA, MXU-rate matmuls, f32 accumulation;
    # LN / softmax statistics and all elementwise math stay in f32).
    params_bf16 = prepare_params(params, jnp.bfloat16)
    logits_bf16 = transformer_forward(token_ids, params_bf16, num_heads, jnp.bfloat16)
    logits_bf16 = jax.block_until_ready(logits_bf16)
    assert jnp.allclose(logits_bf16, ref, atol=3e-2, rtol=3e-2), "bf16 mismatch vs JAX reference"

    print("KERNEL_OK")
</pallas_src>

<mosaic_0001>
module attributes {stable_mosaic.version = 11 : i64} {
  func.func @decoder_layer_kernel(%arg0: i32, %arg1: memref<4x32x128xf32, #tpu.memory_space<vmem>>, %arg2: memref<128x384xf32, #tpu.memory_space<vmem>>, %arg3: memref<1x384xf32, #tpu.memory_space<vmem>>, %arg4: memref<128x128xf32, #tpu.memory_space<vmem>>, %arg5: memref<1x128xf32, #tpu.memory_space<vmem>>, %arg6: memref<1x128xf32, #tpu.memory_space<vmem>>, %arg7: memref<1x128xf32, #tpu.memory_space<vmem>>, %arg8: memref<128x512xf32, #tpu.memory_space<vmem>>, %arg9: memref<1x512xf32, #tpu.memory_space<vmem>>, %arg10: memref<512x128xf32, #tpu.memory_space<vmem>>, %arg11: memref<1x128xf32, #tpu.memory_space<vmem>>, %arg12: memref<1x128xf32, #tpu.memory_space<vmem>>, %arg13: memref<1x128xf32, #tpu.memory_space<vmem>>, %arg14: memref<4x32x128xf32, #tpu.memory_space<vmem>>, %arg15: memref<128x384xf32, #tpu.memory_space<vmem>>, %arg16: memref<128x128xf32, #tpu.memory_space<vmem>>) attributes {dimension_semantics = [#tpu.dimension_semantics<parallel>], iteration_bounds = array<i64: 2>, scalar_prefetch = 0 : i64, scratch_operands = 2 : i64, tpu.core_type = #tpu.core_type<tc>, window_params = [{transform_indices = @transform_0, window_bounds = array<i64: 4, 32, 128>}, {pipeline_mode = #tpu.pipeline_mode<synchronous>, transform_indices = @transform_1, window_bounds = array<i64: 128, 384>}, {pipeline_mode = #tpu.pipeline_mode<synchronous>, transform_indices = @transform_2, window_bounds = array<i64: 1, 384>}, {pipeline_mode = #tpu.pipeline_mode<synchronous>, transform_indices = @transform_3, window_bounds = array<i64: 128, 128>}, {pipeline_mode = #tpu.pipeline_mode<synchronous>, transform_indices = @transform_4, window_bounds = array<i64: 1, 128>}, {pipeline_mode = #tpu.pipeline_mode<synchronous>, transform_indices = @transform_5, window_bounds = array<i64: 1, 128>}, {pipeline_mode = #tpu.pipeline_mode<synchronous>, transform_indices = @transform_6, window_bounds = array<i64: 1, 128>}, {pipeline_mode = #tpu.pipeline_mode<synchronous>, transform_indices = @transform_7, window_bounds = array<i64: 128, 512>}, {pipeline_mode = #tpu.pipeline_mode<synchronous>, transform_indices = @transform_8, window_bounds = array<i64: 1, 512>}, {pipeline_mode = #tpu.pipeline_mode<synchronous>, transform_indices = @transform_9, window_bounds = array<i64: 512, 128>}, {pipeline_mode = #tpu.pipeline_mode<synchronous>, transform_indices = @transform_10, window_bounds = array<i64: 1, 128>}, {pipeline_mode = #tpu.pipeline_mode<synchronous>, transform_indices = @transform_11, window_bounds = array<i64: 1, 128>}, {pipeline_mode = #tpu.pipeline_mode<synchronous>, transform_indices = @transform_12, window_bounds = array<i64: 1, 128>}, {transform_indices = @transform_13, window_bounds = array<i64: 4, 32, 128>}]} {
    %c0 = arith.constant 0 : index
    %c0_0 = arith.constant 0 : index
    %c0_1 = arith.constant 0 : index
    %0 = vector.load %arg1[%c0, %c0_0, %c0_1] : memref<4x32x128xf32, #tpu.memory_space<vmem>>, vector<4x32x128xf32>
    %1 = vector.shape_cast %0 : vector<4x32x128xf32> to vector<128x128xf32>
    %c0_2 = arith.constant 0 : index
    %c0_3 = arith.constant 0 : index
    %2 = vector.load %arg2[%c0_2, %c0_3] : memref<128x384xf32, #tpu.memory_space<vmem>>, vector<128x384xf32>
    %cst = arith.constant dense<0.000000e+00> : vector<128x384xf32>
    %3 = tpu.matmul %1, %2, %cst {dimension_numbers = #tpu.dot_dimension_numbers<[1], [0], [0], [1], [0, 0, 1, 1], [], []>} : vector<128x128xf32>, vector<128x384xf32>, vector<128x384xf32> -> vector<128x384xf32>
    %c0_4 = arith.constant 0 : index
    %c0_5 = arith.constant 0 : index
    %4 = vector.load %arg3[%c0_4, %c0_5] : memref<1x384xf32, #tpu.memory_space<vmem>>, vector<1x384xf32>
    %5 = vector.broadcast %4 : vector<1x384xf32> to vector<128x384xf32>
    %6 = arith.addf %3, %5 : vector<128x384xf32>
    %c0_6 = arith.constant 0 : index
    %c0_7 = arith.constant 0 : index
    %7 = vector.load %arg15[%c0_6, %c0_7] : memref<128x384xf32, #tpu.memory_space<vmem>>, vector<128x384xf32>
    tpu.vector_store %arg15[%c0_6, %c0_7], %6 {strides = array<i32>} : memref<128x384xf32, #tpu.memory_space<vmem>>, vector<128x384xf32>,
    %8 = tpu.iota {dimensions = array<i32: 0>} : vector<32x32xi32>
    %9 = tpu.iota {dimensions = array<i32: 1>} : vector<32x32xi32>
    %10 = arith.cmpi sle, %9, %8 : vector<32x32xi32>
    %cst_8 = arith.constant 0.000000e+00 : f32
    %cst_9 = arith.constant -1.000000e+30 : f32
    %11 = vector.broadcast %cst_8 : f32 to vector<32x32xf32>
    %12 = vector.broadcast %cst_9 : f32 to vector<32x32xf32>
    %13 = arith.select %10, %11, %12 : vector<32x32xi1>, vector<32x32xf32>
    %14 = vector.shape_cast %13 : vector<32x32xf32> to vector<1x32x32xf32>
    %c0_10 = arith.constant 0 : index
    %c0_11 = arith.constant 0 : index
    %15 = vector.load %arg15[%c0_10, %c0_11] : memref<128x384xf32, #tpu.memory_space<vmem>>, vector<128x32xf32>
    %16 = vector.shape_cast %15 : vector<128x32xf32> to vector<4x32x32xf32>
    %c0_12 = arith.constant 0 : index
    %c128 = arith.constant 128 : index
    %17 = vector.load %arg15[%c0_12, %c128] : memref<128x384xf32, #tpu.memory_space<vmem>>, vector<128x32xf32>
    %18 = vector.shape_cast %17 : vector<128x32xf32> to vector<4x32x32xf32>
    %c0_13 = arith.constant 0 : index
    %c256 = arith.constant 256 : index
    %19 = vector.load %arg15[%c0_13, %c256] : memref<128x384xf32, #tpu.memory_space<vmem>>, vector<128x32xf32>
    %20 = vector.shape_cast %19 : vector<128x32xf32> to vector<4x32x32xf32>
    "tpu.trace_start"() <{level = 10 : i32, message = "bqd,bkd->bqk"}> : () -> ()
    %cst_14 = arith.constant dense<0.000000e+00> : vector<4x32x32xf32>
    %21 = tpu.matmul %16, %18, %cst_14 {dimension_numbers = #tpu.dot_dimension_numbers<[2], [2], [1], [1], [0, 0, 0, 1, 1, 1], [0], [0]>} : vector<4x32x32xf32>, vector<4x32x32xf32>, vector<4x32x32xf32> -> vector<4x32x32xf32>
    "tpu.trace_stop"() : () -> ()
    %cst_15 = arith.constant 0.176776692 : f32
    %22 = vector.broadcast %cst_15 : f32 to vector<4x32x32xf32>
    %23 = arith.mulf %21, %22 : vector<4x32x32xf32>
    %24 = vector.broadcast %14 : vector<1x32x32xf32> to vector<4x32x32xf32>
    %25 = arith.addf %23, %24 : vector<4x32x32xf32>
    %cst_16 = arith.constant dense<0xFF800000> : vector<4x32xf32>
    %26 = vector.multi_reduction <maximumf>, %25, %cst_16 [2] : vector<4x32x32xf32> to vector<4x32xf32>
    %27 = vector.shape_cast %26 : vector<4x32xf32> to vector<4x32x1xf32>
    %28 = vector.broadcast %27 : vector<4x32x1xf32> to vector<4x32x32xf32>
    %29 = arith.subf %25, %28 : vector<4x32x32xf32>
    %30 = math.exp %29 : vector<4x32x32xf32>
    %cst_17 = arith.constant dense<0.000000e+00> : vector<4x32xf32>
    %31 = vector.multi_reduction <add>, %30, %cst_17 [2] : vector<4x32x32xf32> to vector<4x32xf32>
    %32 = vector.shape_cast %31 : vector<4x32xf32> to vector<4x32x1xf32>
    %cst_18 = arith.constant 1.000000e+00 : f32
    %33 = vector.broadcast %cst_18 : f32 to vector<4x32x1xf32>
    %34 = arith.divf %33, %32 : vector<4x32x1xf32>
    "tpu.trace_start"() <{level = 10 : i32, message = "bqk,bkd->bqd"}> : () -> ()
    %cst_19 = arith.constant dense<0.000000e+00> : vector<4x32x32xf32>
    %35 = tpu.matmul %30, %20, %cst_19 {dimension_numbers = #tpu.dot_dimension_numbers<[2], [1], [1], [2], [0, 0, 0, 1, 1, 2], [0], [0]>} : vector<4x32x32xf32>, vector<4x32x32xf32>, vector<4x32x32xf32> -> vector<4x32x32xf32>
    "tpu.trace_stop"() : () -> ()
    %36 = vector.broadcast %34 : vector<4x32x1xf32> to vector<4x32x32xf32>
    %37 = arith.mulf %35, %36 : vector<4x32x32xf32>
    %38 = vector.shape_cast %37 : vector<4x32x32xf32> to vector<128x32xf32>
    %c0_20 = arith.constant 0 : index
    %c0_21 = arith.constant 0 : index
    %39 = vector.load %arg16[%c0_20, %c0_21] : memref<128x128xf32, #tpu.memory_space<vmem>>, vector<128x32xf32>
    tpu.vector_store %arg16[%c0_20, %c0_21], %38 {strides = array<i32>} : memref<128x128xf32, #tpu.memory_space<vmem>>, vector<128x32xf32>,
    %c0_22 = arith.constant 0 : index
    %c32 = arith.constant 32 : index
    %40 = vector.load %arg15[%c0_22, %c32] : memref<128x384xf32, #tpu.memory_space<vmem>>, vector<128x32xf32>
    %41 = vector.shape_cast %40 : vector<128x32xf32> to vector<4x32x32xf32>
    %c0_23 = arith.constant 0 : index
    %c160 = arith.constant 160 : index
    %42 = vector.load %arg15[%c0_23, %c160] : memref<128x384xf32, #tpu.memory_space<vmem>>, vector<128x32xf32>
    %43 = vector.shape_cast %42 : vector<128x32xf32> to vector<4x32x32xf32>
    %c0_24 = arith.constant 0 : index
    %c288 = arith.constant 288 : index
    %44 = vector.load %arg15[%c0_24, %c288] : memref<128x384xf32, #tpu.memory_space<vmem>>, vector<128x32xf32>
    %45 = vector.shape_cast %44 : vector<128x32xf32> to vector<4x32x32xf32>
    "tpu.trace_start"() <{level = 10 : i32, message = "bqd,bkd->bqk"}> : () -> ()
    %cst_25 = arith.constant dense<0.000000e+00> : vector<4x32x32xf32>
    %46 = tpu.matmul %41, %43, %cst_25 {dimension_numbers = #tpu.dot_dimension_numbers<[2], [2], [1], [1], [0, 0, 0, 1, 1, 1], [0], [0]>} : vector<4x32x32xf32>, vector<4x32x32xf32>, vector<4x32x32xf32> -> vector<4x32x32xf32>
    "tpu.trace_stop"() : () -> ()
    %cst_26 = arith.constant 0.176776692 : f32
    %47 = vector.broadcast %cst_26 : f32 to vector<4x32x32xf32>
    %48 = arith.mulf %46, %47 : vector<4x32x32xf32>
    %49 = vector.broadcast %14 : vector<1x32x32xf32> to vector<4x32x32xf32>
    %50 = arith.addf %48, %49 : vector<4x32x32xf32>
    %cst_27 = arith.constant dense<0xFF800000> : vector<4x32xf32>
    %51 = vector.multi_reduction <maximumf>, %50, %cst_27 [2] : vector<4x32x32xf32> to vector<4x32xf32>
    %52 = vector.shape_cast %51 : vector<4x32xf32> to vector<4x32x1xf32>
    %53 = vector.broadcast %52 : vector<4x32x1xf32> to vector<4x32x32xf32>
    %54 = arith.subf %50, %53 : vector<4x32x32xf32>
    %55 = math.exp %54 : vector<4x32x32xf32>
    %cst_28 = arith.constant dense<0.000000e+00> : vector<4x32xf32>
    %56 = vector.multi_reduction <add>, %55, %cst_28 [2] : vector<4x32x32xf32> to vector<4x32xf32>
    %57 = vector.shape_cast %56 : vector<4x32xf32> to vector<4x32x1xf32>
    %cst_29 = arith.constant 1.000000e+00 : f32
    %58 = vector.broadcast %cst_29 : f32 to vector<4x32x1xf32>
    %59 = arith.divf %58, %57 : vector<4x32x1xf32>
    "tpu.trace_start"() <{level = 10 : i32, message = "bqk,bkd->bqd"}> : () -> ()
    %cst_30 = arith.constant dense<0.000000e+00> : vector<4x32x32xf32>
    %60 = tpu.matmul %55, %45, %cst_30 {dimension_numbers = #tpu.dot_dimension_numbers<[2], [1], [1], [2], [0, 0, 0, 1, 1, 2], [0], [0]>} : vector<4x32x32xf32>, vector<4x32x32xf32>, vector<4x32x32xf32> -> vector<4x32x32xf32>
    "tpu.trace_stop"() : () -> ()
    %61 = vector.broadcast %59 : vector<4x32x1xf32> to vector<4x32x32xf32>
    %62 = arith.mulf %60, %61 : vector<4x32x32xf32>
    %63 = vector.shape_cast %62 : vector<4x32x32xf32> to vector<128x32xf32>
    %c0_31 = arith.constant 0 : index
    %c32_32 = arith.constant 32 : index
    %64 = vector.load %arg16[%c0_31, %c32_32] : memref<128x128xf32, #tpu.memory_space<vmem>>, vector<128x32xf32>
    tpu.vector_store %arg16[%c0_31, %c32_32], %63 {strides = array<i32>} : memref<128x128xf32, #tpu.memory_space<vmem>>, vector<128x32xf32>,
    %c0_33 = arith.constant 0 : index
    %c64 = arith.constant 64 : index
    %65 = vector.load %arg15[%c0_33, %c64] : memref<128x384xf32, #tpu.memory_space<vmem>>, vector<128x32xf32>
    %66 = vector.shape_cast %65 : vector<128x32xf32> to vector<4x32x32xf32>
    %c0_34 = arith.constant 0 : index
    %c192 = arith.constant 192 : index
    %67 = vector.load %arg15[%c0_34, %c192] : memref<128x384xf32, #tpu.memory_space<vmem>>, vector<128x32xf32>
    %68 = vector.shape_cast %67 : vector<128x32xf32> to vector<4x32x32xf32>
    %c0_35 = arith.constant 0 : index
    %c320 = arith.constant 320 : index
    %69 = vector.load %arg15[%c0_35, %c320] : memref<128x384xf32, #tpu.memory_space<vmem>>, vector<128x32xf32>
    %70 = vector.shape_cast %69 : vector<128x32xf32> to vector<4x32x32xf32>
    "tpu.trace_start"() <{level = 10 : i32, message = "bqd,bkd->bqk"}> : () -> ()
    %cst_36 = arith.constant dense<0.000000e+00> : vector<4x32x32xf32>
    %71 = tpu.matmul %66, %68, %cst_36 {dimension_numbers = #tpu.dot_dimension_numbers<[2], [2], [1], [1], [0, 0, 0, 1, 1, 1], [0], [0]>} : vector<4x32x32xf32>, vector<4x32x32xf32>, vector<4x32x32xf32> -> vector<4x32x32xf32>
    "tpu.trace_stop"() : () -> ()
    %cst_37 = arith.constant 0.176776692 : f32
    %72 = vector.broadcast %cst_37 : f32 to vector<4x32x32xf32>
    %73 = arith.mulf %71, %72 : vector<4x32x32xf32>
    %74 = vector.broadcast %14 : vector<1x32x32xf32> to vector<4x32x32xf32>
    %75 = arith.addf %73, %74 : vector<4x32x32xf32>
    %cst_38 = arith.constant dense<0xFF800000> : vector<4x32xf32>
    %76 = vector.multi_reduction <maximumf>, %75, %cst_38 [2] : vector<4x32x32xf32> to vector<4x32xf32>
    %77 = vector.shape_cast %76 : vector<4x32xf32> to vector<4x32x1xf32>
    %78 = vector.broadcast %77 : vector<4x32x1xf32> to vector<4x32x32xf32>
    %79 = arith.subf %75, %78 : vector<4x32x32xf32>
    %80 = math.exp %79 : vector<4x32x32xf32>
    %cst_39 = arith.constant dense<0.000000e+00> : vector<4x32xf32>
    %81 = vector.multi_reduction <add>, %80, %cst_39 [2] : vector<4x32x32xf32> to vector<4x32xf32>
    %82 = vector.shape_cast %81 : vector<4x32xf32> to vector<4x32x1xf32>
    %cst_40 = arith.constant 1.000000e+00 : f32
    %83 = vector.broadcast %cst_40 : f32 to vector<4x32x1xf32>
    %84 = arith.divf %83, %82 : vector<4x32x1xf32>
    "tpu.trace_start"() <{level = 10 : i32, message = "bqk,bkd->bqd"}> : () -> ()
    %cst_41 = arith.constant dense<0.000000e+00> : vector<4x32x32xf32>
    %85 = tpu.matmul %80, %70, %cst_41 {dimension_numbers = #tpu.dot_dimension_numbers<[2], [1], [1], [2], [0, 0, 0, 1, 1, 2], [0], [0]>} : vector<4x32x32xf32>, vector<4x32x32xf32>, vector<4x32x32xf32> -> vector<4x32x32xf32>
    "tpu.trace_stop"() : () -> ()
    %86 = vector.broadcast %84 : vector<4x32x1xf32> to vector<4x32x32xf32>
    %87 = arith.mulf %85, %86 : vector<4x32x32xf32>
    %88 = vector.shape_cast %87 : vector<4x32x32xf32> to vector<128x32xf32>
    %c0_42 = arith.constant 0 : index
    %c64_43 = arith.constant 64 : index
    %89 = vector.load %arg16[%c0_42, %c64_43] : memref<128x128xf32, #tpu.memory_space<vmem>>, vector<128x32xf32>
    tpu.vector_store %arg16[%c0_42, %c64_43], %88 {strides = array<i32>} : memref<128x128xf32, #tpu.memory_space<vmem>>, vector<128x32xf32>,
    %c0_44 = arith.constant 0 : index
    %c96 = arith.constant 96 : index
    %90 = vector.load %arg15[%c0_44, %c96] : memref<128x384xf32, #tpu.memory_space<vmem>>, vector<128x32xf32>
    %91 = vector.shape_cast %90 : vector<128x32xf32> to vector<4x32x32xf32>
    %c0_45 = arith.constant 0 : index
    %c224 = arith.constant 224 : index
    %92 = vector.load %arg15[%c0_45, %c224] : memref<128x384xf32, #tpu.memory_space<vmem>>, vector<128x32xf32>
    %93 = vector.shape_cast %92 : vector<128x32xf32> to vector<4x32x32xf32>
    %c0_46 = arith.constant 0 : index
    %c352 = arith.constant 352 : index
    %94 = vector.load %arg15[%c0_46, %c352] : memref<128x384xf32, #tpu.memory_space<vmem>>, vector<128x32xf32>
    %95 = vector.shape_cast %94 : vector<128x32xf32> to vector<4x32x32xf32>
    "tpu.trace_start"() <{level = 10 : i32, message = "bqd,bkd->bqk"}> : () -> ()
    %cst_47 = arith.constant dense<0.000000e+00> : vector<4x32x32xf32>
    %96 = tpu.matmul %91, %93, %cst_47 {dimension_numbers = #tpu.dot_dimension_numbers<[2], [2], [1], [1], [0, 0, 0, 1, 1, 1], [0], [0]>} : vector<4x32x32xf32>, vector<4x32x32xf32>, vector<4x32x32xf32> -> vector<4x32x32xf32>
    "tpu.trace_stop"() : () -> ()
    %cst_48 = arith.constant 0.176776692 : f32
    %97 = vector.broadcast %cst_48 : f32 to vector<4x32x32xf32>
    %98 = arith.mulf %96, %97 : vector<4x32x32xf32>
    %99 = vector.broadcast %14 : vector<1x32x32xf32> to vector<4x32x32xf32>
    %100 = arith.addf %98, %99 : vector<4x32x32xf32>
    %cst_49 = arith.constant dense<0xFF800000> : vector<4x32xf32>
    %101 = vector.multi_reduction <maximumf>, %100, %cst_49 [2] : vector<4x32x32xf32> to vector<4x32xf32>
    %102 = vector.shape_cast %101 : vector<4x32xf32> to vector<4x32x1xf32>
    %103 = vector.broadcast %102 : vector<4x32x1xf32> to vector<4x32x32xf32>
    %104 = arith.subf %100, %103 : vector<4x32x32xf32>
    %105 = math.exp %104 : vector<4x32x32xf32>
    %cst_50 = arith.constant dense<0.000000e+00> : vector<4x32xf32>
    %106 = vector.multi_reduction <add>, %105, %cst_50 [2] : vector<4x32x32xf32> to vector<4x32xf32>
    %107 = vector.shape_cast %106 : vector<4x32xf32> to vector<4x32x1xf32>
    %cst_51 = arith.constant 1.000000e+00 : f32
    %108 = vector.broadcast %cst_51 : f32 to vector<4x32x1xf32>
    %109 = arith.divf %108, %107 : vector<4x32x1xf32>
    "tpu.trace_start"() <{level = 10 : i32, message = "bqk,bkd->bqd"}> : () -> ()
    %cst_52 = arith.constant dense<0.000000e+00> : vector<4x32x32xf32>
    %110 = tpu.matmul %105, %95, %cst_52 {dimension_numbers = #tpu.dot_dimension_numbers<[2], [1], [1], [2], [0, 0, 0, 1, 1, 2], [0], [0]>} : vector<4x32x32xf32>, vector<4x32x32xf32>, vector<4x32x32xf32> -> vector<4x32x32xf32>
    "tpu.trace_stop"() : () -> ()
    %111 = vector.broadcast %109 : vector<4x32x1xf32> to vector<4x32x32xf32>
    %112 = arith.mulf %110, %111 : vector<4x32x32xf32>
    %113 = vector.shape_cast %112 : vector<4x32x32xf32> to vector<128x32xf32>
    %c0_53 = arith.constant 0 : index
    %c96_54 = arith.constant 96 : index
    %114 = vector.load %arg16[%c0_53, %c96_54] : memref<128x128xf32, #tpu.memory_space<vmem>>, vector<128x32xf32>
    tpu.vector_store %arg16[%c0_53, %c96_54], %113 {strides = array<i32>} : memref<128x128xf32, #tpu.memory_space<vmem>>, vector<128x32xf32>,
    %c0_55 = arith.constant 0 : index
    %c0_56 = arith.constant 0 : index
    %115 = vector.load %arg16[%c0_55, %c0_56] : memref<128x128xf32, #tpu.memory_space<vmem>>, vector<128x128xf32>
    %c0_57 = arith.constant 0 : index
    %c0_58 = arith.constant 0 : index
    %116 = vector.load %arg4[%c0_57, %c0_58] : memref<128x128xf32, #tpu.memory_space<vmem>>, vector<128x128xf32>
    %cst_59 = arith.constant dense<0.000000e+00> : vector<128x128xf32>
    %117 = tpu.matmul %115, %116, %cst_59 {dimension_numbers = #tpu.dot_dimension_numbers<[1], [0], [0], [1], [0, 0, 1, 1], [], []>} : vector<128x128xf32>, vector<128x128xf32>, vector<128x128xf32> -> vector<128x128xf32>
    %c0_60 = arith.constant 0 : index
    %c0_61 = arith.constant 0 : index
    %118 = vector.load %arg5[%c0_60, %c0_61] : memref<1x128xf32, #tpu.memory_space<vmem>>, vector<1x128xf32>
    %119 = vector.broadcast %118 : vector<1x128xf32> to vector<128x128xf32>
    %120 = arith.addf %117, %119 : vector<128x128xf32>
    %121 = arith.addf %1, %120 : vector<128x128xf32>
    %c0_62 = arith.constant 0 : index
    %c0_63 = arith.constant 0 : index
    %122 = vector.load %arg6[%c0_62, %c0_63] : memref<1x128xf32, #tpu.memory_space<vmem>>, vector<1x128xf32>
    %c0_64 = arith.constant 0 : index
    %c0_65 = arith.constant 0 : index
    %123 = vector.load %arg7[%c0_64, %c0_65] : memref<1x128xf32, #tpu.memory_space<vmem>>, vector<1x128xf32>
    %cst_66 = arith.constant dense<0.000000e+00> : vector<128xf32>
    %124 = vector.multi_reduction <add>, %121, %cst_66 [1] : vector<128x128xf32> to vector<128xf32>
    %125 = vector.shape_cast %124 : vector<128xf32> to vector<128x1xf32>
    %cst_67 = arith.constant 1.280000e+02 : f32
    %126 = vector.broadcast %cst_67 : f32 to vector<128x1xf32>
    %127 = arith.divf %125, %126 : vector<128x1xf32>
    %128 = vector.broadcast %127 : vector<128x1xf32> to vector<128x128xf32>
    %129 = arith.subf %121, %128 : vector<128x128xf32>
    %130 = arith.mulf %129, %129 : vector<128x128xf32>
    %cst_68 = arith.constant dense<0.000000e+00> : vector<128xf32>
    %131 = vector.multi_reduction <add>, %130, %cst_68 [1] : vector<128x128xf32> to vector<128xf32>
    %132 = vector.shape_cast %131 : vector<128xf32> to vector<128x1xf32>
    %cst_69 = arith.constant 1.280000e+02 : f32
    %133 = vector.broadcast %cst_69 : f32 to vector<128x1xf32>
    %134 = arith.divf %132, %133 : vector<128x1xf32>
    %135 = vector.broadcast %127 : vector<128x1xf32> to vector<128x128xf32>
    %136 = arith.subf %121, %135 : vector<128x128xf32>
    %cst_70 = arith.constant 9.99999974E-6 : f32
    %137 = vector.broadcast %cst_70 : f32 to vector<128x1xf32>
    %138 = arith.addf %134, %137 : vector<128x1xf32>
    %139 = math.rsqrt %138 : vector<128x1xf32>
    %140 = vector.broadcast %139 : vector<128x1xf32> to vector<128x128xf32>
    %141 = arith.mulf %136, %140 : vector<128x128xf32>
    %142 = vector.broadcast %122 : vector<1x128xf32> to vector<128x128xf32>
    %143 = arith.mulf %141, %142 : vector<128x128xf32>
    %144 = vector.broadcast %123 : vector<1x128xf32> to vector<128x128xf32>
    %145 = arith.addf %143, %144 : vector<128x128xf32>
    %c0_71 = arith.constant 0 : index
    %c0_72 = arith.constant 0 : index
    %146 = vector.load %arg8[%c0_71, %c0_72] : memref<128x512xf32, #tpu.memory_space<vmem>>, vector<128x512xf32>
    %cst_73 = arith.constant dense<0.000000e+00> : vector<128x512xf32>
    %147 = tpu.matmul %145, %146, %cst_73 {dimension_numbers = #tpu.dot_dimension_numbers<[1], [0], [0], [1], [0, 0, 1, 1], [], []>} : vector<128x128xf32>, vector<128x512xf32>, vector<128x512xf32> -> vector<128x512xf32>
    %c0_74 = arith.constant 0 : index
    %c0_75 = arith.constant 0 : index
    %148 = vector.load %arg9[%c0_74, %c0_75] : memref<1x512xf32, #tpu.memory_space<vmem>>, vector<1x512xf32>
    %149 = vector.broadcast %148 : vector<1x512xf32> to vector<128x512xf32>
    %150 = arith.addf %147, %149 : vector<128x512xf32>
    %cst_76 = arith.constant 0.000000e+00 : f32
    %151 = vector.broadcast %cst_76 : f32 to vector<128x512xf32>
    %152 = arith.maximumf %150, %151 : vector<128x512xf32>
    %c0_77 = arith.constant 0 : index
    %c0_78 = arith.constant 0 : index
    %153 = vector.load %arg10[%c0_77, %c0_78] : memref<512x128xf32, #tpu.memory_space<vmem>>, vector<512x128xf32>
    %cst_79 = arith.constant dense<0.000000e+00> : vector<128x128xf32>
    %154 = tpu.matmul %152, %153, %cst_79 {dimension_numbers = #tpu.dot_dimension_numbers<[1], [0], [0], [1], [0, 0, 1, 1], [], []>} : vector<128x512xf32>, vector<512x128xf32>, vector<128x128xf32> -> vector<128x128xf32>
    %c0_80 = arith.constant 0 : index
    %c0_81 = arith.constant 0 : index
    %155 = vector.load %arg11[%c0_80, %c0_81] : memref<1x128xf32, #tpu.memory_space<vmem>>, vector<1x128xf32>
    %156 = vector.broadcast %155 : vector<1x128xf32> to vector<128x128xf32>
    %157 = arith.addf %154, %156 : vector<128x128xf32>
    %158 = arith.addf %145, %157 : vector<128x128xf32>
    %c0_82 = arith.constant 0 : index
    %c0_83 = arith.constant 0 : index
    %159 = vector.load %arg12[%c0_82, %c0_83] : memref<1x128xf32, #tpu.memory_space<vmem>>, vector<1x128xf32>
    %c0_84 = arith.constant 0 : index
    %c0_85 = arith.constant 0 : index
    %160 = vector.load %arg13[%c0_84, %c0_85] : memref<1x128xf32, #tpu.memory_space<vmem>>, vector<1x128xf32>
    %cst_86 = arith.constant dense<0.000000e+00> : vector<128xf32>
    %161 = vector.multi_reduction <add>, %158, %cst_86 [1] : vector<128x128xf32> to vector<128xf32>
    %162 = vector.shape_cast %161 : vector<128xf32> to vector<128x1xf32>
    %cst_87 = arith.constant 1.280000e+02 : f32
    %163 = vector.broadcast %cst_87 : f32 to vector<128x1xf32>
    %164 = arith.divf %162, %163 : vector<128x1xf32>
    %165 = vector.broadcast %164 : vector<128x1xf32> to vector<128x128xf32>
    %166 = arith.subf %158, %165 : vector<128x128xf32>
    %167 = arith.mulf %166, %166 : vector<128x128xf32>
    %cst_88 = arith.constant dense<0.000000e+00> : vector<128xf32>
    %168 = vector.multi_reduction <add>, %167, %cst_88 [1] : vector<128x128xf32> to vector<128xf32>
    %169 = vector.shape_cast %168 : vector<128xf32> to vector<128x1xf32>
    %cst_89 = arith.constant 1.280000e+02 : f32
    %170 = vector.broadcast %cst_89 : f32 to vector<128x1xf32>
    %171 = arith.divf %169, %170 : vector<128x1xf32>
    %172 = vector.broadcast %164 : vector<128x1xf32> to vector<128x128xf32>
    %173 = arith.subf %158, %172 : vector<128x128xf32>
    %cst_90 = arith.constant 9.99999974E-6 : f32
    %174 = vector.broadcast %cst_90 : f32 to vector<128x1xf32>
    %175 = arith.addf %171, %174 : vector<128x1xf32>
    %176 = math.rsqrt %175 : vector<128x1xf32>
    %177 = vector.broadcast %176 : vector<128x1xf32> to vector<128x128xf32>
    %178 = arith.mulf %173, %177 : vector<128x128xf32>
    %179 = vector.broadcast %159 : vector<1x128xf32> to vector<128x128xf32>
    %180 = arith.mulf %178, %179 : vector<128x128xf32>
    %181 = vector.broadcast %160 : vector<1x128xf32> to vector<128x128xf32>
    %182 = arith.addf %180, %181 : vector<128x128xf32>
    %183 = vector.shape_cast %182 : vector<128x128xf32> to vector<4x32x128xf32>
    %c0_91 = arith.constant 0 : index
    %c0_92 = arith.constant 0 : index
    %c0_93 = arith.constant 0 : index
    %184 = vector.load %arg14[%c0_91, %c0_92, %c0_93] : memref<4x32x128xf32, #tpu.memory_space<vmem>>, vector<4x32x128xf32>
    tpu.vector_store %arg14[%c0_91, %c0_92, %c0_93], %183 {strides = array<i32>} : memref<4x32x128xf32, #tpu.memory_space<vmem>>, vector<4x32x128xf32>,
    return
  }
  func.func @transform_0(%arg0: i32) -> (i32, i32, i32) {
    %c0_i32 = arith.constant 0 : i32
    %c0_i32_0 = arith.constant 0 : i32
    %c0_i32_1 = arith.constant 0 : i32
    return %arg0, %c0_i32, %c0_i32_0 : i32, i32, i32
  }
  func.func @transform_1(%arg0: i32) -> (i32, i32) {
    %c0_i32 = arith.constant 0 : i32
    %c0_i32_0 = arith.constant 0 : i32
    %c0_i32_1 = arith.constant 0 : i32
    return %c0_i32, %c0_i32_0 : i32, i32
  }
  func.func @transform_2(%arg0: i32) -> (i32, i32) {
    %c0_i32 = arith.constant 0 : i32
    %c0_i32_0 = arith.constant 0 : i32
    %c0_i32_1 = arith.constant 0 : i32
    return %c0_i32, %c0_i32_0 : i32, i32
  }
  func.func @transform_3(%arg0: i32) -> (i32, i32) {
    %c0_i32 = arith.constant 0 : i32
    %c0_i32_0 = arith.constant 0 : i32
    %c0_i32_1 = arith.constant 0 : i32
    return %c0_i32, %c0_i32_0 : i32, i32
  }
  func.func @transform_4(%arg0: i32) -> (i32, i32) {
    %c0_i32 = arith.constant 0 : i32
    %c0_i32_0 = arith.constant 0 : i32
    %c0_i32_1 = arith.constant 0 : i32
    return %c0_i32, %c0_i32_0 : i32, i32
  }
  func.func @transform_5(%arg0: i32) -> (i32, i32) {
    %c0_i32 = arith.constant 0 : i32
    %c0_i32_0 = arith.constant 0 : i32
    %c0_i32_1 = arith.constant 0 : i32
    return %c0_i32, %c0_i32_0 : i32, i32
  }
  func.func @transform_6(%arg0: i32) -> (i32, i32) {
    %c0_i32 = arith.constant 0 : i32
    %c0_i32_0 = arith.constant 0 : i32
    %c0_i32_1 = arith.constant 0 : i32
    return %c0_i32, %c0_i32_0 : i32, i32
  }
  func.func @transform_7(%arg0: i32) -> (i32, i32) {
    %c0_i32 = arith.constant 0 : i32
    %c0_i32_0 = arith.constant 0 : i32
    %c0_i32_1 = arith.constant 0 : i32
    return %c0_i32, %c0_i32_0 : i32, i32
  }
  func.func @transform_8(%arg0: i32) -> (i32, i32) {
    %c0_i32 = arith.constant 0 : i32
    %c0_i32_0 = arith.constant 0 : i32
    %c0_i32_1 = arith.constant 0 : i32
    return %c0_i32, %c0_i32_0 : i32, i32
  }
  func.func @transform_9(%arg0: i32) -> (i32, i32) {
    %c0_i32 = arith.constant 0 : i32
    %c0_i32_0 = arith.constant 0 : i32
    %c0_i32_1 = arith.constant 0 : i32
    return %c0_i32, %c0_i32_0 : i32, i32
  }
  func.func @transform_10(%arg0: i32) -> (i32, i32) {
    %c0_i32 = arith.constant 0 : i32
    %c0_i32_0 = arith.constant 0 : i32
    %c0_i32_1 = arith.constant 0 : i32
    return %c0_i32, %c0_i32_0 : i32, i32
  }
  func.func @transform_11(%arg0: i32) -> (i32, i32) {
    %c0_i32 = arith.constant 0 : i32
    %c0_i32_0 = arith.constant 0 : i32
    %c0_i32_1 = arith.constant 0 : i32
    return %c0_i32, %c0_i32_0 : i32, i32
  }
  func.func @transform_12(%arg0: i32) -> (i32, i32) {
    %c0_i32 = arith.constant 0 : i32
    %c0_i32_0 = arith.constant 0 : i32
    %c0_i32_1 = arith.constant 0 : i32
    return %c0_i32, %c0_i32_0 : i32, i32
  }
  func.func @transform_13(%arg0: i32) -> (i32, i32, i32) {
    %c0_i32 = arith.constant 0 : i32
    %c0_i32_0 = arith.constant 0 : i32
    %c0_i32_1 = arith.constant 0 : i32
    return %arg0, %c0_i32, %c0_i32_0 : i32, i32, i32
  }
}

</mosaic_0001>

<llo_original>
// kernel: tpu_custom_call.1
$region0: #{tpu_custom_call.1}
  #allocation0 [shape = 'u32[]', space=smem, size = 0x4, offset = 0x4, fixed_abs, tag = 'smem constant byte address 0x4 - core index']
  #allocation1 [shape = 'u32[144,128]{1,0:T(1,128)}', space=vmem, size = 0x12000, scoped, tag = 'internal scratch']
  #allocation2 [shape = 'f32[128,384]{1,0:T(8,128)}', space=vmem, size = 0x30000, scoped, tag = 'scratch operand']
  #allocation3 [shape = 'f32[128,128]{1,0:T(8,128)}', space=vmem, size = 0x10000, scoped, tag = 'scratch operand']
  %s0 = inlined_call_operand.hbm [shape: f32[8,32,128], index: 0, kind: input, shape index: {}]
  %s1 = inlined_call_operand.hbm [shape: f32[128,384], index: 1, kind: input, shape index: {}]
  %s2 = inlined_call_operand.vmem [shape: f32[1,384], index: 2, kind: input, shape index: {}]
  %s3 = inlined_call_operand.hbm [shape: f32[128,128], index: 3, kind: input, shape index: {}]
  %s4 = inlined_call_operand.vmem [shape: f32[1,128], index: 4, kind: input, shape index: {}]
  %s5 = inlined_call_operand.vmem [shape: f32[1,128], index: 5, kind: input, shape index: {}]
  %s6 = inlined_call_operand.vmem [shape: f32[1,128], index: 6, kind: input, shape index: {}]
  %s7 = inlined_call_operand.hbm [shape: f32[128,512], index: 7, kind: input, shape index: {}]
  %s8 = inlined_call_operand.vmem [shape: f32[1,512], index: 8, kind: input, shape index: {}]
  %s9 = inlined_call_operand.hbm [shape: f32[512,128], index: 9, kind: input, shape index: {}]
  %s10 = inlined_call_operand.vmem [shape: f32[1,128], index: 10, kind: input, shape index: {}]
  %s11 = inlined_call_operand.vmem [shape: f32[1,128], index: 11, kind: input, shape index: {}]
  %s12 = inlined_call_operand.vmem [shape: f32[1,128], index: 12, kind: input, shape index: {}]
  %s13 = inlined_call_operand.hbm [shape: f32[8,32,128], index: 13, kind: output, shape index: {}]
  %s14 = sld [smem:[#allocation0]]
  $region105: #{tpu_custom_call.1} parent=0
    _
  %s16 = ssub.s32 1, %s14
  %s17 = scalar_select 0, %s16, %s14
  $region1: #{tpu_custom_call.1} parent=0
    #allocation4 [shape = 'u8[131072]{0}', space=vmem, size = 0x20000, scoped, tag = 'input window, operand 0']
    #allocation5 [shape = 's32[2]{0}', space=sflag, size = 0x8, scoped, tag = 'scoped memory for tpu_custom_call.1']
    #allocation6 [shape = 's32[2]{0}', space=sflag, size = 0x8, scoped, tag = 'scoped memory for tpu_custom_call.1']
    #allocation7 [shape = 'u8[196608]{0}', space=vmem, size = 0x30000, scoped, tag = 'input window, operand 1, single buffered']
    #allocation8 [shape = 's32[1]{0}', space=sflag, size = 0x4, scoped, tag = 'scoped memory for tpu_custom_call.1']
    #allocation9 [shape = 'u8[65536]{0}', space=vmem, size = 0x10000, scoped, tag = 'input window, operand 3, single buffered']
    #allocation10 [shape = 'u8[262144]{0}', space=vmem, size = 0x40000, scoped, tag = 'input window, operand 7, single buffered']
    #allocation11 [shape = 's32[1]{0}', space=sflag, size = 0x4, scoped, tag = 'scoped memory for tpu_custom_call.1']
    #allocation12 [shape = 'u8[262144]{0}', space=vmem, size = 0x40000, scoped, tag = 'input window, operand 9, single buffered']
    #allocation13 [shape = 'u8[131072]{0}', space=vmem, size = 0x20000, scoped, tag = 'output window, operand 0']
    %18 = vsyncpa [#allocation5], 0
    %s19 = scalar_lea.sflag [#allocation5], 1
    %20 = vsyncpa %s19, 0
    %21 = vsyncpa [#allocation8], 0
    %22 = vsyncpa [#allocation11], 0
    %23 = vsyncpa [#allocation6], 0
    %s24 = scalar_lea.sflag [#allocation6], 1
    %25 = vsyncpa %s24, 0
    loop: start=0, step=1, limit=4
    $region2: #{tpu_custom_call.1} parent=1 // loop_pre_header
      _
    $region3: #{tpu_custom_call.1} parent=1 // loop_header
      %s27 = sphi 0, %s31
      %p28 = scmp.ge.s32.totalorder %s27, 4
      %s37 = sphi 0, %s39
      %s40 = sphi 0, %s37
      %s41 = sphi 0, %s40
      %s57 = sphi 0, %s41
      %s61 = sphi 0, %s61
      %s63 = sphi 0, %s61
      %s64 = sphi 0, %s63
      %s78 = sphi 0, %s64
      %s82 = sphi 0, %s82
      %s84 = sphi 0, %s82
      %s85 = sphi 0, %s84
      %s99 = sphi 0, %s85
      %s103 = sphi 0, %s103
      %s105 = sphi 0, %s103
      %s106 = sphi 0, %s105
      %s120 = sphi 0, %s106
      %s124 = sphi 0, %s124
      %s126 = sphi 0, %s124
      %s127 = sphi 0, %s126
      %s141 = sphi 0, %s127
      %s145 = sphi 0, %s145
      %s147 = sphi 0, %s145
      %s148 = sphi 0, %s147
      %s162 = sphi 0, %s148
      %s166 = sphi 0, %s166
      %s168 = sphi 0, %s166
      %s169 = sphi 0, %s168
      %s183 = sphi 0, %s169
      %s187 = sphi 0, %s187
      %s189 = sphi 0, %s187
      %s190 = sphi 0, %s189
      %s204 = sphi 0, %s190
      %s208 = sphi 0, %s208
      %s210 = sphi 0, %s208
      %s211 = sphi 0, %s210
      %s225 = sphi 0, %s211
      %s229 = sphi 0, %s229
      %s231 = sphi 0, %s229
      %s232 = sphi 0, %s231
      %s246 = sphi 0, %s232
      %s250 = sphi 0, %s250
      %s252 = sphi 0, %s250
      %s253 = sphi 0, %s252
      %s267 = sphi 0, %s253
      %s271 = sphi 0, %s271
      %s273 = sphi 0, %s271
      %s274 = sphi 0, %s273
      %s288 = sphi 0, %s274
      %s292 = sphi 0, %s292
      %s294 = sphi 0, %s292
      %s295 = sphi 0, %s294
      %s309 = sphi 0, %s295
      %s315 = sphi 0, %s317
      %s318 = sphi 0, %s315
      %s319 = sphi 0, %s318
      %s335 = sphi 0, %s319
    $region4: #{tpu_custom_call.1} parent=1 // loop_header_branch
      %30 = sbr.rel (%p28) target = $region8
    $region5: #{tpu_custom_call.1} parent=1 // loop_body
      %s32 = ssub.s32 %s27, 1
      %s33 = ssub.s32 %s27, 2
      %s34 = sadd.s32 %s27, 1
      %s35 = ssub.s32 %s27, %s34
      %p36 = scmp.eq.s32.totalorder %s35, 0
      %s38 = sadd.s32 %s37, 1
      %s39 = scalar_select %p36, %s37, %s38
      %p42 = pneg %p36
      %p43 = scmp.eq.s32.totalorder %s27, 1
      %p44 = por %p42, %p43
      %p45 = scmp.ne.s32.totalorder %s37, %s40
      %p46 = scmp.eq.s32.totalorder %s27, 0
      %p47 = por %p45, %p46
      %p48 = scmp.ne.s32.totalorder %s37, %s40
      %p49 = scmp.eq.s32.totalorder %s32, 1
      %p50 = por %p48, %p49
      %p51 = scmp.ne.s32.totalorder %s40, %s41
      %p52 = scmp.eq.s32.totalorder %s32, 0
      %p53 = por %p51, %p52
      %p54 = scmp.ne.s32.totalorder %s40, %s41
      %p55 = scmp.eq.s32.totalorder %s33, 1
      %p56 = por %p54, %p55
      %p58 = scmp.ne.s32.totalorder %s41, %s57
      %p59 = scmp.eq.s32.totalorder %s33, 0
      %p60 = por %p58, %p59
      %s62 = sadd.s32 %s61, 1
      %p65 = scmp.eq.s32.totalorder %s27, 1
      %p66 = scmp.ne.s32.totalorder %s61, %s63
      %p67 = scmp.eq.s32.totalorder %s27, 0
      %p68 = por %p66, %p67
      %p69 = scmp.ne.s32.totalorder %s61, %s63
      %p70 = scmp.eq.s32.totalorder %s32, 1
      %p71 = por %p69, %p70
      %p72 = scmp.ne.s32.totalorder %s63, %s64
      %p73 = scmp.eq.s32.totalorder %s32, 0
      %p74 = por %p72, %p73
      %p75 = scmp.ne.s32.totalorder %s63, %s64
      %p76 = scmp.eq.s32.totalorder %s33, 1
      %p77 = por %p75, %p76
      %p79 = scmp.ne.s32.totalorder %s64, %s78
      %p80 = scmp.eq.s32.totalorder %s33, 0
      %p81 = por %p79, %p80
      %s83 = sadd.s32 %s82, 1
      %p86 = scmp.eq.s32.totalorder %s27, 1
      %p87 = scmp.ne.s32.totalorder %s82, %s84
      %p88 = scmp.eq.s32.totalorder %s27, 0
      %p89 = por %p87, %p88
      %p90 = scmp.ne.s32.totalorder %s82, %s84
      %p91 = scmp.eq.s32.totalorder %s32, 1
      %p92 = por %p90, %p91
      %p93 = scmp.ne.s32.totalorder %s84, %s85
      %p94 = scmp.eq.s32.totalorder %s32, 0
      %p95 = por %p93, %p94
      %p96 = scmp.ne.s32.totalorder %s84, %s85
      %p97 = scmp.eq.s32.totalorder %s33, 1
      %p98 = por %p96, %p97
      %p100 = scmp.ne.s32.totalorder %s85, %s99
      %p101 = scmp.eq.s32.totalorder %s33, 0
      %p102 = por %p100, %p101
      %s104 = sadd.s32 %s103, 1
      %p107 = scmp.eq.s32.totalorder %s27, 1
      %p108 = scmp.ne.s32.totalorder %s103, %s105
      %p109 = scmp.eq.s32.totalorder %s27, 0
      %p110 = por %p108, %p109
      %p111 = scmp.ne.s32.totalorder %s103, %s105
      %p112 = scmp.eq.s32.totalorder %s32, 1
      %p113 = por %p111, %p112
      %p114 = scmp.ne.s32.totalorder %s105, %s106
      %p115 = scmp.eq.s32.totalorder %s32, 0
      %p116 = por %p114, %p115
      %p117 = scmp.ne.s32.totalorder %s105, %s106
      %p118 = scmp.eq.s32.totalorder %s33, 1
      %p119 = por %p117, %p118
      %p121 = scmp.ne.s32.totalorder %s106, %s120
      %p122 = scmp.eq.s32.totalorder %s33, 0
      %p123 = por %p121, %p122
      %s125 = sadd.s32 %s124, 1
      %p128 = scmp.eq.s32.totalorder %s27, 1
      %p129 = scmp.ne.s32.totalorder %s124, %s126
      %p130 = scmp.eq.s32.totalorder %s27, 0
      %p131 = por %p129, %p130
      %p132 = scmp.ne.s32.totalorder %s124, %s126
      %p133 = scmp.eq.s32.totalorder %s32, 1
      %p134 = por %p132, %p133
      %p135 = scmp.ne.s32.totalorder %s126, %s127
      %p136 = scmp.eq.s32.totalorder %s32, 0
      %p137 = por %p135, %p136
      %p138 = scmp.ne.s32.totalorder %s126, %s127
      %p139 = scmp.eq.s32.totalorder %s33, 1
      %p140 = por %p138, %p139
      %p142 = scmp.ne.s32.totalorder %s127, %s141
      %p143 = scmp.eq.s32.totalorder %s33, 0
      %p144 = por %p142, %p143
      %s146 = sadd.s32 %s145, 1
      %p149 = scmp.eq.s32.totalorder %s27, 1
      %p150 = scmp.ne.s32.totalorder %s145, %s147
      %p151 = scmp.eq.s32.totalorder %s27, 0
      %p152 = por %p150, %p151
      %p153 = scmp.ne.s32.totalorder %s145, %s147
      %p154 = scmp.eq.s32.totalorder %s32, 1
      %p155 = por %p153, %p154
      %p156 = scmp.ne.s32.totalorder %s147, %s148
      %p157 = scmp.eq.s32.totalorder %s32, 0
      %p158 = por %p156, %p157
      %p159 = scmp.ne.s32.totalorder %s147, %s148
      %p160 = scmp.eq.s32.totalorder %s33, 1
      %p161 = por %p159, %p160
      %p163 = scmp.ne.s32.totalorder %s148, %s162
      %p164 = scmp.eq.s32.totalorder %s33, 0
      %p165 = por %p163, %p164
      %s167 = sadd.s32 %s166, 1
      %p170 = scmp.eq.s32.totalorder %s27, 1
      %p171 = scmp.ne.s32.totalorder %s166, %s168
      %p172 = scmp.eq.s32.totalorder %s27, 0
      %p173 = por %p171, %p172
      %p174 = scmp.ne.s32.totalorder %s166, %s168
      %p175 = scmp.eq.s32.totalorder %s32, 1
      %p176 = por %p174, %p175
      %p177 = scmp.ne.s32.totalorder %s168, %s169
      %p178 = scmp.eq.s32.totalorder %s32, 0
      %p179 = por %p177, %p178
      %p180 = scmp.ne.s32.totalorder %s168, %s169
      %p181 = scmp.eq.s32.totalorder %s33, 1
      %p182 = por %p180, %p181
      %p184 = scmp.ne.s32.totalorder %s169, %s183
      %p185 = scmp.eq.s32.totalorder %s33, 0
      %p186 = por %p184, %p185
      %s188 = sadd.s32 %s187, 1
      %p191 = scmp.eq.s32.totalorder %s27, 1
      %p192 = scmp.ne.s32.totalorder %s187, %s189
      %p193 = scmp.eq.s32.totalorder %s27, 0
      %p194 = por %p192, %p193
      %p195 = scmp.ne.s32.totalorder %s187, %s189
      %p196 = scmp.eq.s32.totalorder %s32, 1
      %p197 = por %p195, %p196
      %p198 = scmp.ne.s32.totalorder %s189, %s190
      %p199 = scmp.eq.s32.totalorder %s32, 0
      %p200 = por %p198, %p199
      %p201 = scmp.ne.s32.totalorder %s189, %s190
      %p202 = scmp.eq.s32.totalorder %s33, 1
      %p203 = por %p201, %p202
      %p205 = scmp.ne.s32.totalorder %s190, %s204
      %p206 = scmp.eq.s32.totalorder %s33, 0
      %p207 = por %p205, %p206
      %s209 = sadd.s32 %s208, 1
      %p212 = scmp.eq.s32.totalorder %s27, 1
      %p213 = scmp.ne.s32.totalorder %s208, %s210
      %p214 = scmp.eq.s32.totalorder %s27, 0
      %p215 = por %p213, %p214
      %p216 = scmp.ne.s32.totalorder %s208, %s210
      %p217 = scmp.eq.s32.totalorder %s32, 1
      %p218 = por %p216, %p217
      %p219 = scmp.ne.s32.totalorder %s210, %s211
      %p220 = scmp.eq.s32.totalorder %s32, 0
      %p221 = por %p219, %p220
      %p222 = scmp.ne.s32.totalorder %s210, %s211
      %p223 = scmp.eq.s32.totalorder %s33, 1
      %p224 = por %p222, %p223
      %p226 = scmp.ne.s32.totalorder %s211, %s225
      %p227 = scmp.eq.s32.totalorder %s33, 0
      %p228 = por %p226, %p227
      %s230 = sadd.s32 %s229, 1
      %p233 = scmp.eq.s32.totalorder %s27, 1
      %p234 = scmp.ne.s32.totalorder %s229, %s231
      %p235 = scmp.eq.s32.totalorder %s27, 0
      %p236 = por %p234, %p235
      %p237 = scmp.ne.s32.totalorder %s229, %s231
      %p238 = scmp.eq.s32.totalorder %s32, 1
      %p239 = por %p237, %p238
      %p240 = scmp.ne.s32.totalorder %s231, %s232
      %p241 = scmp.eq.s32.totalorder %s32, 0
      %p242 = por %p240, %p241
      %p243 = scmp.ne.s32.totalorder %s231, %s232
      %p244 = scmp.eq.s32.totalorder %s33, 1
      %p245 = por %p243, %p244
      %p247 = scmp.ne.s32.totalorder %s232, %s246
      %p248 = scmp.eq.s32.totalorder %s33, 0
      %p249 = por %p247, %p248
      %s251 = sadd.s32 %s250, 1
      %p254 = scmp.eq.s32.totalorder %s27, 1
      %p255 = scmp.ne.s32.totalorder %s250, %s252
      %p256 = scmp.eq.s32.totalorder %s27, 0
      %p257 = por %p255, %p256
      %p258 = scmp.ne.s32.totalorder %s250, %s252
      %p259 = scmp.eq.s32.totalorder %s32, 1
      %p260 = por %p258, %p259
      %p261 = scmp.ne.s32.totalorder %s252, %s253
      %p262 = scmp.eq.s32.totalorder %s32, 0
      %p263 = por %p261, %p262
      %p264 = scmp.ne.s32.totalorder %s252, %s253
      %p265 = scmp.eq.s32.totalorder %s33, 1
      %p266 = por %p264, %p265
      %p268 = scmp.ne.s32.totalorder %s253, %s267
      %p269 = scmp.eq.s32.totalorder %s33, 0
      %p270 = por %p268, %p269
      %s272 = sadd.s32 %s271, 1
      %p275 = scmp.eq.s32.totalorder %s27, 1
      %p276 = scmp.ne.s32.totalorder %s271, %s273
      %p277 = scmp.eq.s32.totalorder %s27, 0
      %p278 = por %p276, %p277
      %p279 = scmp.ne.s32.totalorder %s271, %s273
      %p280 = scmp.eq.s32.totalorder %s32, 1
      %p281 = por %p279, %p280
      %p282 = scmp.ne.s32.totalorder %s273, %s274
      %p283 = scmp.eq.s32.totalorder %s32, 0
      %p284 = por %p282, %p283
      %p285 = scmp.ne.s32.totalorder %s273, %s274
      %p286 = scmp.eq.s32.totalorder %s33, 1
      %p287 = por %p285, %p286
      %p289 = scmp.ne.s32.totalorder %s274, %s288
      %p290 = scmp.eq.s32.totalorder %s33, 0
      %p291 = por %p289, %p290
      %s293 = sadd.s32 %s292, 1
      %p296 = scmp.eq.s32.totalorder %s27, 1
      %p297 = scmp.ne.s32.totalorder %s292, %s294
      %p298 = scmp.eq.s32.totalorder %s27, 0
      %p299 = por %p297, %p298
      %p300 = scmp.ne.s32.totalorder %s292, %s294
      %p301 = scmp.eq.s32.totalorder %s32, 1
      %p302 = por %p300, %p301
      %p303 = scmp.ne.s32.totalorder %s294, %s295
      %p304 = scmp.eq.s32.totalorder %s32, 0
      %p305 = por %p303, %p304
      %p306 = scmp.ne.s32.totalorder %s294, %s295
      %p307 = scmp.eq.s32.totalorder %s33, 1
      %p308 = por %p306, %p307
      %p310 = scmp.ne.s32.totalorder %s295, %s309
      %p311 = scmp.eq.s32.totalorder %s33, 0
      %p312 = por %p310, %p311
      %s313 = ssub.s32 %s27, %s34
      %p314 = scmp.eq.s32.totalorder %s313, 0
      %s316 = sadd.s32 %s315, 1
      %s317 = scalar_select %p314, %s315, %s316
      %p320 = pneg %p314
      %p321 = scmp.eq.s32.totalorder %s27, 1
      %p322 = por %p320, %p321
      %p323 = scmp.ne.s32.totalorder %s315, %s318
      %p324 = scmp.eq.s32.totalorder %s27, 0
      %p325 = por %p323, %p324
      %p326 = scmp.ne.s32.totalorder %s315, %s318
      %p327 = scmp.eq.s32.totalorder %s32, 1
      %p328 = por %p326, %p327
      %p329 = scmp.ne.s32.totalorder %s318, %s319
      %p330 = scmp.eq.s32.totalorder %s32, 0
      %p331 = por %p329, %p330
      %p332 = scmp.ne.s32.totalorder %s318, %s319
      %p333 = scmp.eq.s32.totalorder %s33, 1
      %p334 = por %p332, %p333
      %p336 = scmp.ne.s32.totalorder %s319, %s335
      %p337 = scmp.eq.s32.totalorder %s33, 0
      %p338 = por %p336, %p337
      %p339 = scmp.le.s32.totalorder 1, %s27
      %p340 = scmp.lt.s32.totalorder %s27, 3
      %p341 = pnand %p339, %p340
      %p342 = pneg %p341
      // Predicated region
      $region9: #{tpu_custom_call.1} parent=5 // pred_check
        _
      $region10: #{tpu_custom_call.1} parent=5 // pred_check_branch
        %344 = sbr.rel (%p341) target = $region12
      $region11: #{tpu_custom_call.1} parent=5 // pred_region
        %s345 = ssub.s32 %s27, 1
        // Predicated region
        $region13: #{tpu_custom_call.1} parent=11 // pred_check
          %p346 = pneg %p74
        $region14: #{tpu_custom_call.1} parent=11 // pred_check_branch
          %348 = sbr.rel (%p346) target = $region16
        $region15: #{tpu_custom_call.1} parent=11 // pred_region
          %s350 = ssub.s32 6144, 6144
          %351 = vsyncadd [#allocation8], %s350
          %s352 = sshll.u32 [#allocation7], 4
          %s353 = int_to_ptr.vmem [resolvable:$true] %s352
          %358 = dma.hbm_to_vmem [thread:$0]  %s1, 6144, %s353, [#allocation8], 384, 384, 24
        $region16: #{tpu_custom_call.1} parent=11 // pred_fallthru
          _
        // Predicated region
        $region17: #{tpu_custom_call.1} parent=11 // pred_check
          %p359 = pneg %p95
        $region18: #{tpu_custom_call.1} parent=11 // pred_check_branch
          %361 = sbr.rel (%p359) target = $region20
        $region19: #{tpu_custom_call.1} parent=11 // pred_region
          _
        $region20: #{tpu_custom_call.1} parent=11 // pred_fallthru
          _
        // Predicated region
        $region21: #{tpu_custom_call.1} parent=11 // pred_check
          %p362 = pneg %p116
        $region22: #{tpu_custom_call.1} parent=11 // pred_check_branch
          %364 = sbr.rel (%p362) target = $region24
        $region23: #{tpu_custom_call.1} parent=11 // pred_region
          %s366 = ssub.s32 2048, 2048
          %367 = vsyncadd [#allocation8], %s366
          %s368 = sshll.u32 [#allocation9], 4
          %s369 = int_to_ptr.vmem [resolvable:$true] %s368
          %374 = dma.hbm_to_vmem [thread:$0]  %s3, 2048, %s369, [#allocation8], 128, 128, 8
        $region24: #{tpu_custom_call.1} parent=11 // pred_fallthru
          _
        // Predicated region
        $region25: #{tpu_custom_call.1} parent=11 // pred_check
          %p375 = pneg %p137
        $region26: #{tpu_custom_call.1} parent=11 // pred_check_branch
          %377 = sbr.rel (%p375) target = $region28
        $region27: #{tpu_custom_call.1} parent=11 // pred_region
          _
        $region28: #{tpu_custom_call.1} parent=11 // pred_fallthru
          _
        // Predicated region
        $region29: #{tpu_custom_call.1} parent=11 // pred_check
          %p378 = pneg %p158
        $region30: #{tpu_custom_call.1} parent=11 // pred_check_branch
          %380 = sbr.rel (%p378) target = $region32
        $region31: #{tpu_custom_call.1} parent=11 // pred_region
          _
        $region32: #{tpu_custom_call.1} parent=11 // pred_fallthru
          _
        // Predicated region
        $region33: #{tpu_custom_call.1} parent=11 // pred_check
          %p381 = pneg %p179
        $region34: #{tpu_custom_call.1} parent=11 // pred_check_branch
          %383 = sbr.rel (%p381) target = $region36
        $region35: #{tpu_custom_call.1} parent=11 // pred_region
          _
        $region36: #{tpu_custom_call.1} parent=11 // pred_fallthru
          _
        // Predicated region
        $region37: #{tpu_custom_call.1} parent=11 // pred_check
          %p384 = pneg %p200
        $region38: #{tpu_custom_call.1} parent=11 // pred_check_branch
          %386 = sbr.rel (%p384) target = $region40
        $region39: #{tpu_custom_call.1} parent=11 // pred_region
          %s388 = ssub.s32 8192, 8192
          %389 = vsyncadd [#allocation11], %s388
          %s390 = sshll.u32 [#allocation10], 4
          %s391 = int_to_ptr.vmem [resolvable:$true] %s390
          %396 = dma.hbm_to_vmem [thread:$0]  %s7, 8192, %s391, [#allocation11], 512, 512, 32
        $region40: #{tpu_custom_call.1} parent=11 // pred_fallthru
          _
        // Predicated region
        $region41: #{tpu_custom_call.1} parent=11 // pred_check
          %p397 = pneg %p221
        $region42: #{tpu_custom_call.1} parent=11 // pred_check_branch
          %399 = sbr.rel (%p397) target = $region44
        $region43: #{tpu_custom_call.1} parent=11 // pred_region
          _
        $region44: #{tpu_custom_call.1} parent=11 // pred_fallthru
          _
        // Predicated region
        $region45: #{tpu_custom_call.1} parent=11 // pred_check
          %p400 = pneg %p242
        $region46: #{tpu_custom_call.1} parent=11 // pred_check_branch
          %402 = sbr.rel (%p400) target = $region48
        $region47: #{tpu_custom_call.1} parent=11 // pred_region
          %s404 = ssub.s32 8192, 8192
          %405 = vsyncadd [#allocation11], %s404
          %s406 = sshll.u32 [#allocation12], 4
          %s407 = int_to_ptr.vmem [resolvable:$true] %s406
          %412 = dma.hbm_to_vmem [thread:$0]  %s9, 8192, %s407, [#allocation11], 128, 128, 8
        $region48: #{tpu_custom_call.1} parent=11 // pred_fallthru
          _
        // Predicated region
        $region49: #{tpu_custom_call.1} parent=11 // pred_check
          %p413 = pneg %p263
        $region50: #{tpu_custom_call.1} parent=11 // pred_check_branch
          %415 = sbr.rel (%p413) target = $region52
        $region51: #{tpu_custom_call.1} parent=11 // pred_region
          _
        $region52: #{tpu_custom_call.1} parent=11 // pred_fallthru
          _
        // Predicated region
        $region53: #{tpu_custom_call.1} parent=11 // pred_check
          %p416 = pneg %p284
        $region54: #{tpu_custom_call.1} parent=11 // pred_check_branch
          %418 = sbr.rel (%p416) target = $region56
        $region55: #{tpu_custom_call.1} parent=11 // pred_region
          _
        $region56: #{tpu_custom_call.1} parent=11 // pred_fallthru
          _
        // Predicated region
        $region57: #{tpu_custom_call.1} parent=11 // pred_check
          %p419 = pneg %p305
        $region58: #{tpu_custom_call.1} parent=11 // pred_check_branch
          %421 = sbr.rel (%p419) target = $region60
        $region59: #{tpu_custom_call.1} parent=11 // pred_region
          _
        $region60: #{tpu_custom_call.1} parent=11 // pred_fallthru
          _
      $region12: #{tpu_custom_call.1} parent=5 // pred_fallthru
        _
      %p422 = scmp.lt.s32.totalorder %s27, 2
      // Predicated region
      $region61: #{tpu_custom_call.1} parent=5 // pred_check
        %p423 = pneg %p422
      $region62: #{tpu_custom_call.1} parent=5 // pred_check_branch
        %425 = sbr.rel (%p423) target = $region64
      $region63: #{tpu_custom_call.1} parent=5 // pred_region
        // Predicated region
        $region65: #{tpu_custom_call.1} parent=63 // pred_check
          %p426 = pneg %p47
        $region66: #{tpu_custom_call.1} parent=63 // pred_check_branch
          %428 = sbr.rel (%p426) target = $region68
        $region67: #{tpu_custom_call.1} parent=63 // pred_region
          %s429 = sand.u32 %s37, 1
          %s430 = scalar_lea.sflag [#allocation5], %s429
          %s431 = sand.u32 %s37, 1
          %s432 = smul.addr %s431, 128
          %s433 = scalar_lea.vmem [#allocation4], %s432
          %s434 = smul.u32 4, %s27
          %s436 = ssub.s32 2048, 2048
          %437 = vsyncadd %s430, %s436
          %s438 = smul.addr %s434, 4
          %s439 = smul.addr %s438, 128
          %s440 = scalar_lea.hbm %s0, %s439
          %s441 = sshll.u32 %s433, 4
          %s442 = int_to_ptr.vmem [resolvable:$true] %s441
          %447 = dma.hbm_to_vmem [thread:$0]  %s440, 2048, %s442, %s430, 128, 128, 8
        $region68: #{tpu_custom_call.1} parent=63 // pred_fallthru
          _
      $region64: #{tpu_custom_call.1} parent=5 // pred_fallthru
        _
      %p448 = scmp.le.s32.totalorder 1, %s27
      %p449 = scmp.lt.s32.totalorder %s27, 3
      %p450 = pnand %p448, %p449
      %p451 = pneg %p450
      // Predicated region
      $region69: #{tpu_custom_call.1} parent=5 // pred_check
        _
      $region70: #{tpu_custom_call.1} parent=5 // pred_check_branch
        %453 = sbr.rel (%p450) target = $region72
      $region71: #{tpu_custom_call.1} parent=5 // pred_region
        %s454 = ssub.s32 %s27, 1
        %s455 = sand.u32 %s40, 1
        %s456 = scalar_lea.sflag [#allocation5], %s455
        %s457 = sand.u32 %s40, 1
        %s458 = smul.addr %s457, 128
        %s459 = scalar_lea.vmem [#allocation4], %s458
        // Predicated region
        $region73: #{tpu_custom_call.1} parent=71 // pred_check
          %p460 = pneg %p53
        $region74: #{tpu_custom_call.1} parent=71 // pred_check_branch
          %462 = sbr.rel (%p460) target = $region76
        $region75: #{tpu_custom_call.1} parent=71 // pred_region
          %463 = dma.done %s456, 2048
        $region76: #{tpu_custom_call.1} parent=71 // pred_fallthru
          _
        // Predicated region
        $region77: #{tpu_custom_call.1} parent=71 // pred_check
          %p464 = pneg %p74
        $region78: #{tpu_custom_call.1} parent=71 // pred_check_branch
          %466 = sbr.rel (%p464) target = $region80
        $region79: #{tpu_custom_call.1} parent=71 // pred_region
          %467 = dma.done [#allocation8], 6144
        $region80: #{tpu_custom_call.1} parent=71 // pred_fallthru
          _
        // Predicated region
        $region81: #{tpu_custom_call.1} parent=71 // pred_check
          %p468 = pneg %p116
        $region82: #{tpu_custom_call.1} parent=71 // pred_check_branch
          %470 = sbr.rel (%p468) target = $region84
        $region83: #{tpu_custom_call.1} parent=71 // pred_region
          %471 = dma.done [#allocation8], 2048
        $region84: #{tpu_custom_call.1} parent=71 // pred_fallthru
          _
        // Predicated region
        $region85: #{tpu_custom_call.1} parent=71 // pred_check
          %p472 = pneg %p200
        $region86: #{tpu_custom_call.1} parent=71 // pred_check_branch
          %474 = sbr.rel (%p472) target = $region88
        $region87: #{tpu_custom_call.1} parent=71 // pred_region
          %475 = dma.done [#allocation11], 8192
        $region88: #{tpu_custom_call.1} parent=71 // pred_fallthru
          _
        // Predicated region
        $region89: #{tpu_custom_call.1} parent=71 // pred_check
          %p476 = pneg %p242
        $region90: #{tpu_custom_call.1} parent=71 // pred_check_branch
          %478 = sbr.rel (%p476) target = $region92
        $region91: #{tpu_custom_call.1} parent=71 // pred_region
          %479 = dma.done [#allocation11], 8192
        $region92: #{tpu_custom_call.1} parent=71 // pred_fallthru
          _
        %s480 = sand.u32 %s40, 1
        %s481 = scalar_lea.sflag [#allocation5], %s480
        %s482 = sand.u32 %s40, 1
        %s483 = smul.addr %s482, 128
        %s484 = scalar_lea.vmem [#allocation4], %s483
        %p485 = pneg %p53
        %p486 = pneg %p50
        %p487 = pneg %p74
        %p488 = pneg %p71
        %p489 = pneg %p95
        %p490 = pneg %p92
        %p491 = pneg %p116
        %p492 = pneg %p113
        %p493 = pneg %p137
        %p494 = pneg %p134
        %p495 = pneg %p158
        %p496 = pneg %p155
        %p497 = pneg %p179
        %p498 = pneg %p176
        %p499 = pneg %p200
        %p500 = pneg %p197
        %p501 = pneg %p221
        %p502 = pneg %p218
        %p503 = pneg %p242
        %p504 = pneg %p239
        %p505 = pneg %p263
        %p506 = pneg %p260
        %p507 = pneg %p284
        %p508 = pneg %p281
        %p509 = pneg %p305
        %p510 = pneg %p302
        %p511 = pneg %p331
        %p512 = pneg %p328
        %s513 = sand.u32 %s318, 1
        %s514 = scalar_lea.sflag [#allocation6], %s513
        %s515 = sand.u32 %s318, 1
        %s516 = smul.addr %s515, 128
        %s517 = scalar_lea.vmem [#allocation13], %s516
        %s518 = smul.u32 4, %s32
        %s519 = smul.u32 4, %s32
        %v520 = vld [vmem:[%s459] sm:$0xff]
        %v521 = vld [vmem:[%s459 + $0x8] sm:$0xff]
        %v522 = vld [vmem:[%s459 + $0x10] sm:$0xff]
        %v523 = vld [vmem:[%s459 + $0x18] sm:$0xff]
        %v524 = vld [vmem:[%s459 + $0x20] sm:$0xff]
        %v525 = vld [vmem:[%s459 + $0x28] sm:$0xff]
        %v526 = vld [vmem:[%s459 + $0x30] sm:$0xff]
        %v527 = vld [vmem:[%s459 + $0x38] sm:$0xff]
        %v528 = vld [vmem:[%s459 + $0x40] sm:$0xff]
        %v529 = vld [vmem:[%s459 + $0x48] sm:$0xff]
        %v530 = vld [vmem:[%s459 + $0x50] sm:$0xff]
        %v531 = vld [vmem:[%s459 + $0x58] sm:$0xff]
        %v532 = vld [vmem:[%s459 + $0x60] sm:$0xff]
        %v533 = vld [vmem:[%s459 + $0x68] sm:$0xff]
        %v534 = vld [vmem:[%s459 + $0x70] sm:$0xff]
        %v535 = vld [vmem:[%s459 + $0x78] sm:$0xff]
        %v536 = vld [vmem:[#allocation7] sm:$0xff]
        %v537 = vld [vmem:[#allocation7 + $0x8] sm:$0xff]
        %v538 = vld [vmem:[#allocation7 + $0x10] sm:$0xff]
        %v539 = vld [vmem:[#allocation7 + $0x18] sm:$0xff]
        %v540 = vld [vmem:[#allocation7 + $0x20] sm:$0xff]
        %v541 = vld [vmem:[#allocation7 + $0x28] sm:$0xff]
        %v542 = vld [vmem:[#allocation7 + $0x30] sm:$0xff]
        %v543 = vld [vmem:[#allocation7 + $0x38] sm:$0xff]
        %v544 = vld [vmem:[#allocation7 + $0x40] sm:$0xff]
        %v545 = vld [vmem:[#allocation7 + $0x48] sm:$0xff]
        %v546 = vld [vmem:[#allocation7 + $0x50] sm:$0xff]
        %v547 = vld [vmem:[#allocation7 + $0x58] sm:$0xff]
        %v548 = vld [vmem:[#allocation7 + $0x60] sm:$0xff]
        %v549 = vld [vmem:[#allocation7 + $0x68] sm:$0xff]
        %v550 = vld [vmem:[#allocation7 + $0x70] sm:$0xff]
        %v551 = vld [vmem:[#allocation7 + $0x78] sm:$0xff]
        %v552 = vld [vmem:[#allocation7 + $0x80] sm:$0xff]
        %v553 = vld [vmem:[#allocation7 + $0x88] sm:$0xff]
        %v554 = vld [vmem:[#allocation7 + $0x90] sm:$0xff]
        %v555 = vld [vmem:[#allocation7 + $0x98] sm:$0xff]
        %v556 = vld [vmem:[#allocation7 + $0xa0] sm:$0xff]
        %v557 = vld [vmem:[#allocation7 + $0xa8] sm:$0xff]
        %v558 = vld [vmem:[#allocation7 + $0xb0] sm:$0xff]
        %v559 = vld [vmem:[#allocation7 + $0xb8] sm:$0xff]
        %v560 = vld [vmem:[#allocation7 + $0xc0] sm:$0xff]
        %v561 = vld [vmem:[#allocation7 + $0xc8] sm:$0xff]
        %v562 = vld [vmem:[#allocation7 + $0xd0] sm:$0xff]
        %v563 = vld [vmem:[#allocation7 + $0xd8] sm:$0xff]
        %v564 = vld [vmem:[#allocation7 + $0xe0] sm:$0xff]
        %v565 = vld [vmem:[#allocation7 + $0xe8] sm:$0xff]
        %v566 = vld [vmem:[#allocation7 + $0xf0] sm:$0xff]
        %v567 = vld [vmem:[#allocation7 + $0xf8] sm:$0xff]
        %v568 = vld [vmem:[#allocation7 + $0x100] sm:$0xff]
        %v569 = vld [vmem:[#allocation7 + $0x108] sm:$0xff]
        %v570 = vld [vmem:[#allocation7 + $0x110] sm:$0xff]
        %v571 = vld [vmem:[#allocation7 + $0x118] sm:$0xff]
        %v572 = vld [vmem:[#allocation7 + $0x120] sm:$0xff]
        %v573 = vld [vmem:[#allocation7 + $0x128] sm:$0xff]
        %v574 = vld [vmem:[#allocation7 + $0x130] sm:$0xff]
        %v575 = vld [vmem:[#allocation7 + $0x138] sm:$0xff]
        %v576 = vld [vmem:[#allocation7 + $0x140] sm:$0xff]
        %v577 = vld [vmem:[#allocation7 + $0x148] sm:$0xff]
        %v578 = vld [vmem:[#allocation7 + $0x150] sm:$0xff]
        %v579 = vld [vmem:[#allocation7 + $0x158] sm:$0xff]
        %v580 = vld [vmem:[#allocation7 + $0x160] sm:$0xff]
        %v581 = vld [vmem:[#allocation7 + $0x168] sm:$0xff]
        %v582 = vld [vmem:[#allocation7 + $0x170] sm:$0xff]
        %v583 = vld [vmem:[#allocation7 + $0x178] sm:$0xff]
        %v584 = vld [vmem:[%s2] sm:$0x7]
        %v586 = vlaneseq
        %v587 = vshrl.u32 %v586, 7
        %v588 = vsub.s32 0, %v587
        %v589 = vrot.slane %v584, %v588
        %v590 = vlaneseq
        %v591 = vshrl.u32 %v590, 7
        %v592 = vsub.s32 1, %v591
        %v593 = vrot.slane %v584, %v592
        %v594 = vlaneseq
        %v595 = vshrl.u32 %v594, 7
        %v596 = vsub.s32 2, %v595
        %v597 = vrot.slane %v584, %v596
        %601 = vmatprep.subr.mxu0 %v537
        %602 = vmatpush1.msra.mxu0 %v536
        %603 = vmatprep.subr.mxu0 %v540
        %604 = vmatpush1.msra.mxu0 %v539
        %605 = vmatprep.subr.mxu0 %v543
        %606 = vmatpush1.msra.mxu0 %v542
        %607 = vmatprep.subr.mxu0 %v546
        %608 = vmatpush1.msra.mxu0 %v545
        %609 = vmatprep.subr.mxu0 %v549
        %610 = vmatpush1.msra.mxu0 %v548
        %611 = vmatprep.subr.mxu0 %v552
        %612 = vmatpush1.msra.mxu0 %v551
        %613 = vmatprep.subr.mxu0 %v555
        %614 = vmatpush1.msra.mxu0 %v554
        %615 = vmatprep.subr.mxu0 %v558
        %616 = vmatpush1.msra.mxu0 %v557
        %617 = vmatprep.subr.mxu0 %v561
        %618 = vmatpush1.msra.mxu0 %v560
        %619 = vmatprep.subr.mxu0 %v564
        %620 = vmatpush1.msra.mxu0 %v563
        %621 = vmatprep.subr.mxu0 %v567
        %622 = vmatpush1.msra.mxu0 %v566
        %623 = vmatprep.subr.mxu0 %v570
        %624 = vmatpush1.msra.mxu0 %v569
        %625 = vmatprep.subr.mxu0 %v573
        %626 = vmatpush1.msra.mxu0 %v572
        %627 = vmatprep.subr.mxu0 %v576
        %628 = vmatpush1.msra.mxu0 %v575
        %629 = vmatprep.subr.mxu0 %v579
        %630 = vmatpush1.msra.mxu0 %v578
        %631 = vmatprep.subr.mxu0 %v582
        %632 = vmatpush1.msra.mxu0 %v581
        %633 = vmatprep.subr.mxu0 0.0
        %634 = vmatpush1.msra.mxu0 0.0
        %635 = vmatprep.subr.mxu0 0.0
        %636 = vmatpush1.msra.mxu0 0.0
        %637 = vmatprep.subr.mxu0 0.0
        %638 = vmatpush1.msra.mxu0 0.0
        %639 = vmatprep.subr.mxu0 0.0
        %640 = vmatpush1.msra.mxu0 0.0
        %641 = vmatprep.subr.mxu0 0.0
        %642 = vmatpush1.msra.mxu0 0.0
        %643 = vmatprep.subr.mxu0 0.0
        %644 = vmatpush1.msra.mxu0 0.0
        %645 = vmatprep.subr.mxu0 0.0
        %646 = vmatpush1.msra.mxu0 0.0
        %647 = vmatprep.subr.mxu0 0.0
        %648 = vmatpush1.msra.mxu0 0.0
        %649 = vmatprep.subr.mxu0 0.0
        %650 = vmatpush1.msra.mxu0 0.0
        %651 = vmatprep.subr.mxu0 0.0
        %652 = vmatpush1.msra.mxu0 0.0
        %653 = vmatprep.subr.mxu0 0.0
        %654 = vmatpush1.msra.mxu0 0.0
        %655 = vmatprep.subr.mxu0 0.0
        %656 = vmatpush1.msra.mxu0 0.0
        %657 = vmatprep.subr.mxu0 0.0
        %658 = vmatpush1.msra.mxu0 0.0
        %659 = vmatprep.subr.mxu0 0.0
        %660 = vmatpush1.msra.mxu0 0.0
        %661 = vmatprep.subr.mxu0 0.0
        %662 = vmatpush1.msra.mxu0 0.0
        %663 = vmatprep.subr.mxu0 0.0
        %664 = vmatpush1.msra.mxu0 0.0
        %665 = vmatprep.mubr.f32.mxu0 0.0
        %666 = vmatmul.mubr.f32.gmra.mrb[0].mxu0 %v520
        %v667 = vpop.f32.mrb[0].mxu0
        %v668 = vadd.f32 %v589, %v667
        %v669 = vpop.f32.mrb[0].mxu0
        %v670 = vadd.f32 %v593, %v669
        %671 = vmatprep.mubr.f32.mxu0 0.0
        %672 = vmatmul.mubr.f32.gmra.mrb[0].mxu0 %v521
        %v673 = vpop.f32.mrb[0].mxu0
        %v674 = vadd.f32 %v589, %v673
        %v675 = vpop.f32.mrb[0].mxu0
        %v676 = vadd.f32 %v593, %v675
        %677 = vmatprep.mubr.f32.mxu0 0.0
        %678 = vmatmul.mubr.f32.gmra.mrb[0].mxu0 %v522
        %v679 = vpop.f32.mrb[0].mxu0
        %v680 = vadd.f32 %v589, %v679
        %v681 = vpop.f32.mrb[0].mxu0
        %v682 = vadd.f32 %v593, %v681
        %683 = vmatprep.mubr.f32.mxu0 0.0
        %684 = vmatmul.mubr.f32.gmra.mrb[0].mxu0 %v523
        %v685 = vpop.f32.mrb[0].mxu0
        %v686 = vadd.f32 %v589, %v685
        %v687 = vpop.f32.mrb[0].mxu0
        %v688 = vadd.f32 %v593, %v687
        %689 = vmatprep.mubr.f32.mxu0 0.0
        %690 = vmatmul.mubr.f32.gmra.mrb[0].mxu0 %v524
        %v691 = vpop.f32.mrb[0].mxu0
        %v692 = vadd.f32 %v589, %v691
        %v693 = vpop.f32.mrb[0].mxu0
        %v694 = vadd.f32 %v593, %v693
        %695 = vmatprep.mubr.f32.mxu0 0.0
        %696 = vmatmul.mubr.f32.gmra.mrb[0].mxu0 %v525
        %v697 = vpop.f32.mrb[0].mxu0
        %v698 = vadd.f32 %v589, %v697
        %v699 = vpop.f32.mrb[0].mxu0
        %v700 = vadd.f32 %v593, %v699
        %701 = vmatprep.mubr.f32.mxu0 0.0
        %702 = vmatmul.mubr.f32.gmra.mrb[0].mxu0 %v526
        %v703 = vpop.f32.mrb[0].mxu0
        %v704 = vadd.f32 %v589, %v703
        %v705 = vpop.f32.mrb[0].mxu0
        %v706 = vadd.f32 %v593, %v705
        %707 = vmatprep.mubr.f32.mxu0 0.0
        %708 = vmatmul.mubr.f32.gmra.mrb[0].mxu0 %v527
        %v709 = vpop.f32.mrb[0].mxu0
        %v710 = vadd.f32 %v589, %v709
        %v711 = vpop.f32.mrb[0].mxu0
        %v712 = vadd.f32 %v593, %v711
        %713 = vmatprep.mubr.f32.mxu0 0.0
        %714 = vmatmul.mubr.f32.gmra.mrb[0].mxu0 %v528
        %v715 = vpop.f32.mrb[0].mxu0
        %v716 = vadd.f32 %v589, %v715
        %v717 = vpop.f32.mrb[0].mxu0
        %v718 = vadd.f32 %v593, %v717
        %719 = vmatprep.mubr.f32.mxu0 0.0
        %720 = vmatmul.mubr.f32.gmra.mrb[0].mxu0 %v529
        %v721 = vpop.f32.mrb[0].mxu0
        %v722 = vadd.f32 %v589, %v721
        %v723 = vpop.f32.mrb[0].mxu0
        %v724 = vadd.f32 %v593, %v723
        %725 = vmatprep.mubr.f32.mxu0 0.0
        %726 = vmatmul.mubr.f32.gmra.mrb[0].mxu0 %v530
        %v727 = vpop.f32.mrb[0].mxu0
        %v728 = vadd.f32 %v589, %v727
        %v729 = vpop.f32.mrb[0].mxu0
        %v730 = vadd.f32 %v593, %v729
        %731 = vmatprep.mubr.f32.mxu0 0.0
        %732 = vmatmul.mubr.f32.gmra.mrb[0].mxu0 %v531
        %v733 = vpop.f32.mrb[0].mxu0
        %v734 = vadd.f32 %v589, %v733
        %v735 = vpop.f32.mrb[0].mxu0
        %v736 = vadd.f32 %v593, %v735
        %737 = vmatprep.mubr.f32.mxu0 0.0
        %738 = vmatmul.mubr.f32.gmra.mrb[0].mxu0 %v532
        %v739 = vpop.f32.mrb[0].mxu0
        %v740 = vadd.f32 %v589, %v739
        %v741 = vpop.f32.mrb[0].mxu0
        %v742 = vadd.f32 %v593, %v741
        %743 = vmatprep.mubr.f32.mxu0 0.0
        %744 = vmatmul.mubr.f32.gmra.mrb[0].mxu0 %v533
        %v745 = vpop.f32.mrb[0].mxu0
        %v746 = vadd.f32 %v589, %v745
        %v747 = vpop.f32.mrb[0].mxu0
        %v748 = vadd.f32 %v593, %v747
        %749 = vmatprep.mubr.f32.mxu0 0.0
        %750 = vmatmul.mubr.f32.gmra.mrb[0].mxu0 %v534
        %v751 = vpop.f32.mrb[0].mxu0
        %v752 = vadd.f32 %v589, %v751
        %v753 = vpop.f32.mrb[0].mxu0
        %v754 = vadd.f32 %v593, %v753
        %755 = vmatprep.mubr.f32.mxu0 0.0
        %756 = vmatmul.mubr.f32.gmra.mrb[0].mxu0 %v535
        %v757 = vpop.f32.mrb[0].mxu0
        %v758 = vadd.f32 %v589, %v757
        %v759 = vpop.f32.mrb[0].mxu0
        %v760 = vadd.f32 %v593, %v759
        %761 = vdwg.mxu0
        %762 = vmatprep.subr.mxu0 0.0
        %763 = vmatpush1.msra.mxu0 %v538
        %764 = vmatprep.subr.mxu0 0.0
        %765 = vmatpush1.msra.mxu0 %v541
        %766 = vmatprep.subr.mxu0 0.0
        %767 = vmatpush1.msra.mxu0 %v544
        %768 = vmatprep.subr.mxu0 0.0
        %769 = vmatpush1.msra.mxu0 %v547
        %770 = vmatprep.subr.mxu0 0.0
        %771 = vmatpush1.msra.mxu0 %v550
        %772 = vmatprep.subr.mxu0 0.0
        %773 = vmatpush1.msra.mxu0 %v553
        %774 = vmatprep.subr.mxu0 0.0
        %775 = vmatpush1.msra.mxu0 %v556
        %776 = vmatprep.subr.mxu0 0.0
        %777 = vmatpush1.msra.mxu0 %v559
        %778 = vmatprep.subr.mxu0 0.0
        %779 = vmatpush1.msra.mxu0 %v562
        %780 = vmatprep.subr.mxu0 0.0
        %781 = vmatpush1.msra.mxu0 %v565
        %782 = vmatprep.subr.mxu0 0.0
        %783 = vmatpush1.msra.mxu0 %v568
        %784 = vmatprep.subr.mxu0 0.0
        %785 = vmatpush1.msra.mxu0 %v571
        %786 = vmatprep.subr.mxu0 0.0
        %787 = vmatpush1.msra.mxu0 %v574
        %788 = vmatprep.subr.mxu0 0.0
        %789 = vmatpush1.msra.mxu0 %v577
        %790 = vmatprep.subr.mxu0 0.0
        %791 = vmatpush1.msra.mxu0 %v580
        %792 = vmatprep.subr.mxu0 0.0
        %793 = vmatpush1.msra.mxu0 %v583
        %794 = vmatprep.subr.mxu0 0.0
        %795 = vmatpush1.msra.mxu0 0.0
        %796 = vmatprep.subr.mxu0 0.0
        %797 = vmatpush1.msra.mxu0 0.0
        %798 = vmatprep.subr.mxu0 0.0
        %799 = vmatpush1.msra.mxu0 0.0
        %800 = vmatprep.subr.mxu0 0.0
        %801 = vmatpush1.msra.mxu0 0.0
        %802 = vmatprep.subr.mxu0 0.0
        %803 = vmatpush1.msra.mxu0 0.0
        %804 = vmatprep.subr.mxu0 0.0
        %805 = vmatpush1.msra.mxu0 0.0
        %806 = vmatprep.subr.mxu0 0.0
        %807 = vmatpush1.msra.mxu0 0.0
        %808 = vmatprep.subr.mxu0 0.0
        %809 = vmatpush1.msra.mxu0 0.0
        %810 = vmatprep.subr.mxu0 0.0
        %811 = vmatpush1.msra.mxu0 0.0
        %812 = vmatprep.subr.mxu0 0.0
        %813 = vmatpush1.msra.mxu0 0.0
        %814 = vmatprep.subr.mxu0 0.0
        %815 = vmatpush1.msra.mxu0 0.0
        %816 = vmatprep.subr.mxu0 0.0
        %817 = vmatpush1.msra.mxu0 0.0
        %818 = vmatprep.subr.mxu0 0.0
        %819 = vmatpush1.msra.mxu0 0.0
        %820 = vmatprep.subr.mxu0 0.0
        %821 = vmatpush1.msra.mxu0 0.0
        %822 = vmatprep.subr.mxu0 0.0
        %823 = vmatpush1.msra.mxu0 0.0
        %824 = vmatprep.subr.mxu0 0.0
        %825 = vmatpush1.msra.mxu0 0.0
        %826 = vmatprep.mubr.f32.mxu0 0.0
        %827 = vmatmul.mubr.f32.gmra.mrb[0].mxu0 %v520
        %v828 = vpop.f32.mrb[0].mxu0
        %v829 = vadd.f32 %v597, %v828
        %v830 = vpop.f32.mrb[0].mxu0
        %831 = vmatprep.mubr.f32.mxu0 0.0
        %832 = vmatmul.mubr.f32.gmra.mrb[0].mxu0 %v521
        %v833 = vpop.f32.mrb[0].mxu0
        %v834 = vadd.f32 %v597, %v833
        %v835 = vpop.f32.mrb[0].mxu0
        %836 = vmatprep.mubr.f32.mxu0 0.0
        %837 = vmatmul.mubr.f32.gmra.mrb[0].mxu0 %v522
        %v838 = vpop.f32.mrb[0].mxu0
        %v839 = vadd.f32 %v597, %v838
        %v840 = vpop.f32.mrb[0].mxu0
        %841 = vmatprep.mubr.f32.mxu0 0.0
        %842 = vmatmul.mubr.f32.gmra.mrb[0].mxu0 %v523
        %v843 = vpop.f32.mrb[0].mxu0
        %v844 = vadd.f32 %v597, %v843
        %v845 = vpop.f32.mrb[0].mxu0
        %846 = vmatprep.mubr.f32.mxu0 0.0
        %847 = vmatmul.mubr.f32.gmra.mrb[0].mxu0 %v524
        %v848 = vpop.f32.mrb[0].mxu0
        %v849 = vadd.f32 %v597, %v848
        %v850 = vpop.f32.mrb[0].mxu0
        %851 = vmatprep.mubr.f32.mxu0 0.0
        %852 = vmatmul.mubr.f32.gmra.mrb[0].mxu0 %v525
        %v853 = vpop.f32.mrb[0].mxu0
        %v854 = vadd.f32 %v597, %v853
        %v855 = vpop.f32.mrb[0].mxu0
        %856 = vmatprep.mubr.f32.mxu0 0.0
        %857 = vmatmul.mubr.f32.gmra.mrb[0].mxu0 %v526
        %v858 = vpop.f32.mrb[0].mxu0
        %v859 = vadd.f32 %v597, %v858
        %v860 = vpop.f32.mrb[0].mxu0
        %861 = vmatprep.mubr.f32.mxu0 0.0
        %862 = vmatmul.mubr.f32.gmra.mrb[0].mxu0 %v527
        %v863 = vpop.f32.mrb[0].mxu0
        %v864 = vadd.f32 %v597, %v863
        %v865 = vpop.f32.mrb[0].mxu0
        %866 = vmatprep.mubr.f32.mxu0 0.0
        %867 = vmatmul.mubr.f32.gmra.mrb[0].mxu0 %v528
        %v868 = vpop.f32.mrb[0].mxu0
        %v869 = vadd.f32 %v597, %v868
        %v870 = vpop.f32.mrb[0].mxu0
        %871 = vmatprep.mubr.f32.mxu0 0.0
        %872 = vmatmul.mubr.f32.gmra.mrb[0].mxu0 %v529
        %v873 = vpop.f32.mrb[0].mxu0
        %v874 = vadd.f32 %v597, %v873
        %v875 = vpop.f32.mrb[0].mxu0
        %876 = vmatprep.mubr.f32.mxu0 0.0
        %877 = vmatmul.mubr.f32.gmra.mrb[0].mxu0 %v530
        %v878 = vpop.f32.mrb[0].mxu0
        %v879 = vadd.f32 %v597, %v878
        %v880 = vpop.f32.mrb[0].mxu0
        %881 = vmatprep.mubr.f32.mxu0 0.0
        %882 = vmatmul.mubr.f32.gmra.mrb[0].mxu0 %v531
        %v883 = vpop.f32.mrb[0].mxu0
        %v884 = vadd.f32 %v597, %v883
        %v885 = vpop.f32.mrb[0].mxu0
        %886 = vmatprep.mubr.f32.mxu0 0.0
        %887 = vmatmul.mubr.f32.gmra.mrb[0].mxu0 %v532
        %v888 = vpop.f32.mrb[0].mxu0
        %v889 = vadd.f32 %v597, %v888
        %v890 = vpop.f32.mrb[0].mxu0
        %891 = vmatprep.mubr.f32.mxu0 0.0
        %892 = vmatmul.mubr.f32.gmra.mrb[0].mxu0 %v533
        %v893 = vpop.f32.mrb[0].mxu0
        %v894 = vadd.f32 %v597, %v893
        %v895 = vpop.f32.mrb[0].mxu0
        %896 = vmatprep.mubr.f32.mxu0 0.0
        %897 = vmatmul.mubr.f32.gmra.mrb[0].mxu0 %v534
        %v898 = vpop.f32.mrb[0].mxu0
        %v899 = vadd.f32 %v597, %v898
        %v900 = vpop.f32.mrb[0].mxu0
        %901 = vmatprep.mubr.f32.mxu0 0.0
        %902 = vmatmul.mubr.f32.gmra.mrb[0].mxu0 %v535
        %v903 = vpop.f32.mrb[0].mxu0
        %v904 = vadd.f32 %v597, %v903
        %v905 = vpop.f32.mrb[0].mxu0
        %906 = vdwg.mxu0
        %907 = vst [vmem:[#allocation2] sm:$0xff] %v668
        %908 = vst [vmem:[#allocation2 + $0x8] sm:$0xff] %v670
        %909 = vst [vmem:[#allocation2 + $0x10] sm:$0xff] %v829
        %910 = vst [vmem:[#allocation2 + $0x18] sm:$0xff] %v674
        %911 = vst [vmem:[#allocation2 + $0x20] sm:$0xff] %v676
        %912 = vst [vmem:[#allocation2 + $0x28] sm:$0xff] %v834
        %913 = vst [vmem:[#allocation2 + $0x30] sm:$0xff] %v680
        %914 = vst [vmem:[#allocation2 + $0x38] sm:$0xff] %v682
        %915 = vst [vmem:[#allocation2 + $0x40] sm:$0xff] %v839
        %916 = vst [vmem:[#allocation2 + $0x48] sm:$0xff] %v686
        %917 = vst [vmem:[#allocation2 + $0x50] sm:$0xff] %v688
        %918 = vst [vmem:[#allocation2 + $0x58] sm:$0xff] %v844
        %919 = vst [vmem:[#allocation2 + $0x60] sm:$0xff] %v692
        %920 = vst [vmem:[#allocation2 + $0x68] sm:$0xff] %v694
        %921 = vst [vmem:[#allocation2 + $0x70] sm:$0xff] %v849
        %922 = vst [vmem:[#allocation2 + $0x78] sm:$0xff] %v698
        %923 = vst [vmem:[#allocation2 + $0x80] sm:$0xff] %v700
        %924 = vst [vmem:[#allocation2 + $0x88] sm:$0xff] %v854
        %925 = vst [vmem:[#allocation2 + $0x90] sm:$0xff] %v704
        %926 = vst [vmem:[#allocation2 + $0x98] sm:$0xff] %v706
        %927 = vst [vmem:[#allocation2 + $0xa0] sm:$0xff] %v859
        %928 = vst [vmem:[#allocation2 + $0xa8] sm:$0xff] %v710
        %929 = vst [vmem:[#allocation2 + $0xb0] sm:$0xff] %v712
        %930 = vst [vmem:[#allocation2 + $0xb8] sm:$0xff] %v864
        %931 = vst [vmem:[#allocation2 + $0xc0] sm:$0xff] %v716
        %932 = vst [vmem:[#allocation2 + $0xc8] sm:$0xff] %v718
        %933 = vst [vmem:[#allocation2 + $0xd0] sm:$0xff] %v869
        %934 = vst [vmem:[#allocation2 + $0xd8] sm:$0xff] %v722
        %935 = vst [vmem:[#allocation2 + $0xe0] sm:$0xff] %v724
        %936 = vst [vmem:[#allocation2 + $0xe8] sm:$0xff] %v874
        %937 = vst [vmem:[#allocation2 + $0xf0] sm:$0xff] %v728
        %938 = vst [vmem:[#allocation2 + $0xf8] sm:$0xff] %v730
        %939 = vst [vmem:[#allocation2 + $0x100] sm:$0xff] %v879
        %940 = vst [vmem:[#allocation2 + $0x108] sm:$0xff] %v734
        %941 = vst [vmem:[#allocation2 + $0x110] sm:$0xff] %v736
        %942 = vst [vmem:[#allocation2 + $0x118] sm:$0xff] %v884
        %943 = vst [vmem:[#allocation2 + $0x120] sm:$0xff] %v740
        %944 = vst [vmem:[#allocation2 + $0x128] sm:$0xff] %v742
        %945 = vst [vmem:[#allocation2 + $0x130] sm:$0xff] %v889
        %946 = vst [vmem:[#allocation2 + $0x138] sm:$0xff] %v746
        %947 = vst [vmem:[#allocation2 + $0x140] sm:$0xff] %v748
        %948 = vst [vmem:[#allocation2 + $0x148] sm:$0xff] %v894
        %949 = vst [vmem:[#allocation2 + $0x150] sm:$0xff] %v752
        %950 = vst [vmem:[#allocation2 + $0x158] sm:$0xff] %v754
        %951 = vst [vmem:[#allocation2 + $0x160] sm:$0xff] %v899
        %952 = vst [vmem:[#allocation2 + $0x168] sm:$0xff] %v758
        %953 = vst [vmem:[#allocation2 + $0x170] sm:$0xff] %v760
        %954 = vst [vmem:[#allocation2 + $0x178] sm:$0xff] %v904
        %v955 = vlaneseq
        %v956 = vshrl.u32 %v955, 7
        %v957 = vadd.s32 %v956, 8
        %v958 = vadd.s32 %v956, 16
        %v959 = vadd.s32 %v956, 24
        %v960 = vlaneseq
        %v961 = vand.u32 %v960, 127
        %vm962 = vcmp.le.s32.totalorder %v961, %v956
        %vm963 = vcmp.le.s32.totalorder %v961, %v957
        %vm964 = vcmp.le.s32.totalorder %v961, %v958
        %vm965 = vcmp.le.s32.totalorder %v961, %v959
        %v966 = vsel %vm962, 0.0, -1e+30
        %v967 = vsel %vm963, 0.0, -1e+30
        %v968 = vsel %vm964, 0.0, -1e+30
        %v969 = vsel %vm965, 0.0, -1e+30
        %v970 = vld [vmem:[#allocation2] sm:$0xff]
        %v971 = vld [vmem:[#allocation2 + $0x18] sm:$0xff]
        %v972 = vld [vmem:[#allocation2 + $0x30] sm:$0xff]
        %v973 = vld [vmem:[#allocation2 + $0x48] sm:$0xff]
        %v974 = vld [vmem:[#allocation2 + $0x60] sm:$0xff]
        %v975 = vld [vmem:[#allocation2 + $0x78] sm:$0xff]
        %v976 = vld [vmem:[#allocation2 + $0x90] sm:$0xff]
        %v977 = vld [vmem:[#allocation2 + $0xa8] sm:$0xff]
        %v978 = vld [vmem:[#allocation2 + $0xc0] sm:$0xff]
        %v979 = vld [vmem:[#allocation2 + $0xd8] sm:$0xff]
        %v980 = vld [vmem:[#allocation2 + $0xf0] sm:$0xff]
        %v981 = vld [vmem:[#allocation2 + $0x108] sm:$0xff]
        %v982 = vld [vmem:[#allocation2 + $0x120] sm:$0xff]
        %v983 = vld [vmem:[#allocation2 + $0x138] sm:$0xff]
        %v984 = vld [vmem:[#allocation2 + $0x150] sm:$0xff]
        %v985 = vld [vmem:[#allocation2 + $0x168] sm:$0xff]
        %v986 = vld [vmem:[#allocation2 + $0x8] sm:$0xff]
        %v987 = vld [vmem:[#allocation2 + $0x20] sm:$0xff]
        %v988 = vld [vmem:[#allocation2 + $0x38] sm:$0xff]
        %v989 = vld [vmem:[#allocation2 + $0x50] sm:$0xff]
        %v990 = vld [vmem:[#allocation2 + $0x68] sm:$0xff]
        %v991 = vld [vmem:[#allocation2 + $0x80] sm:$0xff]
        %v992 = vld [vmem:[#allocation2 + $0x98] sm:$0xff]
        %v993 = vld [vmem:[#allocation2 + $0xb0] sm:$0xff]
        %v994 = vld [vmem:[#allocation2 + $0xc8] sm:$0xff]
        %v995 = vld [vmem:[#allocation2 + $0xe0] sm:$0xff]
        %v996 = vld [vmem:[#allocation2 + $0xf8] sm:$0xff]
        %v997 = vld [vmem:[#allocation2 + $0x110] sm:$0xff]
        %v998 = vld [vmem:[#allocation2 + $0x128] sm:$0xff]
        %v999 = vld [vmem:[#allocation2 + $0x140] sm:$0xff]
        %v1000 = vld [vmem:[#allocation2 + $0x158] sm:$0xff]
        %v1001 = vld [vmem:[#allocation2 + $0x170] sm:$0xff]
        %v1002 = vld [vmem:[#allocation2 + $0x10] sm:$0xff]
        %v1003 = vld [vmem:[#allocation2 + $0x28] sm:$0xff]
        %v1004 = vld [vmem:[#allocation2 + $0x40] sm:$0xff]
        %v1005 = vld [vmem:[#allocation2 + $0x58] sm:$0xff]
        %v1006 = vld [vmem:[#allocation2 + $0x70] sm:$0xff]
        %v1007 = vld [vmem:[#allocation2 + $0x88] sm:$0xff]
        %v1008 = vld [vmem:[#allocation2 + $0xa0] sm:$0xff]
        %v1009 = vld [vmem:[#allocation2 + $0xb8] sm:$0xff]
        %v1010 = vld [vmem:[#allocation2 + $0xd0] sm:$0xff]
        %v1011 = vld [vmem:[#allocation2 + $0xe8] sm:$0xff]
        %v1012 = vld [vmem:[#allocation2 + $0x100] sm:$0xff]
        %v1013 = vld [vmem:[#allocation2 + $0x118] sm:$0xff]
        %v1014 = vld [vmem:[#allocation2 + $0x130] sm:$0xff]
        %v1015 = vld [vmem:[#allocation2 + $0x148] sm:$0xff]
        %v1016 = vld [vmem:[#allocation2 + $0x160] sm:$0xff]
        %v1017 = vld [vmem:[#allocation2 + $0x178] sm:$0xff]
        %vm1018 = vcmask 261120
        %v1020 = vsel %vm1018, %v970, 0
        %v1023 = vsel %vm1018, %v971, 0
        %v1026 = vsel %vm1018, %v972, 0
        %v1029 = vsel %vm1018, %v973, 0
        %v1032 = vsel %vm1018, %v986, 0
        %v1035 = vsel %vm1018, %v987, 0
        %v1038 = vsel %vm1018, %v988, 0
        %v1041 = vsel %vm1018, %v989, 0
        %1043 = vmatprep.subr.mxu0 0.0
        %1044 = vmatpush1.xpose.msra.mxu0 %v1032
        %1045 = vmatprep.subr.mxu0 0.0
        %1046 = vmatpush1.xpose.msra.mxu0 %v1035
        %1047 = vmatprep.subr.mxu0 0.0
        %1048 = vmatpush1.xpose.msra.mxu0 %v1038
        %1049 = vmatprep.subr.mxu0 0.0
        %1050 = vmatpush1.xpose.msra.mxu0 %v1041
        %1051 = vmatprep.subr.mxu0 0.0
        %1052 = vmatpush1.xpose.msra.mxu0 0.0
        %1053 = vmatprep.subr.mxu0 0.0
        %1054 = vmatpush1.xpose.msra.mxu0 0.0
        %1055 = vmatprep.subr.mxu0 0.0
        %1056 = vmatpush1.xpose.msra.mxu0 0.0
        %1057 = vmatprep.subr.mxu0 0.0
        %1058 = vmatpush1.xpose.msra.mxu0 0.0
        %1059 = vmatprep.subr.mxu0 0.0
        %1060 = vmatpush1.xpose.msra.mxu0 0.0
        %1061 = vmatprep.subr.mxu0 0.0
        %1062 = vmatpush1.xpose.msra.mxu0 0.0
        %1063 = vmatprep.subr.mxu0 0.0
        %1064 = vmatpush1.xpose.msra.mxu0 0.0
        %1065 = vmatprep.subr.mxu0 0.0
        %1066 = vmatpush1.xpose.msra.mxu0 0.0
        %1067 = vmatprep.subr.mxu0 0.0
        %1068 = vmatpush1.xpose.msra.mxu0 0.0
        %1069 = vmatprep.subr.mxu0 0.0
        %1070 = vmatpush1.xpose.msra.mxu0 0.0
        %1071 = vmatprep.subr.mxu0 0.0
        %1072 = vmatpush1.xpose.msra.mxu0 0.0
        %1073 = vmatprep.subr.mxu0 0.0
        %1074 = vmatpush1.xpose.msra.mxu0 0.0
        %1075 = vmatprep.subr.mxu0 0.0
        %1076 = vmatpush1.xpose.msra.mxu0 0.0
        %1077 = vmatprep.subr.mxu0 0.0
        %1078 = vmatpush1.xpose.msra.mxu0 0.0
        %1079 = vmatprep.subr.mxu0 0.0
        %1080 = vmatpush1.xpose.msra.mxu0 0.0
        %1081 = vmatprep.subr.mxu0 0.0
        %1082 = vmatpush1.xpose.msra.mxu0 0.0
        %1083 = vmatprep.subr.mxu0 0.0
        %1084 = vmatpush1.xpose.msra.mxu0 0.0
        %1085 = vmatprep.subr.mxu0 0.0
        %1086 = vmatpush1.xpose.msra.mxu0 0.0
        %1087 = vmatprep.subr.mxu0 0.0
        %1088 = vmatpush1.xpose.msra.mxu0 0.0
        %1089 = vmatprep.subr.mxu0 0.0
        %1090 = vmatpush1.xpose.msra.mxu0 0.0
        %1091 = vmatprep.subr.mxu0 0.0
        %1092 = vmatpush1.xpose.msra.mxu0 0.0
        %1093 = vmatprep.subr.mxu0 0.0
        %1094 = vmatpush1.xpose.msra.mxu0 0.0
        %1095 = vmatprep.subr.mxu0 0.0
        %1096 = vmatpush1.xpose.msra.mxu0 0.0
        %1097 = vmatprep.subr.mxu0 0.0
        %1098 = vmatpush1.xpose.msra.mxu0 0.0
        %1099 = vmatprep.subr.mxu0 0.0
        %1100 = vmatpush1.xpose.msra.mxu0 0.0
        %1101 = vmatprep.subr.mxu0 0.0
        %1102 = vmatpush1.xpose.msra.mxu0 0.0
        %1103 = vmatprep.subr.mxu0 0.0
        %1104 = vmatpush1.xpose.msra.mxu0 0.0
        %1105 = vmatprep.subr.mxu0 0.0
        %1106 = vmatpush1.xpose.msra.mxu0 0.0
        %1107 = vmatprep.mubr.f32.mxu0 0.0
        %1108 = vmatmul.mubr.f32.gmra.mrb[0].mxu0 %v1020
        %v1109 = vpop.f32.mrb[0].mxu0
        %v1110 = vadd.f32 0.0, %v1109
        %v1111 = vpop.f32.mrb[0].mxu0
        %1112 = vmatprep.mubr.f32.mxu0 0.0
        %1113 = vmatmul.mubr.f32.gmra.mrb[0].mxu0 %v1023
        %v1114 = vpop.f32.mrb[0].mxu0
        %v1115 = vadd.f32 0.0, %v1114
        %v1116 = vpop.f32.mrb[0].mxu0
        %1117 = vmatprep.mubr.f32.mxu0 0.0
        %1118 = vmatmul.mubr.f32.gmra.mrb[0].mxu0 %v1026
        %v1119 = vpop.f32.mrb[0].mxu0
        %v1120 = vadd.f32 0.0, %v1119
        %v1121 = vpop.f32.mrb[0].mxu0
        %1122 = vmatprep.mubr.f32.mxu0 0.0
        %1123 = vmatmul.mubr.f32.gmra.mrb[0].mxu0 %v1029
        %v1124 = vpop.f32.mrb[0].mxu0
        %v1125 = vadd.f32 0.0, %v1124
        %v1126 = vpop.f32.mrb[0].mxu0
        %1127 = vdwg.mxu0
        %v1129 = vsel %vm1018, %v974, 0
        %v1132 = vsel %vm1018, %v975, 0
        %v1135 = vsel %vm1018, %v976, 0
        %v1138 = vsel %vm1018, %v977, 0
        %v1141 = vsel %vm1018, %v990, 0
        %v1144 = vsel %vm1018, %v991, 0
        %v1147 = vsel %vm1018, %v992, 0
        %v1150 = vsel %vm1018, %v993, 0
        %1152 = vmatprep.subr.mxu0 0.0
        %1153 = vmatpush1.xpose.msra.mxu0 %v1141
        %1154 = vmatprep.subr.mxu0 0.0
        %1155 = vmatpush1.xpose.msra.mxu0 %v1144
        %1156 = vmatprep.subr.mxu0 0.0
        %1157 = vmatpush1.xpose.msra.mxu0 %v1147
        %1158 = vmatprep.subr.mxu0 0.0
        %1159 = vmatpush1.xpose.msra.mxu0 %v1150
        %1160 = vmatprep.subr.mxu0 0.0
        %1161 = vmatpush1.xpose.msra.mxu0 0.0
        %1162 = vmatprep.subr.mxu0 0.0
        %1163 = vmatpush1.xpose.msra.mxu0 0.0
        %1164 = vmatprep.subr.mxu0 0.0
        %1165 = vmatpush1.xpose.msra.mxu0 0.0
        %1166 = vmatprep.subr.mxu0 0.0
        %1167 = vmatpush1.xpose.msra.mxu0 0.0
        %1168 = vmatprep.subr.mxu0 0.0
        %1169 = vmatpush1.xpose.msra.mxu0 0.0
        %1170 = vmatprep.subr.mxu0 0.0
        %1171 = vmatpush1.xpose.msra.mxu0 0.0
        %1172 = vmatprep.subr.mxu0 0.0
        %1173 = vmatpush1.xpose.msra.mxu0 0.0
        %1174 = vmatprep.subr.mxu0 0.0
        %1175 = vmatpush1.xpose.msra.mxu0 0.0
        %1176 = vmatprep.subr.mxu0 0.0
        %1177 = vmatpush1.xpose.msra.mxu0 0.0
        %1178 = vmatprep.subr.mxu0 0.0
        %1179 = vmatpush1.xpose.msra.mxu0 0.0
        %1180 = vmatprep.subr.mxu0 0.0
        %1181 = vmatpush1.xpose.msra.mxu0 0.0
        %1182 = vmatprep.subr.mxu0 0.0
        %1183 = vmatpush1.xpose.msra.mxu0 0.0
        %1184 = vmatprep.subr.mxu0 0.0
        %1185 = vmatpush1.xpose.msra.mxu0 0.0
        %1186 = vmatprep.subr.mxu0 0.0
        %1187 = vmatpush1.xpose.msra.mxu0 0.0
        %1188 = vmatprep.subr.mxu0 0.0
        %1189 = vmatpush1.xpose.msra.mxu0 0.0
        %1190 = vmatprep.subr.mxu0 0.0
        %1191 = vmatpush1.xpose.msra.mxu0 0.0
        %1192 = vmatprep.subr.mxu0 0.0
        %1193 = vmatpush1.xpose.msra.mxu0 0.0
        %1194 = vmatprep.subr.mxu0 0.0
        %1195 = vmatpush1.xpose.msra.mxu0 0.0
        %1196 = vmatprep.subr.mxu0 0.0
        %1197 = vmatpush1.xpose.msra.mxu0 0.0
        %1198 = vmatprep.subr.mxu0 0.0
        %1199 = vmatpush1.xpose.msra.mxu0 0.0
        %1200 = vmatprep.subr.mxu0 0.0
        %1201 = vmatpush1.xpose.msra.mxu0 0.0
        %1202 = vmatprep.subr.mxu0 0.0
        %1203 = vmatpush1.xpose.msra.mxu0 0.0
        %1204 = vmatprep.subr.mxu0 0.0
        %1205 = vmatpush1.xpose.msra.mxu0 0.0
        %1206 = vmatprep.subr.mxu0 0.0
        %1207 = vmatpush1.xpose.msra.mxu0 0.0
        %1208 = vmatprep.subr.mxu0 0.0
        %1209 = vmatpush1.xpose.msra.mxu0 0.0
        %1210 = vmatprep.subr.mxu0 0.0
        %1211 = vmatpush1.xpose.msra.mxu0 0.0
        %1212 = vmatprep.subr.mxu0 0.0
        %1213 = vmatpush1.xpose.msra.mxu0 0.0
        %1214 = vmatprep.subr.mxu0 0.0
        %1215 = vmatpush1.xpose.msra.mxu0 0.0
        %1216 = vmatprep.mubr.f32.mxu0 0.0
        %1217 = vmatmul.mubr.f32.gmra.mrb[0].mxu0 %v1129
        %v1218 = vpop.f32.mrb[0].mxu0
        %v1219 = vadd.f32 0.0, %v1218
        %v1220 = vpop.f32.mrb[0].mxu0
        %1221 = vmatprep.mubr.f32.mxu0 0.0
        %1222 = vmatmul.mubr.f32.gmra.mrb[0].mxu0 %v1132
        %v1223 = vpop.f32.mrb[0].mxu0
        %v1224 = vadd.f32 0.0, %v1223
        %v1225 = vpop.f32.mrb[0].mxu0
        %1226 = vmatprep.mubr.f32.mxu0 0.0
        %1227 = vmatmul.mubr.f32.gmra.mrb[0].mxu0 %v1135
        %v1228 = vpop.f32.mrb[0].mxu0
        %v1229 = vadd.f32 0.0, %v1228
        %v1230 = vpop.f32.mrb[0].mxu0
        %1231 = vmatprep.mubr.f32.mxu0 0.0
        %1232 = vmatmul.mubr.f32.gmra.mrb[0].mxu0 %v1138
        %v1233 = vpop.f32.mrb[0].mxu0
        %v1234 = vadd.f32 0.0, %v1233
        %v1235 = vpop.f32.mrb[0].mxu0
        %1236 = vdwg.mxu0
        %v1238 = vsel %vm1018, %v978, 0
        %v1241 = vsel %vm1018, %v979, 0
        %v1244 = vsel %vm1018, %v980, 0
        %v1247 = vsel %vm1018, %v981, 0
        %v1250 = vsel %vm1018, %v994, 0
        %v1253 = vsel %vm1018, %v995, 0
        %v1256 = vsel %vm1018, %v996, 0
        %v1259 = vsel %vm1018, %v997, 0
        %1261 = vmatprep.subr.mxu0 0.0
        %1262 = vmatpush1.xpose.msra.mxu0 %v1250
        %1263 = vmatprep.subr.mxu0 0.0
        %1264 = vmatpush1.xpose.msra.mxu0 %v1253
        %1265 = vmatprep.subr.mxu0 0.0
        %1266 = vmatpush1.xpose.msra.mxu0 %v1256
        %1267 = vmatprep.subr.mxu0 0.0
        %1268 = vmatpush1.xpose.msra.mxu0 %v1259
        %1269 = vmatprep.subr.mxu0 0.0
        %1270 = vmatpush1.xpose.msra.mxu0 0.0
        %1271 = vmatprep.subr.mxu0 0.0
        %1272 = vmatpush1.xpose.msra.mxu0 0.0
        %1273 = vmatprep.subr.mxu0 0.0
        %1274 = vmatpush1.xpose.msra.mxu0 0.0
        %1275 = vmatprep.subr.mxu0 0.0
        %1276 = vmatpush1.xpose.msra.mxu0 0.0
        %1277 = vmatprep.subr.mxu0 0.0
        %1278 = vmatpush1.xpose.msra.mxu0 0.0
        %1279 = vmatprep.subr.mxu0 0.0
        %1280 = vmatpush1.xpose.msra.mxu0 0.0
        %1281 = vmatprep.subr.mxu0 0.0
        %1282 = vmatpush1.xpose.msra.mxu0 0.0
        %1283 = vmatprep.subr.mxu0 0.0
        %1284 = vmatpush1.xpose.msra.mxu0 0.0
        %1285 = vmatprep.subr.mxu0 0.0
        %1286 = vmatpush1.xpose.msra.mxu0 0.0
        %1287 = vmatprep.subr.mxu0 0.0
        %1288 = vmatpush1.xpose.msra.mxu0 0.0
        %1289 = vmatprep.subr.mxu0 0.0
        %1290 = vmatpush1.xpose.msra.mxu0 0.0
        %1291 = vmatprep.subr.mxu0 0.0
        %1292 = vmatpush1.xpose.msra.mxu0 0.0
        %1293 = vmatprep.subr.mxu0 0.0
        %1294 = vmatpush1.xpose.msra.mxu0 0.0
        %1295 = vmatprep.subr.mxu0 0.0
        %1296 = vmatpush1.xpose.msra.mxu0 0.0
        %1297 = vmatprep.subr.mxu0 0.0
        %1298 = vmatpush1.xpose.msra.mxu0 0.0
        %1299 = vmatprep.subr.mxu0 0.0
        %1300 = vmatpush1.xpose.msra.mxu0 0.0
        %1301 = vmatprep.subr.mxu0 0.0
        %1302 = vmatpush1.xpose.msra.mxu0 0.0
        %1303 = vmatprep.subr.mxu0 0.0
        %1304 = vmatpush1.xpose.msra.mxu0 0.0
        %1305 = vmatprep.subr.mxu0 0.0
        %1306 = vmatpush1.xpose.msra.mxu0 0.0
        %1307 = vmatprep.subr.mxu0 0.0
        %1308 = vmatpush1.xpose.msra.mxu0 0.0
        %1309 = vmatprep.subr.mxu0 0.0
        %1310 = vmatpush1.xpose.msra.mxu0 0.0
        %1311 = vmatprep.subr.mxu0 0.0
        %1312 = vmatpush1.xpose.msra.mxu0 0.0
        %1313 = vmatprep.subr.mxu0 0.0
        %1314 = vmatpush1.xpose.msra.mxu0 0.0
        %1315 = vmatprep.subr.mxu0 0.0
        %1316 = vmatpush1.xpose.msra.mxu0 0.0
        %1317 = vmatprep.subr.mxu0 0.0
        %1318 = vmatpush1.xpose.msra.mxu0 0.0
        %1319 = vmatprep.subr.mxu0 0.0
        %1320 = vmatpush1.xpose.msra.mxu0 0.0
        %1321 = vmatprep.subr.mxu0 0.0
        %1322 = vmatpush1.xpose.msra.mxu0 0.0
        %1323 = vmatprep.subr.mxu0 0.0
        %1324 = vmatpush1.xpose.msra.mxu0 0.0
        %1325 = vmatprep.mubr.f32.mxu0 0.0
        %1326 = vmatmul.mubr.f32.gmra.mrb[0].mxu0 %v1238
        %v1327 = vpop.f32.mrb[0].mxu0
        %v1328 = vadd.f32 0.0, %v1327
        %v1329 = vpop.f32.mrb[0].mxu0
        %1330 = vmatprep.mubr.f32.mxu0 0.0
        %1331 = vmatmul.mubr.f32.gmra.mrb[0].mxu0 %v1241
        %v1332 = vpop.f32.mrb[0].mxu0
        %v1333 = vadd.f32 0.0, %v1332
        %v1334 = vpop.f32.mrb[0].mxu0
        %1335 = vmatprep.mubr.f32.mxu0 0.0
        %1336 = vmatmul.mubr.f32.gmra.mrb[0].mxu0 %v1244
        %v1337 = vpop.f32.mrb[0].mxu0
        %v1338 = vadd.f32 0.0, %v1337
        %v1339 = vpop.f32.mrb[0].mxu0
        %1340 = vmatprep.mubr.f32.mxu0 0.0
        %1341 = vmatmul.mubr.f32.gmra.mrb[0].mxu0 %v1247
        %v1342 = vpop.f32.mrb[0].mxu0
        %v1343 = vadd.f32 0.0, %v1342
        %v1344 = vpop.f32.mrb[0].mxu0
        %1345 = vdwg.mxu0
        %v1347 = vsel %vm1018, %v982, 0
        %v1350 = vsel %vm1018, %v983, 0
        %v1353 = vsel %vm1018, %v984, 0
        %v1356 = vsel %vm1018, %v985, 0
        %v1359 = vsel %vm1018, %v998, 0
        %v1362 = vsel %vm1018, %v999, 0
        %v1365 = vsel %vm1018, %v1000, 0
        %v1368 = vsel %vm1018, %v1001, 0
        %1370 = vmatprep.subr.mxu0 0.0
        %1371 = vmatpush1.xpose.msra.mxu0 %v1359
        %1372 = vmatprep.subr.mxu0 0.0
        %1373 = vmatpush1.xpose.msra.mxu0 %v1362
        %1374 = vmatprep.subr.mxu0 0.0
        %1375 = vmatpush1.xpose.msra.mxu0 %v1365
        %1376 = vmatprep.subr.mxu0 0.0
        %1377 = vmatpush1.xpose.msra.mxu0 %v1368
        %1378 = vmatprep.subr.mxu0 0.0
        %1379 = vmatpush1.xpose.msra.mxu0 0.0
        %1380 = vmatprep.subr.mxu0 0.0
        %1381 = vmatpush1.xpose.msra.mxu0 0.0
        %1382 = vmatprep.subr.mxu0 0.0
        %1383 = vmatpush1.xpose.msra.mxu0 0.0
        %1384 = vmatprep.subr.mxu0 0.0
        %1385 = vmatpush1.xpose.msra.mxu0 0.0
        %1386 = vmatprep.subr.mxu0 0.0
        %1387 = vmatpush1.xpose.msra.mxu0 0.0
        %1388 = vmatprep.subr.mxu0 0.0
        %1389 = vmatpush1.xpose.msra.mxu0 0.0
        %1390 = vmatprep.subr.mxu0 0.0
        %1391 = vmatpush1.xpose.msra.mxu0 0.0
        %1392 = vmatprep.subr.mxu0 0.0
        %1393 = vmatpush1.xpose.msra.mxu0 0.0
        %1394 = vmatprep.subr.mxu0 0.0
        %1395 = vmatpush1.xpose.msra.mxu0 0.0
        %1396 = vmatprep.subr.mxu0 0.0
        %1397 = vmatpush1.xpose.msra.mxu0 0.0
        %1398 = vmatprep.subr.mxu0 0.0
        %1399 = vmatpush1.xpose.msra.mxu0 0.0
        %1400 = vmatprep.subr.mxu0 0.0
        %1401 = vmatpush1.xpose.msra.mxu0 0.0
        %1402 = vmatprep.subr.mxu0 0.0
        %1403 = vmatpush1.xpose.msra.mxu0 0.0
        %1404 = vmatprep.subr.mxu0 0.0
        %1405 = vmatpush1.xpose.msra.mxu0 0.0
        %1406 = vmatprep.subr.mxu0 0.0
        %1407 = vmatpush1.xpose.msra.mxu0 0.0
        %1408 = vmatprep.subr.mxu0 0.0
        %1409 = vmatpush1.xpose.msra.mxu0 0.0
        %1410 = vmatprep.subr.mxu0 0.0
        %1411 = vmatpush1.xpose.msra.mxu0 0.0
        %1412 = vmatprep.subr.mxu0 0.0
        %1413 = vmatpush1.xpose.msra.mxu0 0.0
        %1414 = vmatprep.subr.mxu0 0.0
        %1415 = vmatpush1.xpose.msra.mxu0 0.0
        %1416 = vmatprep.subr.mxu0 0.0
        %1417 = vmatpush1.xpose.msra.mxu0 0.0
        %1418 = vmatprep.subr.mxu0 0.0
        %1419 = vmatpush1.xpose.msra.mxu0 0.0
        %1420 = vmatprep.subr.mxu0 0.0
        %1421 = vmatpush1.xpose.msra.mxu0 0.0
        %1422 = vmatprep.subr.mxu0 0.0
        %1423 = vmatpush1.xpose.msra.mxu0 0.0
        %1424 = vmatprep.subr.mxu0 0.0
        %1425 = vmatpush1.xpose.msra.mxu0 0.0
        %1426 = vmatprep.subr.mxu0 0.0
        %1427 = vmatpush1.xpose.msra.mxu0 0.0
        %1428 = vmatprep.subr.mxu0 0.0
        %1429 = vmatpush1.xpose.msra.mxu0 0.0
        %1430 = vmatprep.subr.mxu0 0.0
        %1431 = vmatpush1.xpose.msra.mxu0 0.0
        %1432 = vmatprep.subr.mxu0 0.0
        %1433 = vmatpush1.xpose.msra.mxu0 0.0
        %1434 = vmatprep.mubr.f32.mxu0 0.0
        %1435 = vmatmul.mubr.f32.gmra.mrb[0].mxu0 %v1347
        %v1436 = vpop.f32.mrb[0].mxu0
        %v1437 = vadd.f32 0.0, %v1436
        %v1438 = vpop.f32.mrb[0].mxu0
        %1439 = vmatprep.mubr.f32.mxu0 0.0
        %1440 = vmatmul.mubr.f32.gmra.mrb[0].mxu0 %v1350
        %v1441 = vpop.f32.mrb[0].mxu0
        %v1442 = vadd.f32 0.0, %v1441
        %v1443 = vpop.f32.mrb[0].mxu0
        %1444 = vmatprep.mubr.f32.mxu0 0.0
        %1445 = vmatmul.mubr.f32.gmra.mrb[0].mxu0 %v1353
        %v1446 = vpop.f32.mrb[0].mxu0
        %v1447 = vadd.f32 0.0, %v1446
        %v1448 = vpop.f32.mrb[0].mxu0
        %1449 = vmatprep.mubr.f32.mxu0 0.0
        %1450 = vmatmul.mubr.f32.gmra.mrb[0].mxu0 %v1356
        %v1451 = vpop.f32.mrb[0].mxu0
        %v1452 = vadd.f32 0.0, %v1451
        %v1453 = vpop.f32.mrb[0].mxu0
        %1454 = vdwg.mxu0
        %v1455 = vmul.f32 %v1110, 0.17677669
        %v1456 = vmul.f32 %v1115, 0.17677669
        %v1457 = vmul.f32 %v1120, 0.17677669
        %v1458 = vmul.f32 %v1125, 0.17677669
        %v1459 = vmul.f32 %v1219, 0.17677669
        %v1460 = vmul.f32 %v1224, 0.17677669
        %v1461 = vmul.f32 %v1229, 0.17677669
        %v1462 = vmul.f32 %v1234, 0.17677669
        %v1463 = vmul.f32 %v1328, 0.17677669
        %v1464 = vmul.f32 %v1333, 0.17677669
        %v1465 = vmul.f32 %v1338, 0.17677669
        %v1466 = vmul.f32 %v1343, 0.17677669
        %v1467 = vmul.f32 %v1437, 0.17677669
        %v1468 = vmul.f32 %v1442, 0.17677669
        %v1469 = vmul.f32 %v1447, 0.17677669
        %v1470 = vmul.f32 %v1452, 0.17677669
        %v1471 = vadd.f32 %v1455, %v966
        %v1472 = vadd.f32 %v1456, %v967
        %v1473 = vadd.f32 %v1457, %v968
        %v1474 = vadd.f32 %v1458, %v969
        %v1475 = vadd.f32 %v1459, %v966
        %v1476 = vadd.f32 %v1460, %v967
        %v1477 = vadd.f32 %v1461, %v968
        %v1478 = vadd.f32 %v1462, %v969
        %v1479 = vadd.f32 %v1463, %v966
        %v1480 = vadd.f32 %v1464, %v967
        %v1481 = vadd.f32 %v1465, %v968
        %v1482 = vadd.f32 %v1466, %v969
        %v1483 = vadd.f32 %v1467, %v966
        %v1484 = vadd.f32 %v1468, %v967
        %v1485 = vadd.f32 %v1469, %v968
        %v1486 = vadd.f32 %v1470, %v969
        %v1487 = vsel %vm1018, %v1471, -inf
        %1488 = vmax.xlane.f32.xlu0 %v1487
        %v1489 = vpop.xlane.xlu0 %1488
        %v1490 = vsel %vm1018, %v1472, -inf
        %1491 = vmax.xlane.f32.xlu0 %v1490
        %v1492 = vpop.xlane.xlu0 %1491
        %v1493 = vsel %vm1018, %v1473, -inf
        %1494 = vmax.xlane.f32.xlu0 %v1493
        %v1495 = vpop.xlane.xlu0 %1494
        %v1496 = vsel %vm1018, %v1474, -inf
        %1497 = vmax.xlane.f32.xlu0 %v1496
        %v1498 = vpop.xlane.xlu0 %1497
        %v1499 = vsel %vm1018, %v1475, -inf
        %1500 = vmax.xlane.f32.xlu0 %v1499
        %v1501 = vpop.xlane.xlu0 %1500
        %v1502 = vsel %vm1018, %v1476, -inf
        %1503 = vmax.xlane.f32.xlu0 %v1502
        %v1504 = vpop.xlane.xlu0 %1503
        %v1505 = vsel %vm1018, %v1477, -inf
        %1506 = vmax.xlane.f32.xlu0 %v1505
        %v1507 = vpop.xlane.xlu0 %1506
        %v1508 = vsel %vm1018, %v1478, -inf
        %1509 = vmax.xlane.f32.xlu0 %v1508
        %v1510 = vpop.xlane.xlu0 %1509
        %v1511 = vsel %vm1018, %v1479, -inf
        %1512 = vmax.xlane.f32.xlu0 %v1511
        %v1513 = vpop.xlane.xlu0 %1512
        %v1514 = vsel %vm1018, %v1480, -inf
        %1515 = vmax.xlane.f32.xlu0 %v1514
        %v1516 = vpop.xlane.xlu0 %1515
        %v1517 = vsel %vm1018, %v1481, -inf
        %1518 = vmax.xlane.f32.xlu0 %v1517
        %v1519 = vpop.xlane.xlu0 %1518
        %v1520 = vsel %vm1018, %v1482, -inf
        %1521 = vmax.xlane.f32.xlu0 %v1520
        %v1522 = vpop.xlane.xlu0 %1521
        %v1523 = vsel %vm1018, %v1483, -inf
        %1524 = vmax.xlane.f32.xlu0 %v1523
        %v1525 = vpop.xlane.xlu0 %1524
        %v1526 = vsel %vm1018, %v1484, -inf
        %1527 = vmax.xlane.f32.xlu0 %v1526
        %v1528 = vpop.xlane.xlu0 %1527
        %v1529 = vsel %vm1018, %v1485, -inf
        %1530 = vmax.xlane.f32.xlu0 %v1529
        %v1531 = vpop.xlane.xlu0 %1530
        %v1532 = vsel %vm1018, %v1486, -inf
        %1533 = vmax.xlane.f32.xlu0 %v1532
        %v1534 = vpop.xlane.xlu0 %1533
        %v1535 = vsub.f32 %v1471, %v1489
        %v1536 = vsub.f32 %v1472, %v1492
        %v1537 = vsub.f32 %v1473, %v1495
        %v1538 = vsub.f32 %v1474, %v1498
        %v1539 = vsub.f32 %v1475, %v1501
        %v1540 = vsub.f32 %v1476, %v1504
        %v1541 = vsub.f32 %v1477, %v1507
        %v1542 = vsub.f32 %v1478, %v1510
        %v1543 = vsub.f32 %v1479, %v1513
        %v1544 = vsub.f32 %v1480, %v1516
        %v1545 = vsub.f32 %v1481, %v1519
        %v1546 = vsub.f32 %v1482, %v1522
        %v1547 = vsub.f32 %v1483, %v1525
        %v1548 = vsub.f32 %v1484, %v1528
        %v1549 = vsub.f32 %v1485, %v1531
        %v1550 = vsub.f32 %v1486, %v1534
        %v1551 = vmul.f32 %v1535, 1.442695
        %v1552 = vpow.pop %v1551
        %v1553 = vmul.f32 %v1536, 1.442695
        %v1554 = vpow.pop %v1553
        %v1555 = vmul.f32 %v1537, 1.442695
        %v1556 = vpow.pop %v1555
        %v1557 = vmul.f32 %v1538, 1.442695
        %v1558 = vpow.pop %v1557
        %v1559 = vmul.f32 %v1539, 1.442695
        %v1560 = vpow.pop %v1559
        %v1561 = vmul.f32 %v1540, 1.442695
        %v1562 = vpow.pop %v1561
        %v1563 = vmul.f32 %v1541, 1.442695
        %v1564 = vpow.pop %v1563
        %v1565 = vmul.f32 %v1542, 1.442695
        %v1566 = vpow.pop %v1565
        %v1567 = vmul.f32 %v1543, 1.442695
        %v1568 = vpow.pop %v1567
        %v1569 = vmul.f32 %v1544, 1.442695
        %v1570 = vpow.pop %v1569
        %v1571 = vmul.f32 %v1545, 1.442695
        %v1572 = vpow.pop %v1571
        %v1573 = vmul.f32 %v1546, 1.442695
        %v1574 = vpow.pop %v1573
        %v1575 = vmul.f32 %v1547, 1.442695
        %v1576 = vpow.pop %v1575
        %v1577 = vmul.f32 %v1548, 1.442695
        %v1578 = vpow.pop %v1577
        %v1579 = vmul.f32 %v1549, 1.442695
        %v1580 = vpow.pop %v1579
        %v1581 = vmul.f32 %v1550, 1.442695
        %v1582 = vpow.pop %v1581
        %v1583 = vsel %vm1018, %v1552, 0.0
        %1584 = vadd.xlane.f32.xlu0 %v1583
        %v1585 = vpop.xlane.xlu0 %1584
        %v1586 = vsel %vm1018, %v1554, 0.0
        %1587 = vadd.xlane.f32.xlu0 %v1586
        %v1588 = vpop.xlane.xlu0 %1587
        %v1589 = vsel %vm1018, %v1556, 0.0
        %1590 = vadd.xlane.f32.xlu0 %v1589
        %v1591 = vpop.xlane.xlu0 %1590
        %v1592 = vsel %vm1018, %v1558, 0.0
        %1593 = vadd.xlane.f32.xlu0 %v1592
        %v1594 = vpop.xlane.xlu0 %1593
        %v1595 = vsel %vm1018, %v1560, 0.0
        %1596 = vadd.xlane.f32.xlu0 %v1595
        %v1597 = vpop.xlane.xlu0 %1596
        %v1598 = vsel %vm1018, %v1562, 0.0
        %1599 = vadd.xlane.f32.xlu0 %v1598
        %v1600 = vpop.xlane.xlu0 %1599
        %v1601 = vsel %vm1018, %v1564, 0.0
        %1602 = vadd.xlane.f32.xlu0 %v1601
        %v1603 = vpop.xlane.xlu0 %1602
        %v1604 = vsel %vm1018, %v1566, 0.0
        %1605 = vadd.xlane.f32.xlu0 %v1604
        %v1606 = vpop.xlane.xlu0 %1605
        %v1607 = vsel %vm1018, %v1568, 0.0
        %1608 = vadd.xlane.f32.xlu0 %v1607
        %v1609 = vpop.xlane.xlu0 %1608
        %v1610 = vsel %vm1018, %v1570, 0.0
        %1611 = vadd.xlane.f32.xlu0 %v1610
        %v1612 = vpop.xlane.xlu0 %1611
        %v1613 = vsel %vm1018, %v1572, 0.0
        %1614 = vadd.xlane.f32.xlu0 %v1613
        %v1615 = vpop.xlane.xlu0 %1614
        %v1616 = vsel %vm1018, %v1574, 0.0
        %1617 = vadd.xlane.f32.xlu0 %v1616
        %v1618 = vpop.xlane.xlu0 %1617
        %v1619 = vsel %vm1018, %v1576, 0.0
        %1620 = vadd.xlane.f32.xlu0 %v1619
        %v1621 = vpop.xlane.xlu0 %1620
        %v1622 = vsel %vm1018, %v1578, 0.0
        %1623 = vadd.xlane.f32.xlu0 %v1622
        %v1624 = vpop.xlane.xlu0 %1623
        %v1625 = vsel %vm1018, %v1580, 0.0
        %1626 = vadd.xlane.f32.xlu0 %v1625
        %v1627 = vpop.xlane.xlu0 %1626
        %v1628 = vsel %vm1018, %v1582, 0.0
        %1629 = vadd.xlane.f32.xlu0 %v1628
        %v1630 = vpop.xlane.xlu0 %1629
        %v1631 = vrcp.pop %v1585
        %v1632 = vmul.f32 1.0, %v1631
        %v1633 = vrcp.pop %v1588
        %v1634 = vmul.f32 1.0, %v1633
        %v1635 = vrcp.pop %v1591
        %v1636 = vmul.f32 1.0, %v1635
        %v1637 = vrcp.pop %v1594
        %v1638 = vmul.f32 1.0, %v1637
        %v1639 = vrcp.pop %v1597
        %v1640 = vmul.f32 1.0, %v1639
        %v1641 = vrcp.pop %v1600
        %v1642 = vmul.f32 1.0, %v1641
        %v1643 = vrcp.pop %v1603
        %v1644 = vmul.f32 1.0, %v1643
        %v1645 = vrcp.pop %v1606
        %v1646 = vmul.f32 1.0, %v1645
        %v1647 = vrcp.pop %v1609
        %v1648 = vmul.f32 1.0, %v1647
        %v1649 = vrcp.pop %v1612
        %v1650 = vmul.f32 1.0, %v1649
        %v1651 = vrcp.pop %v1615
        %v1652 = vmul.f32 1.0, %v1651
        %v1653 = vrcp.pop %v1618
        %v1654 = vmul.f32 1.0, %v1653
        %v1655 = vrcp.pop %v1621
        %v1656 = vmul.f32 1.0, %v1655
        %v1657 = vrcp.pop %v1624
        %v1658 = vmul.f32 1.0, %v1657
        %v1659 = vrcp.pop %v1627
        %v1660 = vmul.f32 1.0, %v1659
        %v1661 = vrcp.pop %v1630
        %v1662 = vmul.f32 1.0, %v1661
        %v1664 = vsel %vm1018, %v1552, 0
        %v1667 = vsel %vm1018, %v1554, 0
        %v1670 = vsel %vm1018, %v1556, 0
        %v1673 = vsel %vm1018, %v1558, 0
        %1675 = vmatprep.subr.mxu0 0.0
        %1676 = vmatpush1.msra.mxu0 %v1002
        %1677 = vmatprep.subr.mxu0 0.0
        %1678 = vmatpush1.msra.mxu0 %v1003
        %1679 = vmatprep.subr.mxu0 0.0
        %1680 = vmatpush1.msra.mxu0 %v1004
        %1681 = vmatprep.subr.mxu0 0.0
        %1682 = vmatpush1.msra.mxu0 %v1005
        %1683 = vmatprep.subr.mxu0 0.0
        %1684 = vmatpush1.msra.mxu0 0.0
        %1685 = vmatprep.subr.mxu0 0.0
        %1686 = vmatpush1.msra.mxu0 0.0
        %1687 = vmatprep.subr.mxu0 0.0
        %1688 = vmatpush1.msra.mxu0 0.0
        %1689 = vmatprep.subr.mxu0 0.0
        %1690 = vmatpush1.msra.mxu0 0.0
        %1691 = vmatprep.subr.mxu0 0.0
        %1692 = vmatpush1.msra.mxu0 0.0
        %1693 = vmatprep.subr.mxu0 0.0
        %1694 = vmatpush1.msra.mxu0 0.0
        %1695 = vmatprep.subr.mxu0 0.0
        %1696 = vmatpush1.msra.mxu0 0.0
        %1697 = vmatprep.subr.mxu0 0.0
        %1698 = vmatpush1.msra.mxu0 0.0
        %1699 = vmatprep.subr.mxu0 0.0
        %1700 = vmatpush1.msra.mxu0 0.0
        %1701 = vmatprep.subr.mxu0 0.0
        %1702 = vmatpush1.msra.mxu0 0.0
        %1703 = vmatprep.subr.mxu0 0.0
        %1704 = vmatpush1.msra.mxu0 0.0
        %1705 = vmatprep.subr.mxu0 0.0
        %1706 = vmatpush1.msra.mxu0 0.0
        %1707 = vmatprep.subr.mxu0 0.0
        %1708 = vmatpush1.msra.mxu0 0.0
        %1709 = vmatprep.subr.mxu0 0.0
        %1710 = vmatpush1.msra.mxu0 0.0
        %1711 = vmatprep.subr.mxu0 0.0
        %1712 = vmatpush1.msra.mxu0 0.0
        %1713 = vmatprep.subr.mxu0 0.0
        %1714 = vmatpush1.msra.mxu0 0.0
        %1715 = vmatprep.subr.mxu0 0.0
        %1716 = vmatpush1.msra.mxu0 0.0
        %1717 = vmatprep.subr.mxu0 0.0
        %1718 = vmatpush1.msra.mxu0 0.0
        %1719 = vmatprep.subr.mxu0 0.0
        %1720 = vmatpush1.msra.mxu0 0.0
        %1721 = vmatprep.subr.mxu0 0.0
        %1722 = vmatpush1.msra.mxu0 0.0
        %1723 = vmatprep.subr.mxu0 0.0
        %1724 = vmatpush1.msra.mxu0 0.0
        %1725 = vmatprep.subr.mxu0 0.0
        %1726 = vmatpush1.msra.mxu0 0.0
        %1727 = vmatprep.subr.mxu0 0.0
        %1728 = vmatpush1.msra.mxu0 0.0
        %1729 = vmatprep.subr.mxu0 0.0
        %1730 = vmatpush1.msra.mxu0 0.0
        %1731 = vmatprep.subr.mxu0 0.0
        %1732 = vmatpush1.msra.mxu0 0.0
        %1733 = vmatprep.subr.mxu0 0.0
        %1734 = vmatpush1.msra.mxu0 0.0
        %1735 = vmatprep.subr.mxu0 0.0
        %1736 = vmatpush1.msra.mxu0 0.0
        %1737 = vmatprep.subr.mxu0 0.0
        %1738 = vmatpush1.msra.mxu0 0.0
        %1739 = vmatprep.mubr.f32.mxu0 0.0
        %1740 = vmatmul.mubr.f32.gmra.mrb[0].mxu0 %v1664
        %v1741 = vpop.f32.mrb[0].mxu0
        %v1742 = vadd.f32 0.0, %v1741
        %v1743 = vpop.f32.mrb[0].mxu0
        %1744 = vmatprep.mubr.f32.mxu0 0.0
        %1745 = vmatmul.mubr.f32.gmra.mrb[0].mxu0 %v1667
        %v1746 = vpop.f32.mrb[0].mxu0
        %v1747 = vadd.f32 0.0, %v1746
        %v1748 = vpop.f32.mrb[0].mxu0
        %1749 = vmatprep.mubr.f32.mxu0 0.0
        %1750 = vmatmul.mubr.f32.gmra.mrb[0].mxu0 %v1670
        %v1751 = vpop.f32.mrb[0].mxu0
        %v1752 = vadd.f32 0.0, %v1751
        %v1753 = vpop.f32.mrb[0].mxu0
        %1754 = vmatprep.mubr.f32.mxu0 0.0
        %1755 = vmatmul.mubr.f32.gmra.mrb[0].mxu0 %v1673
        %v1756 = vpop.f32.mrb[0].mxu0
        %v1757 = vadd.f32 0.0, %v1756
        %v1758 = vpop.f32.mrb[0].mxu0
        %1759 = vdwg.mxu0
        %v1761 = vsel %vm1018, %v1560, 0
        %v1764 = vsel %vm1018, %v1562, 0
        %v1767 = vsel %vm1018, %v1564, 0
        %v1770 = vsel %vm1018, %v1566, 0
        %1772 = vmatprep.subr.mxu0 0.0
        %1773 = vmatpush1.msra.mxu0 %v1006
        %1774 = vmatprep.subr.mxu0 0.0
        %1775 = vmatpush1.msra.mxu0 %v1007
        %1776 = vmatprep.subr.mxu0 0.0
        %1777 = vmatpush1.msra.mxu0 %v1008
        %1778 = vmatprep.subr.mxu0 0.0
        %1779 = vmatpush1.msra.mxu0 %v1009
        %1780 = vmatprep.subr.mxu0 0.0
        %1781 = vmatpush1.msra.mxu0 0.0
        %1782 = vmatprep.subr.mxu0 0.0
        %1783 = vmatpush1.msra.mxu0 0.0
        %1784 = vmatprep.subr.mxu0 0.0
        %1785 = vmatpush1.msra.mxu0 0.0
        %1786 = vmatprep.subr.mxu0 0.0
        %1787 = vmatpush1.msra.mxu0 0.0
        %1788 = vmatprep.subr.mxu0 0.0
        %1789 = vmatpush1.msra.mxu0 0.0
        %1790 = vmatprep.subr.mxu0 0.0
        %1791 = vmatpush1.msra.mxu0 0.0
        %1792 = vmatprep.subr.mxu0 0.0
        %1793 = vmatpush1.msra.mxu0 0.0
        %1794 = vmatprep.subr.mxu0 0.0
        %1795 = vmatpush1.msra.mxu0 0.0
        %1796 = vmatprep.subr.mxu0 0.0
        %1797 = vmatpush1.msra.mxu0 0.0
        %1798 = vmatprep.subr.mxu0 0.0
        %1799 = vmatpush1.msra.mxu0 0.0
        %1800 = vmatprep.subr.mxu0 0.0
        %1801 = vmatpush1.msra.mxu0 0.0
        %1802 = vmatprep.subr.mxu0 0.0
        %1803 = vmatpush1.msra.mxu0 0.0
        %1804 = vmatprep.subr.mxu0 0.0
        %1805 = vmatpush1.msra.mxu0 0.0
        %1806 = vmatprep.subr.mxu0 0.0
        %1807 = vmatpush1.msra.mxu0 0.0
        %1808 = vmatprep.subr.mxu0 0.0
        %1809 = vmatpush1.msra.mxu0 0.0
        %1810 = vmatprep.subr.mxu0 0.0
        %1811 = vmatpush1.msra.mxu0 0.0
        %1812 = vmatprep.subr.mxu0 0.0
        %1813 = vmatpush1.msra.mxu0 0.0
        %1814 = vmatprep.subr.mxu0 0.0
        %1815 = vmatpush1.msra.mxu0 0.0
        %1816 = vmatprep.subr.mxu0 0.0
        %1817 = vmatpush1.msra.mxu0 0.0
        %1818 = vmatprep.subr.mxu0 0.0
        %1819 = vmatpush1.msra.mxu0 0.0
        %1820 = vmatprep.subr.mxu0 0.0
        %1821 = vmatpush1.msra.mxu0 0.0
        %1822 = vmatprep.subr.mxu0 0.0
        %1823 = vmatpush1.msra.mxu0 0.0
        %1824 = vmatprep.subr.mxu0 0.0
        %1825 = vmatpush1.msra.mxu0 0.0
        %1826 = vmatprep.subr.mxu0 0.0
        %1827 = vmatpush1.msra.mxu0 0.0
        %1828 = vmatprep.subr.mxu0 0.0
        %1829 = vmatpush1.msra.mxu0 0.0
        %1830 = vmatprep.subr.mxu0 0.0
        %1831 = vmatpush1.msra.mxu0 0.0
        %1832 = vmatprep.subr.mxu0 0.0
        %1833 = vmatpush1.msra.mxu0 0.0
        %1834 = vmatprep.subr.mxu0 0.0
        %1835 = vmatpush1.msra.mxu0 0.0
        %1836 = vmatprep.mubr.f32.mxu0 0.0
        %1837 = vmatmul.mubr.f32.gmra.mrb[0].mxu0 %v1761
        %v1838 = vpop.f32.mrb[0].mxu0
        %v1839 = vadd.f32 0.0, %v1838
        %v1840 = vpop.f32.mrb[0].mxu0
        %1841 = vmatprep.mubr.f32.mxu0 0.0
        %1842 = vmatmul.mubr.f32.gmra.mrb[0].mxu0 %v1764
        %v1843 = vpop.f32.mrb[0].mxu0
        %v1844 = vadd.f32 0.0, %v1843
        %v1845 = vpop.f32.mrb[0].mxu0
        %1846 = vmatprep.mubr.f32.mxu0 0.0
        %1847 = vmatmul.mubr.f32.gmra.mrb[0].mxu0 %v1767
        %v1848 = vpop.f32.mrb[0].mxu0
        %v1849 = vadd.f32 0.0, %v1848
        %v1850 = vpop.f32.mrb[0].mxu0
        %1851 = vmatprep.mubr.f32.mxu0 0.0
        %1852 = vmatmul.mubr.f32.gmra.mrb[0].mxu0 %v1770
        %v1853 = vpop.f32.mrb[0].mxu0
        %v1854 = vadd.f32 0.0, %v1853
        %v1855 = vpop.f32.mrb[0].mxu0
        %1856 = vdwg.mxu0
        %v1858 = vsel %vm1018, %v1568, 0
        %v1861 = vsel %vm1018, %v1570, 0
        %v1864 = vsel %vm1018, %v1572, 0
        %v1867 = vsel %vm1018, %v1574, 0
        %1869 = vmatprep.subr.mxu0 0.0
        %1870 = vmatpush1.msra.mxu0 %v1010
        %1871 = vmatprep.subr.mxu0 0.0
        %1872 = vmatpush1.msra.mxu0 %v1011
        %1873 = vmatprep.subr.mxu0 0.0
        %1874 = vmatpush1.msra.mxu0 %v1012
        %1875 = vmatprep.subr.mxu0 0.0
        %1876 = vmatpush1.msra.mxu0 %v1013
        %1877 = vmatprep.subr.mxu0 0.0
        %1878 = vmatpush1.msra.mxu0 0.0
        %1879 = vmatprep.subr.mxu0 0.0
        %1880 = vmatpush1.msra.mxu0 0.0
        %1881 = vmatprep.subr.mxu0 0.0
        %1882 = vmatpush1.msra.mxu0 0.0
        %1883 = vmatprep.subr.mxu0 0.0
        %1884 = vmatpush1.msra.mxu0 0.0
        %1885 = vmatprep.subr.mxu0 0.0
        %1886 = vmatpush1.msra.mxu0 0.0
        %1887 = vmatprep.subr.mxu0 0.0
        %1888 = vmatpush1.msra.mxu0 0.0
        %1889 = vmatprep.subr.mxu0 0.0
        %1890 = vmatpush1.msra.mxu0 0.0
        %1891 = vmatprep.subr.mxu0 0.0
        %1892 = vmatpush1.msra.mxu0 0.0
        %1893 = vmatprep.subr.mxu0 0.0
        %1894 = vmatpush1.msra.mxu0 0.0
        %1895 = vmatprep.subr.mxu0 0.0
        %1896 = vmatpush1.msra.mxu0 0.0
        %1897 = vmatprep.subr.mxu0 0.0
        %1898 = vmatpush1.msra.mxu0 0.0
        %1899 = vmatprep.subr.mxu0 0.0
        %1900 = vmatpush1.msra.mxu0 0.0
        %1901 = vmatprep.subr.mxu0 0.0
        %1902 = vmatpush1.msra.mxu0 0.0
        %1903 = vmatprep.subr.mxu0 0.0
        %1904 = vmatpush1.msra.mxu0 0.0
        %1905 = vmatprep.subr.mxu0 0.0
        %1906 = vmatpush1.msra.mxu0 0.0
        %1907 = vmatprep.subr.mxu0 0.0
        %1908 = vmatpush1.msra.mxu0 0.0
        %1909 = vmatprep.subr.mxu0 0.0
        %1910 = vmatpush1.msra.mxu0 0.0
        %1911 = vmatprep.subr.mxu0 0.0
        %1912 = vmatpush1.msra.mxu0 0.0
        %1913 = vmatprep.subr.mxu0 0.0
        %1914 = vmatpush1.msra.mxu0 0.0
        %1915 = vmatprep.subr.mxu0 0.0
        %1916 = vmatpush1.msra.mxu0 0.0
        %1917 = vmatprep.subr.mxu0 0.0
        %1918 = vmatpush1.msra.mxu0 0.0
        %1919 = vmatprep.subr.mxu0 0.0
        %1920 = vmatpush1.msra.mxu0 0.0
        %1921 = vmatprep.subr.mxu0 0.0
        %1922 = vmatpush1.msra.mxu0 0.0
        %1923 = vmatprep.subr.mxu0 0.0
        %1924 = vmatpush1.msra.mxu0 0.0
        %1925 = vmatprep.subr.mxu0 0.0
        %1926 = vmatpush1.msra.mxu0 0.0
        %1927 = vmatprep.subr.mxu0 0.0
        %1928 = vmatpush1.msra.mxu0 0.0
        %1929 = vmatprep.subr.mxu0 0.0
        %1930 = vmatpush1.msra.mxu0 0.0
        %1931 = vmatprep.subr.mxu0 0.0
        %1932 = vmatpush1.msra.mxu0 0.0
        %1933 = vmatprep.mubr.f32.mxu0 0.0
        %1934 = vmatmul.mubr.f32.gmra.mrb[0].mxu0 %v1858
        %v1935 = vpop.f32.mrb[0].mxu0
        %v1936 = vadd.f32 0.0, %v1935
        %v1937 = vpop.f32.mrb[0].mxu0
        %1938 = vmatprep.mubr.f32.mxu0 0.0
        %1939 = vmatmul.mubr.f32.gmra.mrb[0].mxu0 %v1861
        %v1940 = vpop.f32.mrb[0].mxu0
        %v1941 = vadd.f32 0.0, %v1940
        %v1942 = vpop.f32.mrb[0].mxu0
        %1943 = vmatprep.mubr.f32.mxu0 0.0
        %1944 = vmatmul.mubr.f32.gmra.mrb[0].mxu0 %v1864
        %v1945 = vpop.f32.mrb[0].mxu0
        %v1946 = vadd.f32 0.0, %v1945
        %v1947 = vpop.f32.mrb[0].mxu0
        %1948 = vmatprep.mubr.f32.mxu0 0.0
        %1949 = vmatmul.mubr.f32.gmra.mrb[0].mxu0 %v1867
        %v1950 = vpop.f32.mrb[0].mxu0
        %v1951 = vadd.f32 0.0, %v1950
        %v1952 = vpop.f32.mrb[0].mxu0
        %1953 = vdwg.mxu0
        %v1955 = vsel %vm1018, %v1576, 0
        %v1958 = vsel %vm1018, %v1578, 0
        %v1961 = vsel %vm1018, %v1580, 0
        %v1964 = vsel %vm1018, %v1582, 0
        %1966 = vmatprep.subr.mxu0 0.0
        %1967 = vmatpush1.msra.mxu0 %v1014
        %1968 = vmatprep.subr.mxu0 0.0
        %1969 = vmatpush1.msra.mxu0 %v1015
        %1970 = vmatprep.subr.mxu0 0.0
        %1971 = vmatpush1.msra.mxu0 %v1016
        %1972 = vmatprep.subr.mxu0 0.0
        %1973 = vmatpush1.msra.mxu0 %v1017
        %1974 = vmatprep.subr.mxu0 0.0
        %1975 = vmatpush1.msra.mxu0 0.0
        %1976 = vmatprep.subr.mxu0 0.0
        %1977 = vmatpush1.msra.mxu0 0.0
        %1978 = vmatprep.subr.mxu0 0.0
        %1979 = vmatpush1.msra.mxu0 0.0
        %1980 = vmatprep.subr.mxu0 0.0
        %1981 = vmatpush1.msra.mxu0 0.0
        %1982 = vmatprep.subr.mxu0 0.0
        %1983 = vmatpush1.msra.mxu0 0.0
        %1984 = vmatprep.subr.mxu0 0.0
        %1985 = vmatpush1.msra.mxu0 0.0
        %1986 = vmatprep.subr.mxu0 0.0
        %1987 = vmatpush1.msra.mxu0 0.0
        %1988 = vmatprep.subr.mxu0 0.0
        %1989 = vmatpush1.msra.mxu0 0.0
        %1990 = vmatprep.subr.mxu0 0.0
        %1991 = vmatpush1.msra.mxu0 0.0
        %1992 = vmatprep.subr.mxu0 0.0
        %1993 = vmatpush1.msra.mxu0 0.0
        %1994 = vmatprep.subr.mxu0 0.0
        %1995 = vmatpush1.msra.mxu0 0.0
        %1996 = vmatprep.subr.mxu0 0.0
        %1997 = vmatpush1.msra.mxu0 0.0
        %1998 = vmatprep.subr.mxu0 0.0
        %1999 = vmatpush1.msra.mxu0 0.0
        %2000 = vmatprep.subr.mxu0 0.0
        %2001 = vmatpush1.msra.mxu0 0.0
        %2002 = vmatprep.subr.mxu0 0.0
        %2003 = vmatpush1.msra.mxu0 0.0
        %2004 = vmatprep.subr.mxu0 0.0
        %2005 = vmatpush1.msra.mxu0 0.0
        %2006 = vmatprep.subr.mxu0 0.0
        %2007 = vmatpush1.msra.mxu0 0.0
        %2008 = vmatprep.subr.mxu0 0.0
        %2009 = vmatpush1.msra.mxu0 0.0
        %2010 = vmatprep.subr.mxu0 0.0
        %2011 = vmatpush1.msra.mxu0 0.0
        %2012 = vmatprep.subr.mxu0 0.0
        %2013 = vmatpush1.msra.mxu0 0.0
        %2014 = vmatprep.subr.mxu0 0.0
        %2015 = vmatpush1.msra.mxu0 0.0
        %2016 = vmatprep.subr.mxu0 0.0
        %2017 = vmatpush1.msra.mxu0 0.0
        %2018 = vmatprep.subr.mxu0 0.0
        %2019 = vmatpush1.msra.mxu0 0.0
        %2020 = vmatprep.subr.mxu0 0.0
        %2021 = vmatpush1.msra.mxu0 0.0
        %2022 = vmatprep.subr.mxu0 0.0
        %2023 = vmatpush1.msra.mxu0 0.0
        %2024 = vmatprep.subr.mxu0 0.0
        %2025 = vmatpush1.msra.mxu0 0.0
        %2026 = vmatprep.subr.mxu0 0.0
        %2027 = vmatpush1.msra.mxu0 0.0
        %2028 = vmatprep.subr.mxu0 0.0
        %2029 = vmatpush1.msra.mxu0 0.0
        %2030 = vmatprep.mubr.f32.mxu0 0.0
        %2031 = vmatmul.mubr.f32.gmra.mrb[0].mxu0 %v1955
        %v2032 = vpop.f32.mrb[0].mxu0
        %v2033 = vadd.f32 0.0, %v2032
        %v2034 = vpop.f32.mrb[0].mxu0
        %2035 = vmatprep.mubr.f32.mxu0 0.0
        %2036 = vmatmul.mubr.f32.gmra.mrb[0].mxu0 %v1958
        %v2037 = vpop.f32.mrb[0].mxu0
        %v2038 = vadd.f32 0.0, %v2037
        %v2039 = vpop.f32.mrb[0].mxu0
        %2040 = vmatprep.mubr.f32.mxu0 0.0
        %2041 = vmatmul.mubr.f32.gmra.mrb[0].mxu0 %v1961
        %v2042 = vpop.f32.mrb[0].mxu0
        %v2043 = vadd.f32 0.0, %v2042
        %v2044 = vpop.f32.mrb[0].mxu0
        %2045 = vmatprep.mubr.f32.mxu0 0.0
        %2046 = vmatmul.mubr.f32.gmra.mrb[0].mxu0 %v1964
        %v2047 = vpop.f32.mrb[0].mxu0
        %v2048 = vadd.f32 0.0, %v2047
        %v2049 = vpop.f32.mrb[0].mxu0
        %2050 = vdwg.mxu0
        %v2051 = vmul.f32 %v1742, %v1632
        %v2052 = vmul.f32 %v1747, %v1634
        %v2053 = vmul.f32 %v1752, %v1636
        %v2054 = vmul.f32 %v1757, %v1638
        %v2055 = vmul.f32 %v1839, %v1640
        %v2056 = vmul.f32 %v1844, %v1642
        %v2057 = vmul.f32 %v1849, %v1644
        %v2058 = vmul.f32 %v1854, %v1646
        %v2059 = vmul.f32 %v1936, %v1648
        %v2060 = vmul.f32 %v1941, %v1650
        %v2061 = vmul.f32 %v1946, %v1652
        %v2062 = vmul.f32 %v1951, %v1654
        %v2063 = vmul.f32 %v2033, %v1656
        %v2064 = vmul.f32 %v2038, %v1658
        %v2065 = vmul.f32 %v2043, %v1660
        %v2066 = vmul.f32 %v2048, %v1662
        %2067 = vst.msk [vmem:[#allocation3] sm:$0xff] %vm1018, %v2051
        %2068 = vst.msk [vmem:[#allocation3 + $0x8] sm:$0xff] %vm1018, %v2052
        %2069 = vst.msk [vmem:[#allocation3 + $0x10] sm:$0xff] %vm1018, %v2053
        %2070 = vst.msk [vmem:[#allocation3 + $0x18] sm:$0xff] %vm1018, %v2054
        %2071 = vst.msk [vmem:[#allocation3 + $0x20] sm:$0xff] %vm1018, %v2055
        %2072 = vst.msk [vmem:[#allocation3 + $0x28] sm:$0xff] %vm1018, %v2056
        %2073 = vst.msk [vmem:[#allocation3 + $0x30] sm:$0xff] %vm1018, %v2057
        %2074 = vst.msk [vmem:[#allocation3 + $0x38] sm:$0xff] %vm1018, %v2058
        %2075 = vst.msk [vmem:[#allocation3 + $0x40] sm:$0xff] %vm1018, %v2059
        %2076 = vst.msk [vmem:[#allocation3 + $0x48] sm:$0xff] %vm1018, %v2060
        %2077 = vst.msk [vmem:[#allocation3 + $0x50] sm:$0xff] %vm1018, %v2061
        %2078 = vst.msk [vmem:[#allocation3 + $0x58] sm:$0xff] %vm1018, %v2062
        %2079 = vst.msk [vmem:[#allocation3 + $0x60] sm:$0xff] %vm1018, %v2063
        %2080 = vst.msk [vmem:[#allocation3 + $0x68] sm:$0xff] %vm1018, %v2064
        %2081 = vst.msk [vmem:[#allocation3 + $0x70] sm:$0xff] %vm1018, %v2065
        %2082 = vst.msk [vmem:[#allocation3 + $0x78] sm:$0xff] %vm1018, %v2066
        %v2083 = vld [vmem:[#allocation2] sm:$0xff]
        %v2084 = vld [vmem:[#allocation2 + $0x18] sm:$0xff]
        %v2085 = vld [vmem:[#allocation2 + $0x30] sm:$0xff]
        %v2086 = vld [vmem:[#allocation2 + $0x48] sm:$0xff]
        %v2087 = vld [vmem:[#allocation2 + $0x60] sm:$0xff]
        %v2088 = vld [vmem:[#allocation2 + $0x78] sm:$0xff]
        %v2089 = vld [vmem:[#allocation2 + $0x90] sm:$0xff]
        %v2090 = vld [vmem:[#allocation2 + $0xa8] sm:$0xff]
        %v2091 = vld [vmem:[#allocation2 + $0xc0] sm:$0xff]
        %v2092 = vld [vmem:[#allocation2 + $0xd8] sm:$0xff]
        %v2093 = vld [vmem:[#allocation2 + $0xf0] sm:$0xff]
        %v2094 = vld [vmem:[#allocation2 + $0x108] sm:$0xff]
        %v2095 = vld [vmem:[#allocation2 + $0x120] sm:$0xff]
        %v2096 = vld [vmem:[#allocation2 + $0x138] sm:$0xff]
        %v2097 = vld [vmem:[#allocation2 + $0x150] sm:$0xff]
        %v2098 = vld [vmem:[#allocation2 + $0x168] sm:$0xff]
        %v2099 = vld [vmem:[#allocation2 + $0x8] sm:$0xff]
        %v2100 = vld [vmem:[#allocation2 + $0x20] sm:$0xff]
        %v2101 = vld [vmem:[#allocation2 + $0x38] sm:$0xff]
        %v2102 = vld [vmem:[#allocation2 + $0x50] sm:$0xff]
        %v2103 = vld [vmem:[#allocation2 + $0x68] sm:$0xff]
        %v2104 = vld [vmem:[#allocation2 + $0x80] sm:$0xff]
        %v2105 = vld [vmem:[#allocation2 + $0x98] sm:$0xff]
        %v2106 = vld [vmem:[#allocation2 + $0xb0] sm:$0xff]
        %v2107 = vld [vmem:[#allocation2 + $0xc8] sm:$0xff]
        %v2108 = vld [vmem:[#allocation2 + $0xe0] sm:$0xff]
        %v2109 = vld [vmem:[#allocation2 + $0xf8] sm:$0xff]
        %v2110 = vld [vmem:[#allocation2 + $0x110] sm:$0xff]
        %v2111 = vld [vmem:[#allocation2 + $0x128] sm:$0xff]
        %v2112 = vld [vmem:[#allocation2 + $0x140] sm:$0xff]
        %v2113 = vld [vmem:[#allocation2 + $0x158] sm:$0xff]
        %v2114 = vld [vmem:[#allocation2 + $0x170] sm:$0xff]
        %v2115 = vld [vmem:[#allocation2 + $0x10] sm:$0xff]
        %v2116 = vld [vmem:[#allocation2 + $0x28] sm:$0xff]
        %v2117 = vld [vmem:[#allocation2 + $0x40] sm:$0xff]
        %v2118 = vld [vmem:[#allocation2 + $0x58] sm:$0xff]
        %v2119 = vld [vmem:[#allocation2 + $0x70] sm:$0xff]
        %v2120 = vld [vmem:[#allocation2 + $0x88] sm:$0xff]
        %v2121 = vld [vmem:[#allocation2 + $0xa0] sm:$0xff]
        %v2122 = vld [vmem:[#allocation2 + $0xb8] sm:$0xff]
        %v2123 = vld [vmem:[#allocation2 + $0xd0] sm:$0xff]
        %v2124 = vld [vmem:[#allocation2 + $0xe8] sm:$0xff]
        %v2125 = vld [vmem:[#allocation2 + $0x100] sm:$0xff]
        %v2126 = vld [vmem:[#allocation2 + $0x118] sm:$0xff]
        %v2127 = vld [vmem:[#allocation2 + $0x130] sm:$0xff]
        %v2128 = vld [vmem:[#allocation2 + $0x148] sm:$0xff]
        %v2129 = vld [vmem:[#allocation2 + $0x160] sm:$0xff]
        %v2130 = vld [vmem:[#allocation2 + $0x178] sm:$0xff]
        %2135 = vrot.lane.b32.xlu0 %v2083, 96
        %v2136 = vpop.permute.xlu0 %2135
        %2137 = vrot.lane.b32.xlu0 %v2084, 96
        %v2138 = vpop.permute.xlu0 %2137
        %2139 = vrot.lane.b32.xlu0 %v2085, 96
        %v2140 = vpop.permute.xlu0 %2139
        %2141 = vrot.lane.b32.xlu0 %v2086, 96
        %v2142 = vpop.permute.xlu0 %2141
        %2147 = vrot.lane.b32.xlu0 %v2099, 96
        %v2148 = vpop.permute.xlu0 %2147
        %2149 = vrot.lane.b32.xlu0 %v2100, 96
        %v2150 = vpop.permute.xlu0 %2149
        %2151 = vrot.lane.b32.xlu0 %v2101, 96
        %v2152 = vpop.permute.xlu0 %2151
        %2153 = vrot.lane.b32.xlu0 %v2102, 96
        %v2154 = vpop.permute.xlu0 %2153
        %v2155 = vsel %vm1018, %v2136, 0
        %v2157 = vsel %vm1018, %v2138, 0
        %v2159 = vsel %vm1018, %v2140, 0
        %v2161 = vsel %vm1018, %v2142, 0
        %v2163 = vsel %vm1018, %v2148, 0
        %v2165 = vsel %vm1018, %v2150, 0
        %v2167 = vsel %vm1018, %v2152, 0
        %v2169 = vsel %vm1018, %v2154, 0
        %2171 = vmatprep.subr.mxu0 0.0
        %2172 = vmatpush1.xpose.msra.mxu0 %v2163
        %2173 = vmatprep.subr.mxu0 0.0
        %2174 = vmatpush1.xpose.msra.mxu0 %v2165
        %2175 = vmatprep.subr.mxu0 0.0
        %2176 = vmatpush1.xpose.msra.mxu0 %v2167
        %2177 = vmatprep.subr.mxu0 0.0
        %2178 = vmatpush1.xpose.msra.mxu0 %v2169
        %2179 = vmatprep.subr.mxu0 0.0
        %2180 = vmatpush1.xpose.msra.mxu0 0.0
        %2181 = vmatprep.subr.mxu0 0.0
        %2182 = vmatpush1.xpose.msra.mxu0 0.0
        %2183 = vmatprep.subr.mxu0 0.0
        %2184 = vmatpush1.xpose.msra.mxu0 0.0
        %2185 = vmatprep.subr.mxu0 0.0
        %2186 = vmatpush1.xpose.msra.mxu0 0.0
        %2187 = vmatprep.subr.mxu0 0.0
        %2188 = vmatpush1.xpose.msra.mxu0 0.0
        %2189 = vmatprep.subr.mxu0 0.0
        %2190 = vmatpush1.xpose.msra.mxu0 0.0
        %2191 = vmatprep.subr.mxu0 0.0
        %2192 = vmatpush1.xpose.msra.mxu0 0.0
        %2193 = vmatprep.subr.mxu0 0.0
        %2194 = vmatpush1.xpose.msra.mxu0 0.0
        %2195 = vmatprep.subr.mxu0 0.0
        %2196 = vmatpush1.xpose.msra.mxu0 0.0
        %2197 = vmatprep.subr.mxu0 0.0
        %2198 = vmatpush1.xpose.msra.mxu0 0.0
        %2199 = vmatprep.subr.mxu0 0.0
        %2200 = vmatpush1.xpose.msra.mxu0 0.0
        %2201 = vmatprep.subr.mxu0 0.0
        %2202 = vmatpush1.xpose.msra.mxu0 0.0
        %2203 = vmatprep.subr.mxu0 0.0
        %2204 = vmatpush1.xpose.msra.mxu0 0.0
        %2205 = vmatprep.subr.mxu0 0.0
        %2206 = vmatpush1.xpose.msra.mxu0 0.0
        %2207 = vmatprep.subr.mxu0 0.0
        %2208 = vmatpush1.xpose.msra.mxu0 0.0
        %2209 = vmatprep.subr.mxu0 0.0
        %2210 = vmatpush1.xpose.msra.mxu0 0.0
        %2211 = vmatprep.subr.mxu0 0.0
        %2212 = vmatpush1.xpose.msra.mxu0 0.0
        %2213 = vmatprep.subr.mxu0 0.0
        %2214 = vmatpush1.xpose.msra.mxu0 0.0
        %2215 = vmatprep.subr.mxu0 0.0
        %2216 = vmatpush1.xpose.msra.mxu0 0.0
        %2217 = vmatprep.subr.mxu0 0.0
        %2218 = vmatpush1.xpose.msra.mxu0 0.0
        %2219 = vmatprep.subr.mxu0 0.0
        %2220 = vmatpush1.xpose.msra.mxu0 0.0
        %2221 = vmatprep.subr.mxu0 0.0
        %2222 = vmatpush1.xpose.msra.mxu0 0.0
        %2223 = vmatprep.subr.mxu0 0.0
        %2224 = vmatpush1.xpose.msra.mxu0 0.0
        %2225 = vmatprep.subr.mxu0 0.0
        %2226 = vmatpush1.xpose.msra.mxu0 0.0
        %2227 = vmatprep.subr.mxu0 0.0
        %2228 = vmatpush1.xpose.msra.mxu0 0.0
        %2229 = vmatprep.subr.mxu0 0.0
        %2230 = vmatpush1.xpose.msra.mxu0 0.0
        %2231 = vmatprep.subr.mxu0 0.0
        %2232 = vmatpush1.xpose.msra.mxu0 0.0
        %2233 = vmatprep.subr.mxu0 0.0
        %2234 = vmatpush1.xpose.msra.mxu0 0.0
        %2235 = vmatprep.mubr.f32.mxu0 0.0
        %2236 = vmatmul.mubr.f32.gmra.mrb[0].mxu0 %v2155
        %v2237 = vpop.f32.mrb[0].mxu0
        %v2238 = vadd.f32 0.0, %v2237
        %v2239 = vpop.f32.mrb[0].mxu0
        %2240 = vmatprep.mubr.f32.mxu0 0.0
        %2241 = vmatmul.mubr.f32.gmra.mrb[0].mxu0 %v2157
        %v2242 = vpop.f32.mrb[0].mxu0
        %v2243 = vadd.f32 0.0, %v2242
        %v2244 = vpop.f32.mrb[0].mxu0
        %2245 = vmatprep.mubr.f32.mxu0 0.0
        %2246 = vmatmul.mubr.f32.gmra.mrb[0].mxu0 %v2159
        %v2247 = vpop.f32.mrb[0].mxu0
        %v2248 = vadd.f32 0.0, %v2247
        %v2249 = vpop.f32.mrb[0].mxu0
        %2250 = vmatprep.mubr.f32.mxu0 0.0
        %2251 = vmatmul.mubr.f32.gmra.mrb[0].mxu0 %v2161
        %v2252 = vpop.f32.mrb[0].mxu0
        %v2253 = vadd.f32 0.0, %v2252
        %v2254 = vpop.f32.mrb[0].mxu0
        %2255 = vdwg.mxu0
        %2260 = vrot.lane.b32.xlu0 %v2087, 96
        %v2261 = vpop.permute.xlu0 %2260
        %2262 = vrot.lane.b32.xlu0 %v2088, 96
        %v2263 = vpop.permute.xlu0 %2262
        %2264 = vrot.lane.b32.xlu0 %v2089, 96
        %v2265 = vpop.permute.xlu0 %2264
        %2266 = vrot.lane.b32.xlu0 %v2090, 96
        %v2267 = vpop.permute.xlu0 %2266
        %2272 = vrot.lane.b32.xlu0 %v2103, 96
        %v2273 = vpop.permute.xlu0 %2272
        %2274 = vrot.lane.b32.xlu0 %v2104, 96
        %v2275 = vpop.permute.xlu0 %2274
        %2276 = vrot.lane.b32.xlu0 %v2105, 96
        %v2277 = vpop.permute.xlu0 %2276
        %2278 = vrot.lane.b32.xlu0 %v2106, 96
        %v2279 = vpop.permute.xlu0 %2278
        %v2280 = vsel %vm1018, %v2261, 0
        %v2282 = vsel %vm1018, %v2263, 0
        %v2284 = vsel %vm1018, %v2265, 0
        %v2286 = vsel %vm1018, %v2267, 0
        %v2288 = vsel %vm1018, %v2273, 0
        %v2290 = vsel %vm1018, %v2275, 0
        %v2292 = vsel %vm1018, %v2277, 0
        %v2294 = vsel %vm1018, %v2279, 0
        %2296 = vmatprep.subr.mxu0 0.0
        %2297 = vmatpush1.xpose.msra.mxu0 %v2288
        %2298 = vmatprep.subr.mxu0 0.0
        %2299 = vmatpush1.xpose.msra.mxu0 %v2290
        %2300 = vmatprep.subr.mxu0 0.0
        %2301 = vmatpush1.xpose.msra.mxu0 %v2292
        %2302 = vmatprep.subr.mxu0 0.0
        %2303 = vmatpush1.xpose.msra.mxu0 %v2294
        %2304 = vmatprep.subr.mxu0 0.0
        %2305 = vmatpush1.xpose.msra.mxu0 0.0
        %2306 = vmatprep.subr.mxu0 0.0
        %2307 = vmatpush1.xpose.msra.mxu0 0.0
        %2308 = vmatprep.subr.mxu0 0.0
        %2309 = vmatpush1.xpose.msra.mxu0 0.0
        %2310 = vmatprep.subr.mxu0 0.0
        %2311 = vmatpush1.xpose.msra.mxu0 0.0
        %2312 = vmatprep.subr.mxu0 0.0
        %2313 = vmatpush1.xpose.msra.mxu0 0.0
        %2314 = vmatprep.subr.mxu0 0.0
        %2315 = vmatpush1.xpose.msra.mxu0 0.0
        %2316 = vmatprep.subr.mxu0 0.0
        %2317 = vmatpush1.xpose.msra.mxu0 0.0
        %2318 = vmatprep.subr.mxu0 0.0
        %2319 = vmatpush1.xpose.msra.mxu0 0.0
        %2320 = vmatprep.subr.mxu0 0.0
        %2321 = vmatpush1.xpose.msra.mxu0 0.0
        %2322 = vmatprep.subr.mxu0 0.0
        %2323 = vmatpush1.xpose.msra.mxu0 0.0
        %2324 = vmatprep.subr.mxu0 0.0
        %2325 = vmatpush1.xpose.msra.mxu0 0.0
        %2326 = vmatprep.subr.mxu0 0.0
        %2327 = vmatpush1.xpose.msra.mxu0 0.0
        %2328 = vmatprep.subr.mxu0 0.0
        %2329 = vmatpush1.xpose.msra.mxu0 0.0
        %2330 = vmatprep.subr.mxu0 0.0
        %2331 = vmatpush1.xpose.msra.mxu0 0.0
        %2332 = vmatprep.subr.mxu0 0.0
        %2333 = vmatpush1.xpose.msra.mxu0 0.0
        %2334 = vmatprep.subr.mxu0 0.0
        %2335 = vmatpush1.xpose.msra.mxu0 0.0
        %2336 = vmatprep.subr.mxu0 0.0
        %2337 = vmatpush1.xpose.msra.mxu0 0.0
        %2338 = vmatprep.subr.mxu0 0.0
        %2339 = vmatpush1.xpose.msra.mxu0 0.0
        %2340 = vmatprep.subr.mxu0 0.0
        %2341 = vmatpush1.xpose.msra.mxu0 0.0
        %2342 = vmatprep.subr.mxu0 0.0
        %2343 = vmatpush1.xpose.msra.mxu0 0.0
        %2344 = vmatprep.subr.mxu0 0.0
        %2345 = vmatpush1.xpose.msra.mxu0 0.0
        %2346 = vmatprep.subr.mxu0 0.0
        %2347 = vmatpush1.xpose.msra.mxu0 0.0
        %2348 = vmatprep.subr.mxu0 0.0
        %2349 = vmatpush1.xpose.msra.mxu0 0.0
        %2350 = vmatprep.subr.mxu0 0.0
        %2351 = vmatpush1.xpose.msra.mxu0 0.0
        %2352 = vmatprep.subr.mxu0 0.0
        %2353 = vmatpush1.xpose.msra.mxu0 0.0
        %2354 = vmatprep.subr.mxu0 0.0
        %2355 = vmatpush1.xpose.msra.mxu0 0.0
        %2356 = vmatprep.subr.mxu0 0.0
        %2357 = vmatpush1.xpose.msra.mxu0 0.0
        %2358 = vmatprep.subr.mxu0 0.0
        %2359 = vmatpush1.xpose.msra.mxu0 0.0
        %2360 = vmatprep.mubr.f32.mxu0 0.0
        %2361 = vmatmul.mubr.f32.gmra.mrb[0].mxu0 %v2280
        %v2362 = vpop.f32.mrb[0].mxu0
        %v2363 = vadd.f32 0.0, %v2362
        %v2364 = vpop.f32.mrb[0].mxu0
        %2365 = vmatprep.mubr.f32.mxu0 0.0
        %2366 = vmatmul.mubr.f32.gmra.mrb[0].mxu0 %v2282
        %v2367 = vpop.f32.mrb[0].mxu0
        %v2368 = vadd.f32 0.0, %v2367
        %v2369 = vpop.f32.mrb[0].mxu0
        %2370 = vmatprep.mubr.f32.mxu0 0.0
        %2371 = vmatmul.mubr.f32.gmra.mrb[0].mxu0 %v2284
        %v2372 = vpop.f32.mrb[0].mxu0
        %v2373 = vadd.f32 0.0, %v2372
        %v2374 = vpop.f32.mrb[0].mxu0
        %2375 = vmatprep.mubr.f32.mxu0 0.0
        %2376 = vmatmul.mubr.f32.gmra.mrb[0].mxu0 %v2286
        %v2377 = vpop.f32.mrb[0].mxu0
        %v2378 = vadd.f32 0.0, %v2377
        %v2379 = vpop.f32.mrb[0].mxu0
        %2380 = vdwg.mxu0
        %2385 = vrot.lane.b32.xlu0 %v2091, 96
        %v2386 = vpop.permute.xlu0 %2385
        %2387 = vrot.lane.b32.xlu0 %v2092, 96
        %v2388 = vpop.permute.xlu0 %2387
        %2389 = vrot.lane.b32.xlu0 %v2093, 96
        %v2390 = vpop.permute.xlu0 %2389
        %2391 = vrot.lane.b32.xlu0 %v2094, 96
        %v2392 = vpop.permute.xlu0 %2391
        %2397 = vrot.lane.b32.xlu0 %v2107, 96
        %v2398 = vpop.permute.xlu0 %2397
        %2399 = vrot.lane.b32.xlu0 %v2108, 96
        %v2400 = vpop.permute.xlu0 %2399
        %2401 = vrot.lane.b32.xlu0 %v2109, 96
        %v2402 = vpop.permute.xlu0 %2401
        %2403 = vrot.lane.b32.xlu0 %v2110, 96
        %v2404 = vpop.permute.xlu0 %2403
        %v2405 = vsel %vm1018, %v2386, 0
        %v2407 = vsel %vm1018, %v2388, 0
        %v2409 = vsel %vm1018, %v2390, 0
        %v2411 = vsel %vm1018, %v2392, 0
        %v2413 = vsel %vm1018, %v2398, 0
        %v2415 = vsel %vm1018, %v2400, 0
        %v2417 = vsel %vm1018, %v2402, 0
        %v2419 = vsel %vm1018, %v2404, 0
        %2421 = vmatprep.subr.mxu0 0.0
        %2422 = vmatpush1.xpose.msra.mxu0 %v2413
        %2423 = vmatprep.subr.mxu0 0.0
        %2424 = vmatpush1.xpose.msra.mxu0 %v2415
        %2425 = vmatprep.subr.mxu0 0.0
        %2426 = vmatpush1.xpose.msra.mxu0 %v2417
        %2427 = vmatprep.subr.mxu0 0.0
        %2428 = vmatpush1.xpose.msra.mxu0 %v2419
        %2429 = vmatprep.subr.mxu0 0.0
        %2430 = vmatpush1.xpose.msra.mxu0 0.0
        %2431 = vmatprep.subr.mxu0 0.0
        %2432 = vmatpush1.xpose.msra.mxu0 0.0
        %2433 = vmatprep.subr.mxu0 0.0
        %2434 = vmatpush1.xpose.msra.mxu0 0.0
        %2435 = vmatprep.subr.mxu0 0.0
        %2436 = vmatpush1.xpose.msra.mxu0 0.0
        %2437 = vmatprep.subr.mxu0 0.0
        %2438 = vmatpush1.xpose.msra.mxu0 0.0
        %2439 = vmatprep.subr.mxu0 0.0
        %2440 = vmatpush1.xpose.msra.mxu0 0.0
        %2441 = vmatprep.subr.mxu0 0.0
        %2442 = vmatpush1.xpose.msra.mxu0 0.0
        %2443 = vmatprep.subr.mxu0 0.0
        %2444 = vmatpush1.xpose.msra.mxu0 0.0
        %2445 = vmatprep.subr.mxu0 0.0
        %2446 = vmatpush1.xpose.msra.mxu0 0.0
        %2447 = vmatprep.subr.mxu0 0.0
        %2448 = vmatpush1.xpose.msra.mxu0 0.0
        %2449 = vmatprep.subr.mxu0 0.0
        %2450 = vmatpush1.xpose.msra.mxu0 0.0
        %2451 = vmatprep.subr.mxu0 0.0
        %2452 = vmatpush1.xpose.msra.mxu0 0.0
        %2453 = vmatprep.subr.mxu0 0.0
        %2454 = vmatpush1.xpose.msra.mxu0 0.0
        %2455 = vmatprep.subr.mxu0 0.0
        %2456 = vmatpush1.xpose.msra.mxu0 0.0
        %2457 = vmatprep.subr.mxu0 0.0
        %2458 = vmatpush1.xpose.msra.mxu0 0.0
        %2459 = vmatprep.subr.mxu0 0.0
        %2460 = vmatpush1.xpose.msra.mxu0 0.0
        %2461 = vmatprep.subr.mxu0 0.0
        %2462 = vmatpush1.xpose.msra.mxu0 0.0
        %2463 = vmatprep.subr.mxu0 0.0
        %2464 = vmatpush1.xpose.msra.mxu0 0.0
        %2465 = vmatprep.subr.mxu0 0.0
        %2466 = vmatpush1.xpose.msra.mxu0 0.0
        %2467 = vmatprep.subr.mxu0 0.0
        %2468 = vmatpush1.xpose.msra.mxu0 0.0
        %2469 = vmatprep.subr.mxu0 0.0
        %2470 = vmatpush1.xpose.msra.mxu0 0.0
        %2471 = vmatprep.subr.mxu0 0.0
        %2472 = vmatpush1.xpose.msra.mxu0 0.0
        %2473 = vmatprep.subr.mxu0 0.0
        %2474 = vmatpush1.xpose.msra.mxu0 0.0
        %2475 = vmatprep.subr.mxu0 0.0
        %2476 = vmatpush1.xpose.msra.mxu0 0.0
        %2477 = vmatprep.subr.mxu0 0.0
        %2478 = vmatpush1.xpose.msra.mxu0 0.0
        %2479 = vmatprep.subr.mxu0 0.0
        %2480 = vmatpush1.xpose.msra.mxu0 0.0
        %2481 = vmatprep.subr.mxu0 0.0
        %2482 = vmatpush1.xpose.msra.mxu0 0.0
        %2483 = vmatprep.subr.mxu0 0.0
        %2484 = vmatpush1.xpose.msra.mxu0 0.0
        %2485 = vmatprep.mubr.f32.mxu0 0.0
        %2486 = vmatmul.mubr.f32.gmra.mrb[0].mxu0 %v2405
        %v2487 = vpop.f32.mrb[0].mxu0
        %v2488 = vadd.f32 0.0, %v2487
        %v2489 = vpop.f32.mrb[0].mxu0
        %2490 = vmatprep.mubr.f32.mxu0 0.0
        %2491 = vmatmul.mubr.f32.gmra.mrb[0].mxu0 %v2407
        %v2492 = vpop.f32.mrb[0].mxu0
        %v2493 = vadd.f32 0.0, %v2492
        %v2494 = vpop.f32.mrb[0].mxu0
        %2495 = vmatprep.mubr.f32.mxu0 0.0
        %2496 = vmatmul.mubr.f32.gmra.mrb[0].mxu0 %v2409
        %v2497 = vpop.f32.mrb[0].mxu0
        %v2498 = vadd.f32 0.0, %v2497
        %v2499 = vpop.f32.mrb[0].mxu0
        %2500 = vmatprep.mubr.f32.mxu0 0.0
        %2501 = vmatmul.mubr.f32.gmra.mrb[0].mxu0 %v2411
        %v2502 = vpop.f32.mrb[0].mxu0
        %v2503 = vadd.f32 0.0, %v2502
        %v2504 = vpop.f32.mrb[0].mxu0
        %2505 = vdwg.mxu0
        %2510 = vrot.lane.b32.xlu0 %v2095, 96
        %v2511 = vpop.permute.xlu0 %2510
        %2512 = vrot.lane.b32.xlu0 %v2096, 96
        %v2513 = vpop.permute.xlu0 %2512
        %2514 = vrot.lane.b32.xlu0 %v2097, 96
        %v2515 = vpop.permute.xlu0 %2514
        %2516 = vrot.lane.b32.xlu0 %v2098, 96
        %v2517 = vpop.permute.xlu0 %2516
        %2522 = vrot.lane.b32.xlu0 %v2111, 96
        %v2523 = vpop.permute.xlu0 %2522
        %2524 = vrot.lane.b32.xlu0 %v2112, 96
        %v2525 = vpop.permute.xlu0 %2524
        %2526 = vrot.lane.b32.xlu0 %v2113, 96
        %v2527 = vpop.permute.xlu0 %2526
        %2528 = vrot.lane.b32.xlu0 %v2114, 96
        %v2529 = vpop.permute.xlu0 %2528
        %v2530 = vsel %vm1018, %v2511, 0
        %v2532 = vsel %vm1018, %v2513, 0
        %v2534 = vsel %vm1018, %v2515, 0
        %v2536 = vsel %vm1018, %v2517, 0
        %v2538 = vsel %vm1018, %v2523, 0
        %v2540 = vsel %vm1018, %v2525, 0
        %v2542 = vsel %vm1018, %v2527, 0
        %v2544 = vsel %vm1018, %v2529, 0
        %2546 = vmatprep.subr.mxu0 0.0
        %2547 = vmatpush1.xpose.msra.mxu0 %v2538
        %2548 = vmatprep.subr.mxu0 0.0
        %2549 = vmatpush1.xpose.msra.mxu0 %v2540
        %2550 = vmatprep.subr.mxu0 0.0
        %2551 = vmatpush1.xpose.msra.mxu0 %v2542
        %2552 = vmatprep.subr.mxu0 0.0
        %2553 = vmatpush1.xpose.msra.mxu0 %v2544
        %2554 = vmatprep.subr.mxu0 0.0
        %2555 = vmatpush1.xpose.msra.mxu0 0.0
        %2556 = vmatprep.subr.mxu0 0.0
        %2557 = vmatpush1.xpose.msra.mxu0 0.0
        %2558 = vmatprep.subr.mxu0 0.0
        %2559 = vmatpush1.xpose.msra.mxu0 0.0
        %2560 = vmatprep.subr.mxu0 0.0
        %2561 = vmatpush1.xpose.msra.mxu0 0.0
        %2562 = vmatprep.subr.mxu0 0.0
        %2563 = vmatpush1.xpose.msra.mxu0 0.0
        %2564 = vmatprep.subr.mxu0 0.0
        %2565 = vmatpush1.xpose.msra.mxu0 0.0
        %2566 = vmatprep.subr.mxu0 0.0
        %2567 = vmatpush1.xpose.msra.mxu0 0.0
        %2568 = vmatprep.subr.mxu0 0.0
        %2569 = vmatpush1.xpose.msra.mxu0 0.0
        %2570 = vmatprep.subr.mxu0 0.0
        %2571 = vmatpush1.xpose.msra.mxu0 0.0
        %2572 = vmatprep.subr.mxu0 0.0
        %2573 = vmatpush1.xpose.msra.mxu0 0.0
        %2574 = vmatprep.subr.mxu0 0.0
        %2575 = vmatpush1.xpose.msra.mxu0 0.0
        %2576 = vmatprep.subr.mxu0 0.0
        %2577 = vmatpush1.xpose.msra.mxu0 0.0
        %2578 = vmatprep.subr.mxu0 0.0
        %2579 = vmatpush1.xpose.msra.mxu0 0.0
        %2580 = vmatprep.subr.mxu0 0.0
        %2581 = vmatpush1.xpose.msra.mxu0 0.0
        %2582 = vmatprep.subr.mxu0 0.0
        %2583 = vmatpush1.xpose.msra.mxu0 0.0
        %2584 = vmatprep.subr.mxu0 0.0
        %2585 = vmatpush1.xpose.msra.mxu0 0.0
        %2586 = vmatprep.subr.mxu0 0.0
        %2587 = vmatpush1.xpose.msra.mxu0 0.0
        %2588 = vmatprep.subr.mxu0 0.0
        %2589 = vmatpush1.xpose.msra.mxu0 0.0
        %2590 = vmatprep.subr.mxu0 0.0
        %2591 = vmatpush1.xpose.msra.mxu0 0.0
        %2592 = vmatprep.subr.mxu0 0.0
        %2593 = vmatpush1.xpose.msra.mxu0 0.0
        %2594 = vmatprep.subr.mxu0 0.0
        %2595 = vmatpush1.xpose.msra.mxu0 0.0
        %2596 = vmatprep.subr.mxu0 0.0
        %2597 = vmatpush1.xpose.msra.mxu0 0.0
        %2598 = vmatprep.subr.mxu0 0.0
        %2599 = vmatpush1.xpose.msra.mxu0 0.0
        %2600 = vmatprep.subr.mxu0 0.0
        %2601 = vmatpush1.xpose.msra.mxu0 0.0
        %2602 = vmatprep.subr.mxu0 0.0
        %2603 = vmatpush1.xpose.msra.mxu0 0.0
        %2604 = vmatprep.subr.mxu0 0.0
        %2605 = vmatpush1.xpose.msra.mxu0 0.0
        %2606 = vmatprep.subr.mxu0 0.0
        %2607 = vmatpush1.xpose.msra.mxu0 0.0
        %2608 = vmatprep.subr.mxu0 0.0
        %2609 = vmatpush1.xpose.msra.mxu0 0.0
        %2610 = vmatprep.mubr.f32.mxu0 0.0
        %2611 = vmatmul.mubr.f32.gmra.mrb[0].mxu0 %v2530
        %v2612 = vpop.f32.mrb[0].mxu0
        %v2613 = vadd.f32 0.0, %v2612
        %v2614 = vpop.f32.mrb[0].mxu0
        %2615 = vmatprep.mubr.f32.mxu0 0.0
        %2616 = vmatmul.mubr.f32.gmra.mrb[0].mxu0 %v2532
        %v2617 = vpop.f32.mrb[0].mxu0
        %v2618 = vadd.f32 0.0, %v2617
        %v2619 = vpop.f32.mrb[0].mxu0
        %2620 = vmatprep.mubr.f32.mxu0 0.0
        %2621 = vmatmul.mubr.f32.gmra.mrb[0].mxu0 %v2534
        %v2622 = vpop.f32.mrb[0].mxu0
        %v2623 = vadd.f32 0.0, %v2622
        %v2624 = vpop.f32.mrb[0].mxu0
        %2625 = vmatprep.mubr.f32.mxu0 0.0
        %2626 = vmatmul.mubr.f32.gmra.mrb[0].mxu0 %v2536
        %v2627 = vpop.f32.mrb[0].mxu0
        %v2628 = vadd.f32 0.0, %v2627
        %v2629 = vpop.f32.mrb[0].mxu0
        %2630 = vdwg.mxu0
        %v2631 = vmul.f32 %v2238, 0.17677669
        %v2632 = vmul.f32 %v2243, 0.17677669
        %v2633 = vmul.f32 %v2248, 0.17677669
        %v2634 = vmul.f32 %v2253, 0.17677669
        %v2635 = vmul.f32 %v2363, 0.17677669
        %v2636 = vmul.f32 %v2368, 0.17677669
        %v2637 = vmul.f32 %v2373, 0.17677669
        %v2638 = vmul.f32 %v2378, 0.17677669
        %v2639 = vmul.f32 %v2488, 0.17677669
        %v2640 = vmul.f32 %v2493, 0.17677669
        %v2641 = vmul.f32 %v2498, 0.17677669
        %v2642 = vmul.f32 %v2503, 0.17677669
        %v2643 = vmul.f32 %v2613, 0.17677669
        %v2644 = vmul.f32 %v2618, 0.17677669
        %v2645 = vmul.f32 %v2623, 0.17677669
        %v2646 = vmul.f32 %v2628, 0.17677669
        %v2647 = vadd.f32 %v2631, %v966
        %v2648 = vadd.f32 %v2632, %v967
        %v2649 = vadd.f32 %v2633, %v968
        %v2650 = vadd.f32 %v2634, %v969
        %v2651 = vadd.f32 %v2635, %v966
        %v2652 = vadd.f32 %v2636, %v967
        %v2653 = vadd.f32 %v2637, %v968
        %v2654 = vadd.f32 %v2638, %v969
        %v2655 = vadd.f32 %v2639, %v966
        %v2656 = vadd.f32 %v2640, %v967
        %v2657 = vadd.f32 %v2641, %v968
        %v2658 = vadd.f32 %v2642, %v969
        %v2659 = vadd.f32 %v2643, %v966
        %v2660 = vadd.f32 %v2644, %v967
        %v2661 = vadd.f32 %v2645, %v968
        %v2662 = vadd.f32 %v2646, %v969
        %v2663 = vsel %vm1018, %v2647, -inf
        %2664 = vmax.xlane.f32.xlu0 %v2663
        %v2665 = vpop.xlane.xlu0 %2664
        %v2666 = vsel %vm1018, %v2648, -inf
        %2667 = vmax.xlane.f32.xlu0 %v2666
        %v2668 = vpop.xlane.xlu0 %2667
        %v2669 = vsel %vm1018, %v2649, -inf
        %2670 = vmax.xlane.f32.xlu0 %v2669
        %v2671 = vpop.xlane.xlu0 %2670
        %v2672 = vsel %vm1018, %v2650, -inf
        %2673 = vmax.xlane.f32.xlu0 %v2672
        %v2674 = vpop.xlane.xlu0 %2673
        %v2675 = vsel %vm1018, %v2651, -inf
        %2676 = vmax.xlane.f32.xlu0 %v2675
        %v2677 = vpop.xlane.xlu0 %2676
        %v2678 = vsel %vm1018, %v2652, -inf
        %2679 = vmax.xlane.f32.xlu0 %v2678
        %v2680 = vpop.xlane.xlu0 %2679
        %v2681 = vsel %vm1018, %v2653, -inf
        %2682 = vmax.xlane.f32.xlu0 %v2681
        %v2683 = vpop.xlane.xlu0 %2682
        %v2684 = vsel %vm1018, %v2654, -inf
        %2685 = vmax.xlane.f32.xlu0 %v2684
        %v2686 = vpop.xlane.xlu0 %2685
        %v2687 = vsel %vm1018, %v2655, -inf
        %2688 = vmax.xlane.f32.xlu0 %v2687
        %v2689 = vpop.xlane.xlu0 %2688
        %v2690 = vsel %vm1018, %v2656, -inf
        %2691 = vmax.xlane.f32.xlu0 %v2690
        %v2692 = vpop.xlane.xlu0 %2691
        %v2693 = vsel %vm1018, %v2657, -inf
        %2694 = vmax.xlane.f32.xlu0 %v2693
        %v2695 = vpop.xlane.xlu0 %2694
        %v2696 = vsel %vm1018, %v2658, -inf
        %2697 = vmax.xlane.f32.xlu0 %v2696
        %v2698 = vpop.xlane.xlu0 %2697
        %v2699 = vsel %vm1018, %v2659, -inf
        %2700 = vmax.xlane.f32.xlu0 %v2699
        %v2701 = vpop.xlane.xlu0 %2700
        %v2702 = vsel %vm1018, %v2660, -inf
        %2703 = vmax.xlane.f32.xlu0 %v2702
        %v2704 = vpop.xlane.xlu0 %2703
        %v2705 = vsel %vm1018, %v2661, -inf
        %2706 = vmax.xlane.f32.xlu0 %v2705
        %v2707 = vpop.xlane.xlu0 %2706
        %v2708 = vsel %vm1018, %v2662, -inf
        %2709 = vmax.xlane.f32.xlu0 %v2708
        %v2710 = vpop.xlane.xlu0 %2709
        %v2711 = vsub.f32 %v2647, %v2665
        %v2712 = vsub.f32 %v2648, %v2668
        %v2713 = vsub.f32 %v2649, %v2671
        %v2714 = vsub.f32 %v2650, %v2674
        %v2715 = vsub.f32 %v2651, %v2677
        %v2716 = vsub.f32 %v2652, %v2680
        %v2717 = vsub.f32 %v2653, %v2683
        %v2718 = vsub.f32 %v2654, %v2686
        %v2719 = vsub.f32 %v2655, %v2689
        %v2720 = vsub.f32 %v2656, %v2692
        %v2721 = vsub.f32 %v2657, %v2695
        %v2722 = vsub.f32 %v2658, %v2698
        %v2723 = vsub.f32 %v2659, %v2701
        %v2724 = vsub.f32 %v2660, %v2704
        %v2725 = vsub.f32 %v2661, %v2707
        %v2726 = vsub.f32 %v2662, %v2710
        %v2727 = vmul.f32 %v2711, 1.442695
        %v2728 = vpow.pop %v2727
        %v2729 = vmul.f32 %v2712, 1.442695
        %v2730 = vpow.pop %v2729
        %v2731 = vmul.f32 %v2713, 1.442695
        %v2732 = vpow.pop %v2731
        %v2733 = vmul.f32 %v2714, 1.442695
        %v2734 = vpow.pop %v2733
        %v2735 = vmul.f32 %v2715, 1.442695
        %v2736 = vpow.pop %v2735
        %v2737 = vmul.f32 %v2716, 1.442695
        %v2738 = vpow.pop %v2737
        %v2739 = vmul.f32 %v2717, 1.442695
        %v2740 = vpow.pop %v2739
        %v2741 = vmul.f32 %v2718, 1.442695
        %v2742 = vpow.pop %v2741
        %v2743 = vmul.f32 %v2719, 1.442695
        %v2744 = vpow.pop %v2743
        %v2745 = vmul.f32 %v2720, 1.442695
        %v2746 = vpow.pop %v2745
        %v2747 = vmul.f32 %v2721, 1.442695
        %v2748 = vpow.pop %v2747
        %v2749 = vmul.f32 %v2722, 1.442695
        %v2750 = vpow.pop %v2749
        %v2751 = vmul.f32 %v2723, 1.442695
        %v2752 = vpow.pop %v2751
        %v2753 = vmul.f32 %v2724, 1.442695
        %v2754 = vpow.pop %v2753
        %v2755 = vmul.f32 %v2725, 1.442695
        %v2756 = vpow.pop %v2755
        %v2757 = vmul.f32 %v2726, 1.442695
        %v2758 = vpow.pop %v2757
        %v2759 = vsel %vm1018, %v2728, 0.0
        %2760 = vadd.xlane.f32.xlu0 %v2759
        %v2761 = vpop.xlane.xlu0 %2760
        %v2762 = vsel %vm1018, %v2730, 0.0
        %2763 = vadd.xlane.f32.xlu0 %v2762
        %v2764 = vpop.xlane.xlu0 %2763
        %v2765 = vsel %vm1018, %v2732, 0.0
        %2766 = vadd.xlane.f32.xlu0 %v2765
        %v2767 = vpop.xlane.xlu0 %2766
        %v2768 = vsel %vm1018, %v2734, 0.0
        %2769 = vadd.xlane.f32.xlu0 %v2768
        %v2770 = vpop.xlane.xlu0 %2769
        %v2771 = vsel %vm1018, %v2736, 0.0
        %2772 = vadd.xlane.f32.xlu0 %v2771
        %v2773 = vpop.xlane.xlu0 %2772
        %v2774 = vsel %vm1018, %v2738, 0.0
        %2775 = vadd.xlane.f32.xlu0 %v2774
        %v2776 = vpop.xlane.xlu0 %2775
        %v2777 = vsel %vm1018, %v2740, 0.0
        %2778 = vadd.xlane.f32.xlu0 %v2777
        %v2779 = vpop.xlane.xlu0 %2778
        %v2780 = vsel %vm1018, %v2742, 0.0
        %2781 = vadd.xlane.f32.xlu0 %v2780
        %v2782 = vpop.xlane.xlu0 %2781
        %v2783 = vsel %vm1018, %v2744, 0.0
        %2784 = vadd.xlane.f32.xlu0 %v2783
        %v2785 = vpop.xlane.xlu0 %2784
        %v2786 = vsel %vm1018, %v2746, 0.0
        %2787 = vadd.xlane.f32.xlu0 %v2786
        %v2788 = vpop.xlane.xlu0 %2787
        %v2789 = vsel %vm1018, %v2748, 0.0
        %2790 = vadd.xlane.f32.xlu0 %v2789
        %v2791 = vpop.xlane.xlu0 %2790
        %v2792 = vsel %vm1018, %v2750, 0.0
        %2793 = vadd.xlane.f32.xlu0 %v2792
        %v2794 = vpop.xlane.xlu0 %2793
        %v2795 = vsel %vm1018, %v2752, 0.0
        %2796 = vadd.xlane.f32.xlu0 %v2795
        %v2797 = vpop.xlane.xlu0 %2796
        %v2798 = vsel %vm1018, %v2754, 0.0
        %2799 = vadd.xlane.f32.xlu0 %v2798
        %v2800 = vpop.xlane.xlu0 %2799
        %v2801 = vsel %vm1018, %v2756, 0.0
        %2802 = vadd.xlane.f32.xlu0 %v2801
        %v2803 = vpop.xlane.xlu0 %2802
        %v2804 = vsel %vm1018, %v2758, 0.0
        %2805 = vadd.xlane.f32.xlu0 %v2804
        %v2806 = vpop.xlane.xlu0 %2805
        %v2807 = vrcp.pop %v2761
        %v2808 = vmul.f32 1.0, %v2807
        %v2809 = vrcp.pop %v2764
        %v2810 = vmul.f32 1.0, %v2809
        %v2811 = vrcp.pop %v2767
        %v2812 = vmul.f32 1.0, %v2811
        %v2813 = vrcp.pop %v2770
        %v2814 = vmul.f32 1.0, %v2813
        %v2815 = vrcp.pop %v2773
        %v2816 = vmul.f32 1.0, %v2815
        %v2817 = vrcp.pop %v2776
        %v2818 = vmul.f32 1.0, %v2817
        %v2819 = vrcp.pop %v2779
        %v2820 = vmul.f32 1.0, %v2819
        %v2821 = vrcp.pop %v2782
        %v2822 = vmul.f32 1.0, %v2821
        %v2823 = vrcp.pop %v2785
        %v2824 = vmul.f32 1.0, %v2823
        %v2825 = vrcp.pop %v2788
        %v2826 = vmul.f32 1.0, %v2825
        %v2827 = vrcp.pop %v2791
        %v2828 = vmul.f32 1.0, %v2827
        %v2829 = vrcp.pop %v2794
        %v2830 = vmul.f32 1.0, %v2829
        %v2831 = vrcp.pop %v2797
        %v2832 = vmul.f32 1.0, %v2831
        %v2833 = vrcp.pop %v2800
        %v2834 = vmul.f32 1.0, %v2833
        %v2835 = vrcp.pop %v2803
        %v2836 = vmul.f32 1.0, %v2835
        %v2837 = vrcp.pop %v2806
        %v2838 = vmul.f32 1.0, %v2837
        %2843 = vrot.lane.b32.xlu0 %v2115, 96
        %v2844 = vpop.permute.xlu0 %2843
        %2845 = vrot.lane.b32.xlu0 %v2116, 96
        %v2846 = vpop.permute.xlu0 %2845
        %2847 = vrot.lane.b32.xlu0 %v2117, 96
        %v2848 = vpop.permute.xlu0 %2847
        %2849 = vrot.lane.b32.xlu0 %v2118, 96
        %v2850 = vpop.permute.xlu0 %2849
        %v2856 = vsel %vm1018, %v2728, 0
        %v2859 = vsel %vm1018, %v2730, 0
        %v2862 = vsel %vm1018, %v2732, 0
        %v2865 = vsel %vm1018, %v2734, 0
        %2867 = vmatprep.subr.mxu0 0.0
        %2868 = vmatpush1.msra.mxu0 %v2844
        %2869 = vmatprep.subr.mxu0 0.0
        %2870 = vmatpush1.msra.mxu0 %v2846
        %2871 = vmatprep.subr.mxu0 0.0
        %2872 = vmatpush1.msra.mxu0 %v2848
        %2873 = vmatprep.subr.mxu0 0.0
        %2874 = vmatpush1.msra.mxu0 %v2850
        %2875 = vmatprep.subr.mxu0 0.0
        %2876 = vmatpush1.msra.mxu0 0.0
        %2877 = vmatprep.subr.mxu0 0.0
        %2878 = vmatpush1.msra.mxu0 0.0
        %2879 = vmatprep.subr.mxu0 0.0
        %2880 = vmatpush1.msra.mxu0 0.0
        %2881 = vmatprep.subr.mxu0 0.0
        %2882 = vmatpush1.msra.mxu0 0.0
        %2883 = vmatprep.subr.mxu0 0.0
        %2884 = vmatpush1.msra.mxu0 0.0
        %2885 = vmatprep.subr.mxu0 0.0
        %2886 = vmatpush1.msra.mxu0 0.0
        %2887 = vmatprep.subr.mxu0 0.0
        %2888 = vmatpush1.msra.mxu0 0.0
        %2889 = vmatprep.subr.mxu0 0.0
        %2890 = vmatpush1.msra.mxu0 0.0
        %2891 = vmatprep.subr.mxu0 0.0
        %2892 = vmatpush1.msra.mxu0 0.0
        %2893 = vmatprep.subr.mxu0 0.0
        %2894 = vmatpush1.msra.mxu0 0.0
        %2895 = vmatprep.subr.mxu0 0.0
        %2896 = vmatpush1.msra.mxu0 0.0
        %2897 = vmatprep.subr.mxu0 0.0
        %2898 = vmatpush1.msra.mxu0 0.0
        %2899 = vmatprep.subr.mxu0 0.0
        %2900 = vmatpush1.msra.mxu0 0.0
        %2901 = vmatprep.subr.mxu0 0.0
        %2902 = vmatpush1.msra.mxu0 0.0
        %2903 = vmatprep.subr.mxu0 0.0
        %2904 = vmatpush1.msra.mxu0 0.0
        %2905 = vmatprep.subr.mxu0 0.0
        %2906 = vmatpush1.msra.mxu0 0.0
        %2907 = vmatprep.subr.mxu0 0.0
        %2908 = vmatpush1.msra.mxu0 0.0
        %2909 = vmatprep.subr.mxu0 0.0
        %2910 = vmatpush1.msra.mxu0 0.0
        %2911 = vmatprep.subr.mxu0 0.0
        %2912 = vmatpush1.msra.mxu0 0.0
        %2913 = vmatprep.subr.mxu0 0.0
        %2914 = vmatpush1.msra.mxu0 0.0
        %2915 = vmatprep.subr.mxu0 0.0
        %2916 = vmatpush1.msra.mxu0 0.0
        %2917 = vmatprep.subr.mxu0 0.0
        %2918 = vmatpush1.msra.mxu0 0.0
        %2919 = vmatprep.subr.mxu0 0.0
        %2920 = vmatpush1.msra.mxu0 0.0
        %2921 = vmatprep.subr.mxu0 0.0
        %2922 = vmatpush1.msra.mxu0 0.0
        %2923 = vmatprep.subr.mxu0 0.0
        %2924 = vmatpush1.msra.mxu0 0.0
        %2925 = vmatprep.subr.mxu0 0.0
        %2926 = vmatpush1.msra.mxu0 0.0
        %2927 = vmatprep.subr.mxu0 0.0
        %2928 = vmatpush1.msra.mxu0 0.0
        %2929 = vmatprep.subr.mxu0 0.0
        %2930 = vmatpush1.msra.mxu0 0.0
        %2931 = vmatprep.mubr.f32.mxu0 0.0
        %2932 = vmatmul.mubr.f32.gmra.mrb[0].mxu0 %v2856
        %v2933 = vpop.f32.mrb[0].mxu0
        %v2934 = vadd.f32 0.0, %v2933
        %v2935 = vpop.f32.mrb[0].mxu0
        %2936 = vmatprep.mubr.f32.mxu0 0.0
        %2937 = vmatmul.mubr.f32.gmra.mrb[0].mxu0 %v2859
        %v2938 = vpop.f32.mrb[0].mxu0
        %v2939 = vadd.f32 0.0, %v2938
        %v2940 = vpop.f32.mrb[0].mxu0
        %2941 = vmatprep.mubr.f32.mxu0 0.0
        %2942 = vmatmul.mubr.f32.gmra.mrb[0].mxu0 %v2862
        %v2943 = vpop.f32.mrb[0].mxu0
        %v2944 = vadd.f32 0.0, %v2943
        %v2945 = vpop.f32.mrb[0].mxu0
        %2946 = vmatprep.mubr.f32.mxu0 0.0
        %2947 = vmatmul.mubr.f32.gmra.mrb[0].mxu0 %v2865
        %v2948 = vpop.f32.mrb[0].mxu0
        %v2949 = vadd.f32 0.0, %v2948
        %v2950 = vpop.f32.mrb[0].mxu0
        %2951 = vdwg.mxu0
        %2956 = vrot.lane.b32.xlu0 %v2119, 96
        %v2957 = vpop.permute.xlu0 %2956
        %2958 = vrot.lane.b32.xlu0 %v2120, 96
        %v2959 = vpop.permute.xlu0 %2958
        %2960 = vrot.lane.b32.xlu0 %v2121, 96
        %v2961 = vpop.permute.xlu0 %2960
        %2962 = vrot.lane.b32.xlu0 %v2122, 96
        %v2963 = vpop.permute.xlu0 %2962
        %v2969 = vsel %vm1018, %v2736, 0
        %v2972 = vsel %vm1018, %v2738, 0
        %v2975 = vsel %vm1018, %v2740, 0
        %v2978 = vsel %vm1018, %v2742, 0
        %2980 = vmatprep.subr.mxu0 0.0
        %2981 = vmatpush1.msra.mxu0 %v2957
        %2982 = vmatprep.subr.mxu0 0.0
        %2983 = vmatpush1.msra.mxu0 %v2959
        %2984 = vmatprep.subr.mxu0 0.0
        %2985 = vmatpush1.msra.mxu0 %v2961
        %2986 = vmatprep.subr.mxu0 0.0
        %2987 = vmatpush1.msra.mxu0 %v2963
        %2988 = vmatprep.subr.mxu0 0.0
        %2989 = vmatpush1.msra.mxu0 0.0
        %2990 = vmatprep.subr.mxu0 0.0
        %2991 = vmatpush1.msra.mxu0 0.0
        %2992 = vmatprep.subr.mxu0 0.0
        %2993 = vmatpush1.msra.mxu0 0.0
        %2994 = vmatprep.subr.mxu0 0.0
        %2995 = vmatpush1.msra.mxu0 0.0
        %2996 = vmatprep.subr.mxu0 0.0
        %2997 = vmatpush1.msra.mxu0 0.0
        %2998 = vmatprep.subr.mxu0 0.0
        %2999 = vmatpush1.msra.mxu0 0.0
        %3000 = vmatprep.subr.mxu0 0.0
        %3001 = vmatpush1.msra.mxu0 0.0
        %3002 = vmatprep.subr.mxu0 0.0
        %3003 = vmatpush1.msra.mxu0 0.0
        %3004 = vmatprep.subr.mxu0 0.0
        %3005 = vmatpush1.msra.mxu0 0.0
        %3006 = vmatprep.subr.mxu0 0.0
        %3007 = vmatpush1.msra.mxu0 0.0
        %3008 = vmatprep.subr.mxu0 0.0
        %3009 = vmatpush1.msra.mxu0 0.0
        %3010 = vmatprep.subr.mxu0 0.0
        %3011 = vmatpush1.msra.mxu0 0.0
        %3012 = vmatprep.subr.mxu0 0.0
        %3013 = vmatpush1.msra.mxu0 0.0
        %3014 = vmatprep.subr.mxu0 0.0
        %3015 = vmatpush1.msra.mxu0 0.0
        %3016 = vmatprep.subr.mxu0 0.0
        %3017 = vmatpush1.msra.mxu0 0.0
        %3018 = vmatprep.subr.mxu0 0.0
        %3019 = vmatpush1.msra.mxu0 0.0
        %3020 = vmatprep.subr.mxu0 0.0
        %3021 = vmatpush1.msra.mxu0 0.0
        %3022 = vmatprep.subr.mxu0 0.0
        %3023 = vmatpush1.msra.mxu0 0.0
        %3024 = vmatprep.subr.mxu0 0.0
        %3025 = vmatpush1.msra.mxu0 0.0
        %3026 = vmatprep.subr.mxu0 0.0
        %3027 = vmatpush1.msra.mxu0 0.0
        %3028 = vmatprep.subr.mxu0 0.0
        %3029 = vmatpush1.msra.mxu0 0.0
        %3030 = vmatprep.subr.mxu0 0.0
        %3031 = vmatpush1.msra.mxu0 0.0
        %3032 = vmatprep.subr.mxu0 0.0
        %3033 = vmatpush1.msra.mxu0 0.0
        %3034 = vmatprep.subr.mxu0 0.0
        %3035 = vmatpush1.msra.mxu0 0.0
        %3036 = vmatprep.subr.mxu0 0.0
        %3037 = vmatpush1.msra.mxu0 0.0
        %3038 = vmatprep.subr.mxu0 0.0
        %3039 = vmatpush1.msra.mxu0 0.0
        %3040 = vmatprep.subr.mxu0 0.0
        %3041 = vmatpush1.msra.mxu0 0.0
        %3042 = vmatprep.subr.mxu0 0.0
        %3043 = vmatpush1.msra.mxu0 0.0
        %3044 = vmatprep.mubr.f32.mxu0 0.0
        %3045 = vmatmul.mubr.f32.gmra.mrb[0].mxu0 %v2969
        %v3046 = vpop.f32.mrb[0].mxu0
        %v3047 = vadd.f32 0.0, %v3046
        %v3048 = vpop.f32.mrb[0].mxu0
        %3049 = vmatprep.mubr.f32.mxu0 0.0
        %3050 = vmatmul.mubr.f32.gmra.mrb[0].mxu0 %v2972
        %v3051 = vpop.f32.mrb[0].mxu0
        %v3052 = vadd.f32 0.0, %v3051
        %v3053 = vpop.f32.mrb[0].mxu0
        %3054 = vmatprep.mubr.f32.mxu0 0.0
        %3055 = vmatmul.mubr.f32.gmra.mrb[0].mxu0 %v2975
        %v3056 = vpop.f32.mrb[0].mxu0
        %v3057 = vadd.f32 0.0, %v3056
        %v3058 = vpop.f32.mrb[0].mxu0
        %3059 = vmatprep.mubr.f32.mxu0 0.0
        %3060 = vmatmul.mubr.f32.gmra.mrb[0].mxu0 %v2978
        %v3061 = vpop.f32.mrb[0].mxu0
        %v3062 = vadd.f32 0.0, %v3061
        %v3063 = vpop.f32.mrb[0].mxu0
        %3064 = vdwg.mxu0
        %3069 = vrot.lane.b32.xlu0 %v2123, 96
        %v3070 = vpop.permute.xlu0 %3069
        %3071 = vrot.lane.b32.xlu0 %v2124, 96
        %v3072 = vpop.permute.xlu0 %3071
        %3073 = vrot.lane.b32.xlu0 %v2125, 96
        %v3074 = vpop.permute.xlu0 %3073
        %3075 = vrot.lane.b32.xlu0 %v2126, 96
        %v3076 = vpop.permute.xlu0 %3075
        %v3082 = vsel %vm1018, %v2744, 0
        %v3085 = vsel %vm1018, %v2746, 0
        %v3088 = vsel %vm1018, %v2748, 0
        %v3091 = vsel %vm1018, %v2750, 0
        %3093 = vmatprep.subr.mxu0 0.0
        %3094 = vmatpush1.msra.mxu0 %v3070
        %3095 = vmatprep.subr.mxu0 0.0
        %3096 = vmatpush1.msra.mxu0 %v3072
        %3097 = vmatprep.subr.mxu0 0.0
        %3098 = vmatpush1.msra.mxu0 %v3074
        %3099 = vmatprep.subr.mxu0 0.0
        %3100 = vmatpush1.msra.mxu0 %v3076
        %3101 = vmatprep.subr.mxu0 0.0
        %3102 = vmatpush1.msra.mxu0 0.0
        %3103 = vmatprep.subr.mxu0 0.0
        %3104 = vmatpush1.msra.mxu0 0.0
        %3105 = vmatprep.subr.mxu0 0.0
        %3106 = vmatpush1.msra.mxu0 0.0
        %3107 = vmatprep.subr.mxu0 0.0
        %3108 = vmatpush1.msra.mxu0 0.0
        %3109 = vmatprep.subr.mxu0 0.0
        %3110 = vmatpush1.msra.mxu0 0.0
        %3111 = vmatprep.subr.mxu0 0.0
        %3112 = vmatpush1.msra.mxu0 0.0
        %3113 = vmatprep.subr.mxu0 0.0
        %3114 = vmatpush1.msra.mxu0 0.0
        %3115 = vmatprep.subr.mxu0 0.0
        %3116 = vmatpush1.msra.mxu0 0.0
        %3117 = vmatprep.subr.mxu0 0.0
        %3118 = vmatpush1.msra.mxu0 0.0
        %3119 = vmatprep.subr.mxu0 0.0
        %3120 = vmatpush1.msra.mxu0 0.0
        %3121 = vmatprep.subr.mxu0 0.0
        %3122 = vmatpush1.msra.mxu0 0.0
        %3123 = vmatprep.subr.mxu0 0.0
        %3124 = vmatpush1.msra.mxu0 0.0
        %3125 = vmatprep.subr.mxu0 0.0
        %3126 = vmatpush1.msra.mxu0 0.0
        %3127 = vmatprep.subr.mxu0 0.0
        %3128 = vmatpush1.msra.mxu0 0.0
        %3129 = vmatprep.subr.mxu0 0.0
        %3130 = vmatpush1.msra.mxu0 0.0
        %3131 = vmatprep.subr.mxu0 0.0
        %3132 = vmatpush1.msra.mxu0 0.0
        %3133 = vmatprep.subr.mxu0 0.0
        %3134 = vmatpush1.msra.mxu0 0.0
        %3135 = vmatprep.subr.mxu0 0.0
        %3136 = vmatpush1.msra.mxu0 0.0
        %3137 = vmatprep.subr.mxu0 0.0
        %3138 = vmatpush1.msra.mxu0 0.0
        %3139 = vmatprep.subr.mxu0 0.0
        %3140 = vmatpush1.msra.mxu0 0.0
        %3141 = vmatprep.subr.mxu0 0.0
        %3142 = vmatpush1.msra.mxu0 0.0
        %3143 = vmatprep.subr.mxu0 0.0
        %3144 = vmatpush1.msra.mxu0 0.0
        %3145 = vmatprep.subr.mxu0 0.0
        %3146 = vmatpush1.msra.mxu0 0.0
        %3147 = vmatprep.subr.mxu0 0.0
        %3148 = vmatpush1.msra.mxu0 0.0
        %3149 = vmatprep.subr.mxu0 0.0
        %3150 = vmatpush1.msra.mxu0 0.0
        %3151 = vmatprep.subr.mxu0 0.0
        %3152 = vmatpush1.msra.mxu0 0.0
        %3153 = vmatprep.subr.mxu0 0.0
        %3154 = vmatpush1.msra.mxu0 0.0
        %3155 = vmatprep.subr.mxu0 0.0
        %3156 = vmatpush1.msra.mxu0 0.0
        %3157 = vmatprep.mubr.f32.mxu0 0.0
        %3158 = vmatmul.mubr.f32.gmra.mrb[0].mxu0 %v3082
        %v3159 = vpop.f32.mrb[0].mxu0
        %v3160 = vadd.f32 0.0, %v3159
        %v3161 = vpop.f32.mrb[0].mxu0
        %3162 = vmatprep.mubr.f32.mxu0 0.0
        %3163 = vmatmul.mubr.f32.gmra.mrb[0].mxu0 %v3085
        %v3164 = vpop.f32.mrb[0].mxu0
        %v3165 = vadd.f32 0.0, %v3164
        %v3166 = vpop.f32.mrb[0].mxu0
        %3167 = vmatprep.mubr.f32.mxu0 0.0
        %3168 = vmatmul.mubr.f32.gmra.mrb[0].mxu0 %v3088
        %v3169 = vpop.f32.mrb[0].mxu0
        %v3170 = vadd.f32 0.0, %v3169
        %v3171 = vpop.f32.mrb[0].mxu0
        %3172 = vmatprep.mubr.f32.mxu0 0.0
        %3173 = vmatmul.mubr.f32.gmra.mrb[0].mxu0 %v3091
        %v3174 = vpop.f32.mrb[0].mxu0
        %v3175 = vadd.f32 0.0, %v3174
        %v3176 = vpop.f32.mrb[0].mxu0
        %3177 = vdwg.mxu0
        %3182 = vrot.lane.b32.xlu0 %v2127, 96
        %v3183 = vpop.permute.xlu0 %3182
        %3184 = vrot.lane.b32.xlu0 %v2128, 96
        %v3185 = vpop.permute.xlu0 %3184
        %3186 = vrot.lane.b32.xlu0 %v2129, 96
        %v3187 = vpop.permute.xlu0 %3186
        %3188 = vrot.lane.b32.xlu0 %v2130, 96
        %v3189 = vpop.permute.xlu0 %3188
        %v3195 = vsel %vm1018, %v2752, 0
        %v3198 = vsel %vm1018, %v2754, 0
        %v3201 = vsel %vm1018, %v2756, 0
        %v3204 = vsel %vm1018, %v2758, 0
        %3206 = vmatprep.subr.mxu0 0.0
        %3207 = vmatpush1.msra.mxu0 %v3183
        %3208 = vmatprep.subr.mxu0 0.0
        %3209 = vmatpush1.msra.mxu0 %v3185
        %3210 = vmatprep.subr.mxu0 0.0
        %3211 = vmatpush1.msra.mxu0 %v3187
        %3212 = vmatprep.subr.mxu0 0.0
        %3213 = vmatpush1.msra.mxu0 %v3189
        %3214 = vmatprep.subr.mxu0 0.0
        %3215 = vmatpush1.msra.mxu0 0.0
        %3216 = vmatprep.subr.mxu0 0.0
        %3217 = vmatpush1.msra.mxu0 0.0
        %3218 = vmatprep.subr.mxu0 0.0
        %3219 = vmatpush1.msra.mxu0 0.0
        %3220 = vmatprep.subr.mxu0 0.0
        %3221 = vmatpush1.msra.mxu0 0.0
        %3222 = vmatprep.subr.mxu0 0.0
        %3223 = vmatpush1.msra.mxu0 0.0
        %3224 = vmatprep.subr.mxu0 0.0
        %3225 = vmatpush1.msra.mxu0 0.0
        %3226 = vmatprep.subr.mxu0 0.0
        %3227 = vmatpush1.msra.mxu0 0.0
        %3228 = vmatprep.subr.mxu0 0.0
        %3229 = vmatpush1.msra.mxu0 0.0
        %3230 = vmatprep.subr.mxu0 0.0
        %3231 = vmatpush1.msra.mxu0 0.0
        %3232 = vmatprep.subr.mxu0 0.0
        %3233 = vmatpush1.msra.mxu0 0.0
        %3234 = vmatprep.subr.mxu0 0.0
        %3235 = vmatpush1.msra.mxu0 0.0
        %3236 = vmatprep.subr.mxu0 0.0
        %3237 = vmatpush1.msra.mxu0 0.0
        %3238 = vmatprep.subr.mxu0 0.0
        %3239 = vmatpush1.msra.mxu0 0.0
        %3240 = vmatprep.subr.mxu0 0.0
        %3241 = vmatpush1.msra.mxu0 0.0
        %3242 = vmatprep.subr.mxu0 0.0
        %3243 = vmatpush1.msra.mxu0 0.0
        %3244 = vmatprep.subr.mxu0 0.0
        %3245 = vmatpush1.msra.mxu0 0.0
        %3246 = vmatprep.subr.mxu0 0.0
        %3247 = vmatpush1.msra.mxu0 0.0
        %3248 = vmatprep.subr.mxu0 0.0
        %3249 = vmatpush1.msra.mxu0 0.0
        %3250 = vmatprep.subr.mxu0 0.0
        %3251 = vmatpush1.msra.mxu0 0.0
        %3252 = vmatprep.subr.mxu0 0.0
        %3253 = vmatpush1.msra.mxu0 0.0
        %3254 = vmatprep.subr.mxu0 0.0
        %3255 = vmatpush1.msra.mxu0 0.0
        %3256 = vmatprep.subr.mxu0 0.0
        %3257 = vmatpush1.msra.mxu0 0.0
        %3258 = vmatprep.subr.mxu0 0.0
        %3259 = vmatpush1.msra.mxu0 0.0
        %3260 = vmatprep.subr.mxu0 0.0
        %3261 = vmatpush1.msra.mxu0 0.0
        %3262 = vmatprep.subr.mxu0 0.0
        %3263 = vmatpush1.msra.mxu0 0.0
        %3264 = vmatprep.subr.mxu0 0.0
        %3265 = vmatpush1.msra.mxu0 0.0
        %3266 = vmatprep.subr.mxu0 0.0
        %3267 = vmatpush1.msra.mxu0 0.0
        %3268 = vmatprep.subr.mxu0 0.0
        %3269 = vmatpush1.msra.mxu0 0.0
        %3270 = vmatprep.mubr.f32.mxu0 0.0
        %3271 = vmatmul.mubr.f32.gmra.mrb[0].mxu0 %v3195
        %v3272 = vpop.f32.mrb[0].mxu0
        %v3273 = vadd.f32 0.0, %v3272
        %v3274 = vpop.f32.mrb[0].mxu0
        %3275 = vmatprep.mubr.f32.mxu0 0.0
        %3276 = vmatmul.mubr.f32.gmra.mrb[0].mxu0 %v3198
        %v3277 = vpop.f32.mrb[0].mxu0
        %v3278 = vadd.f32 0.0, %v3277
        %v3279 = vpop.f32.mrb[0].mxu0
        %3280 = vmatprep.mubr.f32.mxu0 0.0
        %3281 = vmatmul.mubr.f32.gmra.mrb[0].mxu0 %v3201
        %v3282 = vpop.f32.mrb[0].mxu0
        %v3283 = vadd.f32 0.0, %v3282
        %v3284 = vpop.f32.mrb[0].mxu0
        %3285 = vmatprep.mubr.f32.mxu0 0.0
        %3286 = vmatmul.mubr.f32.gmra.mrb[0].mxu0 %v3204
        %v3287 = vpop.f32.mrb[0].mxu0
        %v3288 = vadd.f32 0.0, %v3287
        %v3289 = vpop.f32.mrb[0].mxu0
        %3290 = vdwg.mxu0
        %v3291 = vmul.f32 %v2934, %v2808
        %v3292 = vmul.f32 %v2939, %v2810
        %v3293 = vmul.f32 %v2944, %v2812
        %v3294 = vmul.f32 %v2949, %v2814
        %v3295 = vmul.f32 %v3047, %v2816
        %v3296 = vmul.f32 %v3052, %v2818
        %v3297 = vmul.f32 %v3057, %v2820
        %v3298 = vmul.f32 %v3062, %v2822
        %v3299 = vmul.f32 %v3160, %v2824
        %v3300 = vmul.f32 %v3165, %v2826
        %v3301 = vmul.f32 %v3170, %v2828
        %v3302 = vmul.f32 %v3175, %v2830
        %v3303 = vmul.f32 %v3273, %v2832
        %v3304 = vmul.f32 %v3278, %v2834
        %v3305 = vmul.f32 %v3283, %v2836
        %v3306 = vmul.f32 %v3288, %v2838
        %3323 = vrot.lane.b32.xlu0 %v3291, 32
        %v3324 = vpop.permute.xlu0 %3323
        %3325 = vrot.lane.b32.xlu0 %v3292, 32
        %v3326 = vpop.permute.xlu0 %3325
        %3327 = vrot.lane.b32.xlu0 %v3293, 32
        %v3328 = vpop.permute.xlu0 %3327
        %3329 = vrot.lane.b32.xlu0 %v3294, 32
        %v3330 = vpop.permute.xlu0 %3329
        %3331 = vrot.lane.b32.xlu0 %v3295, 32
        %v3332 = vpop.permute.xlu0 %3331
        %3333 = vrot.lane.b32.xlu0 %v3296, 32
        %v3334 = vpop.permute.xlu0 %3333
        %3335 = vrot.lane.b32.xlu0 %v3297, 32
        %v3336 = vpop.permute.xlu0 %3335
        %3337 = vrot.lane.b32.xlu0 %v3298, 32
        %v3338 = vpop.permute.xlu0 %3337
        %3339 = vrot.lane.b32.xlu0 %v3299, 32
        %v3340 = vpop.permute.xlu0 %3339
        %3341 = vrot.lane.b32.xlu0 %v3300, 32
        %v3342 = vpop.permute.xlu0 %3341
        %3343 = vrot.lane.b32.xlu0 %v3301, 32
        %v3344 = vpop.permute.xlu0 %3343
        %3345 = vrot.lane.b32.xlu0 %v3302, 32
        %v3346 = vpop.permute.xlu0 %3345
        %3347 = vrot.lane.b32.xlu0 %v3303, 32
        %v3348 = vpop.permute.xlu0 %3347
        %3349 = vrot.lane.b32.xlu0 %v3304, 32
        %v3350 = vpop.permute.xlu0 %3349
        %3351 = vrot.lane.b32.xlu0 %v3305, 32
        %v3352 = vpop.permute.xlu0 %3351
        %3353 = vrot.lane.b32.xlu0 %v3306, 32
        %v3354 = vpop.permute.xlu0 %3353
        %vm3371 = vcmask 523520
        %3372 = vst.msk [vmem:[#allocation3] sm:$0xff] %vm3371, %v3324
        %3373 = vst.msk [vmem:[#allocation3 + $0x8] sm:$0xff] %vm3371, %v3326
        %3374 = vst.msk [vmem:[#allocation3 + $0x10] sm:$0xff] %vm3371, %v3328
        %3375 = vst.msk [vmem:[#allocation3 + $0x18] sm:$0xff] %vm3371, %v3330
        %3376 = vst.msk [vmem:[#allocation3 + $0x20] sm:$0xff] %vm3371, %v3332
        %3377 = vst.msk [vmem:[#allocation3 + $0x28] sm:$0xff] %vm3371, %v3334
        %3378 = vst.msk [vmem:[#allocation3 + $0x30] sm:$0xff] %vm3371, %v3336
        %3379 = vst.msk [vmem:[#allocation3 + $0x38] sm:$0xff] %vm3371, %v3338
        %3380 = vst.msk [vmem:[#allocation3 + $0x40] sm:$0xff] %vm3371, %v3340
        %3381 = vst.msk [vmem:[#allocation3 + $0x48] sm:$0xff] %vm3371, %v3342
        %3382 = vst.msk [vmem:[#allocation3 + $0x50] sm:$0xff] %vm3371, %v3344
        %3383 = vst.msk [vmem:[#allocation3 + $0x58] sm:$0xff] %vm3371, %v3346
        %3384 = vst.msk [vmem:[#allocation3 + $0x60] sm:$0xff] %vm3371, %v3348
        %3385 = vst.msk [vmem:[#allocation3 + $0x68] sm:$0xff] %vm3371, %v3350
        %3386 = vst.msk [vmem:[#allocation3 + $0x70] sm:$0xff] %vm3371, %v3352
        %3387 = vst.msk [vmem:[#allocation3 + $0x78] sm:$0xff] %vm3371, %v3354
        %v3388 = vld [vmem:[#allocation2] sm:$0xff]
        %v3389 = vld [vmem:[#allocation2 + $0x18] sm:$0xff]
        %v3390 = vld [vmem:[#allocation2 + $0x30] sm:$0xff]
        %v3391 = vld [vmem:[#allocation2 + $0x48] sm:$0xff]
        %v3392 = vld [vmem:[#allocation2 + $0x60] sm:$0xff]
        %v3393 = vld [vmem:[#allocation2 + $0x78] sm:$0xff]
        %v3394 = vld [vmem:[#allocation2 + $0x90] sm:$0xff]
        %v3395 = vld [vmem:[#allocation2 + $0xa8] sm:$0xff]
        %v3396 = vld [vmem:[#allocation2 + $0xc0] sm:$0xff]
        %v3397 = vld [vmem:[#allocation2 + $0xd8] sm:$0xff]
        %v3398 = vld [vmem:[#allocation2 + $0xf0] sm:$0xff]
        %v3399 = vld [vmem:[#allocation2 + $0x108] sm:$0xff]
        %v3400 = vld [vmem:[#allocation2 + $0x120] sm:$0xff]
        %v3401 = vld [vmem:[#allocation2 + $0x138] sm:$0xff]
        %v3402 = vld [vmem:[#allocation2 + $0x150] sm:$0xff]
        %v3403 = vld [vmem:[#allocation2 + $0x168] sm:$0xff]
        %v3404 = vld [vmem:[#allocation2 + $0x8] sm:$0xff]
        %v3405 = vld [vmem:[#allocation2 + $0x20] sm:$0xff]
        %v3406 = vld [vmem:[#allocation2 + $0x38] sm:$0xff]
        %v3407 = vld [vmem:[#allocation2 + $0x50] sm:$0xff]
        %v3408 = vld [vmem:[#allocation2 + $0x68] sm:$0xff]
        %v3409 = vld [vmem:[#allocation2 + $0x80] sm:$0xff]
        %v3410 = vld [vmem:[#allocation2 + $0x98] sm:$0xff]
        %v3411 = vld [vmem:[#allocation2 + $0xb0] sm:$0xff]
        %v3412 = vld [vmem:[#allocation2 + $0xc8] sm:$0xff]
        %v3413 = vld [vmem:[#allocation2 + $0xe0] sm:$0xff]
        %v3414 = vld [vmem:[#allocation2 + $0xf8] sm:$0xff]
        %v3415 = vld [vmem:[#allocation2 + $0x110] sm:$0xff]
        %v3416 = vld [vmem:[#allocation2 + $0x128] sm:$0xff]
        %v3417 = vld [vmem:[#allocation2 + $0x140] sm:$0xff]
        %v3418 = vld [vmem:[#allocation2 + $0x158] sm:$0xff]
        %v3419 = vld [vmem:[#allocation2 + $0x170] sm:$0xff]
        %v3420 = vld [vmem:[#allocation2 + $0x10] sm:$0xff]
        %v3421 = vld [vmem:[#allocation2 + $0x28] sm:$0xff]
        %v3422 = vld [vmem:[#allocation2 + $0x40] sm:$0xff]
        %v3423 = vld [vmem:[#allocation2 + $0x58] sm:$0xff]
        %v3424 = vld [vmem:[#allocation2 + $0x70] sm:$0xff]
        %v3425 = vld [vmem:[#allocation2 + $0x88] sm:$0xff]
        %v3426 = vld [vmem:[#allocation2 + $0xa0] sm:$0xff]
        %v3427 = vld [vmem:[#allocation2 + $0xb8] sm:$0xff]
        %v3428 = vld [vmem:[#allocation2 + $0xd0] sm:$0xff]
        %v3429 = vld [vmem:[#allocation2 + $0xe8] sm:$0xff]
        %v3430 = vld [vmem:[#allocation2 + $0x100] sm:$0xff]
        %v3431 = vld [vmem:[#allocation2 + $0x118] sm:$0xff]
        %v3432 = vld [vmem:[#allocation2 + $0x130] sm:$0xff]
        %v3433 = vld [vmem:[#allocation2 + $0x148] sm:$0xff]
        %v3434 = vld [vmem:[#allocation2 + $0x160] sm:$0xff]
        %v3435 = vld [vmem:[#allocation2 + $0x178] sm:$0xff]
        %3440 = vrot.lane.b32.xlu0 %v3388, 64
        %v3441 = vpop.permute.xlu0 %3440
        %3442 = vrot.lane.b32.xlu0 %v3389, 64
        %v3443 = vpop.permute.xlu0 %3442
        %3444 = vrot.lane.b32.xlu0 %v3390, 64
        %v3445 = vpop.permute.xlu0 %3444
        %3446 = vrot.lane.b32.xlu0 %v3391, 64
        %v3447 = vpop.permute.xlu0 %3446
        %3452 = vrot.lane.b32.xlu0 %v3404, 64
        %v3453 = vpop.permute.xlu0 %3452
        %3454 = vrot.lane.b32.xlu0 %v3405, 64
        %v3455 = vpop.permute.xlu0 %3454
        %3456 = vrot.lane.b32.xlu0 %v3406, 64
        %v3457 = vpop.permute.xlu0 %3456
        %3458 = vrot.lane.b32.xlu0 %v3407, 64
        %v3459 = vpop.permute.xlu0 %3458
        %v3460 = vsel %vm1018, %v3441, 0
        %v3462 = vsel %vm1018, %v3443, 0
        %v3464 = vsel %vm1018, %v3445, 0
        %v3466 = vsel %vm1018, %v3447, 0
        %v3468 = vsel %vm1018, %v3453, 0
        %v3470 = vsel %vm1018, %v3455, 0
        %v3472 = vsel %vm1018, %v3457, 0
        %v3474 = vsel %vm1018, %v3459, 0
        %3476 = vmatprep.subr.mxu0 0.0
        %3477 = vmatpush1.xpose.msra.mxu0 %v3468
        %3478 = vmatprep.subr.mxu0 0.0
        %3479 = vmatpush1.xpose.msra.mxu0 %v3470
        %3480 = vmatprep.subr.mxu0 0.0
        %3481 = vmatpush1.xpose.msra.mxu0 %v3472
        %3482 = vmatprep.subr.mxu0 0.0
        %3483 = vmatpush1.xpose.msra.mxu0 %v3474
        %3484 = vmatprep.subr.mxu0 0.0
        %3485 = vmatpush1.xpose.msra.mxu0 0.0
        %3486 = vmatprep.subr.mxu0 0.0
        %3487 = vmatpush1.xpose.msra.mxu0 0.0
        %3488 = vmatprep.subr.mxu0 0.0
        %3489 = vmatpush1.xpose.msra.mxu0 0.0
        %3490 = vmatprep.subr.mxu0 0.0
        %3491 = vmatpush1.xpose.msra.mxu0 0.0
        %3492 = vmatprep.subr.mxu0 0.0
        %3493 = vmatpush1.xpose.msra.mxu0 0.0
        %3494 = vmatprep.subr.mxu0 0.0
        %3495 = vmatpush1.xpose.msra.mxu0 0.0
        %3496 = vmatprep.subr.mxu0 0.0
        %3497 = vmatpush1.xpose.msra.mxu0 0.0
        %3498 = vmatprep.subr.mxu0 0.0
        %3499 = vmatpush1.xpose.msra.mxu0 0.0
        %3500 = vmatprep.subr.mxu0 0.0
        %3501 = vmatpush1.xpose.msra.mxu0 0.0
        %3502 = vmatprep.subr.mxu0 0.0
        %3503 = vmatpush1.xpose.msra.mxu0 0.0
        %3504 = vmatprep.subr.mxu0 0.0
        %3505 = vmatpush1.xpose.msra.mxu0 0.0
        %3506 = vmatprep.subr.mxu0 0.0
        %3507 = vmatpush1.xpose.msra.mxu0 0.0
        %3508 = vmatprep.subr.mxu0 0.0
        %3509 = vmatpush1.xpose.msra.mxu0 0.0
        %3510 = vmatprep.subr.mxu0 0.0
        %3511 = vmatpush1.xpose.msra.mxu0 0.0
        %3512 = vmatprep.subr.mxu0 0.0
        %3513 = vmatpush1.xpose.msra.mxu0 0.0
        %3514 = vmatprep.subr.mxu0 0.0
        %3515 = vmatpush1.xpose.msra.mxu0 0.0
        %3516 = vmatprep.subr.mxu0 0.0
        %3517 = vmatpush1.xpose.msra.mxu0 0.0
        %3518 = vmatprep.subr.mxu0 0.0
        %3519 = vmatpush1.xpose.msra.mxu0 0.0
        %3520 = vmatprep.subr.mxu0 0.0
        %3521 = vmatpush1.xpose.msra.mxu0 0.0
        %3522 = vmatprep.subr.mxu0 0.0
        %3523 = vmatpush1.xpose.msra.mxu0 0.0
        %3524 = vmatprep.subr.mxu0 0.0
        %3525 = vmatpush1.xpose.msra.mxu0 0.0
        %3526 = vmatprep.subr.mxu0 0.0
        %3527 = vmatpush1.xpose.msra.mxu0 0.0
        %3528 = vmatprep.subr.mxu0 0.0
        %3529 = vmatpush1.xpose.msra.mxu0 0.0
        %3530 = vmatprep.subr.mxu0 0.0
        %3531 = vmatpush1.xpose.msra.mxu0 0.0
        %3532 = vmatprep.subr.mxu0 0.0
        %3533 = vmatpush1.xpose.msra.mxu0 0.0
        %3534 = vmatprep.subr.mxu0 0.0
        %3535 = vmatpush1.xpose.msra.mxu0 0.0
        %3536 = vmatprep.subr.mxu0 0.0
        %3537 = vmatpush1.xpose.msra.mxu0 0.0
        %3538 = vmatprep.subr.mxu0 0.0
        %3539 = vmatpush1.xpose.msra.mxu0 0.0
        %3540 = vmatprep.mubr.f32.mxu0 0.0
        %3541 = vmatmul.mubr.f32.gmra.mrb[0].mxu0 %v3460
        %v3542 = vpop.f32.mrb[0].mxu0
        %v3543 = vadd.f32 0.0, %v3542
        %v3544 = vpop.f32.mrb[0].mxu0
        %3545 = vmatprep.mubr.f32.mxu0 0.0
        %3546 = vmatmul.mubr.f32.gmra.mrb[0].mxu0 %v3462
        %v3547 = vpop.f32.mrb[0].mxu0
        %v3548 = vadd.f32 0.0, %v3547
        %v3549 = vpop.f32.mrb[0].mxu0
        %3550 = vmatprep.mubr.f32.mxu0 0.0
        %3551 = vmatmul.mubr.f32.gmra.mrb[0].mxu0 %v3464
        %v3552 = vpop.f32.mrb[0].mxu0
        %v3553 = vadd.f32 0.0, %v3552
        %v3554 = vpop.f32.mrb[0].mxu0
        %3555 = vmatprep.mubr.f32.mxu0 0.0
        %3556 = vmatmul.mubr.f32.gmra.mrb[0].mxu0 %v3466
        %v3557 = vpop.f32.mrb[0].mxu0
        %v3558 = vadd.f32 0.0, %v3557
        %v3559 = vpop.f32.mrb[0].mxu0
        %3560 = vdwg.mxu0
        %3565 = vrot.lane.b32.xlu0 %v3392, 64
        %v3566 = vpop.permute.xlu0 %3565
        %3567 = vrot.lane.b32.xlu0 %v3393, 64
        %v3568 = vpop.permute.xlu0 %3567
        %3569 = vrot.lane.b32.xlu0 %v3394, 64
        %v3570 = vpop.permute.xlu0 %3569
        %3571 = vrot.lane.b32.xlu0 %v3395, 64
        %v3572 = vpop.permute.xlu0 %3571
        %3577 = vrot.lane.b32.xlu0 %v3408, 64
        %v3578 = vpop.permute.xlu0 %3577
        %3579 = vrot.lane.b32.xlu0 %v3409, 64
        %v3580 = vpop.permute.xlu0 %3579
        %3581 = vrot.lane.b32.xlu0 %v3410, 64
        %v3582 = vpop.permute.xlu0 %3581
        %3583 = vrot.lane.b32.xlu0 %v3411, 64
        %v3584 = vpop.permute.xlu0 %3583
        %v3585 = vsel %vm1018, %v3566, 0
        %v3587 = vsel %vm1018, %v3568, 0
        %v3589 = vsel %vm1018, %v3570, 0
        %v3591 = vsel %vm1018, %v3572, 0
        %v3593 = vsel %vm1018, %v3578, 0
        %v3595 = vsel %vm1018, %v3580, 0
        %v3597 = vsel %vm1018, %v3582, 0
        %v3599 = vsel %vm1018, %v3584, 0
        %3601 = vmatprep.subr.mxu0 0.0
        %3602 = vmatpush1.xpose.msra.mxu0 %v3593
        %3603 = vmatprep.subr.mxu0 0.0
        %3604 = vmatpush1.xpose.msra.mxu0 %v3595
        %3605 = vmatprep.subr.mxu0 0.0
        %3606 = vmatpush1.xpose.msra.mxu0 %v3597
        %3607 = vmatprep.subr.mxu0 0.0
        %3608 = vmatpush1.xpose.msra.mxu0 %v3599
        %3609 = vmatprep.subr.mxu0 0.0
        %3610 = vmatpush1.xpose.msra.mxu0 0.0
        %3611 = vmatprep.subr.mxu0 0.0
        %3612 = vmatpush1.xpose.msra.mxu0 0.0
        %3613 = vmatprep.subr.mxu0 0.0
        %3614 = vmatpush1.xpose.msra.mxu0 0.0
        %3615 = vmatprep.subr.mxu0 0.0
        %3616 = vmatpush1.xpose.msra.mxu0 0.0
        %3617 = vmatprep.subr.mxu0 0.0
        %3618 = vmatpush1.xpose.msra.mxu0 0.0
        %3619 = vmatprep.subr.mxu0 0.0
        %3620 = vmatpush1.xpose.msra.mxu0 0.0
        %3621 = vmatprep.subr.mxu0 0.0
        %3622 = vmatpush1.xpose.msra.mxu0 0.0
        %3623 = vmatprep.subr.mxu0 0.0
        %3624 = vmatpush1.xpose.msra.mxu0 0.0
        %3625 = vmatprep.subr.mxu0 0.0
        %3626 = vmatpush1.xpose.msra.mxu0 0.0
        %3627 = vmatprep.subr.mxu0 0.0
        %3628 = vmatpush1.xpose.msra.mxu0 0.0
        %3629 = vmatprep.subr.mxu0 0.0
        %3630 = vmatpush1.xpose.msra.mxu0 0.0
        %3631 = vmatprep.subr.mxu0 0.0
        %3632 = vmatpush1.xpose.msra.mxu0 0.0
        %3633 = vmatprep.subr.mxu0 0.0
        %3634 = vmatpush1.xpose.msra.mxu0 0.0
        %3635 = vmatprep.subr.mxu0 0.0
        %3636 = vmatpush1.xpose.msra.mxu0 0.0
        %3637 = vmatprep.subr.mxu0 0.0
        %3638 = vmatpush1.xpose.msra.mxu0 0.0
        %3639 = vmatprep.subr.mxu0 0.0
        %3640 = vmatpush1.xpose.msra.mxu0 0.0
        %3641 = vmatprep.subr.mxu0 0.0
        %3642 = vmatpush1.xpose.msra.mxu0 0.0
        %3643 = vmatprep.subr.mxu0 0.0
        %3644 = vmatpush1.xpose.msra.mxu0 0.0
        %3645 = vmatprep.subr.mxu0 0.0
        %3646 = vmatpush1.xpose.msra.mxu0 0.0
        %3647 = vmatprep.subr.mxu0 0.0
        %3648 = vmatpush1.xpose.msra.mxu0 0.0
        %3649 = vmatprep.subr.mxu0 0.0
        %3650 = vmatpush1.xpose.msra.mxu0 0.0
        %3651 = vmatprep.subr.mxu0 0.0
        %3652 = vmatpush1.xpose.msra.mxu0 0.0
        %3653 = vmatprep.subr.mxu0 0.0
        %3654 = vmatpush1.xpose.msra.mxu0 0.0
        %3655 = vmatprep.subr.mxu0 0.0
        %3656 = vmatpush1.xpose.msra.mxu0 0.0
        %3657 = vmatprep.subr.mxu0 0.0
        %3658 = vmatpush1.xpose.msra.mxu0 0.0
        %3659 = vmatprep.subr.mxu0 0.0
        %3660 = vmatpush1.xpose.msra.mxu0 0.0
        %3661 = vmatprep.subr.mxu0 0.0
        %3662 = vmatpush1.xpose.msra.mxu0 0.0
        %3663 = vmatprep.subr.mxu0 0.0
        %3664 = vmatpush1.xpose.msra.mxu0 0.0
        %3665 = vmatprep.mubr.f32.mxu0 0.0
        %3666 = vmatmul.mubr.f32.gmra.mrb[0].mxu0 %v3585
        %v3667 = vpop.f32.mrb[0].mxu0
        %v3668 = vadd.f32 0.0, %v3667
        %v3669 = vpop.f32.mrb[0].mxu0
        %3670 = vmatprep.mubr.f32.mxu0 0.0
        %3671 = vmatmul.mubr.f32.gmra.mrb[0].mxu0 %v3587
        %v3672 = vpop.f32.mrb[0].mxu0
        %v3673 = vadd.f32 0.0, %v3672
        %v3674 = vpop.f32.mrb[0].mxu0
        %3675 = vmatprep.mubr.f32.mxu0 0.0
        %3676 = vmatmul.mubr.f32.gmra.mrb[0].mxu0 %v3589
        %v3677 = vpop.f32.mrb[0].mxu0
        %v3678 = vadd.f32 0.0, %v3677
        %v3679 = vpop.f32.mrb[0].mxu0
        %3680 = vmatprep.mubr.f32.mxu0 0.0
        %3681 = vmatmul.mubr.f32.gmra.mrb[0].mxu0 %v3591
        %v3682 = vpop.f32.mrb[0].mxu0
        %v3683 = vadd.f32 0.0, %v3682
        %v3684 = vpop.f32.mrb[0].mxu0
        %3685 = vdwg.mxu0
        %3690 = vrot.lane.b32.xlu0 %v3396, 64
        %v3691 = vpop.permute.xlu0 %3690
        %3692 = vrot.lane.b32.xlu0 %v3397, 64
        %v3693 = vpop.permute.xlu0 %3692
        %3694 = vrot.lane.b32.xlu0 %v3398, 64
        %v3695 = vpop.permute.xlu0 %3694
        %3696 = vrot.lane.b32.xlu0 %v3399, 64
        %v3697 = vpop.permute.xlu0 %3696
        %3702 = vrot.lane.b32.xlu0 %v3412, 64
        %v3703 = vpop.permute.xlu0 %3702
        %3704 = vrot.lane.b32.xlu0 %v3413, 64
        %v3705 = vpop.permute.xlu0 %3704
        %3706 = vrot.lane.b32.xlu0 %v3414, 64
        %v3707 = vpop.permute.xlu0 %3706
        %3708 = vrot.lane.b32.xlu0 %v3415, 64
        %v3709 = vpop.permute.xlu0 %3708
        %v3710 = vsel %vm1018, %v3691, 0
        %v3712 = vsel %vm1018, %v3693, 0
        %v3714 = vsel %vm1018, %v3695, 0
        %v3716 = vsel %vm1018, %v3697, 0
        %v3718 = vsel %vm1018, %v3703, 0
        %v3720 = vsel %vm1018, %v3705, 0
        %v3722 = vsel %vm1018, %v3707, 0
        %v3724 = vsel %vm1018, %v3709, 0
        %3726 = vmatprep.subr.mxu0 0.0
        %3727 = vmatpush1.xpose.msra.mxu0 %v3718
        %3728 = vmatprep.subr.mxu0 0.0
        %3729 = vmatpush1.xpose.msra.mxu0 %v3720
        %3730 = vmatprep.subr.mxu0 0.0
        %3731 = vmatpush1.xpose.msra.mxu0 %v3722
        %3732 = vmatprep.subr.mxu0 0.0
        %3733 = vmatpush1.xpose.msra.mxu0 %v3724
        %3734 = vmatprep.subr.mxu0 0.0
        %3735 = vmatpush1.xpose.msra.mxu0 0.0
        %3736 = vmatprep.subr.mxu0 0.0
        %3737 = vmatpush1.xpose.msra.mxu0 0.0
        %3738 = vmatprep.subr.mxu0 0.0
        %3739 = vmatpush1.xpose.msra.mxu0 0.0
        %3740 = vmatprep.subr.mxu0 0.0
        %3741 = vmatpush1.xpose.msra.mxu0 0.0
        %3742 = vmatprep.subr.mxu0 0.0
        %3743 = vmatpush1.xpose.msra.mxu0 0.0
        %3744 = vmatprep.subr.mxu0 0.0
        %3745 = vmatpush1.xpose.msra.mxu0 0.0
        %3746 = vmatprep.subr.mxu0 0.0
        %3747 = vmatpush1.xpose.msra.mxu0 0.0
        %3748 = vmatprep.subr.mxu0 0.0
        %3749 = vmatpush1.xpose.msra.mxu0 0.0
        %3750 = vmatprep.subr.mxu0 0.0
        %3751 = vmatpush1.xpose.msra.mxu0 0.0
        %3752 = vmatprep.subr.mxu0 0.0
        %3753 = vmatpush1.xpose.msra.mxu0 0.0
        %3754 = vmatprep.subr.mxu0 0.0
        %3755 = vmatpush1.xpose.msra.mxu0 0.0
        %3756 = vmatprep.subr.mxu0 0.0
        %3757 = vmatpush1.xpose.msra.mxu0 0.0
        %3758 = vmatprep.subr.mxu0 0.0
        %3759 = vmatpush1.xpose.msra.mxu0 0.0
        %3760 = vmatprep.subr.mxu0 0.0
        %3761 = vmatpush1.xpose.msra.mxu0 0.0
        %3762 = vmatprep.subr.mxu0 0.0
        %3763 = vmatpush1.xpose.msra.mxu0 0.0
        %3764 = vmatprep.subr.mxu0 0.0
        %3765 = vmatpush1.xpose.msra.mxu0 0.0
        %3766 = vmatprep.subr.mxu0 0.0
        %3767 = vmatpush1.xpose.msra.mxu0 0.0
        %3768 = vmatprep.subr.mxu0 0.0
        %3769 = vmatpush1.xpose.msra.mxu0 0.0
        %3770 = vmatprep.subr.mxu0 0.0
        %3771 = vmatpush1.xpose.msra.mxu0 0.0
        %3772 = vmatprep.subr.mxu0 0.0
        %3773 = vmatpush1.xpose.msra.mxu0 0.0
        %3774 = vmatprep.subr.mxu0 0.0
        %3775 = vmatpush1.xpose.msra.mxu0 0.0
        %3776 = vmatprep.subr.mxu0 0.0
        %3777 = vmatpush1.xpose.msra.mxu0 0.0
        %3778 = vmatprep.subr.mxu0 0.0
        %3779 = vmatpush1.xpose.msra.mxu0 0.0
        %3780 = vmatprep.subr.mxu0 0.0
        %3781 = vmatpush1.xpose.msra.mxu0 0.0
        %3782 = vmatprep.subr.mxu0 0.0
        %3783 = vmatpush1.xpose.msra.mxu0 0.0
        %3784 = vmatprep.subr.mxu0 0.0
        %3785 = vmatpush1.xpose.msra.mxu0 0.0
        %3786 = vmatprep.subr.mxu0 0.0
        %3787 = vmatpush1.xpose.msra.mxu0 0.0
        %3788 = vmatprep.subr.mxu0 0.0
        %3789 = vmatpush1.xpose.msra.mxu0 0.0
        %3790 = vmatprep.mubr.f32.mxu0 0.0
        %3791 = vmatmul.mubr.f32.gmra.mrb[0].mxu0 %v3710
        %v3792 = vpop.f32.mrb[0].mxu0
        %v3793 = vadd.f32 0.0, %v3792
        %v3794 = vpop.f32.mrb[0].mxu0
        %3795 = vmatprep.mubr.f32.mxu0 0.0
        %3796 = vmatmul.mubr.f32.gmra.mrb[0].mxu0 %v3712
        %v3797 = vpop.f32.mrb[0].mxu0
        %v3798 = vadd.f32 0.0, %v3797
        %v3799 = vpop.f32.mrb[0].mxu0
        %3800 = vmatprep.mubr.f32.mxu0 0.0
        %3801 = vmatmul.mubr.f32.gmra.mrb[0].mxu0 %v3714
        %v3802 = vpop.f32.mrb[0].mxu0
        %v3803 = vadd.f32 0.0, %v3802
        %v3804 = vpop.f32.mrb[0].mxu0
        %3805 = vmatprep.mubr.f32.mxu0 0.0
        %3806 = vmatmul.mubr.f32.gmra.mrb[0].mxu0 %v3716
        %v3807 = vpop.f32.mrb[0].mxu0
        %v3808 = vadd.f32 0.0, %v3807
        %v3809 = vpop.f32.mrb[0].mxu0
        %3810 = vdwg.mxu0
        %3815 = vrot.lane.b32.xlu0 %v3400, 64
        %v3816 = vpop.permute.xlu0 %3815
        %3817 = vrot.lane.b32.xlu0 %v3401, 64
        %v3818 = vpop.permute.xlu0 %3817
        %3819 = vrot.lane.b32.xlu0 %v3402, 64
        %v3820 = vpop.permute.xlu0 %3819
        %3821 = vrot.lane.b32.xlu0 %v3403, 64
        %v3822 = vpop.permute.xlu0 %3821
        %3827 = vrot.lane.b32.xlu0 %v3416, 64
        %v3828 = vpop.permute.xlu0 %3827
        %3829 = vrot.lane.b32.xlu0 %v3417, 64
        %v3830 = vpop.permute.xlu0 %3829
        %3831 = vrot.lane.b32.xlu0 %v3418, 64
        %v3832 = vpop.permute.xlu0 %3831
        %3833 = vrot.lane.b32.xlu0 %v3419, 64
        %v3834 = vpop.permute.xlu0 %3833
        %v3835 = vsel %vm1018, %v3816, 0
        %v3837 = vsel %vm1018, %v3818, 0
        %v3839 = vsel %vm1018, %v3820, 0
        %v3841 = vsel %vm1018, %v3822, 0
        %v3843 = vsel %vm1018, %v3828, 0
        %v3845 = vsel %vm1018, %v3830, 0
        %v3847 = vsel %vm1018, %v3832, 0
        %v3849 = vsel %vm1018, %v3834, 0
        %3851 = vmatprep.subr.mxu0 0.0
        %3852 = vmatpush1.xpose.msra.mxu0 %v3843
        %3853 = vmatprep.subr.mxu0 0.0
        %3854 = vmatpush1.xpose.msra.mxu0 %v3845
        %3855 = vmatprep.subr.mxu0 0.0
        %3856 = vmatpush1.xpose.msra.mxu0 %v3847
        %3857 = vmatprep.subr.mxu0 0.0
        %3858 = vmatpush1.xpose.msra.mxu0 %v3849
        %3859 = vmatprep.subr.mxu0 0.0
        %3860 = vmatpush1.xpose.msra.mxu0 0.0
        %3861 = vmatprep.subr.mxu0 0.0
        %3862 = vmatpush1.xpose.msra.mxu0 0.0
        %3863 = vmatprep.subr.mxu0 0.0
        %3864 = vmatpush1.xpose.msra.mxu0 0.0
        %3865 = vmatprep.subr.mxu0 0.0
        %3866 = vmatpush1.xpose.msra.mxu0 0.0
        %3867 = vmatprep.subr.mxu0 0.0
        %3868 = vmatpush1.xpose.msra.mxu0 0.0
        %3869 = vmatprep.subr.mxu0 0.0
        %3870 = vmatpush1.xpose.msra.mxu0 0.0
        %3871 = vmatprep.subr.mxu0 0.0
        %3872 = vmatpush1.xpose.msra.mxu0 0.0
        %3873 = vmatprep.subr.mxu0 0.0
        %3874 = vmatpush1.xpose.msra.mxu0 0.0
        %3875 = vmatprep.subr.mxu0 0.0
        %3876 = vmatpush1.xpose.msra.mxu0 0.0
        %3877 = vmatprep.subr.mxu0 0.0
        %3878 = vmatpush1.xpose.msra.mxu0 0.0
        %3879 = vmatprep.subr.mxu0 0.0
        %3880 = vmatpush1.xpose.msra.mxu0 0.0
        %3881 = vmatprep.subr.mxu0 0.0
        %3882 = vmatpush1.xpose.msra.mxu0 0.0
        %3883 = vmatprep.subr.mxu0 0.0
        %3884 = vmatpush1.xpose.msra.mxu0 0.0
        %3885 = vmatprep.subr.mxu0 0.0
        %3886 = vmatpush1.xpose.msra.mxu0 0.0
        %3887 = vmatprep.subr.mxu0 0.0
        %3888 = vmatpush1.xpose.msra.mxu0 0.0
        %3889 = vmatprep.subr.mxu0 0.0
        %3890 = vmatpush1.xpose.msra.mxu0 0.0
        %3891 = vmatprep.subr.mxu0 0.0
        %3892 = vmatpush1.xpose.msra.mxu0 0.0
        %3893 = vmatprep.subr.mxu0 0.0
        %3894 = vmatpush1.xpose.msra.mxu0 0.0
        %3895 = vmatprep.subr.mxu0 0.0
        %3896 = vmatpush1.xpose.msra.mxu0 0.0
        %3897 = vmatprep.subr.mxu0 0.0
        %3898 = vmatpush1.xpose.msra.mxu0 0.0
        %3899 = vmatprep.subr.mxu0 0.0
        %3900 = vmatpush1.xpose.msra.mxu0 0.0
        %3901 = vmatprep.subr.mxu0 0.0
        %3902 = vmatpush1.xpose.msra.mxu0 0.0
        %3903 = vmatprep.subr.mxu0 0.0
        %3904 = vmatpush1.xpose.msra.mxu0 0.0
        %3905 = vmatprep.subr.mxu0 0.0
        %3906 = vmatpush1.xpose.msra.mxu0 0.0
        %3907 = vmatprep.subr.mxu0 0.0
        %3908 = vmatpush1.xpose.msra.mxu0 0.0
        %3909 = vmatprep.subr.mxu0 0.0
        %3910 = vmatpush1.xpose.msra.mxu0 0.0
        %3911 = vmatprep.subr.mxu0 0.0
        %3912 = vmatpush1.xpose.msra.mxu0 0.0
        %3913 = vmatprep.subr.mxu0 0.0
        %3914 = vmatpush1.xpose.msra.mxu0 0.0
        %3915 = vmatprep.mubr.f32.mxu0 0.0
        %3916 = vmatmul.mubr.f32.gmra.mrb[0].mxu0 %v3835
        %v3917 = vpop.f32.mrb[0].mxu0
        %v3918 = vadd.f32 0.0, %v3917
        %v3919 = vpop.f32.mrb[0].mxu0
        %3920 = vmatprep.mubr.f32.mxu0 0.0
        %3921 = vmatmul.mubr.f32.gmra.mrb[0].mxu0 %v3837
        %v3922 = vpop.f32.mrb[0].mxu0
        %v3923 = vadd.f32 0.0, %v3922
        %v3924 = vpop.f32.mrb[0].mxu0
        %3925 = vmatprep.mubr.f32.mxu0 0.0
        %3926 = vmatmul.mubr.f32.gmra.mrb[0].mxu0 %v3839
        %v3927 = vpop.f32.mrb[0].mxu0
        %v3928 = vadd.f32 0.0, %v3927
        %v3929 = vpop.f32.mrb[0].mxu0
        %3930 = vmatprep.mubr.f32.mxu0 0.0
        %3931 = vmatmul.mubr.f32.gmra.mrb[0].mxu0 %v3841
        %v3932 = vpop.f32.mrb[0].mxu0
        %v3933 = vadd.f32 0.0, %v3932
        %v3934 = vpop.f32.mrb[0].mxu0
        %3935 = vdwg.mxu0
        %v3936 = vmul.f32 %v3543, 0.17677669
        %v3937 = vmul.f32 %v3548, 0.17677669
        %v3938 = vmul.f32 %v3553, 0.17677669
        %v3939 = vmul.f32 %v3558, 0.17677669
        %v3940 = vmul.f32 %v3668, 0.17677669
        %v3941 = vmul.f32 %v3673, 0.17677669
        %v3942 = vmul.f32 %v3678, 0.17677669
        %v3943 = vmul.f32 %v3683, 0.17677669
        %v3944 = vmul.f32 %v3793, 0.17677669
        %v3945 = vmul.f32 %v3798, 0.17677669
        %v3946 = vmul.f32 %v3803, 0.17677669
        %v3947 = vmul.f32 %v3808, 0.17677669
        %v3948 = vmul.f32 %v3918, 0.17677669
        %v3949 = vmul.f32 %v3923, 0.17677669
        %v3950 = vmul.f32 %v3928, 0.17677669
        %v3951 = vmul.f32 %v3933, 0.17677669
        %v3952 = vadd.f32 %v3936, %v966
        %v3953 = vadd.f32 %v3937, %v967
        %v3954 = vadd.f32 %v3938, %v968
        %v3955 = vadd.f32 %v3939, %v969
        %v3956 = vadd.f32 %v3940, %v966
        %v3957 = vadd.f32 %v3941, %v967
        %v3958 = vadd.f32 %v3942, %v968
        %v3959 = vadd.f32 %v3943, %v969
        %v3960 = vadd.f32 %v3944, %v966
        %v3961 = vadd.f32 %v3945, %v967
        %v3962 = vadd.f32 %v3946, %v968
        %v3963 = vadd.f32 %v3947, %v969
        %v3964 = vadd.f32 %v3948, %v966
        %v3965 = vadd.f32 %v3949, %v967
        %v3966 = vadd.f32 %v3950, %v968
        %v3967 = vadd.f32 %v3951, %v969
        %v3968 = vsel %vm1018, %v3952, -inf
        %3969 = vmax.xlane.f32.xlu0 %v3968
        %v3970 = vpop.xlane.xlu0 %3969
        %v3971 = vsel %vm1018, %v3953, -inf
        %3972 = vmax.xlane.f32.xlu0 %v3971
        %v3973 = vpop.xlane.xlu0 %3972
        %v3974 = vsel %vm1018, %v3954, -inf
        %3975 = vmax.xlane.f32.xlu0 %v3974
        %v3976 = vpop.xlane.xlu0 %3975
        %v3977 = vsel %vm1018, %v3955, -inf
        %3978 = vmax.xlane.f32.xlu0 %v3977
        %v3979 = vpop.xlane.xlu0 %3978
        %v3980 = vsel %vm1018, %v3956, -inf
        %3981 = vmax.xlane.f32.xlu0 %v3980
        %v3982 = vpop.xlane.xlu0 %3981
        %v3983 = vsel %vm1018, %v3957, -inf
        %3984 = vmax.xlane.f32.xlu0 %v3983
        %v3985 = vpop.xlane.xlu0 %3984
        %v3986 = vsel %vm1018, %v3958, -inf
        %3987 = vmax.xlane.f32.xlu0 %v3986
        %v3988 = vpop.xlane.xlu0 %3987
        %v3989 = vsel %vm1018, %v3959, -inf
        %3990 = vmax.xlane.f32.xlu0 %v3989
        %v3991 = vpop.xlane.xlu0 %3990
        %v3992 = vsel %vm1018, %v3960, -inf
        %3993 = vmax.xlane.f32.xlu0 %v3992
        %v3994 = vpop.xlane.xlu0 %3993
        %v3995 = vsel %vm1018, %v3961, -inf
        %3996 = vmax.xlane.f32.xlu0 %v3995
        %v3997 = vpop.xlane.xlu0 %3996
        %v3998 = vsel %vm1018, %v3962, -inf
        %3999 = vmax.xlane.f32.xlu0 %v3998
        %v4000 = vpop.xlane.xlu0 %3999
        %v4001 = vsel %vm1018, %v3963, -inf
        %4002 = vmax.xlane.f32.xlu0 %v4001
        %v4003 = vpop.xlane.xlu0 %4002
        %v4004 = vsel %vm1018, %v3964, -inf
        %4005 = vmax.xlane.f32.xlu0 %v4004
        %v4006 = vpop.xlane.xlu0 %4005
        %v4007 = vsel %vm1018, %v3965, -inf
        %4008 = vmax.xlane.f32.xlu0 %v4007
        %v4009 = vpop.xlane.xlu0 %4008
        %v4010 = vsel %vm1018, %v3966, -inf
        %4011 = vmax.xlane.f32.xlu0 %v4010
        %v4012 = vpop.xlane.xlu0 %4011
        %v4013 = vsel %vm1018, %v3967, -inf
        %4014 = vmax.xlane.f32.xlu0 %v4013
        %v4015 = vpop.xlane.xlu0 %4014
        %v4016 = vsub.f32 %v3952, %v3970
        %v4017 = vsub.f32 %v3953, %v3973
        %v4018 = vsub.f32 %v3954, %v3976
        %v4019 = vsub.f32 %v3955, %v3979
        %v4020 = vsub.f32 %v3956, %v3982
        %v4021 = vsub.f32 %v3957, %v3985
        %v4022 = vsub.f32 %v3958, %v3988
        %v4023 = vsub.f32 %v3959, %v3991
        %v4024 = vsub.f32 %v3960, %v3994
        %v4025 = vsub.f32 %v3961, %v3997
        %v4026 = vsub.f32 %v3962, %v4000
        %v4027 = vsub.f32 %v3963, %v4003
        %v4028 = vsub.f32 %v3964, %v4006
        %v4029 = vsub.f32 %v3965, %v4009
        %v4030 = vsub.f32 %v3966, %v4012
        %v4031 = vsub.f32 %v3967, %v4015
        %v4032 = vmul.f32 %v4016, 1.442695
        %v4033 = vpow.pop %v4032
        %v4034 = vmul.f32 %v4017, 1.442695
        %v4035 = vpow.pop %v4034
        %v4036 = vmul.f32 %v4018, 1.442695
        %v4037 = vpow.pop %v4036
        %v4038 = vmul.f32 %v4019, 1.442695
        %v4039 = vpow.pop %v4038
        %v4040 = vmul.f32 %v4020, 1.442695
        %v4041 = vpow.pop %v4040
        %v4042 = vmul.f32 %v4021, 1.442695
        %v4043 = vpow.pop %v4042
        %v4044 = vmul.f32 %v4022, 1.442695
        %v4045 = vpow.pop %v4044
        %v4046 = vmul.f32 %v4023, 1.442695
        %v4047 = vpow.pop %v4046
        %v4048 = vmul.f32 %v4024, 1.442695
        %v4049 = vpow.pop %v4048
        %v4050 = vmul.f32 %v4025, 1.442695
        %v4051 = vpow.pop %v4050
        %v4052 = vmul.f32 %v4026, 1.442695
        %v4053 = vpow.pop %v4052
        %v4054 = vmul.f32 %v4027, 1.442695
        %v4055 = vpow.pop %v4054
        %v4056 = vmul.f32 %v4028, 1.442695
        %v4057 = vpow.pop %v4056
        %v4058 = vmul.f32 %v4029, 1.442695
        %v4059 = vpow.pop %v4058
        %v4060 = vmul.f32 %v4030, 1.442695
        %v4061 = vpow.pop %v4060
        %v4062 = vmul.f32 %v4031, 1.442695
        %v4063 = vpow.pop %v4062
        %v4064 = vsel %vm1018, %v4033, 0.0
        %4065 = vadd.xlane.f32.xlu0 %v4064
        %v4066 = vpop.xlane.xlu0 %4065
        %v4067 = vsel %vm1018, %v4035, 0.0
        %4068 = vadd.xlane.f32.xlu0 %v4067
        %v4069 = vpop.xlane.xlu0 %4068
        %v4070 = vsel %vm1018, %v4037, 0.0
        %4071 = vadd.xlane.f32.xlu0 %v4070
        %v4072 = vpop.xlane.xlu0 %4071
        %v4073 = vsel %vm1018, %v4039, 0.0
        %4074 = vadd.xlane.f32.xlu0 %v4073
        %v4075 = vpop.xlane.xlu0 %4074
        %v4076 = vsel %vm1018, %v4041, 0.0
        %4077 = vadd.xlane.f32.xlu0 %v4076
        %v4078 = vpop.xlane.xlu0 %4077
        %v4079 = vsel %vm1018, %v4043, 0.0
        %4080 = vadd.xlane.f32.xlu0 %v4079
        %v4081 = vpop.xlane.xlu0 %4080
        %v4082 = vsel %vm1018, %v4045, 0.0
        %4083 = vadd.xlane.f32.xlu0 %v4082
        %v4084 = vpop.xlane.xlu0 %4083
        %v4085 = vsel %vm1018, %v4047, 0.0
        %4086 = vadd.xlane.f32.xlu0 %v4085
        %v4087 = vpop.xlane.xlu0 %4086
        %v4088 = vsel %vm1018, %v4049, 0.0
        %4089 = vadd.xlane.f32.xlu0 %v4088
        %v4090 = vpop.xlane.xlu0 %4089
        %v4091 = vsel %vm1018, %v4051, 0.0
        %4092 = vadd.xlane.f32.xlu0 %v4091
        %v4093 = vpop.xlane.xlu0 %4092
        %v4094 = vsel %vm1018, %v4053, 0.0
        %4095 = vadd.xlane.f32.xlu0 %v4094
        %v4096 = vpop.xlane.xlu0 %4095
        %v4097 = vsel %vm1018, %v4055, 0.0
        %4098 = vadd.xlane.f32.xlu0 %v4097
        %v4099 = vpop.xlane.xlu0 %4098
        %v4100 = vsel %vm1018, %v4057, 0.0
        %4101 = vadd.xlane.f32.xlu0 %v4100
        %v4102 = vpop.xlane.xlu0 %4101
        %v4103 = vsel %vm1018, %v4059, 0.0
        %4104 = vadd.xlane.f32.xlu0 %v4103
        %v4105 = vpop.xlane.xlu0 %4104
        %v4106 = vsel %vm1018, %v4061, 0.0
        %4107 = vadd.xlane.f32.xlu0 %v4106
        %v4108 = vpop.xlane.xlu0 %4107
        %v4109 = vsel %vm1018, %v4063, 0.0
        %4110 = vadd.xlane.f32.xlu0 %v4109
        %v4111 = vpop.xlane.xlu0 %4110
        %v4112 = vrcp.pop %v4066
        %v4113 = vmul.f32 1.0, %v4112
        %v4114 = vrcp.pop %v4069
        %v4115 = vmul.f32 1.0, %v4114
        %v4116 = vrcp.pop %v4072
        %v4117 = vmul.f32 1.0, %v4116
        %v4118 = vrcp.pop %v4075
        %v4119 = vmul.f32 1.0, %v4118
        %v4120 = vrcp.pop %v4078
        %v4121 = vmul.f32 1.0, %v4120
        %v4122 = vrcp.pop %v4081
        %v4123 = vmul.f32 1.0, %v4122
        %v4124 = vrcp.pop %v4084
        %v4125 = vmul.f32 1.0, %v4124
        %v4126 = vrcp.pop %v4087
        %v4127 = vmul.f32 1.0, %v4126
        %v4128 = vrcp.pop %v4090
        %v4129 = vmul.f32 1.0, %v4128
        %v4130 = vrcp.pop %v4093
        %v4131 = vmul.f32 1.0, %v4130
        %v4132 = vrcp.pop %v4096
        %v4133 = vmul.f32 1.0, %v4132
        %v4134 = vrcp.pop %v4099
        %v4135 = vmul.f32 1.0, %v4134
        %v4136 = vrcp.pop %v4102
        %v4137 = vmul.f32 1.0, %v4136
        %v4138 = vrcp.pop %v4105
        %v4139 = vmul.f32 1.0, %v4138
        %v4140 = vrcp.pop %v4108
        %v4141 = vmul.f32 1.0, %v4140
        %v4142 = vrcp.pop %v4111
        %v4143 = vmul.f32 1.0, %v4142
        %4148 = vrot.lane.b32.xlu0 %v3420, 64
        %v4149 = vpop.permute.xlu0 %4148
        %4150 = vrot.lane.b32.xlu0 %v3421, 64
        %v4151 = vpop.permute.xlu0 %4150
        %4152 = vrot.lane.b32.xlu0 %v3422, 64
        %v4153 = vpop.permute.xlu0 %4152
        %4154 = vrot.lane.b32.xlu0 %v3423, 64
        %v4155 = vpop.permute.xlu0 %4154
        %v4161 = vsel %vm1018, %v4033, 0
        %v4164 = vsel %vm1018, %v4035, 0
        %v4167 = vsel %vm1018, %v4037, 0
        %v4170 = vsel %vm1018, %v4039, 0
        %4172 = vmatprep.subr.mxu0 0.0
        %4173 = vmatpush1.msra.mxu0 %v4149
        %4174 = vmatprep.subr.mxu0 0.0
        %4175 = vmatpush1.msra.mxu0 %v4151
        %4176 = vmatprep.subr.mxu0 0.0
        %4177 = vmatpush1.msra.mxu0 %v4153
        %4178 = vmatprep.subr.mxu0 0.0
        %4179 = vmatpush1.msra.mxu0 %v4155
        %4180 = vmatprep.subr.mxu0 0.0
        %4181 = vmatpush1.msra.mxu0 0.0
        %4182 = vmatprep.subr.mxu0 0.0
        %4183 = vmatpush1.msra.mxu0 0.0
        %4184 = vmatprep.subr.mxu0 0.0
        %4185 = vmatpush1.msra.mxu0 0.0
        %4186 = vmatprep.subr.mxu0 0.0
        %4187 = vmatpush1.msra.mxu0 0.0
        %4188 = vmatprep.subr.mxu0 0.0
        %4189 = vmatpush1.msra.mxu0 0.0
        %4190 = vmatprep.subr.mxu0 0.0
        %4191 = vmatpush1.msra.mxu0 0.0
        %4192 = vmatprep.subr.mxu0 0.0
        %4193 = vmatpush1.msra.mxu0 0.0
        %4194 = vmatprep.subr.mxu0 0.0
        %4195 = vmatpush1.msra.mxu0 0.0
        %4196 = vmatprep.subr.mxu0 0.0
        %4197 = vmatpush1.msra.mxu0 0.0
        %4198 = vmatprep.subr.mxu0 0.0
        %4199 = vmatpush1.msra.mxu0 0.0
        %4200 = vmatprep.subr.mxu0 0.0
        %4201 = vmatpush1.msra.mxu0 0.0
        %4202 = vmatprep.subr.mxu0 0.0
        %4203 = vmatpush1.msra.mxu0 0.0
        %4204 = vmatprep.subr.mxu0 0.0
        %4205 = vmatpush1.msra.mxu0 0.0
        %4206 = vmatprep.subr.mxu0 0.0
        %4207 = vmatpush1.msra.mxu0 0.0
        %4208 = vmatprep.subr.mxu0 0.0
        %4209 = vmatpush1.msra.mxu0 0.0
        %4210 = vmatprep.subr.mxu0 0.0
        %4211 = vmatpush1.msra.mxu0 0.0
        %4212 = vmatprep.subr.mxu0 0.0
        %4213 = vmatpush1.msra.mxu0 0.0
        %4214 = vmatprep.subr.mxu0 0.0
        %4215 = vmatpush1.msra.mxu0 0.0
        %4216 = vmatprep.subr.mxu0 0.0
        %4217 = vmatpush1.msra.mxu0 0.0
        %4218 = vmatprep.subr.mxu0 0.0
        %4219 = vmatpush1.msra.mxu0 0.0
        %4220 = vmatprep.subr.mxu0 0.0
        %4221 = vmatpush1.msra.mxu0 0.0
        %4222 = vmatprep.subr.mxu0 0.0
        %4223 = vmatpush1.msra.mxu0 0.0
        %4224 = vmatprep.subr.mxu0 0.0
        %4225 = vmatpush1.msra.mxu0 0.0
        %4226 = vmatprep.subr.mxu0 0.0
        %4227 = vmatpush1.msra.mxu0 0.0
        %4228 = vmatprep.subr.mxu0 0.0
        %4229 = vmatpush1.msra.mxu0 0.0
        %4230 = vmatprep.subr.mxu0 0.0
        %4231 = vmatpush1.msra.mxu0 0.0
        %4232 = vmatprep.subr.mxu0 0.0
        %4233 = vmatpush1.msra.mxu0 0.0
        %4234 = vmatprep.subr.mxu0 0.0
        %4235 = vmatpush1.msra.mxu0 0.0
        %4236 = vmatprep.mubr.f32.mxu0 0.0
        %4237 = vmatmul.mubr.f32.gmra.mrb[0].mxu0 %v4161
        %v4238 = vpop.f32.mrb[0].mxu0
        %v4239 = vadd.f32 0.0, %v4238
        %v4240 = vpop.f32.mrb[0].mxu0
        %4241 = vmatprep.mubr.f32.mxu0 0.0
        %4242 = vmatmul.mubr.f32.gmra.mrb[0].mxu0 %v4164
        %v4243 = vpop.f32.mrb[0].mxu0
        %v4244 = vadd.f32 0.0, %v4243
        %v4245 = vpop.f32.mrb[0].mxu0
        %4246 = vmatprep.mubr.f32.mxu0 0.0
        %4247 = vmatmul.mubr.f32.gmra.mrb[0].mxu0 %v4167
        %v4248 = vpop.f32.mrb[0].mxu0
        %v4249 = vadd.f32 0.0, %v4248
        %v4250 = vpop.f32.mrb[0].mxu0
        %4251 = vmatprep.mubr.f32.mxu0 0.0
        %4252 = vmatmul.mubr.f32.gmra.mrb[0].mxu0 %v4170
        %v4253 = vpop.f32.mrb[0].mxu0
        %v4254 = vadd.f32 0.0, %v4253
        %v4255 = vpop.f32.mrb[0].mxu0
        %4256 = vdwg.mxu0
        %4261 = vrot.lane.b32.xlu0 %v3424, 64
        %v4262 = vpop.permute.xlu0 %4261
        %4263 = vrot.lane.b32.xlu0 %v3425, 64
        %v4264 = vpop.permute.xlu0 %4263
        %4265 = vrot.lane.b32.xlu0 %v3426, 64
        %v4266 = vpop.permute.xlu0 %4265
        %4267 = vrot.lane.b32.xlu0 %v3427, 64
        %v4268 = vpop.permute.xlu0 %4267
        %v4274 = vsel %vm1018, %v4041, 0
        %v4277 = vsel %vm1018, %v4043, 0
        %v4280 = vsel %vm1018, %v4045, 0
        %v4283 = vsel %vm1018, %v4047, 0
        %4285 = vmatprep.subr.mxu0 0.0
        %4286 = vmatpush1.msra.mxu0 %v4262
        %4287 = vmatprep.subr.mxu0 0.0
        %4288 = vmatpush1.msra.mxu0 %v4264
        %4289 = vmatprep.subr.mxu0 0.0
        %4290 = vmatpush1.msra.mxu0 %v4266
        %4291 = vmatprep.subr.mxu0 0.0
        %4292 = vmatpush1.msra.mxu0 %v4268
        %4293 = vmatprep.subr.mxu0 0.0
        %4294 = vmatpush1.msra.mxu0 0.0
        %4295 = vmatprep.subr.mxu0 0.0
        %4296 = vmatpush1.msra.mxu0 0.0
        %4297 = vmatprep.subr.mxu0 0.0
        %4298 = vmatpush1.msra.mxu0 0.0
        %4299 = vmatprep.subr.mxu0 0.0
        %4300 = vmatpush1.msra.mxu0 0.0
        %4301 = vmatprep.subr.mxu0 0.0
        %4302 = vmatpush1.msra.mxu0 0.0
        %4303 = vmatprep.subr.mxu0 0.0
        %4304 = vmatpush1.msra.mxu0 0.0
        %4305 = vmatprep.subr.mxu0 0.0
        %4306 = vmatpush1.msra.mxu0 0.0
        %4307 = vmatprep.subr.mxu0 0.0
        %4308 = vmatpush1.msra.mxu0 0.0
        %4309 = vmatprep.subr.mxu0 0.0
        %4310 = vmatpush1.msra.mxu0 0.0
        %4311 = vmatprep.subr.mxu0 0.0
        %4312 = vmatpush1.msra.mxu0 0.0
        %4313 = vmatprep.subr.mxu0 0.0
        %4314 = vmatpush1.msra.mxu0 0.0
        %4315 = vmatprep.subr.mxu0 0.0
        %4316 = vmatpush1.msra.mxu0 0.0
        %4317 = vmatprep.subr.mxu0 0.0
        %4318 = vmatpush1.msra.mxu0 0.0
        %4319 = vmatprep.subr.mxu0 0.0
        %4320 = vmatpush1.msra.mxu0 0.0
        %4321 = vmatprep.subr.mxu0 0.0
        %4322 = vmatpush1.msra.mxu0 0.0
        %4323 = vmatprep.subr.mxu0 0.0
        %4324 = vmatpush1.msra.mxu0 0.0
        %4325 = vmatprep.subr.mxu0 0.0
        %4326 = vmatpush1.msra.mxu0 0.0
        %4327 = vmatprep.subr.mxu0 0.0
        %4328 = vmatpush1.msra.mxu0 0.0
        %4329 = vmatprep.subr.mxu0 0.0
        %4330 = vmatpush1.msra.mxu0 0.0
        %4331 = vmatprep.subr.mxu0 0.0
        %4332 = vmatpush1.msra.mxu0 0.0
        %4333 = vmatprep.subr.mxu0 0.0
        %4334 = vmatpush1.msra.mxu0 0.0
        %4335 = vmatprep.subr.mxu0 0.0
        %4336 = vmatpush1.msra.mxu0 0.0
        %4337 = vmatprep.subr.mxu0 0.0
        %4338 = vmatpush1.msra.mxu0 0.0
        %4339 = vmatprep.subr.mxu0 0.0
        %4340 = vmatpush1.msra.mxu0 0.0
        %4341 = vmatprep.subr.mxu0 0.0
        %4342 = vmatpush1.msra.mxu0 0.0
        %4343 = vmatprep.subr.mxu0 0.0
        %4344 = vmatpush1.msra.mxu0 0.0
        %4345 = vmatprep.subr.mxu0 0.0
        %4346 = vmatpush1.msra.mxu0 0.0
        %4347 = vmatprep.subr.mxu0 0.0
        %4348 = vmatpush1.msra.mxu0 0.0
        %4349 = vmatprep.mubr.f32.mxu0 0.0
        %4350 = vmatmul.mubr.f32.gmra.mrb[0].mxu0 %v4274
        %v4351 = vpop.f32.mrb[0].mxu0
        %v4352 = vadd.f32 0.0, %v4351
        %v4353 = vpop.f32.mrb[0].mxu0
        %4354 = vmatprep.mubr.f32.mxu0 0.0
        %4355 = vmatmul.mubr.f32.gmra.mrb[0].mxu0 %v4277
        %v4356 = vpop.f32.mrb[0].mxu0
        %v4357 = vadd.f32 0.0, %v4356
        %v4358 = vpop.f32.mrb[0].mxu0
        %4359 = vmatprep.mubr.f32.mxu0 0.0
        %4360 = vmatmul.mubr.f32.gmra.mrb[0].mxu0 %v4280
        %v4361 = vpop.f32.mrb[0].mxu0
        %v4362 = vadd.f32 0.0, %v4361
        %v4363 = vpop.f32.mrb[0].mxu0
        %4364 = vmatprep.mubr.f32.mxu0 0.0
        %4365 = vmatmul.mubr.f32.gmra.mrb[0].mxu0 %v4283
        %v4366 = vpop.f32.mrb[0].mxu0
        %v4367 = vadd.f32 0.0, %v4366
        %v4368 = vpop.f32.mrb[0].mxu0
        %4369 = vdwg.mxu0
        %4374 = vrot.lane.b32.xlu0 %v3428, 64
        %v4375 = vpop.permute.xlu0 %4374
        %4376 = vrot.lane.b32.xlu0 %v3429, 64
        %v4377 = vpop.permute.xlu0 %4376
        %4378 = vrot.lane.b32.xlu0 %v3430, 64
        %v4379 = vpop.permute.xlu0 %4378
        %4380 = vrot.lane.b32.xlu0 %v3431, 64
        %v4381 = vpop.permute.xlu0 %4380
        %v4387 = vsel %vm1018, %v4049, 0
        %v4390 = vsel %vm1018, %v4051, 0
        %v4393 = vsel %vm1018, %v4053, 0
        %v4396 = vsel %vm1018, %v4055, 0
        %4398 = vmatprep.subr.mxu0 0.0
        %4399 = vmatpush1.msra.mxu0 %v4375
        %4400 = vmatprep.subr.mxu0 0.0
        %4401 = vmatpush1.msra.mxu0 %v4377
        %4402 = vmatprep.subr.mxu0 0.0
        %4403 = vmatpush1.msra.mxu0 %v4379
        %4404 = vmatprep.subr.mxu0 0.0
        %4405 = vmatpush1.msra.mxu0 %v4381
        %4406 = vmatprep.subr.mxu0 0.0
        %4407 = vmatpush1.msra.mxu0 0.0
        %4408 = vmatprep.subr.mxu0 0.0
        %4409 = vmatpush1.msra.mxu0 0.0
        %4410 = vmatprep.subr.mxu0 0.0
        %4411 = vmatpush1.msra.mxu0 0.0
        %4412 = vmatprep.subr.mxu0 0.0
        %4413 = vmatpush1.msra.mxu0 0.0
        %4414 = vmatprep.subr.mxu0 0.0
        %4415 = vmatpush1.msra.mxu0 0.0
        %4416 = vmatprep.subr.mxu0 0.0
        %4417 = vmatpush1.msra.mxu0 0.0
        %4418 = vmatprep.subr.mxu0 0.0
        %4419 = vmatpush1.msra.mxu0 0.0
        %4420 = vmatprep.subr.mxu0 0.0
        %4421 = vmatpush1.msra.mxu0 0.0
        %4422 = vmatprep.subr.mxu0 0.0
        %4423 = vmatpush1.msra.mxu0 0.0
        %4424 = vmatprep.subr.mxu0 0.0
        %4425 = vmatpush1.msra.mxu0 0.0
        %4426 = vmatprep.subr.mxu0 0.0
        %4427 = vmatpush1.msra.mxu0 0.0
        %4428 = vmatprep.subr.mxu0 0.0
        %4429 = vmatpush1.msra.mxu0 0.0
        %4430 = vmatprep.subr.mxu0 0.0
        %4431 = vmatpush1.msra.mxu0 0.0
        %4432 = vmatprep.subr.mxu0 0.0
        %4433 = vmatpush1.msra.mxu0 0.0
        %4434 = vmatprep.subr.mxu0 0.0
        %4435 = vmatpush1.msra.mxu0 0.0
        %4436 = vmatprep.subr.mxu0 0.0
        %4437 = vmatpush1.msra.mxu0 0.0
        %4438 = vmatprep.subr.mxu0 0.0
        %4439 = vmatpush1.msra.mxu0 0.0
        %4440 = vmatprep.subr.mxu0 0.0
        %4441 = vmatpush1.msra.mxu0 0.0
        %4442 = vmatprep.subr.mxu0 0.0
        %4443 = vmatpush1.msra.mxu0 0.0
        %4444 = vmatprep.subr.mxu0 0.0
        %4445 = vmatpush1.msra.mxu0 0.0
        %4446 = vmatprep.subr.mxu0 0.0
        %4447 = vmatpush1.msra.mxu0 0.0
        %4448 = vmatprep.subr.mxu0 0.0
        %4449 = vmatpush1.msra.mxu0 0.0
        %4450 = vmatprep.subr.mxu0 0.0
        %4451 = vmatpush1.msra.mxu0 0.0
        %4452 = vmatprep.subr.mxu0 0.0
        %4453 = vmatpush1.msra.mxu0 0.0
        %4454 = vmatprep.subr.mxu0 0.0
        %4455 = vmatpush1.msra.mxu0 0.0
        %4456 = vmatprep.subr.mxu0 0.0
        %4457 = vmatpush1.msra.mxu0 0.0
        %4458 = vmatprep.subr.mxu0 0.0
        %4459 = vmatpush1.msra.mxu0 0.0
        %4460 = vmatprep.subr.mxu0 0.0
        %4461 = vmatpush1.msra.mxu0 0.0
        %4462 = vmatprep.mubr.f32.mxu0 0.0
        %4463 = vmatmul.mubr.f32.gmra.mrb[0].mxu0 %v4387
        %v4464 = vpop.f32.mrb[0].mxu0
        %v4465 = vadd.f32 0.0, %v4464
        %v4466 = vpop.f32.mrb[0].mxu0
        %4467 = vmatprep.mubr.f32.mxu0 0.0
        %4468 = vmatmul.mubr.f32.gmra.mrb[0].mxu0 %v4390
        %v4469 = vpop.f32.mrb[0].mxu0
        %v4470 = vadd.f32 0.0, %v4469
        %v4471 = vpop.f32.mrb[0].mxu0
        %4472 = vmatprep.mubr.f32.mxu0 0.0
        %4473 = vmatmul.mubr.f32.gmra.mrb[0].mxu0 %v4393
        %v4474 = vpop.f32.mrb[0].mxu0
        %v4475 = vadd.f32 0.0, %v4474
        %v4476 = vpop.f32.mrb[0].mxu0
        %4477 = vmatprep.mubr.f32.mxu0 0.0
        %4478 = vmatmul.mubr.f32.gmra.mrb[0].mxu0 %v4396
        %v4479 = vpop.f32.mrb[0].mxu0
        %v4480 = vadd.f32 0.0, %v4479
        %v4481 = vpop.f32.mrb[0].mxu0
        %4482 = vdwg.mxu0
        %4487 = vrot.lane.b32.xlu0 %v3432, 64
        %v4488 = vpop.permute.xlu0 %4487
        %4489 = vrot.lane.b32.xlu0 %v3433, 64
        %v4490 = vpop.permute.xlu0 %4489
        %4491 = vrot.lane.b32.xlu0 %v3434, 64
        %v4492 = vpop.permute.xlu0 %4491
        %4493 = vrot.lane.b32.xlu0 %v3435, 64
        %v4494 = vpop.permute.xlu0 %4493
        %v4500 = vsel %vm1018, %v4057, 0
        %v4503 = vsel %vm1018, %v4059, 0
        %v4506 = vsel %vm1018, %v4061, 0
        %v4509 = vsel %vm1018, %v4063, 0
        %4511 = vmatprep.subr.mxu0 0.0
        %4512 = vmatpush1.msra.mxu0 %v4488
        %4513 = vmatprep.subr.mxu0 0.0
        %4514 = vmatpush1.msra.mxu0 %v4490
        %4515 = vmatprep.subr.mxu0 0.0
        %4516 = vmatpush1.msra.mxu0 %v4492
        %4517 = vmatprep.subr.mxu0 0.0
        %4518 = vmatpush1.msra.mxu0 %v4494
        %4519 = vmatprep.subr.mxu0 0.0
        %4520 = vmatpush1.msra.mxu0 0.0
        %4521 = vmatprep.subr.mxu0 0.0
        %4522 = vmatpush1.msra.mxu0 0.0
        %4523 = vmatprep.subr.mxu0 0.0
        %4524 = vmatpush1.msra.mxu0 0.0
        %4525 = vmatprep.subr.mxu0 0.0
        %4526 = vmatpush1.msra.mxu0 0.0
        %4527 = vmatprep.subr.mxu0 0.0
        %4528 = vmatpush1.msra.mxu0 0.0
        %4529 = vmatprep.subr.mxu0 0.0
        %4530 = vmatpush1.msra.mxu0 0.0
        %4531 = vmatprep.subr.mxu0 0.0
        %4532 = vmatpush1.msra.mxu0 0.0
        %4533 = vmatprep.subr.mxu0 0.0
        %4534 = vmatpush1.msra.mxu0 0.0
        %4535 = vmatprep.subr.mxu0 0.0
        %4536 = vmatpush1.msra.mxu0 0.0
        %4537 = vmatprep.subr.mxu0 0.0
        %4538 = vmatpush1.msra.mxu0 0.0
        %4539 = vmatprep.subr.mxu0 0.0
        %4540 = vmatpush1.msra.mxu0 0.0
        %4541 = vmatprep.subr.mxu0 0.0
        %4542 = vmatpush1.msra.mxu0 0.0
        %4543 = vmatprep.subr.mxu0 0.0
        %4544 = vmatpush1.msra.mxu0 0.0
        %4545 = vmatprep.subr.mxu0 0.0
        %4546 = vmatpush1.msra.mxu0 0.0
        %4547 = vmatprep.subr.mxu0 0.0
        %4548 = vmatpush1.msra.mxu0 0.0
        %4549 = vmatprep.subr.mxu0 0.0
        %4550 = vmatpush1.msra.mxu0 0.0
        %4551 = vmatprep.subr.mxu0 0.0
        %4552 = vmatpush1.msra.mxu0 0.0
        %4553 = vmatprep.subr.mxu0 0.0
        %4554 = vmatpush1.msra.mxu0 0.0
        %4555 = vmatprep.subr.mxu0 0.0
        %4556 = vmatpush1.msra.mxu0 0.0
        %4557 = vmatprep.subr.mxu0 0.0
        %4558 = vmatpush1.msra.mxu0 0.0
        %4559 = vmatprep.subr.mxu0 0.0
        %4560 = vmatpush1.msra.mxu0 0.0
        %4561 = vmatprep.subr.mxu0 0.0
        %4562 = vmatpush1.msra.mxu0 0.0
        %4563 = vmatprep.subr.mxu0 0.0
        %4564 = vmatpush1.msra.mxu0 0.0
        %4565 = vmatprep.subr.mxu0 0.0
        %4566 = vmatpush1.msra.mxu0 0.0
        %4567 = vmatprep.subr.mxu0 0.0
        %4568 = vmatpush1.msra.mxu0 0.0
        %4569 = vmatprep.subr.mxu0 0.0
        %4570 = vmatpush1.msra.mxu0 0.0
        %4571 = vmatprep.subr.mxu0 0.0
        %4572 = vmatpush1.msra.mxu0 0.0
        %4573 = vmatprep.subr.mxu0 0.0
        %4574 = vmatpush1.msra.mxu0 0.0
        %4575 = vmatprep.mubr.f32.mxu0 0.0
        %4576 = vmatmul.mubr.f32.gmra.mrb[0].mxu0 %v4500
        %v4577 = vpop.f32.mrb[0].mxu0
        %v4578 = vadd.f32 0.0, %v4577
        %v4579 = vpop.f32.mrb[0].mxu0
        %4580 = vmatprep.mubr.f32.mxu0 0.0
        %4581 = vmatmul.mubr.f32.gmra.mrb[0].mxu0 %v4503
        %v4582 = vpop.f32.mrb[0].mxu0
        %v4583 = vadd.f32 0.0, %v4582
        %v4584 = vpop.f32.mrb[0].mxu0
        %4585 = vmatprep.mubr.f32.mxu0 0.0
        %4586 = vmatmul.mubr.f32.gmra.mrb[0].mxu0 %v4506
        %v4587 = vpop.f32.mrb[0].mxu0
        %v4588 = vadd.f32 0.0, %v4587
        %v4589 = vpop.f32.mrb[0].mxu0
        %4590 = vmatprep.mubr.f32.mxu0 0.0
        %4591 = vmatmul.mubr.f32.gmra.mrb[0].mxu0 %v4509
        %v4592 = vpop.f32.mrb[0].mxu0
        %v4593 = vadd.f32 0.0, %v4592
        %v4594 = vpop.f32.mrb[0].mxu0
        %4595 = vdwg.mxu0
        %v4596 = vmul.f32 %v4239, %v4113
        %v4597 = vmul.f32 %v4244, %v4115
        %v4598 = vmul.f32 %v4249, %v4117
        %v4599 = vmul.f32 %v4254, %v4119
        %v4600 = vmul.f32 %v4352, %v4121
        %v4601 = vmul.f32 %v4357, %v4123
        %v4602 = vmul.f32 %v4362, %v4125
        %v4603 = vmul.f32 %v4367, %v4127
        %v4604 = vmul.f32 %v4465, %v4129
        %v4605 = vmul.f32 %v4470, %v4131
        %v4606 = vmul.f32 %v4475, %v4133
        %v4607 = vmul.f32 %v4480, %v4135
        %v4608 = vmul.f32 %v4578, %v4137
        %v4609 = vmul.f32 %v4583, %v4139
        %v4610 = vmul.f32 %v4588, %v4141
        %v4611 = vmul.f32 %v4593, %v4143
        %4628 = vrot.lane.b32.xlu0 %v4596, 64
        %v4629 = vpop.permute.xlu0 %4628
        %4630 = vrot.lane.b32.xlu0 %v4597, 64
        %v4631 = vpop.permute.xlu0 %4630
        %4632 = vrot.lane.b32.xlu0 %v4598, 64
        %v4633 = vpop.permute.xlu0 %4632
        %4634 = vrot.lane.b32.xlu0 %v4599, 64
        %v4635 = vpop.permute.xlu0 %4634
        %4636 = vrot.lane.b32.xlu0 %v4600, 64
        %v4637 = vpop.permute.xlu0 %4636
        %4638 = vrot.lane.b32.xlu0 %v4601, 64
        %v4639 = vpop.permute.xlu0 %4638
        %4640 = vrot.lane.b32.xlu0 %v4602, 64
        %v4641 = vpop.permute.xlu0 %4640
        %4642 = vrot.lane.b32.xlu0 %v4603, 64
        %v4643 = vpop.permute.xlu0 %4642
        %4644 = vrot.lane.b32.xlu0 %v4604, 64
        %v4645 = vpop.permute.xlu0 %4644
        %4646 = vrot.lane.b32.xlu0 %v4605, 64
        %v4647 = vpop.permute.xlu0 %4646
        %4648 = vrot.lane.b32.xlu0 %v4606, 64
        %v4649 = vpop.permute.xlu0 %4648
        %4650 = vrot.lane.b32.xlu0 %v4607, 64
        %v4651 = vpop.permute.xlu0 %4650
        %4652 = vrot.lane.b32.xlu0 %v4608, 64
        %v4653 = vpop.permute.xlu0 %4652
        %4654 = vrot.lane.b32.xlu0 %v4609, 64
        %v4655 = vpop.permute.xlu0 %4654
        %4656 = vrot.lane.b32.xlu0 %v4610, 64
        %v4657 = vpop.permute.xlu0 %4656
        %4658 = vrot.lane.b32.xlu0 %v4611, 64
        %v4659 = vpop.permute.xlu0 %4658
        %vm4676 = vcmask 785920
        %4677 = vst.msk [vmem:[#allocation3] sm:$0xff] %vm4676, %v4629
        %4678 = vst.msk [vmem:[#allocation3 + $0x8] sm:$0xff] %vm4676, %v4631
        %4679 = vst.msk [vmem:[#allocation3 + $0x10] sm:$0xff] %vm4676, %v4633
        %4680 = vst.msk [vmem:[#allocation3 + $0x18] sm:$0xff] %vm4676, %v4635
        %4681 = vst.msk [vmem:[#allocation3 + $0x20] sm:$0xff] %vm4676, %v4637
        %4682 = vst.msk [vmem:[#allocation3 + $0x28] sm:$0xff] %vm4676, %v4639
        %4683 = vst.msk [vmem:[#allocation3 + $0x30] sm:$0xff] %vm4676, %v4641
        %4684 = vst.msk [vmem:[#allocation3 + $0x38] sm:$0xff] %vm4676, %v4643
        %4685 = vst.msk [vmem:[#allocation3 + $0x40] sm:$0xff] %vm4676, %v4645
        %4686 = vst.msk [vmem:[#allocation3 + $0x48] sm:$0xff] %vm4676, %v4647
        %4687 = vst.msk [vmem:[#allocation3 + $0x50] sm:$0xff] %vm4676, %v4649
        %4688 = vst.msk [vmem:[#allocation3 + $0x58] sm:$0xff] %vm4676, %v4651
        %4689 = vst.msk [vmem:[#allocation3 + $0x60] sm:$0xff] %vm4676, %v4653
        %4690 = vst.msk [vmem:[#allocation3 + $0x68] sm:$0xff] %vm4676, %v4655
        %4691 = vst.msk [vmem:[#allocation3 + $0x70] sm:$0xff] %vm4676, %v4657
        %4692 = vst.msk [vmem:[#allocation3 + $0x78] sm:$0xff] %vm4676, %v4659
        %v4693 = vld [vmem:[#allocation2] sm:$0xff]
        %v4694 = vld [vmem:[#allocation2 + $0x18] sm:$0xff]
        %v4695 = vld [vmem:[#allocation2 + $0x30] sm:$0xff]
        %v4696 = vld [vmem:[#allocation2 + $0x48] sm:$0xff]
        %v4697 = vld [vmem:[#allocation2 + $0x60] sm:$0xff]
        %v4698 = vld [vmem:[#allocation2 + $0x78] sm:$0xff]
        %v4699 = vld [vmem:[#allocation2 + $0x90] sm:$0xff]
        %v4700 = vld [vmem:[#allocation2 + $0xa8] sm:$0xff]
        %v4701 = vld [vmem:[#allocation2 + $0xc0] sm:$0xff]
        %v4702 = vld [vmem:[#allocation2 + $0xd8] sm:$0xff]
        %v4703 = vld [vmem:[#allocation2 + $0xf0] sm:$0xff]
        %v4704 = vld [vmem:[#allocation2 + $0x108] sm:$0xff]
        %v4705 = vld [vmem:[#allocation2 + $0x120] sm:$0xff]
        %v4706 = vld [vmem:[#allocation2 + $0x138] sm:$0xff]
        %v4707 = vld [vmem:[#allocation2 + $0x150] sm:$0xff]
        %v4708 = vld [vmem:[#allocation2 + $0x168] sm:$0xff]
        %v4709 = vld [vmem:[#allocation2 + $0x8] sm:$0xff]
        %v4710 = vld [vmem:[#allocation2 + $0x20] sm:$0xff]
        %v4711 = vld [vmem:[#allocation2 + $0x38] sm:$0xff]
        %v4712 = vld [vmem:[#allocation2 + $0x50] sm:$0xff]
        %v4713 = vld [vmem:[#allocation2 + $0x68] sm:$0xff]
        %v4714 = vld [vmem:[#allocation2 + $0x80] sm:$0xff]
        %v4715 = vld [vmem:[#allocation2 + $0x98] sm:$0xff]
        %v4716 = vld [vmem:[#allocation2 + $0xb0] sm:$0xff]
        %v4717 = vld [vmem:[#allocation2 + $0xc8] sm:$0xff]
        %v4718 = vld [vmem:[#allocation2 + $0xe0] sm:$0xff]
        %v4719 = vld [vmem:[#allocation2 + $0xf8] sm:$0xff]
        %v4720 = vld [vmem:[#allocation2 + $0x110] sm:$0xff]
        %v4721 = vld [vmem:[#allocation2 + $0x128] sm:$0xff]
        %v4722 = vld [vmem:[#allocation2 + $0x140] sm:$0xff]
        %v4723 = vld [vmem:[#allocation2 + $0x158] sm:$0xff]
        %v4724 = vld [vmem:[#allocation2 + $0x170] sm:$0xff]
        %v4725 = vld [vmem:[#allocation2 + $0x10] sm:$0xff]
        %v4726 = vld [vmem:[#allocation2 + $0x28] sm:$0xff]
        %v4727 = vld [vmem:[#allocation2 + $0x40] sm:$0xff]
        %v4728 = vld [vmem:[#allocation2 + $0x58] sm:$0xff]
        %v4729 = vld [vmem:[#allocation2 + $0x70] sm:$0xff]
        %v4730 = vld [vmem:[#allocation2 + $0x88] sm:$0xff]
        %v4731 = vld [vmem:[#allocation2 + $0xa0] sm:$0xff]
        %v4732 = vld [vmem:[#allocation2 + $0xb8] sm:$0xff]
        %v4733 = vld [vmem:[#allocation2 + $0xd0] sm:$0xff]
        %v4734 = vld [vmem:[#allocation2 + $0xe8] sm:$0xff]
        %v4735 = vld [vmem:[#allocation2 + $0x100] sm:$0xff]
        %v4736 = vld [vmem:[#allocation2 + $0x118] sm:$0xff]
        %v4737 = vld [vmem:[#allocation2 + $0x130] sm:$0xff]
        %v4738 = vld [vmem:[#allocation2 + $0x148] sm:$0xff]
        %v4739 = vld [vmem:[#allocation2 + $0x160] sm:$0xff]
        %v4740 = vld [vmem:[#allocation2 + $0x178] sm:$0xff]
        %4745 = vrot.lane.b32.xlu0 %v4693, 32
        %v4746 = vpop.permute.xlu0 %4745
        %4747 = vrot.lane.b32.xlu0 %v4694, 32
        %v4748 = vpop.permute.xlu0 %4747
        %4749 = vrot.lane.b32.xlu0 %v4695, 32
        %v4750 = vpop.permute.xlu0 %4749
        %4751 = vrot.lane.b32.xlu0 %v4696, 32
        %v4752 = vpop.permute.xlu0 %4751
        %4757 = vrot.lane.b32.xlu0 %v4709, 32
        %v4758 = vpop.permute.xlu0 %4757
        %4759 = vrot.lane.b32.xlu0 %v4710, 32
        %v4760 = vpop.permute.xlu0 %4759
        %4761 = vrot.lane.b32.xlu0 %v4711, 32
        %v4762 = vpop.permute.xlu0 %4761
        %4763 = vrot.lane.b32.xlu0 %v4712, 32
        %v4764 = vpop.permute.xlu0 %4763
        %v4765 = vsel %vm1018, %v4746, 0
        %v4767 = vsel %vm1018, %v4748, 0
        %v4769 = vsel %vm1018, %v4750, 0
        %v4771 = vsel %vm1018, %v4752, 0
        %v4773 = vsel %vm1018, %v4758, 0
        %v4775 = vsel %vm1018, %v4760, 0
        %v4777 = vsel %vm1018, %v4762, 0
        %v4779 = vsel %vm1018, %v4764, 0
        %4781 = vmatprep.subr.mxu0 0.0
        %4782 = vmatpush1.xpose.msra.mxu0 %v4773
        %4783 = vmatprep.subr.mxu0 0.0
        %4784 = vmatpush1.xpose.msra.mxu0 %v4775
        %4785 = vmatprep.subr.mxu0 0.0
        %4786 = vmatpush1.xpose.msra.mxu0 %v4777
        %4787 = vmatprep.subr.mxu0 0.0
        %4788 = vmatpush1.xpose.msra.mxu0 %v4779
        %4789 = vmatprep.subr.mxu0 0.0
        %4790 = vmatpush1.xpose.msra.mxu0 0.0
        %4791 = vmatprep.subr.mxu0 0.0
        %4792 = vmatpush1.xpose.msra.mxu0 0.0
        %4793 = vmatprep.subr.mxu0 0.0
        %4794 = vmatpush1.xpose.msra.mxu0 0.0
        %4795 = vmatprep.subr.mxu0 0.0
        %4796 = vmatpush1.xpose.msra.mxu0 0.0
        %4797 = vmatprep.subr.mxu0 0.0
        %4798 = vmatpush1.xpose.msra.mxu0 0.0
        %4799 = vmatprep.subr.mxu0 0.0
        %4800 = vmatpush1.xpose.msra.mxu0 0.0
        %4801 = vmatprep.subr.mxu0 0.0
        %4802 = vmatpush1.xpose.msra.mxu0 0.0
        %4803 = vmatprep.subr.mxu0 0.0
        %4804 = vmatpush1.xpose.msra.mxu0 0.0
        %4805 = vmatprep.subr.mxu0 0.0
        %4806 = vmatpush1.xpose.msra.mxu0 0.0
        %4807 = vmatprep.subr.mxu0 0.0
        %4808 = vmatpush1.xpose.msra.mxu0 0.0
        %4809 = vmatprep.subr.mxu0 0.0
        %4810 = vmatpush1.xpose.msra.mxu0 0.0
        %4811 = vmatprep.subr.mxu0 0.0
        %4812 = vmatpush1.xpose.msra.mxu0 0.0
        %4813 = vmatprep.subr.mxu0 0.0
        %4814 = vmatpush1.xpose.msra.mxu0 0.0
        %4815 = vmatprep.subr.mxu0 0.0
        %4816 = vmatpush1.xpose.msra.mxu0 0.0
        %4817 = vmatprep.subr.mxu0 0.0
        %4818 = vmatpush1.xpose.msra.mxu0 0.0
        %4819 = vmatprep.subr.mxu0 0.0
        %4820 = vmatpush1.xpose.msra.mxu0 0.0
        %4821 = vmatprep.subr.mxu0 0.0
        %4822 = vmatpush1.xpose.msra.mxu0 0.0
        %4823 = vmatprep.subr.mxu0 0.0
        %4824 = vmatpush1.xpose.msra.mxu0 0.0
        %4825 = vmatprep.subr.mxu0 0.0
        %4826 = vmatpush1.xpose.msra.mxu0 0.0
        %4827 = vmatprep.subr.mxu0 0.0
        %4828 = vmatpush1.xpose.msra.mxu0 0.0
        %4829 = vmatprep.subr.mxu0 0.0
        %4830 = vmatpush1.xpose.msra.mxu0 0.0
        %4831 = vmatprep.subr.mxu0 0.0
        %4832 = vmatpush1.xpose.msra.mxu0 0.0
        %4833 = vmatprep.subr.mxu0 0.0
        %4834 = vmatpush1.xpose.msra.mxu0 0.0
        %4835 = vmatprep.subr.mxu0 0.0
        %4836 = vmatpush1.xpose.msra.mxu0 0.0
        %4837 = vmatprep.subr.mxu0 0.0
        %4838 = vmatpush1.xpose.msra.mxu0 0.0
        %4839 = vmatprep.subr.mxu0 0.0
        %4840 = vmatpush1.xpose.msra.mxu0 0.0
        %4841 = vmatprep.subr.mxu0 0.0
        %4842 = vmatpush1.xpose.msra.mxu0 0.0
        %4843 = vmatprep.subr.mxu0 0.0
        %4844 = vmatpush1.xpose.msra.mxu0 0.0
        %4845 = vmatprep.mubr.f32.mxu0 0.0
        %4846 = vmatmul.mubr.f32.gmra.mrb[0].mxu0 %v4765
        %v4847 = vpop.f32.mrb[0].mxu0
        %v4848 = vadd.f32 0.0, %v4847
        %v4849 = vpop.f32.mrb[0].mxu0
        %4850 = vmatprep.mubr.f32.mxu0 0.0
        %4851 = vmatmul.mubr.f32.gmra.mrb[0].mxu0 %v4767
        %v4852 = vpop.f32.mrb[0].mxu0
        %v4853 = vadd.f32 0.0, %v4852
        %v4854 = vpop.f32.mrb[0].mxu0
        %4855 = vmatprep.mubr.f32.mxu0 0.0
        %4856 = vmatmul.mubr.f32.gmra.mrb[0].mxu0 %v4769
        %v4857 = vpop.f32.mrb[0].mxu0
        %v4858 = vadd.f32 0.0, %v4857
        %v4859 = vpop.f32.mrb[0].mxu0
        %4860 = vmatprep.mubr.f32.mxu0 0.0
        %4861 = vmatmul.mubr.f32.gmra.mrb[0].mxu0 %v4771
        %v4862 = vpop.f32.mrb[0].mxu0
        %v4863 = vadd.f32 0.0, %v4862
        %v4864 = vpop.f32.mrb[0].mxu0
        %4865 = vdwg.mxu0
        %4870 = vrot.lane.b32.xlu0 %v4697, 32
        %v4871 = vpop.permute.xlu0 %4870
        %4872 = vrot.lane.b32.xlu0 %v4698, 32
        %v4873 = vpop.permute.xlu0 %4872
        %4874 = vrot.lane.b32.xlu0 %v4699, 32
        %v4875 = vpop.permute.xlu0 %4874
        %4876 = vrot.lane.b32.xlu0 %v4700, 32
        %v4877 = vpop.permute.xlu0 %4876
        %4882 = vrot.lane.b32.xlu0 %v4713, 32
        %v4883 = vpop.permute.xlu0 %4882
        %4884 = vrot.lane.b32.xlu0 %v4714, 32
        %v4885 = vpop.permute.xlu0 %4884
        %4886 = vrot.lane.b32.xlu0 %v4715, 32
        %v4887 = vpop.permute.xlu0 %4886
        %4888 = vrot.lane.b32.xlu0 %v4716, 32
        %v4889 = vpop.permute.xlu0 %4888
        %v4890 = vsel %vm1018, %v4871, 0
        %v4892 = vsel %vm1018, %v4873, 0
        %v4894 = vsel %vm1018, %v4875, 0
        %v4896 = vsel %vm1018, %v4877, 0
        %v4898 = vsel %vm1018, %v4883, 0
        %v4900 = vsel %vm1018, %v4885, 0
        %v4902 = vsel %vm1018, %v4887, 0
        %v4904 = vsel %vm1018, %v4889, 0
        %4906 = vmatprep.subr.mxu0 0.0
        %4907 = vmatpush1.xpose.msra.mxu0 %v4898
        %4908 = vmatprep.subr.mxu0 0.0
        %4909 = vmatpush1.xpose.msra.mxu0 %v4900
        %4910 = vmatprep.subr.mxu0 0.0
        %4911 = vmatpush1.xpose.msra.mxu0 %v4902
        %4912 = vmatprep.subr.mxu0 0.0
        %4913 = vmatpush1.xpose.msra.mxu0 %v4904
        %4914 = vmatprep.subr.mxu0 0.0
        %4915 = vmatpush1.xpose.msra.mxu0 0.0
        %4916 = vmatprep.subr.mxu0 0.0
        %4917 = vmatpush1.xpose.msra.mxu0 0.0
        %4918 = vmatprep.subr.mxu0 0.0
        %4919 = vmatpush1.xpose.msra.mxu0 0.0
        %4920 = vmatprep.subr.mxu0 0.0
        %4921 = vmatpush1.xpose.msra.mxu0 0.0
        %4922 = vmatprep.subr.mxu0 0.0
        %4923 = vmatpush1.xpose.msra.mxu0 0.0
        %4924 = vmatprep.subr.mxu0 0.0
        %4925 = vmatpush1.xpose.msra.mxu0 0.0
        %4926 = vmatprep.subr.mxu0 0.0
        %4927 = vmatpush1.xpose.msra.mxu0 0.0
        %4928 = vmatprep.subr.mxu0 0.0
        %4929 = vmatpush1.xpose.msra.mxu0 0.0
        %4930 = vmatprep.subr.mxu0 0.0
        %4931 = vmatpush1.xpose.msra.mxu0 0.0
        %4932 = vmatprep.subr.mxu0 0.0
        %4933 = vmatpush1.xpose.msra.mxu0 0.0
        %4934 = vmatprep.subr.mxu0 0.0
        %4935 = vmatpush1.xpose.msra.mxu0 0.0
        %4936 = vmatprep.subr.mxu0 0.0
        %4937 = vmatpush1.xpose.msra.mxu0 0.0
        %4938 = vmatprep.subr.mxu0 0.0
        %4939 = vmatpush1.xpose.msra.mxu0 0.0
        %4940 = vmatprep.subr.mxu0 0.0
        %4941 = vmatpush1.xpose.msra.mxu0 0.0
        %4942 = vmatprep.subr.mxu0 0.0
        %4943 = vmatpush1.xpose.msra.mxu0 0.0
        %4944 = vmatprep.subr.mxu0 0.0
        %4945 = vmatpush1.xpose.msra.mxu0 0.0
        %4946 = vmatprep.subr.mxu0 0.0
        %4947 = vmatpush1.xpose.msra.mxu0 0.0
        %4948 = vmatprep.subr.mxu0 0.0
        %4949 = vmatpush1.xpose.msra.mxu0 0.0
        %4950 = vmatprep.subr.mxu0 0.0
        %4951 = vmatpush1.xpose.msra.mxu0 0.0
        %4952 = vmatprep.subr.mxu0 0.0
        %4953 = vmatpush1.xpose.msra.mxu0 0.0
        %4954 = vmatprep.subr.mxu0 0.0
        %4955 = vmatpush1.xpose.msra.mxu0 0.0
        %4956 = vmatprep.subr.mxu0 0.0
        %4957 = vmatpush1.xpose.msra.mxu0 0.0
        %4958 = vmatprep.subr.mxu0 0.0
        %4959 = vmatpush1.xpose.msra.mxu0 0.0
        %4960 = vmatprep.subr.mxu0 0.0
        %4961 = vmatpush1.xpose.msra.mxu0 0.0
        %4962 = vmatprep.subr.mxu0 0.0
        %4963 = vmatpush1.xpose.msra.mxu0 0.0
        %4964 = vmatprep.subr.mxu0 0.0
        %4965 = vmatpush1.xpose.msra.mxu0 0.0
        %4966 = vmatprep.subr.mxu0 0.0
        %4967 = vmatpush1.xpose.msra.mxu0 0.0
        %4968 = vmatprep.subr.mxu0 0.0
        %4969 = vmatpush1.xpose.msra.mxu0 0.0
        %4970 = vmatprep.mubr.f32.mxu0 0.0
        %4971 = vmatmul.mubr.f32.gmra.mrb[0].mxu0 %v4890
        %v4972 = vpop.f32.mrb[0].mxu0
        %v4973 = vadd.f32 0.0, %v4972
        %v4974 = vpop.f32.mrb[0].mxu0
        %4975 = vmatprep.mubr.f32.mxu0 0.0
        %4976 = vmatmul.mubr.f32.gmra.mrb[0].mxu0 %v4892
        %v4977 = vpop.f32.mrb[0].mxu0
        %v4978 = vadd.f32 0.0, %v4977
        %v4979 = vpop.f32.mrb[0].mxu0
        %4980 = vmatprep.mubr.f32.mxu0 0.0
        %4981 = vmatmul.mubr.f32.gmra.mrb[0].mxu0 %v4894
        %v4982 = vpop.f32.mrb[0].mxu0
        %v4983 = vadd.f32 0.0, %v4982
        %v4984 = vpop.f32.mrb[0].mxu0
        %4985 = vmatprep.mubr.f32.mxu0 0.0
        %4986 = vmatmul.mubr.f32.gmra.mrb[0].mxu0 %v4896
        %v4987 = vpop.f32.mrb[0].mxu0
        %v4988 = vadd.f32 0.0, %v4987
        %v4989 = vpop.f32.mrb[0].mxu0
        %4990 = vdwg.mxu0
        %4995 = vrot.lane.b32.xlu0 %v4701, 32
        %v4996 = vpop.permute.xlu0 %4995
        %4997 = vrot.lane.b32.xlu0 %v4702, 32
        %v4998 = vpop.permute.xlu0 %4997
        %4999 = vrot.lane.b32.xlu0 %v4703, 32
        %v5000 = vpop.permute.xlu0 %4999
        %5001 = vrot.lane.b32.xlu0 %v4704, 32
        %v5002 = vpop.permute.xlu0 %5001
        %5007 = vrot.lane.b32.xlu0 %v4717, 32
        %v5008 = vpop.permute.xlu0 %5007
        %5009 = vrot.lane.b32.xlu0 %v4718, 32
        %v5010 = vpop.permute.xlu0 %5009
        %5011 = vrot.lane.b32.xlu0 %v4719, 32
        %v5012 = vpop.permute.xlu0 %5011
        %5013 = vrot.lane.b32.xlu0 %v4720, 32
        %v5014 = vpop.permute.xlu0 %5013
        %v5015 = vsel %vm1018, %v4996, 0
        %v5017 = vsel %vm1018, %v4998, 0
        %v5019 = vsel %vm1018, %v5000, 0
        %v5021 = vsel %vm1018, %v5002, 0
        %v5023 = vsel %vm1018, %v5008, 0
        %v5025 = vsel %vm1018, %v5010, 0
        %v5027 = vsel %vm1018, %v5012, 0
        %v5029 = vsel %vm1018, %v5014, 0
        %5031 = vmatprep.subr.mxu0 0.0
        %5032 = vmatpush1.xpose.msra.mxu0 %v5023
        %5033 = vmatprep.subr.mxu0 0.0
        %5034 = vmatpush1.xpose.msra.mxu0 %v5025
        %5035 = vmatprep.subr.mxu0 0.0
        %5036 = vmatpush1.xpose.msra.mxu0 %v5027
        %5037 = vmatprep.subr.mxu0 0.0
        %5038 = vmatpush1.xpose.msra.mxu0 %v5029
        %5039 = vmatprep.subr.mxu0 0.0
        %5040 = vmatpush1.xpose.msra.mxu0 0.0
        %5041 = vmatprep.subr.mxu0 0.0
        %5042 = vmatpush1.xpose.msra.mxu0 0.0
        %5043 = vmatprep.subr.mxu0 0.0
        %5044 = vmatpush1.xpose.msra.mxu0 0.0
        %5045 = vmatprep.subr.mxu0 0.0
        %5046 = vmatpush1.xpose.msra.mxu0 0.0
        %5047 = vmatprep.subr.mxu0 0.0
        %5048 = vmatpush1.xpose.msra.mxu0 0.0
        %5049 = vmatprep.subr.mxu0 0.0
        %5050 = vmatpush1.xpose.msra.mxu0 0.0
        %5051 = vmatprep.subr.mxu0 0.0
        %5052 = vmatpush1.xpose.msra.mxu0 0.0
        %5053 = vmatprep.subr.mxu0 0.0
        %5054 = vmatpush1.xpose.msra.mxu0 0.0
        %5055 = vmatprep.subr.mxu0 0.0
        %5056 = vmatpush1.xpose.msra.mxu0 0.0
        %5057 = vmatprep.subr.mxu0 0.0
        %5058 = vmatpush1.xpose.msra.mxu0 0.0
        %5059 = vmatprep.subr.mxu0 0.0
        %5060 = vmatpush1.xpose.msra.mxu0 0.0
        %5061 = vmatprep.subr.mxu0 0.0
        %5062 = vmatpush1.xpose.msra.mxu0 0.0
        %5063 = vmatprep.subr.mxu0 0.0
        %5064 = vmatpush1.xpose.msra.mxu0 0.0
        %5065 = vmatprep.subr.mxu0 0.0
        %5066 = vmatpush1.xpose.msra.mxu0 0.0
        %5067 = vmatprep.subr.mxu0 0.0
        %5068 = vmatpush1.xpose.msra.mxu0 0.0
        %5069 = vmatprep.subr.mxu0 0.0
        %5070 = vmatpush1.xpose.msra.mxu0 0.0
        %5071 = vmatprep.subr.mxu0 0.0
        %5072 = vmatpush1.xpose.msra.mxu0 0.0
        %5073 = vmatprep.subr.mxu0 0.0
        %5074 = vmatpush1.xpose.msra.mxu0 0.0
        %5075 = vmatprep.subr.mxu0 0.0
        %5076 = vmatpush1.xpose.msra.mxu0 0.0
        %5077 = vmatprep.subr.mxu0 0.0
        %5078 = vmatpush1.xpose.msra.mxu0 0.0
        %5079 = vmatprep.subr.mxu0 0.0
        %5080 = vmatpush1.xpose.msra.mxu0 0.0
        %5081 = vmatprep.subr.mxu0 0.0
        %5082 = vmatpush1.xpose.msra.mxu0 0.0
        %5083 = vmatprep.subr.mxu0 0.0
        %5084 = vmatpush1.xpose.msra.mxu0 0.0
        %5085 = vmatprep.subr.mxu0 0.0
        %5086 = vmatpush1.xpose.msra.mxu0 0.0
        %5087 = vmatprep.subr.mxu0 0.0
        %5088 = vmatpush1.xpose.msra.mxu0 0.0
        %5089 = vmatprep.subr.mxu0 0.0
        %5090 = vmatpush1.xpose.msra.mxu0 0.0
        %5091 = vmatprep.subr.mxu0 0.0
        %5092 = vmatpush1.xpose.msra.mxu0 0.0
        %5093 = vmatprep.subr.mxu0 0.0
        %5094 = vmatpush1.xpose.msra.mxu0 0.0
        %5095 = vmatprep.mubr.f32.mxu0 0.0
        %5096 = vmatmul.mubr.f32.gmra.mrb[0].mxu0 %v5015
        %v5097 = vpop.f32.mrb[0].mxu0
        %v5098 = vadd.f32 0.0, %v5097
        %v5099 = vpop.f32.mrb[0].mxu0
        %5100 = vmatprep.mubr.f32.mxu0 0.0
        %5101 = vmatmul.mubr.f32.gmra.mrb[0].mxu0 %v5017
        %v5102 = vpop.f32.mrb[0].mxu0
        %v5103 = vadd.f32 0.0, %v5102
        %v5104 = vpop.f32.mrb[0].mxu0
        %5105 = vmatprep.mubr.f32.mxu0 0.0
        %5106 = vmatmul.mubr.f32.gmra.mrb[0].mxu0 %v5019
        %v5107 = vpop.f32.mrb[0].mxu0
        %v5108 = vadd.f32 0.0, %v5107
        %v5109 = vpop.f32.mrb[0].mxu0
        %5110 = vmatprep.mubr.f32.mxu0 0.0
        %5111 = vmatmul.mubr.f32.gmra.mrb[0].mxu0 %v5021
        %v5112 = vpop.f32.mrb[0].mxu0
        %v5113 = vadd.f32 0.0, %v5112
        %v5114 = vpop.f32.mrb[0].mxu0
        %5115 = vdwg.mxu0
        %5120 = vrot.lane.b32.xlu0 %v4705, 32
        %v5121 = vpop.permute.xlu0 %5120
        %5122 = vrot.lane.b32.xlu0 %v4706, 32
        %v5123 = vpop.permute.xlu0 %5122
        %5124 = vrot.lane.b32.xlu0 %v4707, 32
        %v5125 = vpop.permute.xlu0 %5124
        %5126 = vrot.lane.b32.xlu0 %v4708, 32
        %v5127 = vpop.permute.xlu0 %5126
        %5132 = vrot.lane.b32.xlu0 %v4721, 32
        %v5133 = vpop.permute.xlu0 %5132
        %5134 = vrot.lane.b32.xlu0 %v4722, 32
        %v5135 = vpop.permute.xlu0 %5134
        %5136 = vrot.lane.b32.xlu0 %v4723, 32
        %v5137 = vpop.permute.xlu0 %5136
        %5138 = vrot.lane.b32.xlu0 %v4724, 32
        %v5139 = vpop.permute.xlu0 %5138
        %v5140 = vsel %vm1018, %v5121, 0
        %v5142 = vsel %vm1018, %v5123, 0
        %v5144 = vsel %vm1018, %v5125, 0
        %v5146 = vsel %vm1018, %v5127, 0
        %v5148 = vsel %vm1018, %v5133, 0
        %v5150 = vsel %vm1018, %v5135, 0
        %v5152 = vsel %vm1018, %v5137, 0
        %v5154 = vsel %vm1018, %v5139, 0
        %5156 = vmatprep.subr.mxu0 0.0
        %5157 = vmatpush1.xpose.msra.mxu0 %v5148
        %5158 = vmatprep.subr.mxu0 0.0
        %5159 = vmatpush1.xpose.msra.mxu0 %v5150
        %5160 = vmatprep.subr.mxu0 0.0
        %5161 = vmatpush1.xpose.msra.mxu0 %v5152
        %5162 = vmatprep.subr.mxu0 0.0
        %5163 = vmatpush1.xpose.msra.mxu0 %v5154
        %5164 = vmatprep.subr.mxu0 0.0
        %5165 = vmatpush1.xpose.msra.mxu0 0.0
        %5166 = vmatprep.subr.mxu0 0.0
        %5167 = vmatpush1.xpose.msra.mxu0 0.0
        %5168 = vmatprep.subr.mxu0 0.0
        %5169 = vmatpush1.xpose.msra.mxu0 0.0
        %5170 = vmatprep.subr.mxu0 0.0
        %5171 = vmatpush1.xpose.msra.mxu0 0.0
        %5172 = vmatprep.subr.mxu0 0.0
        %5173 = vmatpush1.xpose.msra.mxu0 0.0
        %5174 = vmatprep.subr.mxu0 0.0
        %5175 = vmatpush1.xpose.msra.mxu0 0.0
        %5176 = vmatprep.subr.mxu0 0.0
        %5177 = vmatpush1.xpose.msra.mxu0 0.0
        %5178 = vmatprep.subr.mxu0 0.0
        %5179 = vmatpush1.xpose.msra.mxu0 0.0
        %5180 = vmatprep.subr.mxu0 0.0
        %5181 = vmatpush1.xpose.msra.mxu0 0.0
        %5182 = vmatprep.subr.mxu0 0.0
        %5183 = vmatpush1.xpose.msra.mxu0 0.0
        %5184 = vmatprep.subr.mxu0 0.0
        %5185 = vmatpush1.xpose.msra.mxu0 0.0
        %5186 = vmatprep.subr.mxu0 0.0
        %5187 = vmatpush1.xpose.msra.mxu0 0.0
        %5188 = vmatprep.subr.mxu0 0.0
        %5189 = vmatpush1.xpose.msra.mxu0 0.0
        %5190 = vmatprep.subr.mxu0 0.0
        %5191 = vmatpush1.xpose.msra.mxu0 0.0
        %5192 = vmatprep.subr.mxu0 0.0
        %5193 = vmatpush1.xpose.msra.mxu0 0.0
        %5194 = vmatprep.subr.mxu0 0.0
        %5195 = vmatpush1.xpose.msra.mxu0 0.0
        %5196 = vmatprep.subr.mxu0 0.0
        %5197 = vmatpush1.xpose.msra.mxu0 0.0
        %5198 = vmatprep.subr.mxu0 0.0
        %5199 = vmatpush1.xpose.msra.mxu0 0.0
        %5200 = vmatprep.subr.mxu0 0.0
        %5201 = vmatpush1.xpose.msra.mxu0 0.0
        %5202 = vmatprep.subr.mxu0 0.0
        %5203 = vmatpush1.xpose.msra.mxu0 0.0
        %5204 = vmatprep.subr.mxu0 0.0
        %5205 = vmatpush1.xpose.msra.mxu0 0.0
        %5206 = vmatprep.subr.mxu0 0.0
        %5207 = vmatpush1.xpose.msra.mxu0 0.0
        %5208 = vmatprep.subr.mxu0 0.0
        %5209 = vmatpush1.xpose.msra.mxu0 0.0
        %5210 = vmatprep.subr.mxu0 0.0
        %5211 = vmatpush1.xpose.msra.mxu0 0.0
        %5212 = vmatprep.subr.mxu0 0.0
        %5213 = vmatpush1.xpose.msra.mxu0 0.0
        %5214 = vmatprep.subr.mxu0 0.0
        %5215 = vmatpush1.xpose.msra.mxu0 0.0
        %5216 = vmatprep.subr.mxu0 0.0
        %5217 = vmatpush1.xpose.msra.mxu0 0.0
        %5218 = vmatprep.subr.mxu0 0.0
        %5219 = vmatpush1.xpose.msra.mxu0 0.0
        %5220 = vmatprep.mubr.f32.mxu0 0.0
        %5221 = vmatmul.mubr.f32.gmra.mrb[0].mxu0 %v5140
        %v5222 = vpop.f32.mrb[0].mxu0
        %v5223 = vadd.f32 0.0, %v5222
        %v5224 = vpop.f32.mrb[0].mxu0
        %5225 = vmatprep.mubr.f32.mxu0 0.0
        %5226 = vmatmul.mubr.f32.gmra.mrb[0].mxu0 %v5142
        %v5227 = vpop.f32.mrb[0].mxu0
        %v5228 = vadd.f32 0.0, %v5227
        %v5229 = vpop.f32.mrb[0].mxu0
        %5230 = vmatprep.mubr.f32.mxu0 0.0
        %5231 = vmatmul.mubr.f32.gmra.mrb[0].mxu0 %v5144
        %v5232 = vpop.f32.mrb[0].mxu0
        %v5233 = vadd.f32 0.0, %v5232
        %v5234 = vpop.f32.mrb[0].mxu0
        %5235 = vmatprep.mubr.f32.mxu0 0.0
        %5236 = vmatmul.mubr.f32.gmra.mrb[0].mxu0 %v5146
        %v5237 = vpop.f32.mrb[0].mxu0
        %v5238 = vadd.f32 0.0, %v5237
        %v5239 = vpop.f32.mrb[0].mxu0
        %5240 = vdwg.mxu0
        %v5241 = vmul.f32 %v4848, 0.17677669
        %v5242 = vmul.f32 %v4853, 0.17677669
        %v5243 = vmul.f32 %v4858, 0.17677669
        %v5244 = vmul.f32 %v4863, 0.17677669
        %v5245 = vmul.f32 %v4973, 0.17677669
        %v5246 = vmul.f32 %v4978, 0.17677669
        %v5247 = vmul.f32 %v4983, 0.17677669
        %v5248 = vmul.f32 %v4988, 0.17677669
        %v5249 = vmul.f32 %v5098, 0.17677669
        %v5250 = vmul.f32 %v5103, 0.17677669
        %v5251 = vmul.f32 %v5108, 0.17677669
        %v5252 = vmul.f32 %v5113, 0.17677669
        %v5253 = vmul.f32 %v5223, 0.17677669
        %v5254 = vmul.f32 %v5228, 0.17677669
        %v5255 = vmul.f32 %v5233, 0.17677669
        %v5256 = vmul.f32 %v5238, 0.17677669
        %v5257 = vadd.f32 %v5241, %v966
        %v5258 = vadd.f32 %v5242, %v967
        %v5259 = vadd.f32 %v5243, %v968
        %v5260 = vadd.f32 %v5244, %v969
        %v5261 = vadd.f32 %v5245, %v966
        %v5262 = vadd.f32 %v5246, %v967
        %v5263 = vadd.f32 %v5247, %v968
        %v5264 = vadd.f32 %v5248, %v969
        %v5265 = vadd.f32 %v5249, %v966
        %v5266 = vadd.f32 %v5250, %v967
        %v5267 = vadd.f32 %v5251, %v968
        %v5268 = vadd.f32 %v5252, %v969
        %v5269 = vadd.f32 %v5253, %v966
        %v5270 = vadd.f32 %v5254, %v967
        %v5271 = vadd.f32 %v5255, %v968
        %v5272 = vadd.f32 %v5256, %v969
        %v5273 = vsel %vm1018, %v5257, -inf
        %5274 = vmax.xlane.f32.xlu0 %v5273
        %v5275 = vpop.xlane.xlu0 %5274
        %v5276 = vsel %vm1018, %v5258, -inf
        %5277 = vmax.xlane.f32.xlu0 %v5276
        %v5278 = vpop.xlane.xlu0 %5277
        %v5279 = vsel %vm1018, %v5259, -inf
        %5280 = vmax.xlane.f32.xlu0 %v5279
        %v5281 = vpop.xlane.xlu0 %5280
        %v5282 = vsel %vm1018, %v5260, -inf
        %5283 = vmax.xlane.f32.xlu0 %v5282
        %v5284 = vpop.xlane.xlu0 %5283
        %v5285 = vsel %vm1018, %v5261, -inf
        %5286 = vmax.xlane.f32.xlu0 %v5285
        %v5287 = vpop.xlane.xlu0 %5286
        %v5288 = vsel %vm1018, %v5262, -inf
        %5289 = vmax.xlane.f32.xlu0 %v5288
        %v5290 = vpop.xlane.xlu0 %5289
        %v5291 = vsel %vm1018, %v5263, -inf
        %5292 = vmax.xlane.f32.xlu0 %v5291
        %v5293 = vpop.xlane.xlu0 %5292
        %v5294 = vsel %vm1018, %v5264, -inf
        %5295 = vmax.xlane.f32.xlu0 %v5294
        %v5296 = vpop.xlane.xlu0 %5295
        %v5297 = vsel %vm1018, %v5265, -inf
        %5298 = vmax.xlane.f32.xlu0 %v5297
        %v5299 = vpop.xlane.xlu0 %5298
        %v5300 = vsel %vm1018, %v5266, -inf
        %5301 = vmax.xlane.f32.xlu0 %v5300
        %v5302 = vpop.xlane.xlu0 %5301
        %v5303 = vsel %vm1018, %v5267, -inf
        %5304 = vmax.xlane.f32.xlu0 %v5303
        %v5305 = vpop.xlane.xlu0 %5304
        %v5306 = vsel %vm1018, %v5268, -inf
        %5307 = vmax.xlane.f32.xlu0 %v5306
        %v5308 = vpop.xlane.xlu0 %5307
        %v5309 = vsel %vm1018, %v5269, -inf
        %5310 = vmax.xlane.f32.xlu0 %v5309
        %v5311 = vpop.xlane.xlu0 %5310
        %v5312 = vsel %vm1018, %v5270, -inf
        %5313 = vmax.xlane.f32.xlu0 %v5312
        %v5314 = vpop.xlane.xlu0 %5313
        %v5315 = vsel %vm1018, %v5271, -inf
        %5316 = vmax.xlane.f32.xlu0 %v5315
        %v5317 = vpop.xlane.xlu0 %5316
        %v5318 = vsel %vm1018, %v5272, -inf
        %5319 = vmax.xlane.f32.xlu0 %v5318
        %v5320 = vpop.xlane.xlu0 %5319
        %v5321 = vsub.f32 %v5257, %v5275
        %v5322 = vsub.f32 %v5258, %v5278
        %v5323 = vsub.f32 %v5259, %v5281
        %v5324 = vsub.f32 %v5260, %v5284
        %v5325 = vsub.f32 %v5261, %v5287
        %v5326 = vsub.f32 %v5262, %v5290
        %v5327 = vsub.f32 %v5263, %v5293
        %v5328 = vsub.f32 %v5264, %v5296
        %v5329 = vsub.f32 %v5265, %v5299
        %v5330 = vsub.f32 %v5266, %v5302
        %v5331 = vsub.f32 %v5267, %v5305
        %v5332 = vsub.f32 %v5268, %v5308
        %v5333 = vsub.f32 %v5269, %v5311
        %v5334 = vsub.f32 %v5270, %v5314
        %v5335 = vsub.f32 %v5271, %v5317
        %v5336 = vsub.f32 %v5272, %v5320
        %v5337 = vmul.f32 %v5321, 1.442695
        %v5338 = vpow.pop %v5337
        %v5339 = vmul.f32 %v5322, 1.442695
        %v5340 = vpow.pop %v5339
        %v5341 = vmul.f32 %v5323, 1.442695
        %v5342 = vpow.pop %v5341
        %v5343 = vmul.f32 %v5324, 1.442695
        %v5344 = vpow.pop %v5343
        %v5345 = vmul.f32 %v5325, 1.442695
        %v5346 = vpow.pop %v5345
        %v5347 = vmul.f32 %v5326, 1.442695
        %v5348 = vpow.pop %v5347
        %v5349 = vmul.f32 %v5327, 1.442695
        %v5350 = vpow.pop %v5349
        %v5351 = vmul.f32 %v5328, 1.442695
        %v5352 = vpow.pop %v5351
        %v5353 = vmul.f32 %v5329, 1.442695
        %v5354 = vpow.pop %v5353
        %v5355 = vmul.f32 %v5330, 1.442695
        %v5356 = vpow.pop %v5355
        %v5357 = vmul.f32 %v5331, 1.442695
        %v5358 = vpow.pop %v5357
        %v5359 = vmul.f32 %v5332, 1.442695
        %v5360 = vpow.pop %v5359
        %v5361 = vmul.f32 %v5333, 1.442695
        %v5362 = vpow.pop %v5361
        %v5363 = vmul.f32 %v5334, 1.442695
        %v5364 = vpow.pop %v5363
        %v5365 = vmul.f32 %v5335, 1.442695
        %v5366 = vpow.pop %v5365
        %v5367 = vmul.f32 %v5336, 1.442695
        %v5368 = vpow.pop %v5367
        %v5369 = vsel %vm1018, %v5338, 0.0
        %5370 = vadd.xlane.f32.xlu0 %v5369
        %v5371 = vpop.xlane.xlu0 %5370
        %v5372 = vsel %vm1018, %v5340, 0.0
        %5373 = vadd.xlane.f32.xlu0 %v5372
        %v5374 = vpop.xlane.xlu0 %5373
        %v5375 = vsel %vm1018, %v5342, 0.0
        %5376 = vadd.xlane.f32.xlu0 %v5375
        %v5377 = vpop.xlane.xlu0 %5376
        %v5378 = vsel %vm1018, %v5344, 0.0
        %5379 = vadd.xlane.f32.xlu0 %v5378
        %v5380 = vpop.xlane.xlu0 %5379
        %v5381 = vsel %vm1018, %v5346, 0.0
        %5382 = vadd.xlane.f32.xlu0 %v5381
        %v5383 = vpop.xlane.xlu0 %5382
        %v5384 = vsel %vm1018, %v5348, 0.0
        %5385 = vadd.xlane.f32.xlu0 %v5384
        %v5386 = vpop.xlane.xlu0 %5385
        %v5387 = vsel %vm1018, %v5350, 0.0
        %5388 = vadd.xlane.f32.xlu0 %v5387
        %v5389 = vpop.xlane.xlu0 %5388
        %v5390 = vsel %vm1018, %v5352, 0.0
        %5391 = vadd.xlane.f32.xlu0 %v5390
        %v5392 = vpop.xlane.xlu0 %5391
        %v5393 = vsel %vm1018, %v5354, 0.0
        %5394 = vadd.xlane.f32.xlu0 %v5393
        %v5395 = vpop.xlane.xlu0 %5394
        %v5396 = vsel %vm1018, %v5356, 0.0
        %5397 = vadd.xlane.f32.xlu0 %v5396
        %v5398 = vpop.xlane.xlu0 %5397
        %v5399 = vsel %vm1018, %v5358, 0.0
        %5400 = vadd.xlane.f32.xlu0 %v5399
        %v5401 = vpop.xlane.xlu0 %5400
        %v5402 = vsel %vm1018, %v5360, 0.0
        %5403 = vadd.xlane.f32.xlu0 %v5402
        %v5404 = vpop.xlane.xlu0 %5403
        %v5405 = vsel %vm1018, %v5362, 0.0
        %5406 = vadd.xlane.f32.xlu0 %v5405
        %v5407 = vpop.xlane.xlu0 %5406
        %v5408 = vsel %vm1018, %v5364, 0.0
        %5409 = vadd.xlane.f32.xlu0 %v5408
        %v5410 = vpop.xlane.xlu0 %5409
        %v5411 = vsel %vm1018, %v5366, 0.0
        %5412 = vadd.xlane.f32.xlu0 %v5411
        %v5413 = vpop.xlane.xlu0 %5412
        %v5414 = vsel %vm1018, %v5368, 0.0
        %5415 = vadd.xlane.f32.xlu0 %v5414
        %v5416 = vpop.xlane.xlu0 %5415
        %v5417 = vrcp.pop %v5371
        %v5418 = vmul.f32 1.0, %v5417
        %v5419 = vrcp.pop %v5374
        %v5420 = vmul.f32 1.0, %v5419
        %v5421 = vrcp.pop %v5377
        %v5422 = vmul.f32 1.0, %v5421
        %v5423 = vrcp.pop %v5380
        %v5424 = vmul.f32 1.0, %v5423
        %v5425 = vrcp.pop %v5383
        %v5426 = vmul.f32 1.0, %v5425
        %v5427 = vrcp.pop %v5386
        %v5428 = vmul.f32 1.0, %v5427
        %v5429 = vrcp.pop %v5389
        %v5430 = vmul.f32 1.0, %v5429
        %v5431 = vrcp.pop %v5392
        %v5432 = vmul.f32 1.0, %v5431
        %v5433 = vrcp.pop %v5395
        %v5434 = vmul.f32 1.0, %v5433
        %v5435 = vrcp.pop %v5398
        %v5436 = vmul.f32 1.0, %v5435
        %v5437 = vrcp.pop %v5401
        %v5438 = vmul.f32 1.0, %v5437
        %v5439 = vrcp.pop %v5404
        %v5440 = vmul.f32 1.0, %v5439
        %v5441 = vrcp.pop %v5407
        %v5442 = vmul.f32 1.0, %v5441
        %v5443 = vrcp.pop %v5410
        %v5444 = vmul.f32 1.0, %v5443
        %v5445 = vrcp.pop %v5413
        %v5446 = vmul.f32 1.0, %v5445
        %v5447 = vrcp.pop %v5416
        %v5448 = vmul.f32 1.0, %v5447
        %5453 = vrot.lane.b32.xlu0 %v4725, 32
        %v5454 = vpop.permute.xlu0 %5453
        %5455 = vrot.lane.b32.xlu0 %v4726, 32
        %v5456 = vpop.permute.xlu0 %5455
        %5457 = vrot.lane.b32.xlu0 %v4727, 32
        %v5458 = vpop.permute.xlu0 %5457
        %5459 = vrot.lane.b32.xlu0 %v4728, 32
        %v5460 = vpop.permute.xlu0 %5459
        %v5466 = vsel %vm1018, %v5338, 0
        %v5469 = vsel %vm1018, %v5340, 0
        %v5472 = vsel %vm1018, %v5342, 0
        %v5475 = vsel %vm1018, %v5344, 0
        %5477 = vmatprep.subr.mxu0 0.0
        %5478 = vmatpush1.msra.mxu0 %v5454
        %5479 = vmatprep.subr.mxu0 0.0
        %5480 = vmatpush1.msra.mxu0 %v5456
        %5481 = vmatprep.subr.mxu0 0.0
        %5482 = vmatpush1.msra.mxu0 %v5458
        %5483 = vmatprep.subr.mxu0 0.0
        %5484 = vmatpush1.msra.mxu0 %v5460
        %5485 = vmatprep.subr.mxu0 0.0
        %5486 = vmatpush1.msra.mxu0 0.0
        %5487 = vmatprep.subr.mxu0 0.0
        %5488 = vmatpush1.msra.mxu0 0.0
        %5489 = vmatprep.subr.mxu0 0.0
        %5490 = vmatpush1.msra.mxu0 0.0
        %5491 = vmatprep.subr.mxu0 0.0
        %5492 = vmatpush1.msra.mxu0 0.0
        %5493 = vmatprep.subr.mxu0 0.0
        %5494 = vmatpush1.msra.mxu0 0.0
        %5495 = vmatprep.subr.mxu0 0.0
        %5496 = vmatpush1.msra.mxu0 0.0
        %5497 = vmatprep.subr.mxu0 0.0
        %5498 = vmatpush1.msra.mxu0 0.0
        %5499 = vmatprep.subr.mxu0 0.0
        %5500 = vmatpush1.msra.mxu0 0.0
        %5501 = vmatprep.subr.mxu0 0.0
        %5502 = vmatpush1.msra.mxu0 0.0
        %5503 = vmatprep.subr.mxu0 0.0
        %5504 = vmatpush1.msra.mxu0 0.0
        %5505 = vmatprep.subr.mxu0 0.0
        %5506 = vmatpush1.msra.mxu0 0.0
        %5507 = vmatprep.subr.mxu0 0.0
        %5508 = vmatpush1.msra.mxu0 0.0
        %5509 = vmatprep.subr.mxu0 0.0
        %5510 = vmatpush1.msra.mxu0 0.0
        %5511 = vmatprep.subr.mxu0 0.0
        %5512 = vmatpush1.msra.mxu0 0.0
        %5513 = vmatprep.subr.mxu0 0.0
        %5514 = vmatpush1.msra.mxu0 0.0
        %5515 = vmatprep.subr.mxu0 0.0
        %5516 = vmatpush1.msra.mxu0 0.0
        %5517 = vmatprep.subr.mxu0 0.0
        %5518 = vmatpush1.msra.mxu0 0.0
        %5519 = vmatprep.subr.mxu0 0.0
        %5520 = vmatpush1.msra.mxu0 0.0
        %5521 = vmatprep.subr.mxu0 0.0
        %5522 = vmatpush1.msra.mxu0 0.0
        %5523 = vmatprep.subr.mxu0 0.0
        %5524 = vmatpush1.msra.mxu0 0.0
        %5525 = vmatprep.subr.mxu0 0.0
        %5526 = vmatpush1.msra.mxu0 0.0
        %5527 = vmatprep.subr.mxu0 0.0
        %5528 = vmatpush1.msra.mxu0 0.0
        %5529 = vmatprep.subr.mxu0 0.0
        %5530 = vmatpush1.msra.mxu0 0.0
        %5531 = vmatprep.subr.mxu0 0.0
        %5532 = vmatpush1.msra.mxu0 0.0
        %5533 = vmatprep.subr.mxu0 0.0
        %5534 = vmatpush1.msra.mxu0 0.0
        %5535 = vmatprep.subr.mxu0 0.0
        %5536 = vmatpush1.msra.mxu0 0.0
        %5537 = vmatprep.subr.mxu0 0.0
        %5538 = vmatpush1.msra.mxu0 0.0
        %5539 = vmatprep.subr.mxu0 0.0
        %5540 = vmatpush1.msra.mxu0 0.0
        %5541 = vmatprep.mubr.f32.mxu0 0.0
        %5542 = vmatmul.mubr.f32.gmra.mrb[0].mxu0 %v5466
        %v5543 = vpop.f32.mrb[0].mxu0
        %v5544 = vadd.f32 0.0, %v5543
        %v5545 = vpop.f32.mrb[0].mxu0
        %5546 = vmatprep.mubr.f32.mxu0 0.0
        %5547 = vmatmul.mubr.f32.gmra.mrb[0].mxu0 %v5469
        %v5548 = vpop.f32.mrb[0].mxu0
        %v5549 = vadd.f32 0.0, %v5548
        %v5550 = vpop.f32.mrb[0].mxu0
        %5551 = vmatprep.mubr.f32.mxu0 0.0
        %5552 = vmatmul.mubr.f32.gmra.mrb[0].mxu0 %v5472
        %v5553 = vpop.f32.mrb[0].mxu0
        %v5554 = vadd.f32 0.0, %v5553
        %v5555 = vpop.f32.mrb[0].mxu0
        %5556 = vmatprep.mubr.f32.mxu0 0.0
        %5557 = vmatmul.mubr.f32.gmra.mrb[0].mxu0 %v5475
        %v5558 = vpop.f32.mrb[0].mxu0
        %v5559 = vadd.f32 0.0, %v5558
        %v5560 = vpop.f32.mrb[0].mxu0
        %5561 = vdwg.mxu0
        %5566 = vrot.lane.b32.xlu0 %v4729, 32
        %v5567 = vpop.permute.xlu0 %5566
        %5568 = vrot.lane.b32.xlu0 %v4730, 32
        %v5569 = vpop.permute.xlu0 %5568
        %5570 = vrot.lane.b32.xlu0 %v4731, 32
        %v5571 = vpop.permute.xlu0 %5570
        %5572 = vrot.lane.b32.xlu0 %v4732, 32
        %v5573 = vpop.permute.xlu0 %5572
        %v5579 = vsel %vm1018, %v5346, 0
        %v5582 = vsel %vm1018, %v5348, 0
        %v5585 = vsel %vm1018, %v5350, 0
        %v5588 = vsel %vm1018, %v5352, 0
        %5590 = vmatprep.subr.mxu0 0.0
        %5591 = vmatpush1.msra.mxu0 %v5567
        %5592 = vmatprep.subr.mxu0 0.0
        %5593 = vmatpush1.msra.mxu0 %v5569
        %5594 = vmatprep.subr.mxu0 0.0
        %5595 = vmatpush1.msra.mxu0 %v5571
        %5596 = vmatprep.subr.mxu0 0.0
        %5597 = vmatpush1.msra.mxu0 %v5573
        %5598 = vmatprep.subr.mxu0 0.0
        %5599 = vmatpush1.msra.mxu0 0.0
        %5600 = vmatprep.subr.mxu0 0.0
        %5601 = vmatpush1.msra.mxu0 0.0
        %5602 = vmatprep.subr.mxu0 0.0
        %5603 = vmatpush1.msra.mxu0 0.0
        %5604 = vmatprep.subr.mxu0 0.0
        %5605 = vmatpush1.msra.mxu0 0.0
        %5606 = vmatprep.subr.mxu0 0.0
        %5607 = vmatpush1.msra.mxu0 0.0
        %5608 = vmatprep.subr.mxu0 0.0
        %5609 = vmatpush1.msra.mxu0 0.0
        %5610 = vmatprep.subr.mxu0 0.0
        %5611 = vmatpush1.msra.mxu0 0.0
        %5612 = vmatprep.subr.mxu0 0.0
        %5613 = vmatpush1.msra.mxu0 0.0
        %5614 = vmatprep.subr.mxu0 0.0
        %5615 = vmatpush1.msra.mxu0 0.0
        %5616 = vmatprep.subr.mxu0 0.0
        %5617 = vmatpush1.msra.mxu0 0.0
        %5618 = vmatprep.subr.mxu0 0.0
        %5619 = vmatpush1.msra.mxu0 0.0
        %5620 = vmatprep.subr.mxu0 0.0
        %5621 = vmatpush1.msra.mxu0 0.0
        %5622 = vmatprep.subr.mxu0 0.0
        %5623 = vmatpush1.msra.mxu0 0.0
        %5624 = vmatprep.subr.mxu0 0.0
        %5625 = vmatpush1.msra.mxu0 0.0
        %5626 = vmatprep.subr.mxu0 0.0
        %5627 = vmatpush1.msra.mxu0 0.0
        %5628 = vmatprep.subr.mxu0 0.0
        %5629 = vmatpush1.msra.mxu0 0.0
        %5630 = vmatprep.subr.mxu0 0.0
        %5631 = vmatpush1.msra.mxu0 0.0
        %5632 = vmatprep.subr.mxu0 0.0
        %5633 = vmatpush1.msra.mxu0 0.0
        %5634 = vmatprep.subr.mxu0 0.0
        %5635 = vmatpush1.msra.mxu0 0.0
        %5636 = vmatprep.subr.mxu0 0.0
        %5637 = vmatpush1.msra.mxu0 0.0
        %5638 = vmatprep.subr.mxu0 0.0
        %5639 = vmatpush1.msra.mxu0 0.0
        %5640 = vmatprep.subr.mxu0 0.0
        %5641 = vmatpush1.msra.mxu0 0.0
        %5642 = vmatprep.subr.mxu0 0.0
        %5643 = vmatpush1.msra.mxu0 0.0
        %5644 = vmatprep.subr.mxu0 0.0
        %5645 = vmatpush1.msra.mxu0 0.0
        %5646 = vmatprep.subr.mxu0 0.0
        %5647 = vmatpush1.msra.mxu0 0.0
        %5648 = vmatprep.subr.mxu0 0.0
        %5649 = vmatpush1.msra.mxu0 0.0
        %5650 = vmatprep.subr.mxu0 0.0
        %5651 = vmatpush1.msra.mxu0 0.0
        %5652 = vmatprep.subr.mxu0 0.0
        %5653 = vmatpush1.msra.mxu0 0.0
        %5654 = vmatprep.mubr.f32.mxu0 0.0
        %5655 = vmatmul.mubr.f32.gmra.mrb[0].mxu0 %v5579
        %v5656 = vpop.f32.mrb[0].mxu0
        %v5657 = vadd.f32 0.0, %v5656
        %v5658 = vpop.f32.mrb[0].mxu0
        %5659 = vmatprep.mubr.f32.mxu0 0.0
        %5660 = vmatmul.mubr.f32.gmra.mrb[0].mxu0 %v5582
        %v5661 = vpop.f32.mrb[0].mxu0
        %v5662 = vadd.f32 0.0, %v5661
        %v5663 = vpop.f32.mrb[0].mxu0
        %5664 = vmatprep.mubr.f32.mxu0 0.0
        %5665 = vmatmul.mubr.f32.gmra.mrb[0].mxu0 %v5585
        %v5666 = vpop.f32.mrb[0].mxu0
        %v5667 = vadd.f32 0.0, %v5666
        %v5668 = vpop.f32.mrb[0].mxu0
        %5669 = vmatprep.mubr.f32.mxu0 0.0
        %5670 = vmatmul.mubr.f32.gmra.mrb[0].mxu0 %v5588
        %v5671 = vpop.f32.mrb[0].mxu0
        %v5672 = vadd.f32 0.0, %v5671
        %v5673 = vpop.f32.mrb[0].mxu0
        %5674 = vdwg.mxu0
        %5679 = vrot.lane.b32.xlu0 %v4733, 32
        %v5680 = vpop.permute.xlu0 %5679
        %5681 = vrot.lane.b32.xlu0 %v4734, 32
        %v5682 = vpop.permute.xlu0 %5681
        %5683 = vrot.lane.b32.xlu0 %v4735, 32
        %v5684 = vpop.permute.xlu0 %5683
        %5685 = vrot.lane.b32.xlu0 %v4736, 32
        %v5686 = vpop.permute.xlu0 %5685
        %v5692 = vsel %vm1018, %v5354, 0
        %v5695 = vsel %vm1018, %v5356, 0
        %v5698 = vsel %vm1018, %v5358, 0
        %v5701 = vsel %vm1018, %v5360, 0
        %5703 = vmatprep.subr.mxu0 0.0
        %5704 = vmatpush1.msra.mxu0 %v5680
        %5705 = vmatprep.subr.mxu0 0.0
        %5706 = vmatpush1.msra.mxu0 %v5682
        %5707 = vmatprep.subr.mxu0 0.0
        %5708 = vmatpush1.msra.mxu0 %v5684
        %5709 = vmatprep.subr.mxu0 0.0
        %5710 = vmatpush1.msra.mxu0 %v5686
        %5711 = vmatprep.subr.mxu0 0.0
        %5712 = vmatpush1.msra.mxu0 0.0
        %5713 = vmatprep.subr.mxu0 0.0
        %5714 = vmatpush1.msra.mxu0 0.0
        %5715 = vmatprep.subr.mxu0 0.0
        %5716 = vmatpush1.msra.mxu0 0.0
        %5717 = vmatprep.subr.mxu0 0.0
        %5718 = vmatpush1.msra.mxu0 0.0
        %5719 = vmatprep.subr.mxu0 0.0
        %5720 = vmatpush1.msra.mxu0 0.0
        %5721 = vmatprep.subr.mxu0 0.0
        %5722 = vmatpush1.msra.mxu0 0.0
        %5723 = vmatprep.subr.mxu0 0.0
        %5724 = vmatpush1.msra.mxu0 0.0
        %5725 = vmatprep.subr.mxu0 0.0
        %5726 = vmatpush1.msra.mxu0 0.0
        %5727 = vmatprep.subr.mxu0 0.0
        %5728 = vmatpush1.msra.mxu0 0.0
        %5729 = vmatprep.subr.mxu0 0.0
        %5730 = vmatpush1.msra.mxu0 0.0
        %5731 = vmatprep.subr.mxu0 0.0
        %5732 = vmatpush1.msra.mxu0 0.0
        %5733 = vmatprep.subr.mxu0 0.0
        %5734 = vmatpush1.msra.mxu0 0.0
        %5735 = vmatprep.subr.mxu0 0.0
        %5736 = vmatpush1.msra.mxu0 0.0
        %5737 = vmatprep.subr.mxu0 0.0
        %5738 = vmatpush1.msra.mxu0 0.0
        %5739 = vmatprep.subr.mxu0 0.0
        %5740 = vmatpush1.msra.mxu0 0.0
        %5741 = vmatprep.subr.mxu0 0.0
        %5742 = vmatpush1.msra.mxu0 0.0
        %5743 = vmatprep.subr.mxu0 0.0
        %5744 = vmatpush1.msra.mxu0 0.0
        %5745 = vmatprep.subr.mxu0 0.0
        %5746 = vmatpush1.msra.mxu0 0.0
        %5747 = vmatprep.subr.mxu0 0.0
        %5748 = vmatpush1.msra.mxu0 0.0
        %5749 = vmatprep.subr.mxu0 0.0
        %5750 = vmatpush1.msra.mxu0 0.0
        %5751 = vmatprep.subr.mxu0 0.0
        %5752 = vmatpush1.msra.mxu0 0.0
        %5753 = vmatprep.subr.mxu0 0.0
        %5754 = vmatpush1.msra.mxu0 0.0
        %5755 = vmatprep.subr.mxu0 0.0
        %5756 = vmatpush1.msra.mxu0 0.0
        %5757 = vmatprep.subr.mxu0 0.0
        %5758 = vmatpush1.msra.mxu0 0.0
        %5759 = vmatprep.subr.mxu0 0.0
        %5760 = vmatpush1.msra.mxu0 0.0
        %5761 = vmatprep.subr.mxu0 0.0
        %5762 = vmatpush1.msra.mxu0 0.0
        %5763 = vmatprep.subr.mxu0 0.0
        %5764 = vmatpush1.msra.mxu0 0.0
        %5765 = vmatprep.subr.mxu0 0.0
        %5766 = vmatpush1.msra.mxu0 0.0
        %5767 = vmatprep.mubr.f32.mxu0 0.0
        %5768 = vmatmul.mubr.f32.gmra.mrb[0].mxu0 %v5692
        %v5769 = vpop.f32.mrb[0].mxu0
        %v5770 = vadd.f32 0.0, %v5769
        %v5771 = vpop.f32.mrb[0].mxu0
        %5772 = vmatprep.mubr.f32.mxu0 0.0
        %5773 = vmatmul.mubr.f32.gmra.mrb[0].mxu0 %v5695
        %v5774 = vpop.f32.mrb[0].mxu0
        %v5775 = vadd.f32 0.0, %v5774
        %v5776 = vpop.f32.mrb[0].mxu0
        %5777 = vmatprep.mubr.f32.mxu0 0.0
        %5778 = vmatmul.mubr.f32.gmra.mrb[0].mxu0 %v5698
        %v5779 = vpop.f32.mrb[0].mxu0
        %v5780 = vadd.f32 0.0, %v5779
        %v5781 = vpop.f32.mrb[0].mxu0
        %5782 = vmatprep.mubr.f32.mxu0 0.0
        %5783 = vmatmul.mubr.f32.gmra.mrb[0].mxu0 %v5701
        %v5784 = vpop.f32.mrb[0].mxu0
        %v5785 = vadd.f32 0.0, %v5784
        %v5786 = vpop.f32.mrb[0].mxu0
        %5787 = vdwg.mxu0
        %5792 = vrot.lane.b32.xlu0 %v4737, 32
        %v5793 = vpop.permute.xlu0 %5792
        %5794 = vrot.lane.b32.xlu0 %v4738, 32
        %v5795 = vpop.permute.xlu0 %5794
        %5796 = vrot.lane.b32.xlu0 %v4739, 32
        %v5797 = vpop.permute.xlu0 %5796
        %5798 = vrot.lane.b32.xlu0 %v4740, 32
        %v5799 = vpop.permute.xlu0 %5798
        %v5805 = vsel %vm1018, %v5362, 0
        %v5808 = vsel %vm1018, %v5364, 0
        %v5811 = vsel %vm1018, %v5366, 0
        %v5814 = vsel %vm1018, %v5368, 0
        %5816 = vmatprep.subr.mxu0 0.0
        %5817 = vmatpush1.msra.mxu0 %v5793
        %5818 = vmatprep.subr.mxu0 0.0
        %5819 = vmatpush1.msra.mxu0 %v5795
        %5820 = vmatprep.subr.mxu0 0.0
        %5821 = vmatpush1.msra.mxu0 %v5797
        %5822 = vmatprep.subr.mxu0 0.0
        %5823 = vmatpush1.msra.mxu0 %v5799
        %5824 = vmatprep.subr.mxu0 0.0
        %5825 = vmatpush1.msra.mxu0 0.0
        %5826 = vmatprep.subr.mxu0 0.0
        %5827 = vmatpush1.msra.mxu0 0.0
        %5828 = vmatprep.subr.mxu0 0.0
        %5829 = vmatpush1.msra.mxu0 0.0
        %5830 = vmatprep.subr.mxu0 0.0
        %5831 = vmatpush1.msra.mxu0 0.0
        %5832 = vmatprep.subr.mxu0 0.0
        %5833 = vmatpush1.msra.mxu0 0.0
        %5834 = vmatprep.subr.mxu0 0.0
        %5835 = vmatpush1.msra.mxu0 0.0
        %5836 = vmatprep.subr.mxu0 0.0
        %5837 = vmatpush1.msra.mxu0 0.0
        %5838 = vmatprep.subr.mxu0 0.0
        %5839 = vmatpush1.msra.mxu0 0.0
        %5840 = vmatprep.subr.mxu0 0.0
        %5841 = vmatpush1.msra.mxu0 0.0
        %5842 = vmatprep.subr.mxu0 0.0
        %5843 = vmatpush1.msra.mxu0 0.0
        %5844 = vmatprep.subr.mxu0 0.0
        %5845 = vmatpush1.msra.mxu0 0.0
        %5846 = vmatprep.subr.mxu0 0.0
        %5847 = vmatpush1.msra.mxu0 0.0
        %5848 = vmatprep.subr.mxu0 0.0
        %5849 = vmatpush1.msra.mxu0 0.0
        %5850 = vmatprep.subr.mxu0 0.0
        %5851 = vmatpush1.msra.mxu0 0.0
        %5852 = vmatprep.subr.mxu0 0.0
        %5853 = vmatpush1.msra.mxu0 0.0
        %5854 = vmatprep.subr.mxu0 0.0
        %5855 = vmatpush1.msra.mxu0 0.0
        %5856 = vmatprep.subr.mxu0 0.0
        %5857 = vmatpush1.msra.mxu0 0.0
        %5858 = vmatprep.subr.mxu0 0.0
        %5859 = vmatpush1.msra.mxu0 0.0
        %5860 = vmatprep.subr.mxu0 0.0
        %5861 = vmatpush1.msra.mxu0 0.0
        %5862 = vmatprep.subr.mxu0 0.0
        %5863 = vmatpush1.msra.mxu0 0.0
        %5864 = vmatprep.subr.mxu0 0.0
        %5865 = vmatpush1.msra.mxu0 0.0
        %5866 = vmatprep.subr.mxu0 0.0
        %5867 = vmatpush1.msra.mxu0 0.0
        %5868 = vmatprep.subr.mxu0 0.0
        %5869 = vmatpush1.msra.mxu0 0.0
        %5870 = vmatprep.subr.mxu0 0.0
        %5871 = vmatpush1.msra.mxu0 0.0
        %5872 = vmatprep.subr.mxu0 0.0
        %5873 = vmatpush1.msra.mxu0 0.0
        %5874 = vmatprep.subr.mxu0 0.0
        %5875 = vmatpush1.msra.mxu0 0.0
        %5876 = vmatprep.subr.mxu0 0.0
        %5877 = vmatpush1.msra.mxu0 0.0
        %5878 = vmatprep.subr.mxu0 0.0
        %5879 = vmatpush1.msra.mxu0 0.0
        %5880 = vmatprep.mubr.f32.mxu0 0.0
        %5881 = vmatmul.mubr.f32.gmra.mrb[0].mxu0 %v5805
        %v5882 = vpop.f32.mrb[0].mxu0
        %v5883 = vadd.f32 0.0, %v5882
        %v5884 = vpop.f32.mrb[0].mxu0
        %5885 = vmatprep.mubr.f32.mxu0 0.0
        %5886 = vmatmul.mubr.f32.gmra.mrb[0].mxu0 %v5808
        %v5887 = vpop.f32.mrb[0].mxu0
        %v5888 = vadd.f32 0.0, %v5887
        %v5889 = vpop.f32.mrb[0].mxu0
        %5890 = vmatprep.mubr.f32.mxu0 0.0
        %5891 = vmatmul.mubr.f32.gmra.mrb[0].mxu0 %v5811
        %v5892 = vpop.f32.mrb[0].mxu0
        %v5893 = vadd.f32 0.0, %v5892
        %v5894 = vpop.f32.mrb[0].mxu0
        %5895 = vmatprep.mubr.f32.mxu0 0.0
        %5896 = vmatmul.mubr.f32.gmra.mrb[0].mxu0 %v5814
        %v5897 = vpop.f32.mrb[0].mxu0
        %v5898 = vadd.f32 0.0, %v5897
        %v5899 = vpop.f32.mrb[0].mxu0
        %5900 = vdwg.mxu0
        %v5901 = vmul.f32 %v5544, %v5418
        %v5902 = vmul.f32 %v5549, %v5420
        %v5903 = vmul.f32 %v5554, %v5422
        %v5904 = vmul.f32 %v5559, %v5424
        %v5905 = vmul.f32 %v5657, %v5426
        %v5906 = vmul.f32 %v5662, %v5428
        %v5907 = vmul.f32 %v5667, %v5430
        %v5908 = vmul.f32 %v5672, %v5432
        %v5909 = vmul.f32 %v5770, %v5434
        %v5910 = vmul.f32 %v5775, %v5436
        %v5911 = vmul.f32 %v5780, %v5438
        %v5912 = vmul.f32 %v5785, %v5440
        %v5913 = vmul.f32 %v5883, %v5442
        %v5914 = vmul.f32 %v5888, %v5444
        %v5915 = vmul.f32 %v5893, %v5446
        %v5916 = vmul.f32 %v5898, %v5448
        %5933 = vrot.lane.b32.xlu0 %v5901, 96
        %v5934 = vpop.permute.xlu0 %5933
        %5935 = vrot.lane.b32.xlu0 %v5902, 96
        %v5936 = vpop.permute.xlu0 %5935
        %5937 = vrot.lane.b32.xlu0 %v5903, 96
        %v5938 = vpop.permute.xlu0 %5937
        %5939 = vrot.lane.b32.xlu0 %v5904, 96
        %v5940 = vpop.permute.xlu0 %5939
        %5941 = vrot.lane.b32.xlu0 %v5905, 96
        %v5942 = vpop.permute.xlu0 %5941
        %5943 = vrot.lane.b32.xlu0 %v5906, 96
        %v5944 = vpop.permute.xlu0 %5943
        %5945 = vrot.lane.b32.xlu0 %v5907, 96
        %v5946 = vpop.permute.xlu0 %5945
        %5947 = vrot.lane.b32.xlu0 %v5908, 96
        %v5948 = vpop.permute.xlu0 %5947
        %5949 = vrot.lane.b32.xlu0 %v5909, 96
        %v5950 = vpop.permute.xlu0 %5949
        %5951 = vrot.lane.b32.xlu0 %v5910, 96
        %v5952 = vpop.permute.xlu0 %5951
        %5953 = vrot.lane.b32.xlu0 %v5911, 96
        %v5954 = vpop.permute.xlu0 %5953
        %5955 = vrot.lane.b32.xlu0 %v5912, 96
        %v5956 = vpop.permute.xlu0 %5955
        %5957 = vrot.lane.b32.xlu0 %v5913, 96
        %v5958 = vpop.permute.xlu0 %5957
        %5959 = vrot.lane.b32.xlu0 %v5914, 96
        %v5960 = vpop.permute.xlu0 %5959
        %5961 = vrot.lane.b32.xlu0 %v5915, 96
        %v5962 = vpop.permute.xlu0 %5961
        %5963 = vrot.lane.b32.xlu0 %v5916, 96
        %v5964 = vpop.permute.xlu0 %5963
        %vm5981 = vcmask 1048320
        %5982 = vst.msk [vmem:[#allocation3] sm:$0xff] %vm5981, %v5934
        %5983 = vst.msk [vmem:[#allocation3 + $0x8] sm:$0xff] %vm5981, %v5936
        %5984 = vst.msk [vmem:[#allocation3 + $0x10] sm:$0xff] %vm5981, %v5938
        %5985 = vst.msk [vmem:[#allocation3 + $0x18] sm:$0xff] %vm5981, %v5940
        %5986 = vst.msk [vmem:[#allocation3 + $0x20] sm:$0xff] %vm5981, %v5942
        %5987 = vst.msk [vmem:[#allocation3 + $0x28] sm:$0xff] %vm5981, %v5944
        %5988 = vst.msk [vmem:[#allocation3 + $0x30] sm:$0xff] %vm5981, %v5946
        %5989 = vst.msk [vmem:[#allocation3 + $0x38] sm:$0xff] %vm5981, %v5948
        %5990 = vst.msk [vmem:[#allocation3 + $0x40] sm:$0xff] %vm5981, %v5950
        %5991 = vst.msk [vmem:[#allocation3 + $0x48] sm:$0xff] %vm5981, %v5952
        %5992 = vst.msk [vmem:[#allocation3 + $0x50] sm:$0xff] %vm5981, %v5954
        %5993 = vst.msk [vmem:[#allocation3 + $0x58] sm:$0xff] %vm5981, %v5956
        %5994 = vst.msk [vmem:[#allocation3 + $0x60] sm:$0xff] %vm5981, %v5958
        %5995 = vst.msk [vmem:[#allocation3 + $0x68] sm:$0xff] %vm5981, %v5960
        %5996 = vst.msk [vmem:[#allocation3 + $0x70] sm:$0xff] %vm5981, %v5962
        %5997 = vst.msk [vmem:[#allocation3 + $0x78] sm:$0xff] %vm5981, %v5964
        %v5998 = vld [vmem:[#allocation3] sm:$0xff]
        %v5999 = vld [vmem:[#allocation3 + $0x8] sm:$0xff]
        %v6000 = vld [vmem:[#allocation3 + $0x10] sm:$0xff]
        %v6001 = vld [vmem:[#allocation3 + $0x18] sm:$0xff]
        %v6002 = vld [vmem:[#allocation3 + $0x20] sm:$0xff]
        %v6003 = vld [vmem:[#allocation3 + $0x28] sm:$0xff]
        %v6004 = vld [vmem:[#allocation3 + $0x30] sm:$0xff]
        %v6005 = vld [vmem:[#allocation3 + $0x38] sm:$0xff]
        %v6006 = vld [vmem:[#allocation3 + $0x40] sm:$0xff]
        %v6007 = vld [vmem:[#allocation3 + $0x48] sm:$0xff]
        %v6008 = vld [vmem:[#allocation3 + $0x50] sm:$0xff]
        %v6009 = vld [vmem:[#allocation3 + $0x58] sm:$0xff]
        %v6010 = vld [vmem:[#allocation3 + $0x60] sm:$0xff]
        %v6011 = vld [vmem:[#allocation3 + $0x68] sm:$0xff]
        %v6012 = vld [vmem:[#allocation3 + $0x70] sm:$0xff]
        %v6013 = vld [vmem:[#allocation3 + $0x78] sm:$0xff]
        %v6014 = vld [vmem:[#allocation9] sm:$0xff]
        %v6015 = vld [vmem:[#allocation9 + $0x8] sm:$0xff]
        %v6016 = vld [vmem:[#allocation9 + $0x10] sm:$0xff]
        %v6017 = vld [vmem:[#allocation9 + $0x18] sm:$0xff]
        %v6018 = vld [vmem:[#allocation9 + $0x20] sm:$0xff]
        %v6019 = vld [vmem:[#allocation9 + $0x28] sm:$0xff]
        %v6020 = vld [vmem:[#allocation9 + $0x30] sm:$0xff]
        %v6021 = vld [vmem:[#allocation9 + $0x38] sm:$0xff]
        %v6022 = vld [vmem:[#allocation9 + $0x40] sm:$0xff]
        %v6023 = vld [vmem:[#allocation9 + $0x48] sm:$0xff]
        %v6024 = vld [vmem:[#allocation9 + $0x50] sm:$0xff]
        %v6025 = vld [vmem:[#allocation9 + $0x58] sm:$0xff]
        %v6026 = vld [vmem:[#allocation9 + $0x60] sm:$0xff]
        %v6027 = vld [vmem:[#allocation9 + $0x68] sm:$0xff]
        %v6028 = vld [vmem:[#allocation9 + $0x70] sm:$0xff]
        %v6029 = vld [vmem:[#allocation9 + $0x78] sm:$0xff]
        %v6030 = vld [vmem:[%s4] sm:$0x1]
        %v6032 = vlaneseq
        %v6033 = vshrl.u32 %v6032, 7
        %v6034 = vsub.s32 0, %v6033
        %v6035 = vrot.slane %v6030, %v6034
        %6037 = vmatprep.subr.mxu0 0.0
        %6038 = vmatpush1.msra.mxu0 %v6014
        %6039 = vmatprep.subr.mxu0 0.0
        %6040 = vmatpush1.msra.mxu0 %v6015
        %6041 = vmatprep.subr.mxu0 0.0
        %6042 = vmatpush1.msra.mxu0 %v6016
        %6043 = vmatprep.subr.mxu0 0.0
        %6044 = vmatpush1.msra.mxu0 %v6017
        %6045 = vmatprep.subr.mxu0 0.0
        %6046 = vmatpush1.msra.mxu0 %v6018
        %6047 = vmatprep.subr.mxu0 0.0
        %6048 = vmatpush1.msra.mxu0 %v6019
        %6049 = vmatprep.subr.mxu0 0.0
        %6050 = vmatpush1.msra.mxu0 %v6020
        %6051 = vmatprep.subr.mxu0 0.0
        %6052 = vmatpush1.msra.mxu0 %v6021
        %6053 = vmatprep.subr.mxu0 0.0
        %6054 = vmatpush1.msra.mxu0 %v6022
        %6055 = vmatprep.subr.mxu0 0.0
        %6056 = vmatpush1.msra.mxu0 %v6023
        %6057 = vmatprep.subr.mxu0 0.0
        %6058 = vmatpush1.msra.mxu0 %v6024
        %6059 = vmatprep.subr.mxu0 0.0
        %6060 = vmatpush1.msra.mxu0 %v6025
        %6061 = vmatprep.subr.mxu0 0.0
        %6062 = vmatpush1.msra.mxu0 %v6026
        %6063 = vmatprep.subr.mxu0 0.0
        %6064 = vmatpush1.msra.mxu0 %v6027
        %6065 = vmatprep.subr.mxu0 0.0
        %6066 = vmatpush1.msra.mxu0 %v6028
        %6067 = vmatprep.subr.mxu0 0.0
        %6068 = vmatpush1.msra.mxu0 %v6029
        %6069 = vmatprep.subr.mxu0 0.0
        %6070 = vmatpush1.msra.mxu0 0.0
        %6071 = vmatprep.subr.mxu0 0.0
        %6072 = vmatpush1.msra.mxu0 0.0
        %6073 = vmatprep.subr.mxu0 0.0
        %6074 = vmatpush1.msra.mxu0 0.0
        %6075 = vmatprep.subr.mxu0 0.0
        %6076 = vmatpush1.msra.mxu0 0.0
        %6077 = vmatprep.subr.mxu0 0.0
        %6078 = vmatpush1.msra.mxu0 0.0
        %6079 = vmatprep.subr.mxu0 0.0
        %6080 = vmatpush1.msra.mxu0 0.0
        %6081 = vmatprep.subr.mxu0 0.0
        %6082 = vmatpush1.msra.mxu0 0.0
        %6083 = vmatprep.subr.mxu0 0.0
        %6084 = vmatpush1.msra.mxu0 0.0
        %6085 = vmatprep.subr.mxu0 0.0
        %6086 = vmatpush1.msra.mxu0 0.0
        %6087 = vmatprep.subr.mxu0 0.0
        %6088 = vmatpush1.msra.mxu0 0.0
        %6089 = vmatprep.subr.mxu0 0.0
        %6090 = vmatpush1.msra.mxu0 0.0
        %6091 = vmatprep.subr.mxu0 0.0
        %6092 = vmatpush1.msra.mxu0 0.0
        %6093 = vmatprep.subr.mxu0 0.0
        %6094 = vmatpush1.msra.mxu0 0.0
        %6095 = vmatprep.subr.mxu0 0.0
        %6096 = vmatpush1.msra.mxu0 0.0
        %6097 = vmatprep.subr.mxu0 0.0
        %6098 = vmatpush1.msra.mxu0 0.0
        %6099 = vmatprep.subr.mxu0 0.0
        %6100 = vmatpush1.msra.mxu0 0.0
        %6101 = vmatprep.mubr.f32.mxu0 0.0
        %6102 = vmatmul.mubr.f32.gmra.mrb[0].mxu0 %v5998
        %v6103 = vpop.f32.mrb[0].mxu0
        %v6104 = vadd.f32 %v6035, %v6103
        %v6105 = vpop.f32.mrb[0].mxu0
        %6106 = vmatprep.mubr.f32.mxu0 0.0
        %6107 = vmatmul.mubr.f32.gmra.mrb[0].mxu0 %v5999
        %v6108 = vpop.f32.mrb[0].mxu0
        %v6109 = vadd.f32 %v6035, %v6108
        %v6110 = vpop.f32.mrb[0].mxu0
        %6111 = vmatprep.mubr.f32.mxu0 0.0
        %6112 = vmatmul.mubr.f32.gmra.mrb[0].mxu0 %v6000
        %v6113 = vpop.f32.mrb[0].mxu0
        %v6114 = vadd.f32 %v6035, %v6113
        %v6115 = vpop.f32.mrb[0].mxu0
        %6116 = vmatprep.mubr.f32.mxu0 0.0
        %6117 = vmatmul.mubr.f32.gmra.mrb[0].mxu0 %v6001
        %v6118 = vpop.f32.mrb[0].mxu0
        %v6119 = vadd.f32 %v6035, %v6118
        %v6120 = vpop.f32.mrb[0].mxu0
        %6121 = vmatprep.mubr.f32.mxu0 0.0
        %6122 = vmatmul.mubr.f32.gmra.mrb[0].mxu0 %v6002
        %v6123 = vpop.f32.mrb[0].mxu0
        %v6124 = vadd.f32 %v6035, %v6123
        %v6125 = vpop.f32.mrb[0].mxu0
        %6126 = vmatprep.mubr.f32.mxu0 0.0
        %6127 = vmatmul.mubr.f32.gmra.mrb[0].mxu0 %v6003
        %v6128 = vpop.f32.mrb[0].mxu0
        %v6129 = vadd.f32 %v6035, %v6128
        %v6130 = vpop.f32.mrb[0].mxu0
        %6131 = vmatprep.mubr.f32.mxu0 0.0
        %6132 = vmatmul.mubr.f32.gmra.mrb[0].mxu0 %v6004
        %v6133 = vpop.f32.mrb[0].mxu0
        %v6134 = vadd.f32 %v6035, %v6133
        %v6135 = vpop.f32.mrb[0].mxu0
        %6136 = vmatprep.mubr.f32.mxu0 0.0
        %6137 = vmatmul.mubr.f32.gmra.mrb[0].mxu0 %v6005
        %v6138 = vpop.f32.mrb[0].mxu0
        %v6139 = vadd.f32 %v6035, %v6138
        %v6140 = vpop.f32.mrb[0].mxu0
        %6141 = vmatprep.mubr.f32.mxu0 0.0
        %6142 = vmatmul.mubr.f32.gmra.mrb[0].mxu0 %v6006
        %v6143 = vpop.f32.mrb[0].mxu0
        %v6144 = vadd.f32 %v6035, %v6143
        %v6145 = vpop.f32.mrb[0].mxu0
        %6146 = vmatprep.mubr.f32.mxu0 0.0
        %6147 = vmatmul.mubr.f32.gmra.mrb[0].mxu0 %v6007
        %v6148 = vpop.f32.mrb[0].mxu0
        %v6149 = vadd.f32 %v6035, %v6148
        %v6150 = vpop.f32.mrb[0].mxu0
        %6151 = vmatprep.mubr.f32.mxu0 0.0
        %6152 = vmatmul.mubr.f32.gmra.mrb[0].mxu0 %v6008
        %v6153 = vpop.f32.mrb[0].mxu0
        %v6154 = vadd.f32 %v6035, %v6153
        %v6155 = vpop.f32.mrb[0].mxu0
        %6156 = vmatprep.mubr.f32.mxu0 0.0
        %6157 = vmatmul.mubr.f32.gmra.mrb[0].mxu0 %v6009
        %v6158 = vpop.f32.mrb[0].mxu0
        %v6159 = vadd.f32 %v6035, %v6158
        %v6160 = vpop.f32.mrb[0].mxu0
        %6161 = vmatprep.mubr.f32.mxu0 0.0
        %6162 = vmatmul.mubr.f32.gmra.mrb[0].mxu0 %v6010
        %v6163 = vpop.f32.mrb[0].mxu0
        %v6164 = vadd.f32 %v6035, %v6163
        %v6165 = vpop.f32.mrb[0].mxu0
        %6166 = vmatprep.mubr.f32.mxu0 0.0
        %6167 = vmatmul.mubr.f32.gmra.mrb[0].mxu0 %v6011
        %v6168 = vpop.f32.mrb[0].mxu0
        %v6169 = vadd.f32 %v6035, %v6168
        %v6170 = vpop.f32.mrb[0].mxu0
        %6171 = vmatprep.mubr.f32.mxu0 0.0
        %6172 = vmatmul.mubr.f32.gmra.mrb[0].mxu0 %v6012
        %v6173 = vpop.f32.mrb[0].mxu0
        %v6174 = vadd.f32 %v6035, %v6173
        %v6175 = vpop.f32.mrb[0].mxu0
        %6176 = vmatprep.mubr.f32.mxu0 0.0
        %6177 = vmatmul.mubr.f32.gmra.mrb[0].mxu0 %v6013
        %v6178 = vpop.f32.mrb[0].mxu0
        %v6179 = vadd.f32 %v6035, %v6178
        %v6180 = vpop.f32.mrb[0].mxu0
        %6181 = vdwg.mxu0
        %v6182 = vadd.f32 %v520, %v6104
        %v6183 = vadd.f32 %v521, %v6109
        %v6184 = vadd.f32 %v522, %v6114
        %v6185 = vadd.f32 %v523, %v6119
        %v6186 = vadd.f32 %v524, %v6124
        %v6187 = vadd.f32 %v525, %v6129
        %v6188 = vadd.f32 %v526, %v6134
        %v6189 = vadd.f32 %v527, %v6139
        %v6190 = vadd.f32 %v528, %v6144
        %v6191 = vadd.f32 %v529, %v6149
        %v6192 = vadd.f32 %v530, %v6154
        %v6193 = vadd.f32 %v531, %v6159
        %v6194 = vadd.f32 %v532, %v6164
        %v6195 = vadd.f32 %v533, %v6169
        %v6196 = vadd.f32 %v534, %v6174
        %v6197 = vadd.f32 %v535, %v6179
        %v6198 = vld [vmem:[%s5] sm:$0x1]
        %v6199 = vld [vmem:[%s6] sm:$0x1]
        %6200 = vadd.xlane.f32.xlu0 %v6182
        %v6201 = vpop.xlane.xlu0 %6200
        %6202 = vadd.xlane.f32.xlu0 %v6183
        %v6203 = vpop.xlane.xlu0 %6202
        %6204 = vadd.xlane.f32.xlu0 %v6184
        %v6205 = vpop.xlane.xlu0 %6204
        %6206 = vadd.xlane.f32.xlu0 %v6185
        %v6207 = vpop.xlane.xlu0 %6206
        %6208 = vadd.xlane.f32.xlu0 %v6186
        %v6209 = vpop.xlane.xlu0 %6208
        %6210 = vadd.xlane.f32.xlu0 %v6187
        %v6211 = vpop.xlane.xlu0 %6210
        %6212 = vadd.xlane.f32.xlu0 %v6188
        %v6213 = vpop.xlane.xlu0 %6212
        %6214 = vadd.xlane.f32.xlu0 %v6189
        %v6215 = vpop.xlane.xlu0 %6214
        %6216 = vadd.xlane.f32.xlu0 %v6190
        %v6217 = vpop.xlane.xlu0 %6216
        %6218 = vadd.xlane.f32.xlu0 %v6191
        %v6219 = vpop.xlane.xlu0 %6218
        %6220 = vadd.xlane.f32.xlu0 %v6192
        %v6221 = vpop.xlane.xlu0 %6220
        %6222 = vadd.xlane.f32.xlu0 %v6193
        %v6223 = vpop.xlane.xlu0 %6222
        %6224 = vadd.xlane.f32.xlu0 %v6194
        %v6225 = vpop.xlane.xlu0 %6224
        %6226 = vadd.xlane.f32.xlu0 %v6195
        %v6227 = vpop.xlane.xlu0 %6226
        %6228 = vadd.xlane.f32.xlu0 %v6196
        %v6229 = vpop.xlane.xlu0 %6228
        %6230 = vadd.xlane.f32.xlu0 %v6197
        %v6231 = vpop.xlane.xlu0 %6230
        %v6232 = vrcp.pop 128.0
        %v6233 = vmul.f32 %v6201, %v6232
        %v6234 = vmul.f32 %v6203, %v6232
        %v6235 = vmul.f32 %v6205, %v6232
        %v6236 = vmul.f32 %v6207, %v6232
        %v6237 = vmul.f32 %v6209, %v6232
        %v6238 = vmul.f32 %v6211, %v6232
        %v6239 = vmul.f32 %v6213, %v6232
        %v6240 = vmul.f32 %v6215, %v6232
        %v6241 = vmul.f32 %v6217, %v6232
        %v6242 = vmul.f32 %v6219, %v6232
        %v6243 = vmul.f32 %v6221, %v6232
        %v6244 = vmul.f32 %v6223, %v6232
        %v6245 = vmul.f32 %v6225, %v6232
        %v6246 = vmul.f32 %v6227, %v6232
        %v6247 = vmul.f32 %v6229, %v6232
        %v6248 = vmul.f32 %v6231, %v6232
        %v6249 = vsub.f32 %v6182, %v6233
        %v6250 = vsub.f32 %v6183, %v6234
        %v6251 = vsub.f32 %v6184, %v6235
        %v6252 = vsub.f32 %v6185, %v6236
        %v6253 = vsub.f32 %v6186, %v6237
        %v6254 = vsub.f32 %v6187, %v6238
        %v6255 = vsub.f32 %v6188, %v6239
        %v6256 = vsub.f32 %v6189, %v6240
        %v6257 = vsub.f32 %v6190, %v6241
        %v6258 = vsub.f32 %v6191, %v6242
        %v6259 = vsub.f32 %v6192, %v6243
        %v6260 = vsub.f32 %v6193, %v6244
        %v6261 = vsub.f32 %v6194, %v6245
        %v6262 = vsub.f32 %v6195, %v6246
        %v6263 = vsub.f32 %v6196, %v6247
        %v6264 = vsub.f32 %v6197, %v6248
        %v6265 = vmul.f32 %v6249, %v6249
        %v6266 = vmul.f32 %v6250, %v6250
        %v6267 = vmul.f32 %v6251, %v6251
        %v6268 = vmul.f32 %v6252, %v6252
        %v6269 = vmul.f32 %v6253, %v6253
        %v6270 = vmul.f32 %v6254, %v6254
        %v6271 = vmul.f32 %v6255, %v6255
        %v6272 = vmul.f32 %v6256, %v6256
        %v6273 = vmul.f32 %v6257, %v6257
        %v6274 = vmul.f32 %v6258, %v6258
        %v6275 = vmul.f32 %v6259, %v6259
        %v6276 = vmul.f32 %v6260, %v6260
        %v6277 = vmul.f32 %v6261, %v6261
        %v6278 = vmul.f32 %v6262, %v6262
        %v6279 = vmul.f32 %v6263, %v6263
        %v6280 = vmul.f32 %v6264, %v6264
        %6281 = vadd.xlane.f32.xlu0 %v6265
        %v6282 = vpop.xlane.xlu0 %6281
        %6283 = vadd.xlane.f32.xlu0 %v6266
        %v6284 = vpop.xlane.xlu0 %6283
        %6285 = vadd.xlane.f32.xlu0 %v6267
        %v6286 = vpop.xlane.xlu0 %6285
        %6287 = vadd.xlane.f32.xlu0 %v6268
        %v6288 = vpop.xlane.xlu0 %6287
        %6289 = vadd.xlane.f32.xlu0 %v6269
        %v6290 = vpop.xlane.xlu0 %6289
        %6291 = vadd.xlane.f32.xlu0 %v6270
        %v6292 = vpop.xlane.xlu0 %6291
        %6293 = vadd.xlane.f32.xlu0 %v6271
        %v6294 = vpop.xlane.xlu0 %6293
        %6295 = vadd.xlane.f32.xlu0 %v6272
        %v6296 = vpop.xlane.xlu0 %6295
        %6297 = vadd.xlane.f32.xlu0 %v6273
        %v6298 = vpop.xlane.xlu0 %6297
        %6299 = vadd.xlane.f32.xlu0 %v6274
        %v6300 = vpop.xlane.xlu0 %6299
        %6301 = vadd.xlane.f32.xlu0 %v6275
        %v6302 = vpop.xlane.xlu0 %6301
        %6303 = vadd.xlane.f32.xlu0 %v6276
        %v6304 = vpop.xlane.xlu0 %6303
        %6305 = vadd.xlane.f32.xlu0 %v6277
        %v6306 = vpop.xlane.xlu0 %6305
        %6307 = vadd.xlane.f32.xlu0 %v6278
        %v6308 = vpop.xlane.xlu0 %6307
        %6309 = vadd.xlane.f32.xlu0 %v6279
        %v6310 = vpop.xlane.xlu0 %6309
        %6311 = vadd.xlane.f32.xlu0 %v6280
        %v6312 = vpop.xlane.xlu0 %6311
        %v6313 = vmul.f32 %v6282, %v6232
        %v6314 = vmul.f32 %v6284, %v6232
        %v6315 = vmul.f32 %v6286, %v6232
        %v6316 = vmul.f32 %v6288, %v6232
        %v6317 = vmul.f32 %v6290, %v6232
        %v6318 = vmul.f32 %v6292, %v6232
        %v6319 = vmul.f32 %v6294, %v6232
        %v6320 = vmul.f32 %v6296, %v6232
        %v6321 = vmul.f32 %v6298, %v6232
        %v6322 = vmul.f32 %v6300, %v6232
        %v6323 = vmul.f32 %v6302, %v6232
        %v6324 = vmul.f32 %v6304, %v6232
        %v6325 = vmul.f32 %v6306, %v6232
        %v6326 = vmul.f32 %v6308, %v6232
        %v6327 = vmul.f32 %v6310, %v6232
        %v6328 = vmul.f32 %v6312, %v6232
        %v6329 = vadd.f32 %v6313, 1e-05
        %v6330 = vadd.f32 %v6314, 1e-05
        %v6331 = vadd.f32 %v6315, 1e-05
        %v6332 = vadd.f32 %v6316, 1e-05
        %v6333 = vadd.f32 %v6317, 1e-05
        %v6334 = vadd.f32 %v6318, 1e-05
        %v6335 = vadd.f32 %v6319, 1e-05
        %v6336 = vadd.f32 %v6320, 1e-05
        %v6337 = vadd.f32 %v6321, 1e-05
        %v6338 = vadd.f32 %v6322, 1e-05
        %v6339 = vadd.f32 %v6323, 1e-05
        %v6340 = vadd.f32 %v6324, 1e-05
        %v6341 = vadd.f32 %v6325, 1e-05
        %v6342 = vadd.f32 %v6326, 1e-05
        %v6343 = vadd.f32 %v6327, 1e-05
        %v6344 = vadd.f32 %v6328, 1e-05
        %v6345 = vrsqrt.pop %v6329
        %v6346 = vrsqrt.pop %v6330
        %v6347 = vrsqrt.pop %v6331
        %v6348 = vrsqrt.pop %v6332
        %v6349 = vrsqrt.pop %v6333
        %v6350 = vrsqrt.pop %v6334
        %v6351 = vrsqrt.pop %v6335
        %v6352 = vrsqrt.pop %v6336
        %v6353 = vrsqrt.pop %v6337
        %v6354 = vrsqrt.pop %v6338
        %v6355 = vrsqrt.pop %v6339
        %v6356 = vrsqrt.pop %v6340
        %v6357 = vrsqrt.pop %v6341
        %v6358 = vrsqrt.pop %v6342
        %v6359 = vrsqrt.pop %v6343
        %v6360 = vrsqrt.pop %v6344
        %v6361 = vmul.f32 %v6249, %v6345
        %v6362 = vmul.f32 %v6250, %v6346
        %v6363 = vmul.f32 %v6251, %v6347
        %v6364 = vmul.f32 %v6252, %v6348
        %v6365 = vmul.f32 %v6253, %v6349
        %v6366 = vmul.f32 %v6254, %v6350
        %v6367 = vmul.f32 %v6255, %v6351
        %v6368 = vmul.f32 %v6256, %v6352
        %v6369 = vmul.f32 %v6257, %v6353
        %v6370 = vmul.f32 %v6258, %v6354
        %v6371 = vmul.f32 %v6259, %v6355
        %v6372 = vmul.f32 %v6260, %v6356
        %v6373 = vmul.f32 %v6261, %v6357
        %v6374 = vmul.f32 %v6262, %v6358
        %v6375 = vmul.f32 %v6263, %v6359
        %v6376 = vmul.f32 %v6264, %v6360
        %v6378 = vlaneseq
        %v6379 = vshrl.u32 %v6378, 7
        %v6380 = vsub.s32 0, %v6379
        %v6381 = vrot.slane %v6198, %v6380
        %v6383 = vmul.f32 %v6361, %v6381
        %v6384 = vmul.f32 %v6362, %v6381
        %v6385 = vmul.f32 %v6363, %v6381
        %v6386 = vmul.f32 %v6364, %v6381
        %v6387 = vmul.f32 %v6365, %v6381
        %v6388 = vmul.f32 %v6366, %v6381
        %v6389 = vmul.f32 %v6367, %v6381
        %v6390 = vmul.f32 %v6368, %v6381
        %v6391 = vmul.f32 %v6369, %v6381
        %v6392 = vmul.f32 %v6370, %v6381
        %v6393 = vmul.f32 %v6371, %v6381
        %v6394 = vmul.f32 %v6372, %v6381
        %v6395 = vmul.f32 %v6373, %v6381
        %v6396 = vmul.f32 %v6374, %v6381
        %v6397 = vmul.f32 %v6375, %v6381
        %v6398 = vmul.f32 %v6376, %v6381
        %v6400 = vlaneseq
        %v6401 = vshrl.u32 %v6400, 7
        %v6402 = vsub.s32 0, %v6401
        %v6403 = vrot.slane %v6199, %v6402
        %v6405 = vadd.f32 %v6383, %v6403
        %v6406 = vadd.f32 %v6384, %v6403
        %v6407 = vadd.f32 %v6385, %v6403
        %v6408 = vadd.f32 %v6386, %v6403
        %v6409 = vadd.f32 %v6387, %v6403
        %v6410 = vadd.f32 %v6388, %v6403
        %v6411 = vadd.f32 %v6389, %v6403
        %v6412 = vadd.f32 %v6390, %v6403
        %v6413 = vadd.f32 %v6391, %v6403
        %v6414 = vadd.f32 %v6392, %v6403
        %v6415 = vadd.f32 %v6393, %v6403
        %v6416 = vadd.f32 %v6394, %v6403
        %v6417 = vadd.f32 %v6395, %v6403
        %v6418 = vadd.f32 %v6396, %v6403
        %v6419 = vadd.f32 %v6397, %v6403
        %v6420 = vadd.f32 %v6398, %v6403
        %v6421 = vld [vmem:[#allocation10] sm:$0xff]
        %v6422 = vld [vmem:[#allocation10 + $0x8] sm:$0xff]
        %v6423 = vld [vmem:[#allocation10 + $0x10] sm:$0xff]
        %v6424 = vld [vmem:[#allocation10 + $0x18] sm:$0xff]
        %v6425 = vld [vmem:[#allocation10 + $0x20] sm:$0xff]
        %v6426 = vld [vmem:[#allocation10 + $0x28] sm:$0xff]
        %v6427 = vld [vmem:[#allocation10 + $0x30] sm:$0xff]
        %v6428 = vld [vmem:[#allocation10 + $0x38] sm:$0xff]
        %v6429 = vld [vmem:[#allocation10 + $0x40] sm:$0xff]
        %v6430 = vld [vmem:[#allocation10 + $0x48] sm:$0xff]
        %v6431 = vld [vmem:[#allocation10 + $0x50] sm:$0xff]
        %v6432 = vld [vmem:[#allocation10 + $0x58] sm:$0xff]
        %v6433 = vld [vmem:[#allocation10 + $0x60] sm:$0xff]
        %v6434 = vld [vmem:[#allocation10 + $0x68] sm:$0xff]
        %v6435 = vld [vmem:[#allocation10 + $0x70] sm:$0xff]
        %v6436 = vld [vmem:[#allocation10 + $0x78] sm:$0xff]
        %v6437 = vld [vmem:[#allocation10 + $0x80] sm:$0xff]
        %v6438 = vld [vmem:[#allocation10 + $0x88] sm:$0xff]
        %v6439 = vld [vmem:[#allocation10 + $0x90] sm:$0xff]
        %v6440 = vld [vmem:[#allocation10 + $0x98] sm:$0xff]
        %v6441 = vld [vmem:[#allocation10 + $0xa0] sm:$0xff]
        %v6442 = vld [vmem:[#allocation10 + $0xa8] sm:$0xff]
        %v6443 = vld [vmem:[#allocation10 + $0xb0] sm:$0xff]
        %v6444 = vld [vmem:[#allocation10 + $0xb8] sm:$0xff]
        %v6445 = vld [vmem:[#allocation10 + $0xc0] sm:$0xff]
        %v6446 = vld [vmem:[#allocation10 + $0xc8] sm:$0xff]
        %v6447 = vld [vmem:[#allocation10 + $0xd0] sm:$0xff]
        %v6448 = vld [vmem:[#allocation10 + $0xd8] sm:$0xff]
        %v6449 = vld [vmem:[#allocation10 + $0xe0] sm:$0xff]
        %v6450 = vld [vmem:[#allocation10 + $0xe8] sm:$0xff]
        %v6451 = vld [vmem:[#allocation10 + $0xf0] sm:$0xff]
        %v6452 = vld [vmem:[#allocation10 + $0xf8] sm:$0xff]
        %v6453 = vld [vmem:[#allocation10 + $0x100] sm:$0xff]
        %v6454 = vld [vmem:[#allocation10 + $0x108] sm:$0xff]
        %v6455 = vld [vmem:[#allocation10 + $0x110] sm:$0xff]
        %v6456 = vld [vmem:[#allocation10 + $0x118] sm:$0xff]
        %v6457 = vld [vmem:[#allocation10 + $0x120] sm:$0xff]
        %v6458 = vld [vmem:[#allocation10 + $0x128] sm:$0xff]
        %v6459 = vld [vmem:[#allocation10 + $0x130] sm:$0xff]
        %v6460 = vld [vmem:[#allocation10 + $0x138] sm:$0xff]
        %v6461 = vld [vmem:[#allocation10 + $0x140] sm:$0xff]
        %v6462 = vld [vmem:[#allocation10 + $0x148] sm:$0xff]
        %v6463 = vld [vmem:[#allocation10 + $0x150] sm:$0xff]
        %v6464 = vld [vmem:[#allocation10 + $0x158] sm:$0xff]
        %v6465 = vld [vmem:[#allocation10 + $0x160] sm:$0xff]
        %v6466 = vld [vmem:[#allocation10 + $0x168] sm:$0xff]
        %v6467 = vld [vmem:[#allocation10 + $0x170] sm:$0xff]
        %v6468 = vld [vmem:[#allocation10 + $0x178] sm:$0xff]
        %v6469 = vld [vmem:[#allocation10 + $0x180] sm:$0xff]
        %v6470 = vld [vmem:[#allocation10 + $0x188] sm:$0xff]
        %v6471 = vld [vmem:[#allocation10 + $0x190] sm:$0xff]
        %v6472 = vld [vmem:[#allocation10 + $0x198] sm:$0xff]
        %v6473 = vld [vmem:[#allocation10 + $0x1a0] sm:$0xff]
        %v6474 = vld [vmem:[#allocation10 + $0x1a8] sm:$0xff]
        %v6475 = vld [vmem:[#allocation10 + $0x1b0] sm:$0xff]
        %v6476 = vld [vmem:[#allocation10 + $0x1b8] sm:$0xff]
        %v6477 = vld [vmem:[#allocation10 + $0x1c0] sm:$0xff]
        %v6478 = vld [vmem:[#allocation10 + $0x1c8] sm:$0xff]
        %v6479 = vld [vmem:[#allocation10 + $0x1d0] sm:$0xff]
        %v6480 = vld [vmem:[#allocation10 + $0x1d8] sm:$0xff]
        %v6481 = vld [vmem:[#allocation10 + $0x1e0] sm:$0xff]
        %v6482 = vld [vmem:[#allocation10 + $0x1e8] sm:$0xff]
        %v6483 = vld [vmem:[#allocation10 + $0x1f0] sm:$0xff]
        %v6484 = vld [vmem:[#allocation10 + $0x1f8] sm:$0xff]
        %v6485 = vld [vmem:[%s8] sm:$0xf]
        %v6487 = vlaneseq
        %v6488 = vshrl.u32 %v6487, 7
        %v6489 = vsub.s32 0, %v6488
        %v6490 = vrot.slane %v6485, %v6489
        %v6491 = vlaneseq
        %v6492 = vshrl.u32 %v6491, 7
        %v6493 = vsub.s32 1, %v6492
        %v6494 = vrot.slane %v6485, %v6493
        %v6495 = vlaneseq
        %v6496 = vshrl.u32 %v6495, 7
        %v6497 = vsub.s32 2, %v6496
        %v6498 = vrot.slane %v6485, %v6497
        %v6499 = vlaneseq
        %v6500 = vshrl.u32 %v6499, 7
        %v6501 = vsub.s32 3, %v6500
        %v6502 = vrot.slane %v6485, %v6501
        %6507 = vmatprep.subr.mxu0 %v6422
        %6508 = vmatpush1.msra.mxu0 %v6421
        %6509 = vmatprep.subr.mxu0 %v6426
        %6510 = vmatpush1.msra.mxu0 %v6425
        %6511 = vmatprep.subr.mxu0 %v6430
        %6512 = vmatpush1.msra.mxu0 %v6429
        %6513 = vmatprep.subr.mxu0 %v6434
        %6514 = vmatpush1.msra.mxu0 %v6433
        %6515 = vmatprep.subr.mxu0 %v6438
        %6516 = vmatpush1.msra.mxu0 %v6437
        %6517 = vmatprep.subr.mxu0 %v6442
        %6518 = vmatpush1.msra.mxu0 %v6441
        %6519 = vmatprep.subr.mxu0 %v6446
        %6520 = vmatpush1.msra.mxu0 %v6445
        %6521 = vmatprep.subr.mxu0 %v6450
        %6522 = vmatpush1.msra.mxu0 %v6449
        %6523 = vmatprep.subr.mxu0 %v6454
        %6524 = vmatpush1.msra.mxu0 %v6453
        %6525 = vmatprep.subr.mxu0 %v6458
        %6526 = vmatpush1.msra.mxu0 %v6457
        %6527 = vmatprep.subr.mxu0 %v6462
        %6528 = vmatpush1.msra.mxu0 %v6461
        %6529 = vmatprep.subr.mxu0 %v6466
        %6530 = vmatpush1.msra.mxu0 %v6465
        %6531 = vmatprep.subr.mxu0 %v6470
        %6532 = vmatpush1.msra.mxu0 %v6469
        %6533 = vmatprep.subr.mxu0 %v6474
        %6534 = vmatpush1.msra.mxu0 %v6473
        %6535 = vmatprep.subr.mxu0 %v6478
        %6536 = vmatpush1.msra.mxu0 %v6477
        %6537 = vmatprep.subr.mxu0 %v6482
        %6538 = vmatpush1.msra.mxu0 %v6481
        %6539 = vmatprep.subr.mxu0 0.0
        %6540 = vmatpush1.msra.mxu0 0.0
        %6541 = vmatprep.subr.mxu0 0.0
        %6542 = vmatpush1.msra.mxu0 0.0
        %6543 = vmatprep.subr.mxu0 0.0
        %6544 = vmatpush1.msra.mxu0 0.0
        %6545 = vmatprep.subr.mxu0 0.0
        %6546 = vmatpush1.msra.mxu0 0.0
        %6547 = vmatprep.subr.mxu0 0.0
        %6548 = vmatpush1.msra.mxu0 0.0
        %6549 = vmatprep.subr.mxu0 0.0
        %6550 = vmatpush1.msra.mxu0 0.0
        %6551 = vmatprep.subr.mxu0 0.0
        %6552 = vmatpush1.msra.mxu0 0.0
        %6553 = vmatprep.subr.mxu0 0.0
        %6554 = vmatpush1.msra.mxu0 0.0
        %6555 = vmatprep.subr.mxu0 0.0
        %6556 = vmatpush1.msra.mxu0 0.0
        %6557 = vmatprep.subr.mxu0 0.0
        %6558 = vmatpush1.msra.mxu0 0.0
        %6559 = vmatprep.subr.mxu0 0.0
        %6560 = vmatpush1.msra.mxu0 0.0
        %6561 = vmatprep.subr.mxu0 0.0
        %6562 = vmatpush1.msra.mxu0 0.0
        %6563 = vmatprep.subr.mxu0 0.0
        %6564 = vmatpush1.msra.mxu0 0.0
        %6565 = vmatprep.subr.mxu0 0.0
        %6566 = vmatpush1.msra.mxu0 0.0
        %6567 = vmatprep.subr.mxu0 0.0
        %6568 = vmatpush1.msra.mxu0 0.0
        %6569 = vmatprep.subr.mxu0 0.0
        %6570 = vmatpush1.msra.mxu0 0.0
        %6571 = vmatprep.mubr.f32.mxu0 0.0
        %6572 = vmatmul.mubr.f32.gmra.mrb[0].mxu0 %v6405
        %v6573 = vpop.f32.mrb[0].mxu0
        %v6574 = vadd.f32 %v6490, %v6573
        %v6575 = vpop.f32.mrb[0].mxu0
        %v6576 = vadd.f32 %v6494, %v6575
        %6577 = vmatprep.mubr.f32.mxu0 0.0
        %6578 = vmatmul.mubr.f32.gmra.mrb[0].mxu0 %v6406
        %v6579 = vpop.f32.mrb[0].mxu0
        %v6580 = vadd.f32 %v6490, %v6579
        %v6581 = vpop.f32.mrb[0].mxu0
        %v6582 = vadd.f32 %v6494, %v6581
        %6583 = vmatprep.mubr.f32.mxu0 0.0
        %6584 = vmatmul.mubr.f32.gmra.mrb[0].mxu0 %v6407
        %v6585 = vpop.f32.mrb[0].mxu0
        %v6586 = vadd.f32 %v6490, %v6585
        %v6587 = vpop.f32.mrb[0].mxu0
        %v6588 = vadd.f32 %v6494, %v6587
        %6589 = vmatprep.mubr.f32.mxu0 0.0
        %6590 = vmatmul.mubr.f32.gmra.mrb[0].mxu0 %v6408
        %v6591 = vpop.f32.mrb[0].mxu0
        %v6592 = vadd.f32 %v6490, %v6591
        %v6593 = vpop.f32.mrb[0].mxu0
        %v6594 = vadd.f32 %v6494, %v6593
        %6595 = vmatprep.mubr.f32.mxu0 0.0
        %6596 = vmatmul.mubr.f32.gmra.mrb[0].mxu0 %v6409
        %v6597 = vpop.f32.mrb[0].mxu0
        %v6598 = vadd.f32 %v6490, %v6597
        %v6599 = vpop.f32.mrb[0].mxu0
        %v6600 = vadd.f32 %v6494, %v6599
        %6601 = vmatprep.mubr.f32.mxu0 0.0
        %6602 = vmatmul.mubr.f32.gmra.mrb[0].mxu0 %v6410
        %v6603 = vpop.f32.mrb[0].mxu0
        %v6604 = vadd.f32 %v6490, %v6603
        %v6605 = vpop.f32.mrb[0].mxu0
        %v6606 = vadd.f32 %v6494, %v6605
        %6607 = vmatprep.mubr.f32.mxu0 0.0
        %6608 = vmatmul.mubr.f32.gmra.mrb[0].mxu0 %v6411
        %v6609 = vpop.f32.mrb[0].mxu0
        %v6610 = vadd.f32 %v6490, %v6609
        %v6611 = vpop.f32.mrb[0].mxu0
        %v6612 = vadd.f32 %v6494, %v6611
        %6613 = vmatprep.mubr.f32.mxu0 0.0
        %6614 = vmatmul.mubr.f32.gmra.mrb[0].mxu0 %v6412
        %v6615 = vpop.f32.mrb[0].mxu0
        %v6616 = vadd.f32 %v6490, %v6615
        %v6617 = vpop.f32.mrb[0].mxu0
        %v6618 = vadd.f32 %v6494, %v6617
        %6619 = vmatprep.mubr.f32.mxu0 0.0
        %6620 = vmatmul.mubr.f32.gmra.mrb[0].mxu0 %v6413
        %v6621 = vpop.f32.mrb[0].mxu0
        %v6622 = vadd.f32 %v6490, %v6621
        %v6623 = vpop.f32.mrb[0].mxu0
        %v6624 = vadd.f32 %v6494, %v6623
        %6625 = vmatprep.mubr.f32.mxu0 0.0
        %6626 = vmatmul.mubr.f32.gmra.mrb[0].mxu0 %v6414
        %v6627 = vpop.f32.mrb[0].mxu0
        %v6628 = vadd.f32 %v6490, %v6627
        %v6629 = vpop.f32.mrb[0].mxu0
        %v6630 = vadd.f32 %v6494, %v6629
        %6631 = vmatprep.mubr.f32.mxu0 0.0
        %6632 = vmatmul.mubr.f32.gmra.mrb[0].mxu0 %v6415
        %v6633 = vpop.f32.mrb[0].mxu0
        %v6634 = vadd.f32 %v6490, %v6633
        %v6635 = vpop.f32.mrb[0].mxu0
        %v6636 = vadd.f32 %v6494, %v6635
        %6637 = vmatprep.mubr.f32.mxu0 0.0
        %6638 = vmatmul.mubr.f32.gmra.mrb[0].mxu0 %v6416
        %v6639 = vpop.f32.mrb[0].mxu0
        %v6640 = vadd.f32 %v6490, %v6639
        %v6641 = vpop.f32.mrb[0].mxu0
        %v6642 = vadd.f32 %v6494, %v6641
        %6643 = vmatprep.mubr.f32.mxu0 0.0
        %6644 = vmatmul.mubr.f32.gmra.mrb[0].mxu0 %v6417
        %v6645 = vpop.f32.mrb[0].mxu0
        %v6646 = vadd.f32 %v6490, %v6645
        %v6647 = vpop.f32.mrb[0].mxu0
        %v6648 = vadd.f32 %v6494, %v6647
        %6649 = vmatprep.mubr.f32.mxu0 0.0
        %6650 = vmatmul.mubr.f32.gmra.mrb[0].mxu0 %v6418
        %v6651 = vpop.f32.mrb[0].mxu0
        %v6652 = vadd.f32 %v6490, %v6651
        %v6653 = vpop.f32.mrb[0].mxu0
        %v6654 = vadd.f32 %v6494, %v6653
        %6655 = vmatprep.mubr.f32.mxu0 0.0
        %6656 = vmatmul.mubr.f32.gmra.mrb[0].mxu0 %v6419
        %v6657 = vpop.f32.mrb[0].mxu0
        %v6658 = vadd.f32 %v6490, %v6657
        %v6659 = vpop.f32.mrb[0].mxu0
        %v6660 = vadd.f32 %v6494, %v6659
        %6661 = vmatprep.mubr.f32.mxu0 0.0
        %6662 = vmatmul.mubr.f32.gmra.mrb[0].mxu0 %v6420
        %v6663 = vpop.f32.mrb[0].mxu0
        %v6664 = vadd.f32 %v6490, %v6663
        %v6665 = vpop.f32.mrb[0].mxu0
        %v6666 = vadd.f32 %v6494, %v6665
        %6667 = vdwg.mxu0
        %6668 = vmatprep.subr.mxu0 %v6424
        %6669 = vmatpush1.msra.mxu0 %v6423
        %6670 = vmatprep.subr.mxu0 %v6428
        %6671 = vmatpush1.msra.mxu0 %v6427
        %6672 = vmatprep.subr.mxu0 %v6432
        %6673 = vmatpush1.msra.mxu0 %v6431
        %6674 = vmatprep.subr.mxu0 %v6436
        %6675 = vmatpush1.msra.mxu0 %v6435
        %6676 = vmatprep.subr.mxu0 %v6440
        %6677 = vmatpush1.msra.mxu0 %v6439
        %6678 = vmatprep.subr.mxu0 %v6444
        %6679 = vmatpush1.msra.mxu0 %v6443
        %6680 = vmatprep.subr.mxu0 %v6448
        %6681 = vmatpush1.msra.mxu0 %v6447
        %6682 = vmatprep.subr.mxu0 %v6452
        %6683 = vmatpush1.msra.mxu0 %v6451
        %6684 = vmatprep.subr.mxu0 %v6456
        %6685 = vmatpush1.msra.mxu0 %v6455
        %6686 = vmatprep.subr.mxu0 %v6460
        %6687 = vmatpush1.msra.mxu0 %v6459
        %6688 = vmatprep.subr.mxu0 %v6464
        %6689 = vmatpush1.msra.mxu0 %v6463
        %6690 = vmatprep.subr.mxu0 %v6468
        %6691 = vmatpush1.msra.mxu0 %v6467
        %6692 = vmatprep.subr.mxu0 %v6472
        %6693 = vmatpush1.msra.mxu0 %v6471
        %6694 = vmatprep.subr.mxu0 %v6476
        %6695 = vmatpush1.msra.mxu0 %v6475
        %6696 = vmatprep.subr.mxu0 %v6480
        %6697 = vmatpush1.msra.mxu0 %v6479
        %6698 = vmatprep.subr.mxu0 %v6484
        %6699 = vmatpush1.msra.mxu0 %v6483
        %6700 = vmatprep.subr.mxu0 0.0
        %6701 = vmatpush1.msra.mxu0 0.0
        %6702 = vmatprep.subr.mxu0 0.0
        %6703 = vmatpush1.msra.mxu0 0.0
        %6704 = vmatprep.subr.mxu0 0.0
        %6705 = vmatpush1.msra.mxu0 0.0
        %6706 = vmatprep.subr.mxu0 0.0
        %6707 = vmatpush1.msra.mxu0 0.0
        %6708 = vmatprep.subr.mxu0 0.0
        %6709 = vmatpush1.msra.mxu0 0.0
        %6710 = vmatprep.subr.mxu0 0.0
        %6711 = vmatpush1.msra.mxu0 0.0
        %6712 = vmatprep.subr.mxu0 0.0
        %6713 = vmatpush1.msra.mxu0 0.0
        %6714 = vmatprep.subr.mxu0 0.0
        %6715 = vmatpush1.msra.mxu0 0.0
        %6716 = vmatprep.subr.mxu0 0.0
        %6717 = vmatpush1.msra.mxu0 0.0
        %6718 = vmatprep.subr.mxu0 0.0
        %6719 = vmatpush1.msra.mxu0 0.0
        %6720 = vmatprep.subr.mxu0 0.0
        %6721 = vmatpush1.msra.mxu0 0.0
        %6722 = vmatprep.subr.mxu0 0.0
        %6723 = vmatpush1.msra.mxu0 0.0
        %6724 = vmatprep.subr.mxu0 0.0
        %6725 = vmatpush1.msra.mxu0 0.0
        %6726 = vmatprep.subr.mxu0 0.0
        %6727 = vmatpush1.msra.mxu0 0.0
        %6728 = vmatprep.subr.mxu0 0.0
        %6729 = vmatpush1.msra.mxu0 0.0
        %6730 = vmatprep.subr.mxu0 0.0
        %6731 = vmatpush1.msra.mxu0 0.0
        %6732 = vmatprep.mubr.f32.mxu0 0.0
        %6733 = vmatmul.mubr.f32.gmra.mrb[0].mxu0 %v6405
        %v6734 = vpop.f32.mrb[0].mxu0
        %v6735 = vadd.f32 %v6498, %v6734
        %v6736 = vpop.f32.mrb[0].mxu0
        %v6737 = vadd.f32 %v6502, %v6736
        %6738 = vmatprep.mubr.f32.mxu0 0.0
        %6739 = vmatmul.mubr.f32.gmra.mrb[0].mxu0 %v6406
        %v6740 = vpop.f32.mrb[0].mxu0
        %v6741 = vadd.f32 %v6498, %v6740
        %v6742 = vpop.f32.mrb[0].mxu0
        %v6743 = vadd.f32 %v6502, %v6742
        %6744 = vmatprep.mubr.f32.mxu0 0.0
        %6745 = vmatmul.mubr.f32.gmra.mrb[0].mxu0 %v6407
        %v6746 = vpop.f32.mrb[0].mxu0
        %v6747 = vadd.f32 %v6498, %v6746
        %v6748 = vpop.f32.mrb[0].mxu0
        %v6749 = vadd.f32 %v6502, %v6748
        %6750 = vmatprep.mubr.f32.mxu0 0.0
        %6751 = vmatmul.mubr.f32.gmra.mrb[0].mxu0 %v6408
        %v6752 = vpop.f32.mrb[0].mxu0
        %v6753 = vadd.f32 %v6498, %v6752
        %v6754 = vpop.f32.mrb[0].mxu0
        %v6755 = vadd.f32 %v6502, %v6754
        %6756 = vmatprep.mubr.f32.mxu0 0.0
        %6757 = vmatmul.mubr.f32.gmra.mrb[0].mxu0 %v6409
        %v6758 = vpop.f32.mrb[0].mxu0
        %v6759 = vadd.f32 %v6498, %v6758
        %v6760 = vpop.f32.mrb[0].mxu0
        %v6761 = vadd.f32 %v6502, %v6760
        %6762 = vmatprep.mubr.f32.mxu0 0.0
        %6763 = vmatmul.mubr.f32.gmra.mrb[0].mxu0 %v6410
        %v6764 = vpop.f32.mrb[0].mxu0
        %v6765 = vadd.f32 %v6498, %v6764
        %v6766 = vpop.f32.mrb[0].mxu0
        %v6767 = vadd.f32 %v6502, %v6766
        %6768 = vmatprep.mubr.f32.mxu0 0.0
        %6769 = vmatmul.mubr.f32.gmra.mrb[0].mxu0 %v6411
        %v6770 = vpop.f32.mrb[0].mxu0
        %v6771 = vadd.f32 %v6498, %v6770
        %v6772 = vpop.f32.mrb[0].mxu0
        %v6773 = vadd.f32 %v6502, %v6772
        %6774 = vmatprep.mubr.f32.mxu0 0.0
        %6775 = vmatmul.mubr.f32.gmra.mrb[0].mxu0 %v6412
        %v6776 = vpop.f32.mrb[0].mxu0
        %v6777 = vadd.f32 %v6498, %v6776
        %v6778 = vpop.f32.mrb[0].mxu0
        %v6779 = vadd.f32 %v6502, %v6778
        %6780 = vmatprep.mubr.f32.mxu0 0.0
        %6781 = vmatmul.mubr.f32.gmra.mrb[0].mxu0 %v6413
        %v6782 = vpop.f32.mrb[0].mxu0
        %v6783 = vadd.f32 %v6498, %v6782
        %v6784 = vpop.f32.mrb[0].mxu0
        %v6785 = vadd.f32 %v6502, %v6784
        %6786 = vmatprep.mubr.f32.mxu0 0.0
        %6787 = vmatmul.mubr.f32.gmra.mrb[0].mxu0 %v6414
        %v6788 = vpop.f32.mrb[0].mxu0
        %v6789 = vadd.f32 %v6498, %v6788
        %v6790 = vpop.f32.mrb[0].mxu0
        %v6791 = vadd.f32 %v6502, %v6790
        %6792 = vmatprep.mubr.f32.mxu0 0.0
        %6793 = vmatmul.mubr.f32.gmra.mrb[0].mxu0 %v6415
        %v6794 = vpop.f32.mrb[0].mxu0
        %v6795 = vadd.f32 %v6498, %v6794
        %v6796 = vpop.f32.mrb[0].mxu0
        %v6797 = vadd.f32 %v6502, %v6796
        %6798 = vmatprep.mubr.f32.mxu0 0.0
        %6799 = vmatmul.mubr.f32.gmra.mrb[0].mxu0 %v6416
        %v6800 = vpop.f32.mrb[0].mxu0
        %v6801 = vadd.f32 %v6498, %v6800
        %v6802 = vpop.f32.mrb[0].mxu0
        %v6803 = vadd.f32 %v6502, %v6802
        %6804 = vmatprep.mubr.f32.mxu0 0.0
        %6805 = vmatmul.mubr.f32.gmra.mrb[0].mxu0 %v6417
        %v6806 = vpop.f32.mrb[0].mxu0
        %v6807 = vadd.f32 %v6498, %v6806
        %v6808 = vpop.f32.mrb[0].mxu0
        %v6809 = vadd.f32 %v6502, %v6808
        %6810 = vmatprep.mubr.f32.mxu0 0.0
        %6811 = vmatmul.mubr.f32.gmra.mrb[0].mxu0 %v6418
        %v6812 = vpop.f32.mrb[0].mxu0
        %v6813 = vadd.f32 %v6498, %v6812
        %v6814 = vpop.f32.mrb[0].mxu0
        %v6815 = vadd.f32 %v6502, %v6814
        %6816 = vmatprep.mubr.f32.mxu0 0.0
        %6817 = vmatmul.mubr.f32.gmra.mrb[0].mxu0 %v6419
        %v6818 = vpop.f32.mrb[0].mxu0
        %v6819 = vadd.f32 %v6498, %v6818
        %v6820 = vpop.f32.mrb[0].mxu0
        %v6821 = vadd.f32 %v6502, %v6820
        %6822 = vmatprep.mubr.f32.mxu0 0.0
        %6823 = vmatmul.mubr.f32.gmra.mrb[0].mxu0 %v6420
        %v6824 = vpop.f32.mrb[0].mxu0
        %v6825 = vadd.f32 %v6498, %v6824
        %v6826 = vpop.f32.mrb[0].mxu0
        %v6827 = vadd.f32 %v6502, %v6826
        %6828 = vdwg.mxu0
        %v6829 = vmax.f32 %v6574, 0.0
        %v6830 = vmax.f32 %v6576, 0.0
        %v6831 = vmax.f32 %v6735, 0.0
        %v6832 = vmax.f32 %v6737, 0.0
        %v6833 = vmax.f32 %v6580, 0.0
        %v6834 = vmax.f32 %v6582, 0.0
        %v6835 = vmax.f32 %v6741, 0.0
        %v6836 = vmax.f32 %v6743, 0.0
        %v6837 = vmax.f32 %v6586, 0.0
        %v6838 = vmax.f32 %v6588, 0.0
        %v6839 = vmax.f32 %v6747, 0.0
        %v6840 = vmax.f32 %v6749, 0.0
        %v6841 = vmax.f32 %v6592, 0.0
        %v6842 = vmax.f32 %v6594, 0.0
        %v6843 = vmax.f32 %v6753, 0.0
        %v6844 = vmax.f32 %v6755, 0.0
        %v6845 = vmax.f32 %v6598, 0.0
        %v6846 = vmax.f32 %v6600, 0.0
        %v6847 = vmax.f32 %v6759, 0.0
        %v6848 = vmax.f32 %v6761, 0.0
        %v6849 = vmax.f32 %v6604, 0.0
        %v6850 = vmax.f32 %v6606, 0.0
        %v6851 = vmax.f32 %v6765, 0.0
        %v6852 = vmax.f32 %v6767, 0.0
        %v6853 = vmax.f32 %v6610, 0.0
        %v6854 = vmax.f32 %v6612, 0.0
        %v6855 = vmax.f32 %v6771, 0.0
        %v6856 = vmax.f32 %v6773, 0.0
        %v6857 = vmax.f32 %v6616, 0.0
        %v6858 = vmax.f32 %v6618, 0.0
        %v6859 = vmax.f32 %v6777, 0.0
        %v6860 = vmax.f32 %v6779, 0.0
        %v6861 = vmax.f32 %v6622, 0.0
        %v6862 = vmax.f32 %v6624, 0.0
        %v6863 = vmax.f32 %v6783, 0.0
        %v6864 = vmax.f32 %v6785, 0.0
        %v6865 = vmax.f32 %v6628, 0.0
        %v6866 = vmax.f32 %v6630, 0.0
        %v6867 = vmax.f32 %v6789, 0.0
        %v6868 = vmax.f32 %v6791, 0.0
        %v6869 = vmax.f32 %v6634, 0.0
        %v6870 = vmax.f32 %v6636, 0.0
        %v6871 = vmax.f32 %v6795, 0.0
        %v6872 = vmax.f32 %v6797, 0.0
        %v6873 = vmax.f32 %v6640, 0.0
        %v6874 = vmax.f32 %v6642, 0.0
        %v6875 = vmax.f32 %v6801, 0.0
        %v6876 = vmax.f32 %v6803, 0.0
        %v6877 = vmax.f32 %v6646, 0.0
        %v6878 = vmax.f32 %v6648, 0.0
        %v6879 = vmax.f32 %v6807, 0.0
        %v6880 = vmax.f32 %v6809, 0.0
        %v6881 = vmax.f32 %v6652, 0.0
        %v6882 = vmax.f32 %v6654, 0.0
        %v6883 = vmax.f32 %v6813, 0.0
        %v6884 = vmax.f32 %v6815, 0.0
        %v6885 = vmax.f32 %v6658, 0.0
        %v6886 = vmax.f32 %v6660, 0.0
        %v6887 = vmax.f32 %v6819, 0.0
        %v6888 = vmax.f32 %v6821, 0.0
        %v6889 = vmax.f32 %v6664, 0.0
        %v6890 = vmax.f32 %v6666, 0.0
        %v6891 = vmax.f32 %v6825, 0.0
        %v6892 = vmax.f32 %v6827, 0.0
        %v6893 = vld [vmem:[#allocation12] sm:$0xff]
        %v6894 = vld [vmem:[#allocation12 + $0x8] sm:$0xff]
        %v6895 = vld [vmem:[#allocation12 + $0x10] sm:$0xff]
        %v6896 = vld [vmem:[#allocation12 + $0x18] sm:$0xff]
        %v6897 = vld [vmem:[#allocation12 + $0x20] sm:$0xff]
        %v6898 = vld [vmem:[#allocation12 + $0x28] sm:$0xff]
        %v6899 = vld [vmem:[#allocation12 + $0x30] sm:$0xff]
        %v6900 = vld [vmem:[#allocation12 + $0x38] sm:$0xff]
        %v6901 = vld [vmem:[#allocation12 + $0x40] sm:$0xff]
        %v6902 = vld [vmem:[#allocation12 + $0x48] sm:$0xff]
        %v6903 = vld [vmem:[#allocation12 + $0x50] sm:$0xff]
        %v6904 = vld [vmem:[#allocation12 + $0x58] sm:$0xff]
        %v6905 = vld [vmem:[#allocation12 + $0x60] sm:$0xff]
        %v6906 = vld [vmem:[#allocation12 + $0x68] sm:$0xff]
        %v6907 = vld [vmem:[#allocation12 + $0x70] sm:$0xff]
        %v6908 = vld [vmem:[#allocation12 + $0x78] sm:$0xff]
        %v6909 = vld [vmem:[#allocation12 + $0x80] sm:$0xff]
        %v6910 = vld [vmem:[#allocation12 + $0x88] sm:$0xff]
        %v6911 = vld [vmem:[#allocation12 + $0x90] sm:$0xff]
        %v6912 = vld [vmem:[#allocation12 + $0x98] sm:$0xff]
        %v6913 = vld [vmem:[#allocation12 + $0xa0] sm:$0xff]
        %v6914 = vld [vmem:[#allocation12 + $0xa8] sm:$0xff]
        %v6915 = vld [vmem:[#allocation12 + $0xb0] sm:$0xff]
        %v6916 = vld [vmem:[#allocation12 + $0xb8] sm:$0xff]
        %v6917 = vld [vmem:[#allocation12 + $0xc0] sm:$0xff]
        %v6918 = vld [vmem:[#allocation12 + $0xc8] sm:$0xff]
        %v6919 = vld [vmem:[#allocation12 + $0xd0] sm:$0xff]
        %v6920 = vld [vmem:[#allocation12 + $0xd8] sm:$0xff]
        %v6921 = vld [vmem:[#allocation12 + $0xe0] sm:$0xff]
        %v6922 = vld [vmem:[#allocation12 + $0xe8] sm:$0xff]
        %v6923 = vld [vmem:[#allocation12 + $0xf0] sm:$0xff]
        %v6924 = vld [vmem:[#allocation12 + $0xf8] sm:$0xff]
        %v6925 = vld [vmem:[#allocation12 + $0x100] sm:$0xff]
        %v6926 = vld [vmem:[#allocation12 + $0x108] sm:$0xff]
        %v6927 = vld [vmem:[#allocation12 + $0x110] sm:$0xff]
        %v6928 = vld [vmem:[#allocation12 + $0x118] sm:$0xff]
        %v6929 = vld [vmem:[#allocation12 + $0x120] sm:$0xff]
        %v6930 = vld [vmem:[#allocation12 + $0x128] sm:$0xff]
        %v6931 = vld [vmem:[#allocation12 + $0x130] sm:$0xff]
        %v6932 = vld [vmem:[#allocation12 + $0x138] sm:$0xff]
        %v6933 = vld [vmem:[#allocation12 + $0x140] sm:$0xff]
        %v6934 = vld [vmem:[#allocation12 + $0x148] sm:$0xff]
        %v6935 = vld [vmem:[#allocation12 + $0x150] sm:$0xff]
        %v6936 = vld [vmem:[#allocation12 + $0x158] sm:$0xff]
        %v6937 = vld [vmem:[#allocation12 + $0x160] sm:$0xff]
        %v6938 = vld [vmem:[#allocation12 + $0x168] sm:$0xff]
        %v6939 = vld [vmem:[#allocation12 + $0x170] sm:$0xff]
        %v6940 = vld [vmem:[#allocation12 + $0x178] sm:$0xff]
        %v6941 = vld [vmem:[#allocation12 + $0x180] sm:$0xff]
        %v6942 = vld [vmem:[#allocation12 + $0x188] sm:$0xff]
        %v6943 = vld [vmem:[#allocation12 + $0x190] sm:$0xff]
        %v6944 = vld [vmem:[#allocation12 + $0x198] sm:$0xff]
        %v6945 = vld [vmem:[#allocation12 + $0x1a0] sm:$0xff]
        %v6946 = vld [vmem:[#allocation12 + $0x1a8] sm:$0xff]
        %v6947 = vld [vmem:[#allocation12 + $0x1b0] sm:$0xff]
        %v6948 = vld [vmem:[#allocation12 + $0x1b8] sm:$0xff]
        %v6949 = vld [vmem:[#allocation12 + $0x1c0] sm:$0xff]
        %v6950 = vld [vmem:[#allocation12 + $0x1c8] sm:$0xff]
        %v6951 = vld [vmem:[#allocation12 + $0x1d0] sm:$0xff]
        %v6952 = vld [vmem:[#allocation12 + $0x1d8] sm:$0xff]
        %v6953 = vld [vmem:[#allocation12 + $0x1e0] sm:$0xff]
        %v6954 = vld [vmem:[#allocation12 + $0x1e8] sm:$0xff]
        %v6955 = vld [vmem:[#allocation12 + $0x1f0] sm:$0xff]
        %v6956 = vld [vmem:[#allocation12 + $0x1f8] sm:$0xff]
        %v6957 = vld [vmem:[%s10] sm:$0x1]
        %v6959 = vlaneseq
        %v6960 = vshrl.u32 %v6959, 7
        %v6961 = vsub.s32 0, %v6960
        %v6962 = vrot.slane %v6957, %v6961
        %6964 = vmatprep.subr.mxu0 0.0
        %6965 = vmatpush1.msra.mxu0 %v6893
        %6966 = vmatprep.subr.mxu0 0.0
        %6967 = vmatpush1.msra.mxu0 %v6894
        %6968 = vmatprep.subr.mxu0 0.0
        %6969 = vmatpush1.msra.mxu0 %v6895
        %6970 = vmatprep.subr.mxu0 0.0
        %6971 = vmatpush1.msra.mxu0 %v6896
        %6972 = vmatprep.subr.mxu0 0.0
        %6973 = vmatpush1.msra.mxu0 %v6897
        %6974 = vmatprep.subr.mxu0 0.0
        %6975 = vmatpush1.msra.mxu0 %v6898
        %6976 = vmatprep.subr.mxu0 0.0
        %6977 = vmatpush1.msra.mxu0 %v6899
        %6978 = vmatprep.subr.mxu0 0.0
        %6979 = vmatpush1.msra.mxu0 %v6900
        %6980 = vmatprep.subr.mxu0 0.0
        %6981 = vmatpush1.msra.mxu0 %v6901
        %6982 = vmatprep.subr.mxu0 0.0
        %6983 = vmatpush1.msra.mxu0 %v6902
        %6984 = vmatprep.subr.mxu0 0.0
        %6985 = vmatpush1.msra.mxu0 %v6903
        %6986 = vmatprep.subr.mxu0 0.0
        %6987 = vmatpush1.msra.mxu0 %v6904
        %6988 = vmatprep.subr.mxu0 0.0
        %6989 = vmatpush1.msra.mxu0 %v6905
        %6990 = vmatprep.subr.mxu0 0.0
        %6991 = vmatpush1.msra.mxu0 %v6906
        %6992 = vmatprep.subr.mxu0 0.0
        %6993 = vmatpush1.msra.mxu0 %v6907
        %6994 = vmatprep.subr.mxu0 0.0
        %6995 = vmatpush1.msra.mxu0 %v6908
        %6996 = vmatprep.subr.mxu0 0.0
        %6997 = vmatpush1.msra.mxu0 %v6909
        %6998 = vmatprep.subr.mxu0 0.0
        %6999 = vmatpush1.msra.mxu0 %v6910
        %7000 = vmatprep.subr.mxu0 0.0
        %7001 = vmatpush1.msra.mxu0 %v6911
        %7002 = vmatprep.subr.mxu0 0.0
        %7003 = vmatpush1.msra.mxu0 %v6912
        %7004 = vmatprep.subr.mxu0 0.0
        %7005 = vmatpush1.msra.mxu0 %v6913
        %7006 = vmatprep.subr.mxu0 0.0
        %7007 = vmatpush1.msra.mxu0 %v6914
        %7008 = vmatprep.subr.mxu0 0.0
        %7009 = vmatpush1.msra.mxu0 %v6915
        %7010 = vmatprep.subr.mxu0 0.0
        %7011 = vmatpush1.msra.mxu0 %v6916
        %7012 = vmatprep.subr.mxu0 0.0
        %7013 = vmatpush1.msra.mxu0 %v6917
        %7014 = vmatprep.subr.mxu0 0.0
        %7015 = vmatpush1.msra.mxu0 %v6918
        %7016 = vmatprep.subr.mxu0 0.0
        %7017 = vmatpush1.msra.mxu0 %v6919
        %7018 = vmatprep.subr.mxu0 0.0
        %7019 = vmatpush1.msra.mxu0 %v6920
        %7020 = vmatprep.subr.mxu0 0.0
        %7021 = vmatpush1.msra.mxu0 %v6921
        %7022 = vmatprep.subr.mxu0 0.0
        %7023 = vmatpush1.msra.mxu0 %v6922
        %7024 = vmatprep.subr.mxu0 0.0
        %7025 = vmatpush1.msra.mxu0 %v6923
        %7026 = vmatprep.subr.mxu0 0.0
        %7027 = vmatpush1.msra.mxu0 %v6924
        %7028 = vmatprep.mubr.f32.mxu0 %v6830
        %7029 = vmatmul.mubr.f32.gmra.mrb[0].mxu0 %v6829
        %v7030 = vpop.f32.mrb[0].mxu0
        %v7031 = vadd.f32 %v6962, %v7030
        %v7032 = vpop.f32.mrb[0].mxu0
        %7033 = vmatprep.mubr.f32.mxu0 %v6834
        %7034 = vmatmul.mubr.f32.gmra.mrb[0].mxu0 %v6833
        %v7035 = vpop.f32.mrb[0].mxu0
        %v7036 = vadd.f32 %v6962, %v7035
        %v7037 = vpop.f32.mrb[0].mxu0
        %7038 = vmatprep.mubr.f32.mxu0 %v6838
        %7039 = vmatmul.mubr.f32.gmra.mrb[0].mxu0 %v6837
        %v7040 = vpop.f32.mrb[0].mxu0
        %v7041 = vadd.f32 %v6962, %v7040
        %v7042 = vpop.f32.mrb[0].mxu0
        %7043 = vmatprep.mubr.f32.mxu0 %v6842
        %7044 = vmatmul.mubr.f32.gmra.mrb[0].mxu0 %v6841
        %v7045 = vpop.f32.mrb[0].mxu0
        %v7046 = vadd.f32 %v6962, %v7045
        %v7047 = vpop.f32.mrb[0].mxu0
        %7048 = vmatprep.mubr.f32.mxu0 %v6846
        %7049 = vmatmul.mubr.f32.gmra.mrb[0].mxu0 %v6845
        %v7050 = vpop.f32.mrb[0].mxu0
        %v7051 = vadd.f32 %v6962, %v7050
        %v7052 = vpop.f32.mrb[0].mxu0
        %7053 = vmatprep.mubr.f32.mxu0 %v6850
        %7054 = vmatmul.mubr.f32.gmra.mrb[0].mxu0 %v6849
        %v7055 = vpop.f32.mrb[0].mxu0
        %v7056 = vadd.f32 %v6962, %v7055
        %v7057 = vpop.f32.mrb[0].mxu0
        %7058 = vmatprep.mubr.f32.mxu0 %v6854
        %7059 = vmatmul.mubr.f32.gmra.mrb[0].mxu0 %v6853
        %v7060 = vpop.f32.mrb[0].mxu0
        %v7061 = vadd.f32 %v6962, %v7060
        %v7062 = vpop.f32.mrb[0].mxu0
        %7063 = vmatprep.mubr.f32.mxu0 %v6858
        %7064 = vmatmul.mubr.f32.gmra.mrb[0].mxu0 %v6857
        %v7065 = vpop.f32.mrb[0].mxu0
        %v7066 = vadd.f32 %v6962, %v7065
        %v7067 = vpop.f32.mrb[0].mxu0
        %7068 = vmatprep.mubr.f32.mxu0 %v6862
        %7069 = vmatmul.mubr.f32.gmra.mrb[0].mxu0 %v6861
        %v7070 = vpop.f32.mrb[0].mxu0
        %v7071 = vadd.f32 %v6962, %v7070
        %v7072 = vpop.f32.mrb[0].mxu0
        %7073 = vmatprep.mubr.f32.mxu0 %v6866
        %7074 = vmatmul.mubr.f32.gmra.mrb[0].mxu0 %v6865
        %v7075 = vpop.f32.mrb[0].mxu0
        %v7076 = vadd.f32 %v6962, %v7075
        %v7077 = vpop.f32.mrb[0].mxu0
        %7078 = vmatprep.mubr.f32.mxu0 %v6870
        %7079 = vmatmul.mubr.f32.gmra.mrb[0].mxu0 %v6869
        %v7080 = vpop.f32.mrb[0].mxu0
        %v7081 = vadd.f32 %v6962, %v7080
        %v7082 = vpop.f32.mrb[0].mxu0
        %7083 = vmatprep.mubr.f32.mxu0 %v6874
        %7084 = vmatmul.mubr.f32.gmra.mrb[0].mxu0 %v6873
        %v7085 = vpop.f32.mrb[0].mxu0
        %v7086 = vadd.f32 %v6962, %v7085
        %v7087 = vpop.f32.mrb[0].mxu0
        %7088 = vmatprep.mubr.f32.mxu0 %v6878
        %7089 = vmatmul.mubr.f32.gmra.mrb[0].mxu0 %v6877
        %v7090 = vpop.f32.mrb[0].mxu0
        %v7091 = vadd.f32 %v6962, %v7090
        %v7092 = vpop.f32.mrb[0].mxu0
        %7093 = vmatprep.mubr.f32.mxu0 %v6882
        %7094 = vmatmul.mubr.f32.gmra.mrb[0].mxu0 %v6881
        %v7095 = vpop.f32.mrb[0].mxu0
        %v7096 = vadd.f32 %v6962, %v7095
        %v7097 = vpop.f32.mrb[0].mxu0
        %7098 = vmatprep.mubr.f32.mxu0 %v6886
        %7099 = vmatmul.mubr.f32.gmra.mrb[0].mxu0 %v6885
        %v7100 = vpop.f32.mrb[0].mxu0
        %v7101 = vadd.f32 %v6962, %v7100
        %v7102 = vpop.f32.mrb[0].mxu0
        %7103 = vmatprep.mubr.f32.mxu0 %v6890
        %7104 = vmatmul.mubr.f32.gmra.mrb[0].mxu0 %v6889
        %v7105 = vpop.f32.mrb[0].mxu0
        %v7106 = vadd.f32 %v6962, %v7105
        %v7107 = vpop.f32.mrb[0].mxu0
        %7108 = vdwg.mxu0
        %7109 = vmatprep.subr.mxu0 0.0
        %7110 = vmatpush1.msra.mxu0 %v6925
        %7111 = vmatprep.subr.mxu0 0.0
        %7112 = vmatpush1.msra.mxu0 %v6926
        %7113 = vmatprep.subr.mxu0 0.0
        %7114 = vmatpush1.msra.mxu0 %v6927
        %7115 = vmatprep.subr.mxu0 0.0
        %7116 = vmatpush1.msra.mxu0 %v6928
        %7117 = vmatprep.subr.mxu0 0.0
        %7118 = vmatpush1.msra.mxu0 %v6929
        %7119 = vmatprep.subr.mxu0 0.0
        %7120 = vmatpush1.msra.mxu0 %v6930
        %7121 = vmatprep.subr.mxu0 0.0
        %7122 = vmatpush1.msra.mxu0 %v6931
        %7123 = vmatprep.subr.mxu0 0.0
        %7124 = vmatpush1.msra.mxu0 %v6932
        %7125 = vmatprep.subr.mxu0 0.0
        %7126 = vmatpush1.msra.mxu0 %v6933
        %7127 = vmatprep.subr.mxu0 0.0
        %7128 = vmatpush1.msra.mxu0 %v6934
        %7129 = vmatprep.subr.mxu0 0.0
        %7130 = vmatpush1.msra.mxu0 %v6935
        %7131 = vmatprep.subr.mxu0 0.0
        %7132 = vmatpush1.msra.mxu0 %v6936
        %7133 = vmatprep.subr.mxu0 0.0
        %7134 = vmatpush1.msra.mxu0 %v6937
        %7135 = vmatprep.subr.mxu0 0.0
        %7136 = vmatpush1.msra.mxu0 %v6938
        %7137 = vmatprep.subr.mxu0 0.0
        %7138 = vmatpush1.msra.mxu0 %v6939
        %7139 = vmatprep.subr.mxu0 0.0
        %7140 = vmatpush1.msra.mxu0 %v6940
        %7141 = vmatprep.subr.mxu0 0.0
        %7142 = vmatpush1.msra.mxu0 %v6941
        %7143 = vmatprep.subr.mxu0 0.0
        %7144 = vmatpush1.msra.mxu0 %v6942
        %7145 = vmatprep.subr.mxu0 0.0
        %7146 = vmatpush1.msra.mxu0 %v6943
        %7147 = vmatprep.subr.mxu0 0.0
        %7148 = vmatpush1.msra.mxu0 %v6944
        %7149 = vmatprep.subr.mxu0 0.0
        %7150 = vmatpush1.msra.mxu0 %v6945
        %7151 = vmatprep.subr.mxu0 0.0
        %7152 = vmatpush1.msra.mxu0 %v6946
        %7153 = vmatprep.subr.mxu0 0.0
        %7154 = vmatpush1.msra.mxu0 %v6947
        %7155 = vmatprep.subr.mxu0 0.0
        %7156 = vmatpush1.msra.mxu0 %v6948
        %7157 = vmatprep.subr.mxu0 0.0
        %7158 = vmatpush1.msra.mxu0 %v6949
        %7159 = vmatprep.subr.mxu0 0.0
        %7160 = vmatpush1.msra.mxu0 %v6950
        %7161 = vmatprep.subr.mxu0 0.0
        %7162 = vmatpush1.msra.mxu0 %v6951
        %7163 = vmatprep.subr.mxu0 0.0
        %7164 = vmatpush1.msra.mxu0 %v6952
        %7165 = vmatprep.subr.mxu0 0.0
        %7166 = vmatpush1.msra.mxu0 %v6953
        %7167 = vmatprep.subr.mxu0 0.0
        %7168 = vmatpush1.msra.mxu0 %v6954
        %7169 = vmatprep.subr.mxu0 0.0
        %7170 = vmatpush1.msra.mxu0 %v6955
        %7171 = vmatprep.subr.mxu0 0.0
        %7172 = vmatpush1.msra.mxu0 %v6956
        %7173 = vmatprep.mubr.f32.mxu0 %v6832
        %7174 = vmatmul.mubr.f32.gmra.mrb[0].mxu0 %v6831
        %v7175 = vpop.f32.mrb[0].mxu0
        %v7176 = vadd.f32 %v7031, %v7175
        %v7177 = vpop.f32.mrb[0].mxu0
        %7178 = vmatprep.mubr.f32.mxu0 %v6836
        %7179 = vmatmul.mubr.f32.gmra.mrb[0].mxu0 %v6835
        %v7180 = vpop.f32.mrb[0].mxu0
        %v7181 = vadd.f32 %v7036, %v7180
        %v7182 = vpop.f32.mrb[0].mxu0
        %7183 = vmatprep.mubr.f32.mxu0 %v6840
        %7184 = vmatmul.mubr.f32.gmra.mrb[0].mxu0 %v6839
        %v7185 = vpop.f32.mrb[0].mxu0
        %v7186 = vadd.f32 %v7041, %v7185
        %v7187 = vpop.f32.mrb[0].mxu0
        %7188 = vmatprep.mubr.f32.mxu0 %v6844
        %7189 = vmatmul.mubr.f32.gmra.mrb[0].mxu0 %v6843
        %v7190 = vpop.f32.mrb[0].mxu0
        %v7191 = vadd.f32 %v7046, %v7190
        %v7192 = vpop.f32.mrb[0].mxu0
        %7193 = vmatprep.mubr.f32.mxu0 %v6848
        %7194 = vmatmul.mubr.f32.gmra.mrb[0].mxu0 %v6847
        %v7195 = vpop.f32.mrb[0].mxu0
        %v7196 = vadd.f32 %v7051, %v7195
        %v7197 = vpop.f32.mrb[0].mxu0
        %7198 = vmatprep.mubr.f32.mxu0 %v6852
        %7199 = vmatmul.mubr.f32.gmra.mrb[0].mxu0 %v6851
        %v7200 = vpop.f32.mrb[0].mxu0
        %v7201 = vadd.f32 %v7056, %v7200
        %v7202 = vpop.f32.mrb[0].mxu0
        %7203 = vmatprep.mubr.f32.mxu0 %v6856
        %7204 = vmatmul.mubr.f32.gmra.mrb[0].mxu0 %v6855
        %v7205 = vpop.f32.mrb[0].mxu0
        %v7206 = vadd.f32 %v7061, %v7205
        %v7207 = vpop.f32.mrb[0].mxu0
        %7208 = vmatprep.mubr.f32.mxu0 %v6860
        %7209 = vmatmul.mubr.f32.gmra.mrb[0].mxu0 %v6859
        %v7210 = vpop.f32.mrb[0].mxu0
        %v7211 = vadd.f32 %v7066, %v7210
        %v7212 = vpop.f32.mrb[0].mxu0
        %7213 = vmatprep.mubr.f32.mxu0 %v6864
        %7214 = vmatmul.mubr.f32.gmra.mrb[0].mxu0 %v6863
        %v7215 = vpop.f32.mrb[0].mxu0
        %v7216 = vadd.f32 %v7071, %v7215
        %v7217 = vpop.f32.mrb[0].mxu0
        %7218 = vmatprep.mubr.f32.mxu0 %v6868
        %7219 = vmatmul.mubr.f32.gmra.mrb[0].mxu0 %v6867
        %v7220 = vpop.f32.mrb[0].mxu0
        %v7221 = vadd.f32 %v7076, %v7220
        %v7222 = vpop.f32.mrb[0].mxu0
        %7223 = vmatprep.mubr.f32.mxu0 %v6872
        %7224 = vmatmul.mubr.f32.gmra.mrb[0].mxu0 %v6871
        %v7225 = vpop.f32.mrb[0].mxu0
        %v7226 = vadd.f32 %v7081, %v7225
        %v7227 = vpop.f32.mrb[0].mxu0
        %7228 = vmatprep.mubr.f32.mxu0 %v6876
        %7229 = vmatmul.mubr.f32.gmra.mrb[0].mxu0 %v6875
        %v7230 = vpop.f32.mrb[0].mxu0
        %v7231 = vadd.f32 %v7086, %v7230
        %v7232 = vpop.f32.mrb[0].mxu0
        %7233 = vmatprep.mubr.f32.mxu0 %v6880
        %7234 = vmatmul.mubr.f32.gmra.mrb[0].mxu0 %v6879
        %v7235 = vpop.f32.mrb[0].mxu0
        %v7236 = vadd.f32 %v7091, %v7235
        %v7237 = vpop.f32.mrb[0].mxu0
        %7238 = vmatprep.mubr.f32.mxu0 %v6884
        %7239 = vmatmul.mubr.f32.gmra.mrb[0].mxu0 %v6883
        %v7240 = vpop.f32.mrb[0].mxu0
        %v7241 = vadd.f32 %v7096, %v7240
        %v7242 = vpop.f32.mrb[0].mxu0
        %7243 = vmatprep.mubr.f32.mxu0 %v6888
        %7244 = vmatmul.mubr.f32.gmra.mrb[0].mxu0 %v6887
        %v7245 = vpop.f32.mrb[0].mxu0
        %v7246 = vadd.f32 %v7101, %v7245
        %v7247 = vpop.f32.mrb[0].mxu0
        %7248 = vmatprep.mubr.f32.mxu0 %v6892
        %7249 = vmatmul.mubr.f32.gmra.mrb[0].mxu0 %v6891
        %v7250 = vpop.f32.mrb[0].mxu0
        %v7251 = vadd.f32 %v7106, %v7250
        %v7252 = vpop.f32.mrb[0].mxu0
        %7253 = vdwg.mxu0
        %v7254 = vadd.f32 %v6405, %v7176
        %v7255 = vadd.f32 %v6406, %v7181
        %v7256 = vadd.f32 %v6407, %v7186
        %v7257 = vadd.f32 %v6408, %v7191
        %v7258 = vadd.f32 %v6409, %v7196
        %v7259 = vadd.f32 %v6410, %v7201
        %v7260 = vadd.f32 %v6411, %v7206
        %v7261 = vadd.f32 %v6412, %v7211
        %v7262 = vadd.f32 %v6413, %v7216
        %v7263 = vadd.f32 %v6414, %v7221
        %v7264 = vadd.f32 %v6415, %v7226
        %v7265 = vadd.f32 %v6416, %v7231
        %v7266 = vadd.f32 %v6417, %v7236
        %v7267 = vadd.f32 %v6418, %v7241
        %v7268 = vadd.f32 %v6419, %v7246
        %v7269 = vadd.f32 %v6420, %v7251
        %v7270 = vld [vmem:[%s11] sm:$0x1]
        %v7271 = vld [vmem:[%s12] sm:$0x1]
        %7272 = vadd.xlane.f32.xlu0 %v7254
        %v7273 = vpop.xlane.xlu0 %7272
        %7274 = vadd.xlane.f32.xlu0 %v7255
        %v7275 = vpop.xlane.xlu0 %7274
        %7276 = vadd.xlane.f32.xlu0 %v7256
        %v7277 = vpop.xlane.xlu0 %7276
        %7278 = vadd.xlane.f32.xlu0 %v7257
        %v7279 = vpop.xlane.xlu0 %7278
        %7280 = vadd.xlane.f32.xlu0 %v7258
        %v7281 = vpop.xlane.xlu0 %7280
        %7282 = vadd.xlane.f32.xlu0 %v7259
        %v7283 = vpop.xlane.xlu0 %7282
        %7284 = vadd.xlane.f32.xlu0 %v7260
        %v7285 = vpop.xlane.xlu0 %7284
        %7286 = vadd.xlane.f32.xlu0 %v7261
        %v7287 = vpop.xlane.xlu0 %7286
        %7288 = vadd.xlane.f32.xlu0 %v7262
        %v7289 = vpop.xlane.xlu0 %7288
        %7290 = vadd.xlane.f32.xlu0 %v7263
        %v7291 = vpop.xlane.xlu0 %7290
        %7292 = vadd.xlane.f32.xlu0 %v7264
        %v7293 = vpop.xlane.xlu0 %7292
        %7294 = vadd.xlane.f32.xlu0 %v7265
        %v7295 = vpop.xlane.xlu0 %7294
        %7296 = vadd.xlane.f32.xlu0 %v7266
        %v7297 = vpop.xlane.xlu0 %7296
        %7298 = vadd.xlane.f32.xlu0 %v7267
        %v7299 = vpop.xlane.xlu0 %7298
        %7300 = vadd.xlane.f32.xlu0 %v7268
        %v7301 = vpop.xlane.xlu0 %7300
        %7302 = vadd.xlane.f32.xlu0 %v7269
        %v7303 = vpop.xlane.xlu0 %7302
        %v7304 = vmul.f32 %v7273, %v6232
        %v7305 = vmul.f32 %v7275, %v6232
        %v7306 = vmul.f32 %v7277, %v6232
        %v7307 = vmul.f32 %v7279, %v6232
        %v7308 = vmul.f32 %v7281, %v6232
        %v7309 = vmul.f32 %v7283, %v6232
        %v7310 = vmul.f32 %v7285, %v6232
        %v7311 = vmul.f32 %v7287, %v6232
        %v7312 = vmul.f32 %v7289, %v6232
        %v7313 = vmul.f32 %v7291, %v6232
        %v7314 = vmul.f32 %v7293, %v6232
        %v7315 = vmul.f32 %v7295, %v6232
        %v7316 = vmul.f32 %v7297, %v6232
        %v7317 = vmul.f32 %v7299, %v6232
        %v7318 = vmul.f32 %v7301, %v6232
        %v7319 = vmul.f32 %v7303, %v6232
        %v7320 = vsub.f32 %v7254, %v7304
        %v7321 = vsub.f32 %v7255, %v7305
        %v7322 = vsub.f32 %v7256, %v7306
        %v7323 = vsub.f32 %v7257, %v7307
        %v7324 = vsub.f32 %v7258, %v7308
        %v7325 = vsub.f32 %v7259, %v7309
        %v7326 = vsub.f32 %v7260, %v7310
        %v7327 = vsub.f32 %v7261, %v7311
        %v7328 = vsub.f32 %v7262, %v7312
        %v7329 = vsub.f32 %v7263, %v7313
        %v7330 = vsub.f32 %v7264, %v7314
        %v7331 = vsub.f32 %v7265, %v7315
        %v7332 = vsub.f32 %v7266, %v7316
        %v7333 = vsub.f32 %v7267, %v7317
        %v7334 = vsub.f32 %v7268, %v7318
        %v7335 = vsub.f32 %v7269, %v7319
        %v7336 = vmul.f32 %v7320, %v7320
        %v7337 = vmul.f32 %v7321, %v7321
        %v7338 = vmul.f32 %v7322, %v7322
        %v7339 = vmul.f32 %v7323, %v7323
        %v7340 = vmul.f32 %v7324, %v7324
        %v7341 = vmul.f32 %v7325, %v7325
        %v7342 = vmul.f32 %v7326, %v7326
        %v7343 = vmul.f32 %v7327, %v7327
        %v7344 = vmul.f32 %v7328, %v7328
        %v7345 = vmul.f32 %v7329, %v7329
        %v7346 = vmul.f32 %v7330, %v7330
        %v7347 = vmul.f32 %v7331, %v7331
        %v7348 = vmul.f32 %v7332, %v7332
        %v7349 = vmul.f32 %v7333, %v7333
        %v7350 = vmul.f32 %v7334, %v7334
        %v7351 = vmul.f32 %v7335, %v7335
        %7352 = vadd.xlane.f32.xlu0 %v7336
        %v7353 = vpop.xlane.xlu0 %7352
        %7354 = vadd.xlane.f32.xlu0 %v7337
        %v7355 = vpop.xlane.xlu0 %7354
        %7356 = vadd.xlane.f32.xlu0 %v7338
        %v7357 = vpop.xlane.xlu0 %7356
        %7358 = vadd.xlane.f32.xlu0 %v7339
        %v7359 = vpop.xlane.xlu0 %7358
        %7360 = vadd.xlane.f32.xlu0 %v7340
        %v7361 = vpop.xlane.xlu0 %7360
        %7362 = vadd.xlane.f32.xlu0 %v7341
        %v7363 = vpop.xlane.xlu0 %7362
        %7364 = vadd.xlane.f32.xlu0 %v7342
        %v7365 = vpop.xlane.xlu0 %7364
        %7366 = vadd.xlane.f32.xlu0 %v7343
        %v7367 = vpop.xlane.xlu0 %7366
        %7368 = vadd.xlane.f32.xlu0 %v7344
        %v7369 = vpop.xlane.xlu0 %7368
        %7370 = vadd.xlane.f32.xlu0 %v7345
        %v7371 = vpop.xlane.xlu0 %7370
        %7372 = vadd.xlane.f32.xlu0 %v7346
        %v7373 = vpop.xlane.xlu0 %7372
        %7374 = vadd.xlane.f32.xlu0 %v7347
        %v7375 = vpop.xlane.xlu0 %7374
        %7376 = vadd.xlane.f32.xlu0 %v7348
        %v7377 = vpop.xlane.xlu0 %7376
        %7378 = vadd.xlane.f32.xlu0 %v7349
        %v7379 = vpop.xlane.xlu0 %7378
        %7380 = vadd.xlane.f32.xlu0 %v7350
        %v7381 = vpop.xlane.xlu0 %7380
        %7382 = vadd.xlane.f32.xlu0 %v7351
        %v7383 = vpop.xlane.xlu0 %7382
        %v7384 = vmul.f32 %v7353, %v6232
        %v7385 = vmul.f32 %v7355, %v6232
        %v7386 = vmul.f32 %v7357, %v6232
        %v7387 = vmul.f32 %v7359, %v6232
        %v7388 = vmul.f32 %v7361, %v6232
        %v7389 = vmul.f32 %v7363, %v6232
        %v7390 = vmul.f32 %v7365, %v6232
        %v7391 = vmul.f32 %v7367, %v6232
        %v7392 = vmul.f32 %v7369, %v6232
        %v7393 = vmul.f32 %v7371, %v6232
        %v7394 = vmul.f32 %v7373, %v6232
        %v7395 = vmul.f32 %v7375, %v6232
        %v7396 = vmul.f32 %v7377, %v6232
        %v7397 = vmul.f32 %v7379, %v6232
        %v7398 = vmul.f32 %v7381, %v6232
        %v7399 = vmul.f32 %v7383, %v6232
        %v7400 = vadd.f32 %v7384, 1e-05
        %v7401 = vadd.f32 %v7385, 1e-05
        %v7402 = vadd.f32 %v7386, 1e-05
        %v7403 = vadd.f32 %v7387, 1e-05
        %v7404 = vadd.f32 %v7388, 1e-05
        %v7405 = vadd.f32 %v7389, 1e-05
        %v7406 = vadd.f32 %v7390, 1e-05
        %v7407 = vadd.f32 %v7391, 1e-05
        %v7408 = vadd.f32 %v7392, 1e-05
        %v7409 = vadd.f32 %v7393, 1e-05
        %v7410 = vadd.f32 %v7394, 1e-05
        %v7411 = vadd.f32 %v7395, 1e-05
        %v7412 = vadd.f32 %v7396, 1e-05
        %v7413 = vadd.f32 %v7397, 1e-05
        %v7414 = vadd.f32 %v7398, 1e-05
        %v7415 = vadd.f32 %v7399, 1e-05
        %v7416 = vrsqrt.pop %v7400
        %v7417 = vrsqrt.pop %v7401
        %v7418 = vrsqrt.pop %v7402
        %v7419 = vrsqrt.pop %v7403
        %v7420 = vrsqrt.pop %v7404
        %v7421 = vrsqrt.pop %v7405
        %v7422 = vrsqrt.pop %v7406
        %v7423 = vrsqrt.pop %v7407
        %v7424 = vrsqrt.pop %v7408
        %v7425 = vrsqrt.pop %v7409
        %v7426 = vrsqrt.pop %v7410
        %v7427 = vrsqrt.pop %v7411
        %v7428 = vrsqrt.pop %v7412
        %v7429 = vrsqrt.pop %v7413
        %v7430 = vrsqrt.pop %v7414
        %v7431 = vrsqrt.pop %v7415
        %v7432 = vmul.f32 %v7320, %v7416
        %v7433 = vmul.f32 %v7321, %v7417
        %v7434 = vmul.f32 %v7322, %v7418
        %v7435 = vmul.f32 %v7323, %v7419
        %v7436 = vmul.f32 %v7324, %v7420
        %v7437 = vmul.f32 %v7325, %v7421
        %v7438 = vmul.f32 %v7326, %v7422
        %v7439 = vmul.f32 %v7327, %v7423
        %v7440 = vmul.f32 %v7328, %v7424
        %v7441 = vmul.f32 %v7329, %v7425
        %v7442 = vmul.f32 %v7330, %v7426
        %v7443 = vmul.f32 %v7331, %v7427
        %v7444 = vmul.f32 %v7332, %v7428
        %v7445 = vmul.f32 %v7333, %v7429
        %v7446 = vmul.f32 %v7334, %v7430
        %v7447 = vmul.f32 %v7335, %v7431
        %v7449 = vlaneseq
        %v7450 = vshrl.u32 %v7449, 7
        %v7451 = vsub.s32 0, %v7450
        %v7452 = vrot.slane %v7270, %v7451
        %v7454 = vmul.f32 %v7432, %v7452
        %v7455 = vmul.f32 %v7433, %v7452
        %v7456 = vmul.f32 %v7434, %v7452
        %v7457 = vmul.f32 %v7435, %v7452
        %v7458 = vmul.f32 %v7436, %v7452
        %v7459 = vmul.f32 %v7437, %v7452
        %v7460 = vmul.f32 %v7438, %v7452
        %v7461 = vmul.f32 %v7439, %v7452
        %v7462 = vmul.f32 %v7440, %v7452
        %v7463 = vmul.f32 %v7441, %v7452
        %v7464 = vmul.f32 %v7442, %v7452
        %v7465 = vmul.f32 %v7443, %v7452
        %v7466 = vmul.f32 %v7444, %v7452
        %v7467 = vmul.f32 %v7445, %v7452
        %v7468 = vmul.f32 %v7446, %v7452
        %v7469 = vmul.f32 %v7447, %v7452
        %v7471 = vlaneseq
        %v7472 = vshrl.u32 %v7471, 7
        %v7473 = vsub.s32 0, %v7472
        %v7474 = vrot.slane %v7271, %v7473
        %v7476 = vadd.f32 %v7454, %v7474
        %v7477 = vadd.f32 %v7455, %v7474
        %v7478 = vadd.f32 %v7456, %v7474
        %v7479 = vadd.f32 %v7457, %v7474
        %v7480 = vadd.f32 %v7458, %v7474
        %v7481 = vadd.f32 %v7459, %v7474
        %v7482 = vadd.f32 %v7460, %v7474
        %v7483 = vadd.f32 %v7461, %v7474
        %v7484 = vadd.f32 %v7462, %v7474
        %v7485 = vadd.f32 %v7463, %v7474
        %v7486 = vadd.f32 %v7464, %v7474
        %v7487 = vadd.f32 %v7465, %v7474
        %v7488 = vadd.f32 %v7466, %v7474
        %v7489 = vadd.f32 %v7467, %v7474
        %v7490 = vadd.f32 %v7468, %v7474
        %v7491 = vadd.f32 %v7469, %v7474
        %7492 = vst [vmem:[%s517] sm:$0xff] %v7476
        %7493 = vst [vmem:[%s517 + $0x8] sm:$0xff] %v7477
        %7494 = vst [vmem:[%s517 + $0x10] sm:$0xff] %v7478
        %7495 = vst [vmem:[%s517 + $0x18] sm:$0xff] %v7479
        %7496 = vst [vmem:[%s517 + $0x20] sm:$0xff] %v7480
        %7497 = vst [vmem:[%s517 + $0x28] sm:$0xff] %v7481
        %7498 = vst [vmem:[%s517 + $0x30] sm:$0xff] %v7482
        %7499 = vst [vmem:[%s517 + $0x38] sm:$0xff] %v7483
        %7500 = vst [vmem:[%s517 + $0x40] sm:$0xff] %v7484
        %7501 = vst [vmem:[%s517 + $0x48] sm:$0xff] %v7485
        %7502 = vst [vmem:[%s517 + $0x50] sm:$0xff] %v7486
        %7503 = vst [vmem:[%s517 + $0x58] sm:$0xff] %v7487
        %7504 = vst [vmem:[%s517 + $0x60] sm:$0xff] %v7488
        %7505 = vst [vmem:[%s517 + $0x68] sm:$0xff] %v7489
        %7506 = vst [vmem:[%s517 + $0x70] sm:$0xff] %v7490
        %7507 = vst [vmem:[%s517 + $0x78] sm:$0xff] %v7491
        %s7508 = sand.u32 %s318, 1
        %s7509 = scalar_lea.sflag [#allocation6], %s7508
        %s7510 = sand.u32 %s318, 1
        %s7511 = smul.addr %s7510, 128
        %s7512 = scalar_lea.vmem [#allocation13], %s7511
        // Predicated region
        $region93: #{tpu_custom_call.1} parent=71 // pred_check
          %p7513 = pneg %p328
        $region94: #{tpu_custom_call.1} parent=71 // pred_check_branch
          %7515 = sbr.rel (%p7513) target = $region96
        $region95: #{tpu_custom_call.1} parent=71 // pred_region
          %s7516 = smul.u32 4, %s32
          %s7518 = ssub.s32 2048, 2048
          %7519 = vsyncadd %s7509, %s7518
          %s7520 = smul.addr %s7516, 4
          %s7521 = smul.addr %s7520, 128
          %s7522 = scalar_lea.hbm %s13, %s7521
          %s7523 = sshll.u32 %s7512, 4
          %s7524 = int_to_ptr.vmem [resolvable:$true] %s7523
          %7529 = dma.vmem_to_hbm [thread:$0]  %s7524, 2048, %s7522, %s7509, 128, 128, 8
        $region96: #{tpu_custom_call.1} parent=71 // pred_fallthru
          _
      $region72: #{tpu_custom_call.1} parent=5 // pred_fallthru
        _
      %p7530 = scmp.le.s32.totalorder 2, %s27
      // Predicated region
      $region97: #{tpu_custom_call.1} parent=5 // pred_check
        %p7531 = pneg %p7530
      $region98: #{tpu_custom_call.1} parent=5 // pred_check_branch
        %7533 = sbr.rel (%p7531) target = $region100
      $region99: #{tpu_custom_call.1} parent=5 // pred_region
        %s7534 = ssub.s32 %s27, 2
        // Predicated region
        $region101: #{tpu_custom_call.1} parent=99 // pred_check
          %p7535 = pneg %p334
        $region102: #{tpu_custom_call.1} parent=99 // pred_check_branch
          %7537 = sbr.rel (%p7535) target = $region104
        $region103: #{tpu_custom_call.1} parent=99 // pred_region
          %s7538 = sand.u32 %s319, 1
          %s7539 = scalar_lea.sflag [#allocation6], %s7538
          %s7540 = sand.u32 %s319, 1
          %s7541 = smul.addr %s7540, 128
          %s7542 = scalar_lea.vmem [#allocation13], %s7541
          %7543 = dma.done %s7539, 2048
        $region104: #{tpu_custom_call.1} parent=99 // pred_fallthru
          _
      $region100: #{tpu_custom_call.1} parent=5 // pred_fallthru
        _
    $region6: #{tpu_custom_call.1} parent=1 // loop_footer
      %s31 = sadd.s32 1, %s27
    $region7: #{tpu_custom_call.1} parent=1 // loop_footer_branch
      %26 = sbr.rel target = $region3
    $region8: #{tpu_custom_call.1} parent=1 // loop_exit
      _
    %7544 = vsyncpa [#allocation5], 1
    %s7545 = scalar_lea.sflag [#allocation5], 1
    %7546 = vsyncpa %s7545, 1
    %7547 = vsyncpa [#allocation8], 1
    %7548 = vsyncpa [#allocation11], 1
    %7549 = vsyncpa [#allocation6], 1
    %s7550 = scalar_lea.sflag [#allocation6], 1
    %7551 = vsyncpa %s7550, 1

</llo_original>
